<compile_context>
chip_gen: v7x
topology: tpu7x:2x2x1
jax: 0.10.0
libtpu: 0.0.40
codegen_flags: <defaults>
</compile_context>

<pallas_src>
import functools

import jax
import jax.numpy as jnp
import numpy as np
from jax.experimental import pallas as pl
from jax.experimental.pallas import tpu as pltpu


def _auto_compute_dtype():
    """bf16 feature-map math only on chips with bf16 VPU/EUP (v6e / v7x)."""
    try:
        kind = jax.devices()[0].device_kind.lower()
    except Exception:
        return jnp.float32
    if any(s in kind for s in ("v6", "v7", "7x")):
        return jnp.bfloat16
    return jnp.float32


def _uni_match_rnn_kernel(
        hp_ref, hq_ref, mask_ref,
        wq_w_ref, wq_b_ref, wp_w_ref, wp_b_ref, wr_w_ref, wr_b_ref,
        wg_w_ref, wg_b_ref,          # attention score head (H -> 1); bias lives in SMEM
        gate_w_ref, gate_b_ref,      # gated-attention linear (Dz -> Dz)
        lstm_w_ref, lstm_b_ref,      # fused LSTM weights ((Dz+H) -> 4H), bias = b_ih + b_hh
        hr_out_ref, alpha_out_ref, gate_out_ref,
        wq_hq_ref, wp_hp_ref,        # VMEM scratch in the compute dtype
        *, hidden_size, compute_dtype):
    H = hidden_size
    cdt = compute_dtype
    T, BB, Dp = hp_ref.shape
    _, Q, Dq = hq_ref.shape

    # ---- hoisted precompute (Hq / Hp projections are loop-invariant) ----
    wq = (jnp.dot(hq_ref[...].reshape(BB * Q, Dq), wq_w_ref[...],
                  preferred_element_type=jnp.float32) + wq_b_ref[...])
    wq_hq_ref[...] = wq.reshape(BB, Q, H).astype(cdt)

    wp = (jnp.dot(hp_ref[...].reshape(T * BB, Dp), wp_w_ref[...],
                  preferred_element_type=jnp.float32) + wp_b_ref[...])
    wp_hp_ref[...] = wp.reshape(T, BB, H).astype(cdt)

    # small loop-invariant values (fori_loop body is traced once, so these are hoisted)
    mask = mask_ref[...].astype(jnp.float32)            # (BB, Q)
    wg_row = wg_w_ref[...].astype(cdt)                  # (1, H)
    bg = wg_b_ref[0, 0]                                 # scalar, read from SMEM
    wr_b = wr_b_ref[...]
    gate_b = gate_b_ref[...]
    lstm_b = lstm_b_ref[...]

    def step(t, carry):
        h, c = carry                                    # (BB, H) f32 each

        # ---- MatchRNNAttention ----
        wr_hr = (jnp.dot(h, wr_w_ref[...], preferred_element_type=jnp.float32)
                 + wr_b).astype(cdt)                    # (BB, H)
        g = jnp.tanh(wq_hq_ref[...]
                     + wp_hp_ref[t][:, None, :]
                     + wr_hr[:, None, :])               # (BB, Q, H) in compute dtype
        # score = G . wg + bg  (VPU mul + lane reduce; result back in f32 before softmax)
        sc = jnp.sum(g * wg_row[None, :, :], axis=-1).astype(jnp.float32) + bg   # (BB, Q)

        # masked_softmax(sc, mask, dim=1) -- keeps the "max includes masked zeros" quirk
        x = sc * mask
        ex = jnp.exp(x - jnp.max(x, axis=1, keepdims=True)) * mask
        alpha = ex / (jnp.sum(ex, axis=1, keepdims=True) + 1e-6)                 # (BB, Q)
        alpha_out_ref[t] = alpha

        # question_alpha = bmm(alpha, Hq)   (kept on the VPU; f32)
        ctx = jnp.sum(alpha[:, :, None] * hq_ref[...], axis=1)                   # (BB, Dq)

        cur_z = jnp.concatenate([hp_ref[t], ctx], axis=-1)                       # (BB, Dz)

        # gated attention
        gate = jax.nn.sigmoid(
            jnp.dot(cur_z, gate_w_ref[...], preferred_element_type=jnp.float32) + gate_b)
        gate_out_ref[t] = gate
        cur_z = gate * cur_z

        # fused LSTMCell: one (BB, Dz+H) @ (Dz+H, 4H) dot, gate order i, f, g, o
        zh = jnp.concatenate([cur_z, h], axis=-1)
        gates = (jnp.dot(zh, lstm_w_ref[...], preferred_element_type=jnp.float32)
                 + lstm_b)                                                       # (BB, 4H)
        i_g = jax.nn.sigmoid(gates[:, 0 * H:1 * H])
        f_g = jax.nn.sigmoid(gates[:, 1 * H:2 * H])
        g_g = jnp.tanh(gates[:, 2 * H:3 * H])
        o_g = jax.nn.sigmoid(gates[:, 3 * H:4 * H])
        c_new = f_g * c + i_g * g_g
        h_new = o_g * jnp.tanh(c_new)
        hr_out_ref[t] = h_new
        return (h_new, c_new)

    h0 = jnp.zeros((BB, H), jnp.float32)
    c0 = jnp.zeros((BB, H), jnp.float32)
    jax.lax.fori_loop(0, T, step, (h0, c0))


def uni_match_rnn(Hp, Hq, Hq_mask, params, *, compute_dtype=None):
    """Hp: (T,B,Dp); Hq: (Q,B,Dq); Hq_mask: (B,Q).
    Returns (Hr (T,B,H), vis_alpha (B,Q,T), vis_gated (B,Dz,T))."""
    T, B, Dp = Hp.shape
    Q, _, Dq = Hq.shape
    H = params["Wr"].shape[0]
    Dz = Dp + Dq
    if compute_dtype is None:
        compute_dtype = _auto_compute_dtype()

    BB = 8 if (B % 8 == 0) else B                       # batch tile (parallel grid axis)
    grid = (B // BB,)

    Hp_f = Hp.astype(jnp.float32)
    Hq_b = jnp.transpose(Hq, (1, 0, 2)).astype(jnp.float32)   # (B, Q, Dq)
    mask = Hq_mask.astype(jnp.float32)

    kern = functools.partial(_uni_match_rnn_kernel,
                             hidden_size=H, compute_dtype=compute_dtype)

    def full_spec(shape):
        return pl.BlockSpec(shape, lambda b: tuple(0 for _ in shape))

    in_specs = [
        pl.BlockSpec((T, BB, Dp), lambda b: (0, b, 0)),                   # Hp
        pl.BlockSpec((BB, Q, Dq), lambda b: (b, 0, 0)),                   # Hq
        pl.BlockSpec((BB, Q), lambda b: (b, 0)),                          # mask
        full_spec((Dq, H)), full_spec((1, H)),                            # Wq, bq
        full_spec((Dp, H)), full_spec((1, H)),                            # Wp, bp
        full_spec((H, H)), full_spec((1, H)),                             # Wr, br
        full_spec((1, H)),                                                # wg
        pl.BlockSpec((1, 1), lambda b: (0, 0),
                     memory_space=pltpu.MemorySpace.SMEM),                # bg (scalar)
        full_spec((Dz, Dz)), full_spec((1, Dz)),                          # Wgate, bgate
        full_spec((Dz + H, 4 * H)), full_spec((1, 4 * H)),                # Wlstm, blstm
    ]
    out_specs = [
        pl.BlockSpec((T, BB, H), lambda b: (0, b, 0)),
        pl.BlockSpec((T, BB, Q), lambda b: (0, b, 0)),
        pl.BlockSpec((T, BB, Dz), lambda b: (0, b, 0)),
    ]
    out_shape = [
        jax.ShapeDtypeStruct((T, B, H), jnp.float32),
        jax.ShapeDtypeStruct((T, B, Q), jnp.float32),
        jax.ShapeDtypeStruct((T, B, Dz), jnp.float32),
    ]
    scratch = [pltpu.VMEM((BB, Q, H), compute_dtype),      # Wq·Hq
               pltpu.VMEM((T, BB, H), compute_dtype)]      # Wp·Hp

    hr, alpha_tbq, gate_tbz = pl.pallas_call(
        kern,
        grid=grid,
        in_specs=in_specs,
        out_specs=out_specs,
        out_shape=out_shape,
        scratch_shapes=scratch,
        compiler_params=pltpu.CompilerParams(
            dimension_semantics=("parallel",),
            vmem_limit_bytes=48 * 1024 * 1024),
    )(Hp_f, Hq_b, mask,
      params["Wq"], params["bq"], params["Wp"], params["bp"],
      params["Wr"], params["br"], params["wg"], params["bg"],
      params["Wgate"], params["bgate"], params["Wlstm"], params["blstm"])

    vis_alpha = jnp.transpose(alpha_tbq, (1, 2, 0))     # (B, Q, T)
    vis_gated = jnp.transpose(gate_tbz, (1, 2, 0))      # (B, Dz, T)
    return hr, vis_alpha, vis_gated


def _reference(Hp, Hq, Hq_mask, p):
    """Pure-JAX f32 reference of the same forward pass (for validation)."""
    T, B, Dp = Hp.shape
    H = p["Wr"].shape[0]
    Hq_b = jnp.transpose(Hq, (1, 0, 2))                                   # (B, Q, Dq)
    wq_hq = jnp.einsum("bqd,dh->bqh", Hq_b, p["Wq"]) + p["bq"]
    wp_hp = jnp.einsum("tbd,dh->tbh", Hp, p["Wp"]) + p["bp"]
    mask = Hq_mask.astype(jnp.float32)

    def step(carry, xs):
        h, c = carry
        cur_hp, cur_wp = xs
        wr_hr = h @ p["Wr"] + p["br"]
        g = jnp.tanh(wq_hq + cur_wp[:, None, :] + wr_hr[:, None, :])
        sc = jnp.einsum("bqh,h->bq", g, p["wg"][0]) + p["bg"][0, 0]
        x = sc * mask
        ex = jnp.exp(x - jnp.max(x, axis=1, keepdims=True)) * mask
        alpha = ex / (jnp.sum(ex, axis=1, keepdims=True) + 1e-6)
        ctx = jnp.einsum("bq,bqd->bd", alpha, Hq_b)
        cur_z = jnp.concatenate([cur_hp, ctx], axis=-1)
        gate = jax.nn.sigmoid(cur_z @ p["Wgate"] + p["bgate"])
        cur_z = gate * cur_z
        zh = jnp.concatenate([cur_z, h], axis=-1)
        gates = zh @ p["Wlstm"] + p["blstm"]
        i_g = jax.nn.sigmoid(gates[:, 0:H])
        f_g = jax.nn.sigmoid(gates[:, H:2 * H])
        g_g = jnp.tanh(gates[:, 2 * H:3 * H])
        o_g = jax.nn.sigmoid(gates[:, 3 * H:4 * H])
        c = f_g * c + i_g * g_g
        h = o_g * jnp.tanh(c)
        return (h, c), (h, alpha, gate)

    h0 = jnp.zeros((B, H), jnp.float32)
    c0 = jnp.zeros((B, H), jnp.float32)
    _, (hs, alphas, gates) = jax.lax.scan(step, (h0, c0), (Hp, wp_hp))
    return hs, jnp.transpose(alphas, (1, 2, 0)), jnp.transpose(gates, (1, 2, 0))


if __name__ == "__main__":
    # Small, TPU-tile-friendly shapes.
    T, B, Q = 64, 8, 128          # context_len, batch, question_len
    Dp = Dq = H = 128             # hp_input_size, hq_input_size, hidden_size
    Dz = Dp + Dq

    key = jax.random.PRNGKey(0)
    ks = jax.random.split(key, 10)

    Hp = jax.random.normal(ks[0], (T, B, Dp), jnp.float32)
    Hq = jax.random.normal(ks[1], (Q, B, Dq), jnp.float32)
    lengths = (jnp.arange(B) * 17 + 40) % Q + 1
    mask = (jnp.arange(Q)[None, :] < lengths[:, None]).astype(jnp.float32)

    def xavier(k, shape):
        fan_in, fan_out = shape[0], shape[-1]
        lim = float(np.sqrt(6.0 / (fan_in + fan_out)))
        return jax.random.uniform(k, shape, jnp.float32, -lim, lim)

    params = {
        # MatchRNNAttention (weights stored pre-transposed as (in, out))
        "Wq": xavier(ks[2], (Dq, H)), "bq": jnp.zeros((1, H), jnp.float32),
        "Wp": xavier(ks[3], (Dp, H)), "bp": jnp.zeros((1, H), jnp.float32),
        "Wr": xavier(ks[4], (H, H)),  "br": jnp.zeros((1, H), jnp.float32),
        "wg": xavier(ks[5], (1, H)),  "bg": jnp.zeros((1, 1), jnp.float32),
        # gated attention linear (Dz -> Dz)
        "Wgate": xavier(ks[6], (Dz, Dz)), "bgate": jnp.zeros((1, Dz), jnp.float32),
        # fused LSTMCell weights: concat([W_ih^T (Dz,4H), W_hh^T (H,4H)], axis=0)
        "Wlstm": jnp.concatenate([xavier(ks[7], (Dz, 4 * H)),
                                  xavier(ks[8], (H, 4 * H))], axis=0),
        "blstm": jnp.zeros((1, 4 * H), jnp.float32),   # b_ih + b_hh (both zero-init)
    }

    # --- tight check: force the f32 compute path against the pure-JAX reference ---
    hr32, al32, gt32 = jax.block_until_ready(
        uni_match_rnn(Hp, Hq, mask, params, compute_dtype=jnp.float32))
    ref = jax.block_until_ready(_reference(Hp, Hq, mask, params))
    ref_hr, ref_al, ref_gt = ref

    assert hr32.shape == (T, B, H) and al32.shape == (B, Q, T) and gt32.shape == (B, Dz, T)
    np.testing.assert_allclose(np.asarray(hr32), np.asarray(ref_hr), rtol=5e-3, atol=5e-4)
    np.testing.assert_allclose(np.asarray(al32), np.asarray(ref_al), rtol=5e-3, atol=5e-4)
    np.testing.assert_allclose(np.asarray(gt32), np.asarray(ref_gt), rtol=5e-3, atol=5e-4)

    # --- optimized path (bf16 feature map on v6e/v7x, f32 elsewhere): loose check ---
    hr, al, gt = jax.block_until_ready(uni_match_rnn(Hp, Hq, mask, params))
    assert hr.shape == (T, B, H) and al.shape == (B, Q, T) and gt.shape == (B, Dz, T)
    assert bool(jnp.all(jnp.isfinite(hr))) and bool(jnp.all(jnp.isfinite(al)))
    np.testing.assert_allclose(np.asarray(hr), np.asarray(ref_hr), rtol=0.2, atol=3e-2)
    np.testing.assert_allclose(np.asarray(al), np.asarray(ref_al), rtol=0.2, atol=3e-2)

    print("KERNEL_OK")
</pallas_src>

<mosaic_0001>
module attributes {stable_mosaic.version = 11 : i64} {
  func.func @_uni_match_rnn_kernel(%arg0: i32, %arg1: memref<64x8x128xf32, #tpu.memory_space<vmem>>, %arg2: memref<8x128x128xf32, #tpu.memory_space<vmem>>, %arg3: memref<8x128xf32, #tpu.memory_space<vmem>>, %arg4: memref<128x128xf32, #tpu.memory_space<vmem>>, %arg5: memref<1x128xf32, #tpu.memory_space<vmem>>, %arg6: memref<128x128xf32, #tpu.memory_space<vmem>>, %arg7: memref<1x128xf32, #tpu.memory_space<vmem>>, %arg8: memref<128x128xf32, #tpu.memory_space<vmem>>, %arg9: memref<1x128xf32, #tpu.memory_space<vmem>>, %arg10: memref<1x128xf32, #tpu.memory_space<vmem>>, %arg11: memref<1x1xf32, #tpu.memory_space<smem>>, %arg12: memref<256x256xf32, #tpu.memory_space<vmem>>, %arg13: memref<1x256xf32, #tpu.memory_space<vmem>>, %arg14: memref<384x512xf32, #tpu.memory_space<vmem>>, %arg15: memref<1x512xf32, #tpu.memory_space<vmem>>, %arg16: memref<64x8x128xf32, #tpu.memory_space<vmem>>, %arg17: memref<64x8x128xf32, #tpu.memory_space<vmem>>, %arg18: memref<64x8x256xf32, #tpu.memory_space<vmem>>, %arg19: memref<8x128x128xf32, #tpu.memory_space<vmem>>, %arg20: memref<64x8x128xf32, #tpu.memory_space<vmem>>) attributes {dimension_semantics = [#tpu.dimension_semantics<parallel>], iteration_bounds = array<i64: 1>, scalar_prefetch = 0 : i64, scratch_operands = 2 : i64, tpu.core_type = #tpu.core_type<tc>, window_params = [{transform_indices = @transform_0, window_bounds = array<i64: 64, 8, 128>}, {transform_indices = @transform_1, window_bounds = array<i64: 8, 128, 128>}, {transform_indices = @transform_2, window_bounds = array<i64: 8, 128>}, {pipeline_mode = #tpu.pipeline_mode<synchronous>, transform_indices = @transform_3, window_bounds = array<i64: 128, 128>}, {pipeline_mode = #tpu.pipeline_mode<synchronous>, transform_indices = @transform_4, window_bounds = array<i64: 1, 128>}, {pipeline_mode = #tpu.pipeline_mode<synchronous>, transform_indices = @transform_5, window_bounds = array<i64: 128, 128>}, {pipeline_mode = #tpu.pipeline_mode<synchronous>, transform_indices = @transform_6, window_bounds = array<i64: 1, 128>}, {pipeline_mode = #tpu.pipeline_mode<synchronous>, transform_indices = @transform_7, window_bounds = array<i64: 128, 128>}, {pipeline_mode = #tpu.pipeline_mode<synchronous>, transform_indices = @transform_8, window_bounds = array<i64: 1, 128>}, {pipeline_mode = #tpu.pipeline_mode<synchronous>, transform_indices = @transform_9, window_bounds = array<i64: 1, 128>}, {transform_indices = @transform_10, window_bounds = array<i64: 1, 1>}, {pipeline_mode = #tpu.pipeline_mode<synchronous>, transform_indices = @transform_11, window_bounds = array<i64: 256, 256>}, {pipeline_mode = #tpu.pipeline_mode<synchronous>, transform_indices = @transform_12, window_bounds = array<i64: 1, 256>}, {pipeline_mode = #tpu.pipeline_mode<synchronous>, transform_indices = @transform_13, window_bounds = array<i64: 384, 512>}, {pipeline_mode = #tpu.pipeline_mode<synchronous>, transform_indices = @transform_14, window_bounds = array<i64: 1, 512>}, {transform_indices = @transform_15, window_bounds = array<i64: 64, 8, 128>}, {transform_indices = @transform_16, window_bounds = array<i64: 64, 8, 128>}, {transform_indices = @transform_17, window_bounds = array<i64: 64, 8, 256>}]} {
    %c0 = arith.constant 0 : index
    %c0_0 = arith.constant 0 : index
    %c0_1 = arith.constant 0 : index
    %0 = vector.load %arg2[%c0, %c0_0, %c0_1] : memref<8x128x128xf32, #tpu.memory_space<vmem>>, vector<8x128x128xf32>
    %1 = vector.shape_cast %0 : vector<8x128x128xf32> to vector<1024x128xf32>
    %c0_2 = arith.constant 0 : index
    %c0_3 = arith.constant 0 : index
    %2 = vector.load %arg4[%c0_2, %c0_3] : memref<128x128xf32, #tpu.memory_space<vmem>>, vector<128x128xf32>
    %cst = arith.constant dense<0.000000e+00> : vector<1024x128xf32>
    %3 = tpu.matmul %1, %2, %cst {dimension_numbers = #tpu.dot_dimension_numbers<[1], [0], [0], [1], [0, 0, 1, 1], [], []>} : vector<1024x128xf32>, vector<128x128xf32>, vector<1024x128xf32> -> vector<1024x128xf32>
    %c0_4 = arith.constant 0 : index
    %c0_5 = arith.constant 0 : index
    %4 = vector.load %arg5[%c0_4, %c0_5] : memref<1x128xf32, #tpu.memory_space<vmem>>, vector<1x128xf32>
    %5 = vector.broadcast %4 : vector<1x128xf32> to vector<1024x128xf32>
    %6 = arith.addf %3, %5 : vector<1024x128xf32>
    %7 = vector.shape_cast %6 : vector<1024x128xf32> to vector<8x128x128xf32>
    %c0_6 = arith.constant 0 : index
    %c0_7 = arith.constant 0 : index
    %c0_8 = arith.constant 0 : index
    %8 = vector.load %arg19[%c0_6, %c0_7, %c0_8] : memref<8x128x128xf32, #tpu.memory_space<vmem>>, vector<8x128x128xf32>
    tpu.vector_store %arg19[%c0_6, %c0_7, %c0_8], %7 {strides = array<i32>} : memref<8x128x128xf32, #tpu.memory_space<vmem>>, vector<8x128x128xf32>,
    %c0_9 = arith.constant 0 : index
    %c0_10 = arith.constant 0 : index
    %c0_11 = arith.constant 0 : index
    %9 = vector.load %arg1[%c0_9, %c0_10, %c0_11] : memref<64x8x128xf32, #tpu.memory_space<vmem>>, vector<64x8x128xf32>
    %10 = vector.shape_cast %9 : vector<64x8x128xf32> to vector<512x128xf32>
    %c0_12 = arith.constant 0 : index
    %c0_13 = arith.constant 0 : index
    %11 = vector.load %arg6[%c0_12, %c0_13] : memref<128x128xf32, #tpu.memory_space<vmem>>, vector<128x128xf32>
    %cst_14 = arith.constant dense<0.000000e+00> : vector<512x128xf32>
    %12 = tpu.matmul %10, %11, %cst_14 {dimension_numbers = #tpu.dot_dimension_numbers<[1], [0], [0], [1], [0, 0, 1, 1], [], []>} : vector<512x128xf32>, vector<128x128xf32>, vector<512x128xf32> -> vector<512x128xf32>
    %c0_15 = arith.constant 0 : index
    %c0_16 = arith.constant 0 : index
    %13 = vector.load %arg7[%c0_15, %c0_16] : memref<1x128xf32, #tpu.memory_space<vmem>>, vector<1x128xf32>
    %14 = vector.broadcast %13 : vector<1x128xf32> to vector<512x128xf32>
    %15 = arith.addf %12, %14 : vector<512x128xf32>
    %16 = vector.shape_cast %15 : vector<512x128xf32> to vector<64x8x128xf32>
    %c0_17 = arith.constant 0 : index
    %c0_18 = arith.constant 0 : index
    %c0_19 = arith.constant 0 : index
    %17 = vector.load %arg20[%c0_17, %c0_18, %c0_19] : memref<64x8x128xf32, #tpu.memory_space<vmem>>, vector<64x8x128xf32>
    tpu.vector_store %arg20[%c0_17, %c0_18, %c0_19], %16 {strides = array<i32>} : memref<64x8x128xf32, #tpu.memory_space<vmem>>, vector<64x8x128xf32>,
    %c0_20 = arith.constant 0 : index
    %c0_21 = arith.constant 0 : index
    %18 = vector.load %arg3[%c0_20, %c0_21] : memref<8x128xf32, #tpu.memory_space<vmem>>, vector<8x128xf32>
    %c0_22 = arith.constant 0 : index
    %c0_23 = arith.constant 0 : index
    %19 = vector.load %arg10[%c0_22, %c0_23] : memref<1x128xf32, #tpu.memory_space<vmem>>, vector<1x128xf32>
    %c0_24 = arith.constant 0 : index
    %c0_25 = arith.constant 0 : index
    %20 = memref.load %arg11[%c0_24, %c0_25] : memref<1x1xf32, #tpu.memory_space<smem>>
    %c0_26 = arith.constant 0 : index
    %c0_27 = arith.constant 0 : index
    %21 = vector.load %arg9[%c0_26, %c0_27] : memref<1x128xf32, #tpu.memory_space<vmem>>, vector<1x128xf32>
    %c0_28 = arith.constant 0 : index
    %c0_29 = arith.constant 0 : index
    %22 = vector.load %arg13[%c0_28, %c0_29] : memref<1x256xf32, #tpu.memory_space<vmem>>, vector<1x256xf32>
    %c0_30 = arith.constant 0 : index
    %c0_31 = arith.constant 0 : index
    %23 = vector.load %arg15[%c0_30, %c0_31] : memref<1x512xf32, #tpu.memory_space<vmem>>, vector<1x512xf32>
    %cst_32 = arith.constant 0.000000e+00 : f32
    %24 = vector.broadcast %cst_32 : f32 to vector<8x128xf32>
    %cst_33 = arith.constant 0.000000e+00 : f32
    %25 = vector.broadcast %cst_33 : f32 to vector<8x128xf32>
    %c0_i32 = arith.constant 0 : i32
    %c64_i32 = arith.constant 64 : i32
    %26 = arith.addi %c0_i32, %c64_i32 : i32
    %c1_i32 = arith.constant 1 : i32
    %27:2 = scf.for %arg21 = %c0_i32 to %26 step %c1_i32 iter_args(%arg22 = %24, %arg23 = %25) -> (vector<8x128xf32>, vector<8x128xf32>)  : i32 {
      %c0_35 = arith.constant 0 : index
      %c0_36 = arith.constant 0 : index
      %28 = vector.load %arg8[%c0_35, %c0_36] : memref<128x128xf32, #tpu.memory_space<vmem>>, vector<128x128xf32>
      %cst_37 = arith.constant dense<0.000000e+00> : vector<8x128xf32>
      %29 = tpu.matmul %arg22, %28, %cst_37 {dimension_numbers = #tpu.dot_dimension_numbers<[1], [0], [0], [1], [0, 0, 1, 1], [], []>} : vector<8x128xf32>, vector<128x128xf32>, vector<8x128xf32> -> vector<8x128xf32>
      %30 = vector.broadcast %21 : vector<1x128xf32> to vector<8x128xf32>
      %31 = arith.addf %29, %30 : vector<8x128xf32>
      %c0_38 = arith.constant 0 : index
      %c0_39 = arith.constant 0 : index
      %c0_40 = arith.constant 0 : index
      %32 = vector.load %arg19[%c0_38, %c0_39, %c0_40] : memref<8x128x128xf32, #tpu.memory_space<vmem>>, vector<8x128x128xf32>
      %33 = arith.index_cast %arg21 : i32 to index
      %c0_41 = arith.constant 0 : index
      %c0_42 = arith.constant 0 : index
      %34 = vector.load %arg20[%33, %c0_41, %c0_42] : memref<64x8x128xf32, #tpu.memory_space<vmem>>, vector<1x8x128xf32>
      %35 = vector.shape_cast %34 : vector<1x8x128xf32> to vector<8x128xf32>
      %36 = vector.shape_cast %35 : vector<8x128xf32> to vector<8x1x128xf32>
      %37 = vector.broadcast %36 : vector<8x1x128xf32> to vector<8x128x128xf32>
      %38 = arith.addf %32, %37 : vector<8x128x128xf32>
      %39 = vector.shape_cast %31 : vector<8x128xf32> to vector<8x1x128xf32>
      %40 = vector.broadcast %39 : vector<8x1x128xf32> to vector<8x128x128xf32>
      %41 = arith.addf %38, %40 : vector<8x128x128xf32>
      %42 = math.tanh %41 : vector<8x128x128xf32>
      %43 = vector.shape_cast %19 : vector<1x128xf32> to vector<1x1x128xf32>
      %44 = vector.broadcast %43 : vector<1x1x128xf32> to vector<8x128x128xf32>
      %45 = arith.mulf %42, %44 : vector<8x128x128xf32>
      %cst_43 = arith.constant dense<0.000000e+00> : vector<8x128xf32>
      %46 = vector.multi_reduction <add>, %45, %cst_43 [2] : vector<8x128x128xf32> to vector<8x128xf32>
      %47 = vector.broadcast %20 : f32 to vector<8x128xf32>
      %48 = arith.addf %46, %47 : vector<8x128xf32>
      %49 = arith.mulf %48, %18 : vector<8x128xf32>
      %cst_44 = arith.constant dense<0xFF800000> : vector<8xf32>
      %50 = vector.multi_reduction <maximumf>, %49, %cst_44 [1] : vector<8x128xf32> to vector<8xf32>
      %51 = vector.shape_cast %50 : vector<8xf32> to vector<8x1xf32>
      %52 = vector.broadcast %51 : vector<8x1xf32> to vector<8x128xf32>
      %53 = arith.subf %49, %52 : vector<8x128xf32>
      %54 = math.exp %53 : vector<8x128xf32>
      %55 = arith.mulf %54, %18 : vector<8x128xf32>
      %cst_45 = arith.constant dense<0.000000e+00> : vector<8xf32>
      %56 = vector.multi_reduction <add>, %55, %cst_45 [1] : vector<8x128xf32> to vector<8xf32>
      %57 = vector.shape_cast %56 : vector<8xf32> to vector<8x1xf32>
      %cst_46 = arith.constant 9.99999997E-7 : f32
      %58 = vector.broadcast %cst_46 : f32 to vector<8x1xf32>
      %59 = arith.addf %57, %58 : vector<8x1xf32>
      %60 = vector.broadcast %59 : vector<8x1xf32> to vector<8x128xf32>
      %61 = arith.divf %55, %60 : vector<8x128xf32>
      %62 = arith.index_cast %arg21 : i32 to index
      %c0_47 = arith.constant 0 : index
      %c0_48 = arith.constant 0 : index
      %63 = vector.load %arg17[%62, %c0_47, %c0_48] : memref<64x8x128xf32, #tpu.memory_space<vmem>>, vector<1x8x128xf32>
      %64 = vector.shape_cast %63 : vector<1x8x128xf32> to vector<8x128xf32>
      %65 = vector.shape_cast %61 : vector<8x128xf32> to vector<1x8x128xf32>
      tpu.vector_store %arg17[%62, %c0_47, %c0_48], %65 {strides = array<i32>} : memref<64x8x128xf32, #tpu.memory_space<vmem>>, vector<1x8x128xf32>,
      %66 = vector.shape_cast %61 : vector<8x128xf32> to vector<8x128x1xf32>
      %c0_49 = arith.constant 0 : index
      %c0_50 = arith.constant 0 : index
      %c0_51 = arith.constant 0 : index
      %67 = vector.load %arg2[%c0_49, %c0_50, %c0_51] : memref<8x128x128xf32, #tpu.memory_space<vmem>>, vector<8x128x128xf32>
      %68 = vector.broadcast %66 : vector<8x128x1xf32> to vector<8x128x128xf32>
      %69 = arith.mulf %68, %67 : vector<8x128x128xf32>
      %cst_52 = arith.constant dense<0.000000e+00> : vector<8x128xf32>
      %70 = vector.multi_reduction <add>, %69, %cst_52 [1] : vector<8x128x128xf32> to vector<8x128xf32>
      %71 = arith.index_cast %arg21 : i32 to index
      %c0_53 = arith.constant 0 : index
      %c0_54 = arith.constant 0 : index
      %72 = vector.load %arg1[%71, %c0_53, %c0_54] : memref<64x8x128xf32, #tpu.memory_space<vmem>>, vector<1x8x128xf32>
      %73 = vector.shape_cast %72 : vector<1x8x128xf32> to vector<8x128xf32>
      %74 = tpu.concatenate %73, %70 in 1 : vector<8x128xf32>, vector<8x128xf32> -> vector<8x256xf32>
      %c0_55 = arith.constant 0 : index
      %c0_56 = arith.constant 0 : index
      %75 = vector.load %arg12[%c0_55, %c0_56] : memref<256x256xf32, #tpu.memory_space<vmem>>, vector<256x256xf32>
      %cst_57 = arith.constant dense<0.000000e+00> : vector<8x256xf32>
      %76 = tpu.matmul %74, %75, %cst_57 {dimension_numbers = #tpu.dot_dimension_numbers<[1], [0], [0], [1], [0, 0, 1, 1], [], []>} : vector<8x256xf32>, vector<256x256xf32>, vector<8x256xf32> -> vector<8x256xf32>
      %77 = vector.broadcast %22 : vector<1x256xf32> to vector<8x256xf32>
      %78 = arith.addf %76, %77 : vector<8x256xf32>
      %79 = arith.negf %78 : vector<8x256xf32>
      %80 = math.exp %79 : vector<8x256xf32>
      %cst_58 = arith.constant 1.000000e+00 : f32
      %81 = vector.broadcast %cst_58 : f32 to vector<8x256xf32>
      %82 = arith.addf %81, %80 : vector<8x256xf32>
      %83 = arith.divf %81, %82 : vector<8x256xf32>
      %84 = arith.index_cast %arg21 : i32 to index
      %c0_59 = arith.constant 0 : index
      %c0_60 = arith.constant 0 : index
      %85 = vector.load %arg18[%84, %c0_59, %c0_60] : memref<64x8x256xf32, #tpu.memory_space<vmem>>, vector<1x8x256xf32>
      %86 = vector.shape_cast %85 : vector<1x8x256xf32> to vector<8x256xf32>
      %87 = vector.shape_cast %83 : vector<8x256xf32> to vector<1x8x256xf32>
      tpu.vector_store %arg18[%84, %c0_59, %c0_60], %87 {strides = array<i32>} : memref<64x8x256xf32, #tpu.memory_space<vmem>>, vector<1x8x256xf32>,
      %88 = arith.mulf %83, %74 : vector<8x256xf32>
      %89 = tpu.concatenate %88, %arg22 in 1 : vector<8x256xf32>, vector<8x128xf32> -> vector<8x384xf32>
      %c0_61 = arith.constant 0 : index
      %c0_62 = arith.constant 0 : index
      %90 = vector.load %arg14[%c0_61, %c0_62] : memref<384x512xf32, #tpu.memory_space<vmem>>, vector<384x512xf32>
      %cst_63 = arith.constant dense<0.000000e+00> : vector<8x512xf32>
      %91 = tpu.matmul %89, %90, %cst_63 {dimension_numbers = #tpu.dot_dimension_numbers<[1], [0], [0], [1], [0, 0, 1, 1], [], []>} : vector<8x384xf32>, vector<384x512xf32>, vector<8x512xf32> -> vector<8x512xf32>
      %92 = vector.broadcast %23 : vector<1x512xf32> to vector<8x512xf32>
      %93 = arith.addf %91, %92 : vector<8x512xf32>
      %94 = vector.extract_strided_slice %93 {offsets = [0, 0], sizes = [8, 128], strides = [1, 1]} : vector<8x512xf32> to vector<8x128xf32>
      %95 = arith.negf %94 : vector<8x128xf32>
      %96 = math.exp %95 : vector<8x128xf32>
      %cst_64 = arith.constant 1.000000e+00 : f32
      %97 = vector.broadcast %cst_64 : f32 to vector<8x128xf32>
      %98 = arith.addf %97, %96 : vector<8x128xf32>
      %99 = arith.divf %97, %98 : vector<8x128xf32>
      %100 = vector.extract_strided_slice %93 {offsets = [0, 128], sizes = [8, 128], strides = [1, 1]} : vector<8x512xf32> to vector<8x128xf32>
      %101 = arith.negf %100 : vector<8x128xf32>
      %102 = math.exp %101 : vector<8x128xf32>
      %cst_65 = arith.constant 1.000000e+00 : f32
      %103 = vector.broadcast %cst_65 : f32 to vector<8x128xf32>
      %104 = arith.addf %103, %102 : vector<8x128xf32>
      %105 = arith.divf %103, %104 : vector<8x128xf32>
      %106 = vector.extract_strided_slice %93 {offsets = [0, 256], sizes = [8, 128], strides = [1, 1]} : vector<8x512xf32> to vector<8x128xf32>
      %107 = math.tanh %106 : vector<8x128xf32>
      %108 = vector.extract_strided_slice %93 {offsets = [0, 384], sizes = [8, 128], strides = [1, 1]} : vector<8x512xf32> to vector<8x128xf32>
      %109 = arith.negf %108 : vector<8x128xf32>
      %110 = math.exp %109 : vector<8x128xf32>
      %cst_66 = arith.constant 1.000000e+00 : f32
      %111 = vector.broadcast %cst_66 : f32 to vector<8x128xf32>
      %112 = arith.addf %111, %110 : vector<8x128xf32>
      %113 = arith.divf %111, %112 : vector<8x128xf32>
      %114 = arith.mulf %105, %arg23 : vector<8x128xf32>
      %115 = arith.mulf %99, %107 : vector<8x128xf32>
      %116 = arith.addf %114, %115 : vector<8x128xf32>
      %117 = math.tanh %116 : vector<8x128xf32>
      %118 = arith.mulf %113, %117 : vector<8x128xf32>
      %119 = arith.index_cast %arg21 : i32 to index
      %c0_67 = arith.constant 0 : index
      %c0_68 = arith.constant 0 : index
      %120 = vector.load %arg16[%119, %c0_67, %c0_68] : memref<64x8x128xf32, #tpu.memory_space<vmem>>, vector<1x8x128xf32>
      %121 = vector.shape_cast %120 : vector<1x8x128xf32> to vector<8x128xf32>
      %122 = vector.shape_cast %118 : vector<8x128xf32> to vector<1x8x128xf32>
      tpu.vector_store %arg16[%119, %c0_67, %c0_68], %122 {strides = array<i32>} : memref<64x8x128xf32, #tpu.memory_space<vmem>>, vector<1x8x128xf32>,
      scf.yield %118, %116 : vector<8x128xf32>, vector<8x128xf32>
    }
    %c64_i32_34 = arith.constant 64 : i32
    return
  }
  func.func @transform_0(%arg0: i32) -> (i32, i32, i32) {
    %c0_i32 = arith.constant 0 : i32
    %c0_i32_0 = arith.constant 0 : i32
    %c0_i32_1 = arith.constant 0 : i32
    return %c0_i32, %arg0, %c0_i32_0 : i32, i32, i32
  }
  func.func @transform_1(%arg0: i32) -> (i32, i32, i32) {
    %c0_i32 = arith.constant 0 : i32
    %c0_i32_0 = arith.constant 0 : i32
    %c0_i32_1 = arith.constant 0 : i32
    return %arg0, %c0_i32, %c0_i32_0 : i32, i32, i32
  }
  func.func @transform_2(%arg0: i32) -> (i32, i32) {
    %c0_i32 = arith.constant 0 : i32
    %c0_i32_0 = arith.constant 0 : i32
    return %arg0, %c0_i32 : i32, i32
  }
  func.func @transform_3(%arg0: i32) -> (i32, i32) {
    %c0_i32 = arith.constant 0 : i32
    %c0_i32_0 = arith.constant 0 : i32
    %c0_i32_1 = arith.constant 0 : i32
    return %c0_i32, %c0_i32_0 : i32, i32
  }
  func.func @transform_4(%arg0: i32) -> (i32, i32) {
    %c0_i32 = arith.constant 0 : i32
    %c0_i32_0 = arith.constant 0 : i32
    %c0_i32_1 = arith.constant 0 : i32
    return %c0_i32, %c0_i32_0 : i32, i32
  }
  func.func @transform_5(%arg0: i32) -> (i32, i32) {
    %c0_i32 = arith.constant 0 : i32
    %c0_i32_0 = arith.constant 0 : i32
    %c0_i32_1 = arith.constant 0 : i32
    return %c0_i32, %c0_i32_0 : i32, i32
  }
  func.func @transform_6(%arg0: i32) -> (i32, i32) {
    %c0_i32 = arith.constant 0 : i32
    %c0_i32_0 = arith.constant 0 : i32
    %c0_i32_1 = arith.constant 0 : i32
    return %c0_i32, %c0_i32_0 : i32, i32
  }
  func.func @transform_7(%arg0: i32) -> (i32, i32) {
    %c0_i32 = arith.constant 0 : i32
    %c0_i32_0 = arith.constant 0 : i32
    %c0_i32_1 = arith.constant 0 : i32
    return %c0_i32, %c0_i32_0 : i32, i32
  }
  func.func @transform_8(%arg0: i32) -> (i32, i32) {
    %c0_i32 = arith.constant 0 : i32
    %c0_i32_0 = arith.constant 0 : i32
    %c0_i32_1 = arith.constant 0 : i32
    return %c0_i32, %c0_i32_0 : i32, i32
  }
  func.func @transform_9(%arg0: i32) -> (i32, i32) {
    %c0_i32 = arith.constant 0 : i32
    %c0_i32_0 = arith.constant 0 : i32
    %c0_i32_1 = arith.constant 0 : i32
    return %c0_i32, %c0_i32_0 : i32, i32
  }
  func.func @transform_10(%arg0: i32) -> (i32, i32) {
    %c0_i32 = arith.constant 0 : i32
    %c0_i32_0 = arith.constant 0 : i32
    %c0_i32_1 = arith.constant 0 : i32
    return %c0_i32, %c0_i32_0 : i32, i32
  }
  func.func @transform_11(%arg0: i32) -> (i32, i32) {
    %c0_i32 = arith.constant 0 : i32
    %c0_i32_0 = arith.constant 0 : i32
    %c0_i32_1 = arith.constant 0 : i32
    return %c0_i32, %c0_i32_0 : i32, i32
  }
  func.func @transform_12(%arg0: i32) -> (i32, i32) {
    %c0_i32 = arith.constant 0 : i32
    %c0_i32_0 = arith.constant 0 : i32
    %c0_i32_1 = arith.constant 0 : i32
    return %c0_i32, %c0_i32_0 : i32, i32
  }
  func.func @transform_13(%arg0: i32) -> (i32, i32) {
    %c0_i32 = arith.constant 0 : i32
    %c0_i32_0 = arith.constant 0 : i32
    %c0_i32_1 = arith.constant 0 : i32
    return %c0_i32, %c0_i32_0 : i32, i32
  }
  func.func @transform_14(%arg0: i32) -> (i32, i32) {
    %c0_i32 = arith.constant 0 : i32
    %c0_i32_0 = arith.constant 0 : i32
    %c0_i32_1 = arith.constant 0 : i32
    return %c0_i32, %c0_i32_0 : i32, i32
  }
  func.func @transform_15(%arg0: i32) -> (i32, i32, i32) {
    %c0_i32 = arith.constant 0 : i32
    %c0_i32_0 = arith.constant 0 : i32
    %c0_i32_1 = arith.constant 0 : i32
    return %c0_i32, %arg0, %c0_i32_0 : i32, i32, i32
  }
  func.func @transform_16(%arg0: i32) -> (i32, i32, i32) {
    %c0_i32 = arith.constant 0 : i32
    %c0_i32_0 = arith.constant 0 : i32
    %c0_i32_1 = arith.constant 0 : i32
    return %c0_i32, %arg0, %c0_i32_0 : i32, i32, i32
  }
  func.func @transform_17(%arg0: i32) -> (i32, i32, i32) {
    %c0_i32 = arith.constant 0 : i32
    %c0_i32_0 = arith.constant 0 : i32
    %c0_i32_1 = arith.constant 0 : i32
    return %c0_i32, %arg0, %c0_i32_0 : i32, i32, i32
  }
}

</mosaic_0001>

<llo_original>
// kernel: tpu_custom_call.1
$region0: #{tpu_custom_call.1}
  #allocation0 [shape = 'u32[]', space=smem, size = 0x4, offset = 0x4, fixed_abs, tag = 'smem constant byte address 0x4 - core index']
  #allocation1 [shape = 'u32[144,128]{1,0:T(1,128)}', space=vmem, size = 0x12000, scoped, tag = 'internal scratch']
  #allocation2 [shape = 'f32[8,128,128]{2,1,0:T(8,128)}', space=vmem, size = 0x80000, scoped, tag = 'scratch operand']
  #allocation3 [shape = 'f32[64,8,128]{2,1,0:T(8,128)}', space=vmem, size = 0x40000, scoped, tag = 'scratch operand']
  #allocation4 [shape = 'f32[1,1]{1,0:T(1,128)S(6)}', space=smem, size = 0x200, scoped, tag = 'scoped memory for tpu_custom_call.1']
  %s0 = inlined_call_operand.hbm [shape: f32[64,8,128], index: 0, kind: input, shape index: {}]
  %s1 = inlined_call_operand.hbm [shape: f32[8,128,128], index: 1, kind: input, shape index: {}]
  %s2 = inlined_call_operand.vmem [shape: f32[8,128], index: 2, kind: input, shape index: {}]
  %s3 = inlined_call_operand.hbm [shape: f32[128,128], index: 3, kind: input, shape index: {}]
  %s4 = inlined_call_operand.vmem [shape: f32[1,128], index: 4, kind: input, shape index: {}]
  %s5 = inlined_call_operand.hbm [shape: f32[128,128], index: 5, kind: input, shape index: {}]
  %s6 = inlined_call_operand.vmem [shape: f32[1,128], index: 6, kind: input, shape index: {}]
  %s7 = inlined_call_operand.hbm [shape: f32[128,128], index: 7, kind: input, shape index: {}]
  %s8 = inlined_call_operand.vmem [shape: f32[1,128], index: 8, kind: input, shape index: {}]
  %s9 = inlined_call_operand.vmem [shape: f32[1,128], index: 9, kind: input, shape index: {}]
  %s10 = inlined_call_operand.<no memory space> [shape: f32[1,1], index: 10, kind: input, shape index: {}]
  %s11 = inlined_call_operand.hbm [shape: f32[256,256], index: 11, kind: input, shape index: {}]
  %s12 = inlined_call_operand.vmem [shape: f32[1,256], index: 12, kind: input, shape index: {}]
  %s13 = inlined_call_operand.hbm [shape: f32[384,512], index: 13, kind: input, shape index: {}]
  %s14 = inlined_call_operand.vmem [shape: f32[1,512], index: 14, kind: input, shape index: {}]
  %s15 = inlined_call_operand.hbm [shape: f32[64,8,128], index: 15, kind: output, shape index: {0}]
  %s16 = inlined_call_operand.hbm [shape: f32[64,8,128], index: 16, kind: output, shape index: {1}]
  %s17 = inlined_call_operand.hbm [shape: f32[64,8,256], index: 17, kind: output, shape index: {2}]
  %18 = xla_tuple %s15, %s16, %s17
  %s19 = sld [smem:[#allocation0]]
  $region121: #{tpu_custom_call.1} parent=0
    _
  %s21 = ssub.s32 1, %s19
  %s22 = scalar_select 0, %s21, %s19
  %23 = sst [smem:[#allocation4]] %s10
  $region1: #{tpu_custom_call.1} parent=0
    #allocation5 [shape = 'u8[262144]{0}', space=vmem, size = 0x40000, scoped, tag = 'input window, operand 0, single buffered']
    #allocation6 [shape = 's32[1]{0}', space=sflag, size = 0x4, scoped, tag = 'scoped memory for tpu_custom_call.1']
    #allocation7 [shape = 's32[1]{0}', space=sflag, size = 0x4, scoped, tag = 'scoped memory for tpu_custom_call.1']
    #allocation8 [shape = 'u8[524288]{0}', space=vmem, size = 0x80000, scoped, tag = 'input window, operand 1, single buffered']
    #allocation9 [shape = 's32[1]{0}', space=sflag, size = 0x4, scoped, tag = 'scoped memory for tpu_custom_call.1']
    #allocation10 [shape = 'u8[65536]{0}', space=vmem, size = 0x10000, scoped, tag = 'input window, operand 3, single buffered']
    #allocation11 [shape = 'u8[65536]{0}', space=vmem, size = 0x10000, scoped, tag = 'input window, operand 5, single buffered']
    #allocation12 [shape = 's32[1]{0}', space=sflag, size = 0x4, scoped, tag = 'scoped memory for tpu_custom_call.1']
    #allocation13 [shape = 'u8[65536]{0}', space=vmem, size = 0x10000, scoped, tag = 'input window, operand 7, single buffered']
    #allocation14 [shape = 'u8[262144]{0}', space=vmem, size = 0x40000, scoped, tag = 'input window, operand 11, single buffered']
    #allocation15 [shape = 's32[1]{0}', space=sflag, size = 0x4, scoped, tag = 'scoped memory for tpu_custom_call.1']
    #allocation16 [shape = 'u8[786432]{0}', space=vmem, size = 0xc0000, scoped, tag = 'input window, operand 13, single buffered']
    #allocation17 [shape = 'u8[262144]{0}', space=vmem, size = 0x40000, scoped, tag = 'output window, operand 0, single buffered']
    #allocation18 [shape = 'u8[262144]{0}', space=vmem, size = 0x40000, scoped, tag = 'output window, operand 1, single buffered']
    #allocation19 [shape = 's32[1]{0}', space=sflag, size = 0x4, scoped, tag = 'scoped memory for tpu_custom_call.1']
    #allocation20 [shape = 'u8[524288]{0}', space=vmem, size = 0x80000, scoped, tag = 'output window, operand 2, single buffered']
    %24 = vsyncpa [#allocation6], 0
    %25 = vsyncpa [#allocation9], 0
    %26 = vsyncpa [#allocation12], 0
    %27 = vsyncpa [#allocation15], 0
    %28 = vsyncpa [#allocation7], 0
    %29 = vsyncpa [#allocation19], 0
    // Predicated region
    $region2: #{tpu_custom_call.1} parent=1 // pred_check
      _
    $region3: #{tpu_custom_call.1} parent=1 // pred_check_branch
      %31 = sbr.rel (0) target = $region5
    $region4: #{tpu_custom_call.1} parent=1 // pred_region
      %s33 = ssub.s32 8192, 8192
      %34 = vsyncadd [#allocation6], %s33
      %s35 = sshll.u32 [#allocation5], 4
      %s36 = int_to_ptr.vmem [resolvable:$true] %s35
      %41 = dma.hbm_to_vmem [thread:$0]  %s0, 8192, %s36, [#allocation6], 128, 128, 8
    $region5: #{tpu_custom_call.1} parent=1 // pred_fallthru
      _
    // Predicated region
    $region6: #{tpu_custom_call.1} parent=1 // pred_check
      _
    $region7: #{tpu_custom_call.1} parent=1 // pred_check_branch
      %43 = sbr.rel (0) target = $region9
    $region8: #{tpu_custom_call.1} parent=1 // pred_region
      %s45 = ssub.s32 16384, 16384
      %46 = vsyncadd [#allocation9], %s45
      %s47 = sshll.u32 [#allocation8], 4
      %s48 = int_to_ptr.vmem [resolvable:$true] %s47
      %53 = dma.hbm_to_vmem [thread:$0]  %s1, 16384, %s48, [#allocation9], 128, 128, 8
    $region9: #{tpu_custom_call.1} parent=1 // pred_fallthru
      _
    // Predicated region
    $region10: #{tpu_custom_call.1} parent=1 // pred_check
      _
    $region11: #{tpu_custom_call.1} parent=1 // pred_check_branch
      %55 = sbr.rel (0) target = $region13
    $region12: #{tpu_custom_call.1} parent=1 // pred_region
      _
    $region13: #{tpu_custom_call.1} parent=1 // pred_fallthru
      _
    // Predicated region
    $region14: #{tpu_custom_call.1} parent=1 // pred_check
      _
    $region15: #{tpu_custom_call.1} parent=1 // pred_check_branch
      %57 = sbr.rel (0) target = $region17
    $region16: #{tpu_custom_call.1} parent=1 // pred_region
      %s59 = ssub.s32 2048, 2048
      %60 = vsyncadd [#allocation9], %s59
      %s61 = sshll.u32 [#allocation10], 4
      %s62 = int_to_ptr.vmem [resolvable:$true] %s61
      %67 = dma.hbm_to_vmem [thread:$0]  %s3, 2048, %s62, [#allocation9], 128, 128, 8
    $region17: #{tpu_custom_call.1} parent=1 // pred_fallthru
      _
    // Predicated region
    $region18: #{tpu_custom_call.1} parent=1 // pred_check
      _
    $region19: #{tpu_custom_call.1} parent=1 // pred_check_branch
      %69 = sbr.rel (0) target = $region21
    $region20: #{tpu_custom_call.1} parent=1 // pred_region
      _
    $region21: #{tpu_custom_call.1} parent=1 // pred_fallthru
      _
    // Predicated region
    $region22: #{tpu_custom_call.1} parent=1 // pred_check
      _
    $region23: #{tpu_custom_call.1} parent=1 // pred_check_branch
      %71 = sbr.rel (0) target = $region25
    $region24: #{tpu_custom_call.1} parent=1 // pred_region
      %s73 = ssub.s32 2048, 2048
      %74 = vsyncadd [#allocation12], %s73
      %s75 = sshll.u32 [#allocation11], 4
      %s76 = int_to_ptr.vmem [resolvable:$true] %s75
      %81 = dma.hbm_to_vmem [thread:$0]  %s5, 2048, %s76, [#allocation12], 128, 128, 8
    $region25: #{tpu_custom_call.1} parent=1 // pred_fallthru
      _
    // Predicated region
    $region26: #{tpu_custom_call.1} parent=1 // pred_check
      _
    $region27: #{tpu_custom_call.1} parent=1 // pred_check_branch
      %83 = sbr.rel (0) target = $region29
    $region28: #{tpu_custom_call.1} parent=1 // pred_region
      _
    $region29: #{tpu_custom_call.1} parent=1 // pred_fallthru
      _
    // Predicated region
    $region30: #{tpu_custom_call.1} parent=1 // pred_check
      _
    $region31: #{tpu_custom_call.1} parent=1 // pred_check_branch
      %85 = sbr.rel (0) target = $region33
    $region32: #{tpu_custom_call.1} parent=1 // pred_region
      %s87 = ssub.s32 2048, 2048
      %88 = vsyncadd [#allocation12], %s87
      %s89 = sshll.u32 [#allocation13], 4
      %s90 = int_to_ptr.vmem [resolvable:$true] %s89
      %95 = dma.hbm_to_vmem [thread:$0]  %s7, 2048, %s90, [#allocation12], 128, 128, 8
    $region33: #{tpu_custom_call.1} parent=1 // pred_fallthru
      _
    // Predicated region
    $region34: #{tpu_custom_call.1} parent=1 // pred_check
      _
    $region35: #{tpu_custom_call.1} parent=1 // pred_check_branch
      %97 = sbr.rel (0) target = $region37
    $region36: #{tpu_custom_call.1} parent=1 // pred_region
      _
    $region37: #{tpu_custom_call.1} parent=1 // pred_fallthru
      _
    // Predicated region
    $region38: #{tpu_custom_call.1} parent=1 // pred_check
      _
    $region39: #{tpu_custom_call.1} parent=1 // pred_check_branch
      %99 = sbr.rel (0) target = $region41
    $region40: #{tpu_custom_call.1} parent=1 // pred_region
      _
    $region41: #{tpu_custom_call.1} parent=1 // pred_fallthru
      _
    // Predicated region
    $region42: #{tpu_custom_call.1} parent=1 // pred_check
      _
    $region43: #{tpu_custom_call.1} parent=1 // pred_check_branch
      %101 = sbr.rel (0) target = $region45
    $region44: #{tpu_custom_call.1} parent=1 // pred_region
      _
    $region45: #{tpu_custom_call.1} parent=1 // pred_fallthru
      _
    // Predicated region
    $region46: #{tpu_custom_call.1} parent=1 // pred_check
      _
    $region47: #{tpu_custom_call.1} parent=1 // pred_check_branch
      %103 = sbr.rel (0) target = $region49
    $region48: #{tpu_custom_call.1} parent=1 // pred_region
      %s105 = ssub.s32 8192, 8192
      %106 = vsyncadd [#allocation15], %s105
      %s107 = sshll.u32 [#allocation14], 4
      %s108 = int_to_ptr.vmem [resolvable:$true] %s107
      %113 = dma.hbm_to_vmem [thread:$0]  %s11, 8192, %s108, [#allocation15], 256, 256, 16
    $region49: #{tpu_custom_call.1} parent=1 // pred_fallthru
      _
    // Predicated region
    $region50: #{tpu_custom_call.1} parent=1 // pred_check
      _
    $region51: #{tpu_custom_call.1} parent=1 // pred_check_branch
      %115 = sbr.rel (0) target = $region53
    $region52: #{tpu_custom_call.1} parent=1 // pred_region
      _
    $region53: #{tpu_custom_call.1} parent=1 // pred_fallthru
      _
    // Predicated region
    $region54: #{tpu_custom_call.1} parent=1 // pred_check
      _
    $region55: #{tpu_custom_call.1} parent=1 // pred_check_branch
      %117 = sbr.rel (0) target = $region57
    $region56: #{tpu_custom_call.1} parent=1 // pred_region
      %s119 = ssub.s32 24576, 24576
      %120 = vsyncadd [#allocation15], %s119
      %s121 = sshll.u32 [#allocation16], 4
      %s122 = int_to_ptr.vmem [resolvable:$true] %s121
      %127 = dma.hbm_to_vmem [thread:$0]  %s13, 24576, %s122, [#allocation15], 512, 512, 32
    $region57: #{tpu_custom_call.1} parent=1 // pred_fallthru
      _
    // Predicated region
    $region58: #{tpu_custom_call.1} parent=1 // pred_check
      _
    $region59: #{tpu_custom_call.1} parent=1 // pred_check_branch
      %129 = sbr.rel (0) target = $region61
    $region60: #{tpu_custom_call.1} parent=1 // pred_region
      _
    $region61: #{tpu_custom_call.1} parent=1 // pred_fallthru
      _
    // Predicated region
    $region62: #{tpu_custom_call.1} parent=1 // pred_check
      _
    $region63: #{tpu_custom_call.1} parent=1 // pred_check_branch
      %131 = sbr.rel (0) target = $region65
    $region64: #{tpu_custom_call.1} parent=1 // pred_region
      %132 = dma.done [#allocation6], 8192
    $region65: #{tpu_custom_call.1} parent=1 // pred_fallthru
      _
    // Predicated region
    $region66: #{tpu_custom_call.1} parent=1 // pred_check
      _
    $region67: #{tpu_custom_call.1} parent=1 // pred_check_branch
      %134 = sbr.rel (0) target = $region69
    $region68: #{tpu_custom_call.1} parent=1 // pred_region
      %135 = dma.done [#allocation9], 16384
    $region69: #{tpu_custom_call.1} parent=1 // pred_fallthru
      _
    // Predicated region
    $region70: #{tpu_custom_call.1} parent=1 // pred_check
      _
    $region71: #{tpu_custom_call.1} parent=1 // pred_check_branch
      %137 = sbr.rel (0) target = $region73
    $region72: #{tpu_custom_call.1} parent=1 // pred_region
      %138 = dma.done [#allocation9], 2048
    $region73: #{tpu_custom_call.1} parent=1 // pred_fallthru
      _
    // Predicated region
    $region74: #{tpu_custom_call.1} parent=1 // pred_check
      _
    $region75: #{tpu_custom_call.1} parent=1 // pred_check_branch
      %140 = sbr.rel (0) target = $region77
    $region76: #{tpu_custom_call.1} parent=1 // pred_region
      %141 = dma.done [#allocation12], 2048
    $region77: #{tpu_custom_call.1} parent=1 // pred_fallthru
      _
    // Predicated region
    $region78: #{tpu_custom_call.1} parent=1 // pred_check
      _
    $region79: #{tpu_custom_call.1} parent=1 // pred_check_branch
      %143 = sbr.rel (0) target = $region81
    $region80: #{tpu_custom_call.1} parent=1 // pred_region
      %144 = dma.done [#allocation12], 2048
    $region81: #{tpu_custom_call.1} parent=1 // pred_fallthru
      _
    // Predicated region
    $region82: #{tpu_custom_call.1} parent=1 // pred_check
      _
    $region83: #{tpu_custom_call.1} parent=1 // pred_check_branch
      %146 = sbr.rel (0) target = $region85
    $region84: #{tpu_custom_call.1} parent=1 // pred_region
      %147 = dma.done [#allocation15], 8192
    $region85: #{tpu_custom_call.1} parent=1 // pred_fallthru
      _
    // Predicated region
    $region86: #{tpu_custom_call.1} parent=1 // pred_check
      _
    $region87: #{tpu_custom_call.1} parent=1 // pred_check_branch
      %149 = sbr.rel (0) target = $region89
    $region88: #{tpu_custom_call.1} parent=1 // pred_region
      %150 = dma.done [#allocation15], 24576
    $region89: #{tpu_custom_call.1} parent=1 // pred_fallthru
      _
    %v151 = vld [vmem:[#allocation8] sm:$0xff]
    %v152 = vld [vmem:[#allocation8 + $0x8] sm:$0xff]
    %v153 = vld [vmem:[#allocation8 + $0x10] sm:$0xff]
    %v154 = vld [vmem:[#allocation8 + $0x18] sm:$0xff]
    %v155 = vld [vmem:[#allocation8 + $0x20] sm:$0xff]
    %v156 = vld [vmem:[#allocation8 + $0x28] sm:$0xff]
    %v157 = vld [vmem:[#allocation8 + $0x30] sm:$0xff]
    %v158 = vld [vmem:[#allocation8 + $0x38] sm:$0xff]
    %v159 = vld [vmem:[#allocation8 + $0x40] sm:$0xff]
    %v160 = vld [vmem:[#allocation8 + $0x48] sm:$0xff]
    %v161 = vld [vmem:[#allocation8 + $0x50] sm:$0xff]
    %v162 = vld [vmem:[#allocation8 + $0x58] sm:$0xff]
    %v163 = vld [vmem:[#allocation8 + $0x60] sm:$0xff]
    %v164 = vld [vmem:[#allocation8 + $0x68] sm:$0xff]
    %v165 = vld [vmem:[#allocation8 + $0x70] sm:$0xff]
    %v166 = vld [vmem:[#allocation8 + $0x78] sm:$0xff]
    %v167 = vld [vmem:[#allocation8 + $0x80] sm:$0xff]
    %v168 = vld [vmem:[#allocation8 + $0x88] sm:$0xff]
    %v169 = vld [vmem:[#allocation8 + $0x90] sm:$0xff]
    %v170 = vld [vmem:[#allocation8 + $0x98] sm:$0xff]
    %v171 = vld [vmem:[#allocation8 + $0xa0] sm:$0xff]
    %v172 = vld [vmem:[#allocation8 + $0xa8] sm:$0xff]
    %v173 = vld [vmem:[#allocation8 + $0xb0] sm:$0xff]
    %v174 = vld [vmem:[#allocation8 + $0xb8] sm:$0xff]
    %v175 = vld [vmem:[#allocation8 + $0xc0] sm:$0xff]
    %v176 = vld [vmem:[#allocation8 + $0xc8] sm:$0xff]
    %v177 = vld [vmem:[#allocation8 + $0xd0] sm:$0xff]
    %v178 = vld [vmem:[#allocation8 + $0xd8] sm:$0xff]
    %v179 = vld [vmem:[#allocation8 + $0xe0] sm:$0xff]
    %v180 = vld [vmem:[#allocation8 + $0xe8] sm:$0xff]
    %v181 = vld [vmem:[#allocation8 + $0xf0] sm:$0xff]
    %v182 = vld [vmem:[#allocation8 + $0xf8] sm:$0xff]
    %v183 = vld [vmem:[#allocation8 + $0x100] sm:$0xff]
    %v184 = vld [vmem:[#allocation8 + $0x108] sm:$0xff]
    %v185 = vld [vmem:[#allocation8 + $0x110] sm:$0xff]
    %v186 = vld [vmem:[#allocation8 + $0x118] sm:$0xff]
    %v187 = vld [vmem:[#allocation8 + $0x120] sm:$0xff]
    %v188 = vld [vmem:[#allocation8 + $0x128] sm:$0xff]
    %v189 = vld [vmem:[#allocation8 + $0x130] sm:$0xff]
    %v190 = vld [vmem:[#allocation8 + $0x138] sm:$0xff]
    %v191 = vld [vmem:[#allocation8 + $0x140] sm:$0xff]
    %v192 = vld [vmem:[#allocation8 + $0x148] sm:$0xff]
    %v193 = vld [vmem:[#allocation8 + $0x150] sm:$0xff]
    %v194 = vld [vmem:[#allocation8 + $0x158] sm:$0xff]
    %v195 = vld [vmem:[#allocation8 + $0x160] sm:$0xff]
    %v196 = vld [vmem:[#allocation8 + $0x168] sm:$0xff]
    %v197 = vld [vmem:[#allocation8 + $0x170] sm:$0xff]
    %v198 = vld [vmem:[#allocation8 + $0x178] sm:$0xff]
    %v199 = vld [vmem:[#allocation8 + $0x180] sm:$0xff]
    %v200 = vld [vmem:[#allocation8 + $0x188] sm:$0xff]
    %v201 = vld [vmem:[#allocation8 + $0x190] sm:$0xff]
    %v202 = vld [vmem:[#allocation8 + $0x198] sm:$0xff]
    %v203 = vld [vmem:[#allocation8 + $0x1a0] sm:$0xff]
    %v204 = vld [vmem:[#allocation8 + $0x1a8] sm:$0xff]
    %v205 = vld [vmem:[#allocation8 + $0x1b0] sm:$0xff]
    %v206 = vld [vmem:[#allocation8 + $0x1b8] sm:$0xff]
    %v207 = vld [vmem:[#allocation8 + $0x1c0] sm:$0xff]
    %v208 = vld [vmem:[#allocation8 + $0x1c8] sm:$0xff]
    %v209 = vld [vmem:[#allocation8 + $0x1d0] sm:$0xff]
    %v210 = vld [vmem:[#allocation8 + $0x1d8] sm:$0xff]
    %v211 = vld [vmem:[#allocation8 + $0x1e0] sm:$0xff]
    %v212 = vld [vmem:[#allocation8 + $0x1e8] sm:$0xff]
    %v213 = vld [vmem:[#allocation8 + $0x1f0] sm:$0xff]
    %v214 = vld [vmem:[#allocation8 + $0x1f8] sm:$0xff]
    %v215 = vld [vmem:[#allocation8 + $0x200] sm:$0xff]
    %v216 = vld [vmem:[#allocation8 + $0x208] sm:$0xff]
    %v217 = vld [vmem:[#allocation8 + $0x210] sm:$0xff]
    %v218 = vld [vmem:[#allocation8 + $0x218] sm:$0xff]
    %v219 = vld [vmem:[#allocation8 + $0x220] sm:$0xff]
    %v220 = vld [vmem:[#allocation8 + $0x228] sm:$0xff]
    %v221 = vld [vmem:[#allocation8 + $0x230] sm:$0xff]
    %v222 = vld [vmem:[#allocation8 + $0x238] sm:$0xff]
    %v223 = vld [vmem:[#allocation8 + $0x240] sm:$0xff]
    %v224 = vld [vmem:[#allocation8 + $0x248] sm:$0xff]
    %v225 = vld [vmem:[#allocation8 + $0x250] sm:$0xff]
    %v226 = vld [vmem:[#allocation8 + $0x258] sm:$0xff]
    %v227 = vld [vmem:[#allocation8 + $0x260] sm:$0xff]
    %v228 = vld [vmem:[#allocation8 + $0x268] sm:$0xff]
    %v229 = vld [vmem:[#allocation8 + $0x270] sm:$0xff]
    %v230 = vld [vmem:[#allocation8 + $0x278] sm:$0xff]
    %v231 = vld [vmem:[#allocation8 + $0x280] sm:$0xff]
    %v232 = vld [vmem:[#allocation8 + $0x288] sm:$0xff]
    %v233 = vld [vmem:[#allocation8 + $0x290] sm:$0xff]
    %v234 = vld [vmem:[#allocation8 + $0x298] sm:$0xff]
    %v235 = vld [vmem:[#allocation8 + $0x2a0] sm:$0xff]
    %v236 = vld [vmem:[#allocation8 + $0x2a8] sm:$0xff]
    %v237 = vld [vmem:[#allocation8 + $0x2b0] sm:$0xff]
    %v238 = vld [vmem:[#allocation8 + $0x2b8] sm:$0xff]
    %v239 = vld [vmem:[#allocation8 + $0x2c0] sm:$0xff]
    %v240 = vld [vmem:[#allocation8 + $0x2c8] sm:$0xff]
    %v241 = vld [vmem:[#allocation8 + $0x2d0] sm:$0xff]
    %v242 = vld [vmem:[#allocation8 + $0x2d8] sm:$0xff]
    %v243 = vld [vmem:[#allocation8 + $0x2e0] sm:$0xff]
    %v244 = vld [vmem:[#allocation8 + $0x2e8] sm:$0xff]
    %v245 = vld [vmem:[#allocation8 + $0x2f0] sm:$0xff]
    %v246 = vld [vmem:[#allocation8 + $0x2f8] sm:$0xff]
    %v247 = vld [vmem:[#allocation8 + $0x300] sm:$0xff]
    %v248 = vld [vmem:[#allocation8 + $0x308] sm:$0xff]
    %v249 = vld [vmem:[#allocation8 + $0x310] sm:$0xff]
    %v250 = vld [vmem:[#allocation8 + $0x318] sm:$0xff]
    %v251 = vld [vmem:[#allocation8 + $0x320] sm:$0xff]
    %v252 = vld [vmem:[#allocation8 + $0x328] sm:$0xff]
    %v253 = vld [vmem:[#allocation8 + $0x330] sm:$0xff]
    %v254 = vld [vmem:[#allocation8 + $0x338] sm:$0xff]
    %v255 = vld [vmem:[#allocation8 + $0x340] sm:$0xff]
    %v256 = vld [vmem:[#allocation8 + $0x348] sm:$0xff]
    %v257 = vld [vmem:[#allocation8 + $0x350] sm:$0xff]
    %v258 = vld [vmem:[#allocation8 + $0x358] sm:$0xff]
    %v259 = vld [vmem:[#allocation8 + $0x360] sm:$0xff]
    %v260 = vld [vmem:[#allocation8 + $0x368] sm:$0xff]
    %v261 = vld [vmem:[#allocation8 + $0x370] sm:$0xff]
    %v262 = vld [vmem:[#allocation8 + $0x378] sm:$0xff]
    %v263 = vld [vmem:[#allocation8 + $0x380] sm:$0xff]
    %v264 = vld [vmem:[#allocation8 + $0x388] sm:$0xff]
    %v265 = vld [vmem:[#allocation8 + $0x390] sm:$0xff]
    %v266 = vld [vmem:[#allocation8 + $0x398] sm:$0xff]
    %v267 = vld [vmem:[#allocation8 + $0x3a0] sm:$0xff]
    %v268 = vld [vmem:[#allocation8 + $0x3a8] sm:$0xff]
    %v269 = vld [vmem:[#allocation8 + $0x3b0] sm:$0xff]
    %v270 = vld [vmem:[#allocation8 + $0x3b8] sm:$0xff]
    %v271 = vld [vmem:[#allocation8 + $0x3c0] sm:$0xff]
    %v272 = vld [vmem:[#allocation8 + $0x3c8] sm:$0xff]
    %v273 = vld [vmem:[#allocation8 + $0x3d0] sm:$0xff]
    %v274 = vld [vmem:[#allocation8 + $0x3d8] sm:$0xff]
    %v275 = vld [vmem:[#allocation8 + $0x3e0] sm:$0xff]
    %v276 = vld [vmem:[#allocation8 + $0x3e8] sm:$0xff]
    %v277 = vld [vmem:[#allocation8 + $0x3f0] sm:$0xff]
    %v278 = vld [vmem:[#allocation8 + $0x3f8] sm:$0xff]
    %v279 = vld [vmem:[#allocation10] sm:$0xff]
    %v280 = vld [vmem:[#allocation10 + $0x8] sm:$0xff]
    %v281 = vld [vmem:[#allocation10 + $0x10] sm:$0xff]
    %v282 = vld [vmem:[#allocation10 + $0x18] sm:$0xff]
    %v283 = vld [vmem:[#allocation10 + $0x20] sm:$0xff]
    %v284 = vld [vmem:[#allocation10 + $0x28] sm:$0xff]
    %v285 = vld [vmem:[#allocation10 + $0x30] sm:$0xff]
    %v286 = vld [vmem:[#allocation10 + $0x38] sm:$0xff]
    %v287 = vld [vmem:[#allocation10 + $0x40] sm:$0xff]
    %v288 = vld [vmem:[#allocation10 + $0x48] sm:$0xff]
    %v289 = vld [vmem:[#allocation10 + $0x50] sm:$0xff]
    %v290 = vld [vmem:[#allocation10 + $0x58] sm:$0xff]
    %v291 = vld [vmem:[#allocation10 + $0x60] sm:$0xff]
    %v292 = vld [vmem:[#allocation10 + $0x68] sm:$0xff]
    %v293 = vld [vmem:[#allocation10 + $0x70] sm:$0xff]
    %v294 = vld [vmem:[#allocation10 + $0x78] sm:$0xff]
    %v295 = vld [vmem:[%s4] sm:$0x1]
    %v297 = vlaneseq
    %v298 = vshrl.u32 %v297, 7
    %v299 = vsub.s32 0, %v298
    %v300 = vrot.slane %v295, %v299
    %302 = vmatprep.subr.mxu0 0.0
    %303 = vmatpush1.msra.mxu0 %v279
    %304 = vmatprep.subr.mxu0 0.0
    %305 = vmatpush1.msra.mxu0 %v280
    %306 = vmatprep.subr.mxu0 0.0
    %307 = vmatpush1.msra.mxu0 %v281
    %308 = vmatprep.subr.mxu0 0.0
    %309 = vmatpush1.msra.mxu0 %v282
    %310 = vmatprep.subr.mxu0 0.0
    %311 = vmatpush1.msra.mxu0 %v283
    %312 = vmatprep.subr.mxu0 0.0
    %313 = vmatpush1.msra.mxu0 %v284
    %314 = vmatprep.subr.mxu0 0.0
    %315 = vmatpush1.msra.mxu0 %v285
    %316 = vmatprep.subr.mxu0 0.0
    %317 = vmatpush1.msra.mxu0 %v286
    %318 = vmatprep.subr.mxu0 0.0
    %319 = vmatpush1.msra.mxu0 %v287
    %320 = vmatprep.subr.mxu0 0.0
    %321 = vmatpush1.msra.mxu0 %v288
    %322 = vmatprep.subr.mxu0 0.0
    %323 = vmatpush1.msra.mxu0 %v289
    %324 = vmatprep.subr.mxu0 0.0
    %325 = vmatpush1.msra.mxu0 %v290
    %326 = vmatprep.subr.mxu0 0.0
    %327 = vmatpush1.msra.mxu0 %v291
    %328 = vmatprep.subr.mxu0 0.0
    %329 = vmatpush1.msra.mxu0 %v292
    %330 = vmatprep.subr.mxu0 0.0
    %331 = vmatpush1.msra.mxu0 %v293
    %332 = vmatprep.subr.mxu0 0.0
    %333 = vmatpush1.msra.mxu0 %v294
    %334 = vmatprep.subr.mxu0 0.0
    %335 = vmatpush1.msra.mxu0 0.0
    %336 = vmatprep.subr.mxu0 0.0
    %337 = vmatpush1.msra.mxu0 0.0
    %338 = vmatprep.subr.mxu0 0.0
    %339 = vmatpush1.msra.mxu0 0.0
    %340 = vmatprep.subr.mxu0 0.0
    %341 = vmatpush1.msra.mxu0 0.0
    %342 = vmatprep.subr.mxu0 0.0
    %343 = vmatpush1.msra.mxu0 0.0
    %344 = vmatprep.subr.mxu0 0.0
    %345 = vmatpush1.msra.mxu0 0.0
    %346 = vmatprep.subr.mxu0 0.0
    %347 = vmatpush1.msra.mxu0 0.0
    %348 = vmatprep.subr.mxu0 0.0
    %349 = vmatpush1.msra.mxu0 0.0
    %350 = vmatprep.subr.mxu0 0.0
    %351 = vmatpush1.msra.mxu0 0.0
    %352 = vmatprep.subr.mxu0 0.0
    %353 = vmatpush1.msra.mxu0 0.0
    %354 = vmatprep.subr.mxu0 0.0
    %355 = vmatpush1.msra.mxu0 0.0
    %356 = vmatprep.subr.mxu0 0.0
    %357 = vmatpush1.msra.mxu0 0.0
    %358 = vmatprep.subr.mxu0 0.0
    %359 = vmatpush1.msra.mxu0 0.0
    %360 = vmatprep.subr.mxu0 0.0
    %361 = vmatpush1.msra.mxu0 0.0
    %362 = vmatprep.subr.mxu0 0.0
    %363 = vmatpush1.msra.mxu0 0.0
    %364 = vmatprep.subr.mxu0 0.0
    %365 = vmatpush1.msra.mxu0 0.0
    %366 = vmatprep.mubr.f32.mxu0 0.0
    %367 = vmatmul.mubr.f32.gmra.mrb[0].mxu0 %v151
    %v368 = vpop.f32.mrb[0].mxu0
    %v369 = vadd.f32 %v300, %v368
    %v370 = vpop.f32.mrb[0].mxu0
    %371 = vmatprep.mubr.f32.mxu0 0.0
    %372 = vmatmul.mubr.f32.gmra.mrb[0].mxu0 %v152
    %v373 = vpop.f32.mrb[0].mxu0
    %v374 = vadd.f32 %v300, %v373
    %v375 = vpop.f32.mrb[0].mxu0
    %376 = vmatprep.mubr.f32.mxu0 0.0
    %377 = vmatmul.mubr.f32.gmra.mrb[0].mxu0 %v153
    %v378 = vpop.f32.mrb[0].mxu0
    %v379 = vadd.f32 %v300, %v378
    %v380 = vpop.f32.mrb[0].mxu0
    %381 = vmatprep.mubr.f32.mxu0 0.0
    %382 = vmatmul.mubr.f32.gmra.mrb[0].mxu0 %v154
    %v383 = vpop.f32.mrb[0].mxu0
    %v384 = vadd.f32 %v300, %v383
    %v385 = vpop.f32.mrb[0].mxu0
    %386 = vmatprep.mubr.f32.mxu0 0.0
    %387 = vmatmul.mubr.f32.gmra.mrb[0].mxu0 %v155
    %v388 = vpop.f32.mrb[0].mxu0
    %v389 = vadd.f32 %v300, %v388
    %v390 = vpop.f32.mrb[0].mxu0
    %391 = vmatprep.mubr.f32.mxu0 0.0
    %392 = vmatmul.mubr.f32.gmra.mrb[0].mxu0 %v156
    %v393 = vpop.f32.mrb[0].mxu0
    %v394 = vadd.f32 %v300, %v393
    %v395 = vpop.f32.mrb[0].mxu0
    %396 = vmatprep.mubr.f32.mxu0 0.0
    %397 = vmatmul.mubr.f32.gmra.mrb[0].mxu0 %v157
    %v398 = vpop.f32.mrb[0].mxu0
    %v399 = vadd.f32 %v300, %v398
    %v400 = vpop.f32.mrb[0].mxu0
    %401 = vmatprep.mubr.f32.mxu0 0.0
    %402 = vmatmul.mubr.f32.gmra.mrb[0].mxu0 %v158
    %v403 = vpop.f32.mrb[0].mxu0
    %v404 = vadd.f32 %v300, %v403
    %v405 = vpop.f32.mrb[0].mxu0
    %406 = vmatprep.mubr.f32.mxu0 0.0
    %407 = vmatmul.mubr.f32.gmra.mrb[0].mxu0 %v159
    %v408 = vpop.f32.mrb[0].mxu0
    %v409 = vadd.f32 %v300, %v408
    %v410 = vpop.f32.mrb[0].mxu0
    %411 = vmatprep.mubr.f32.mxu0 0.0
    %412 = vmatmul.mubr.f32.gmra.mrb[0].mxu0 %v160
    %v413 = vpop.f32.mrb[0].mxu0
    %v414 = vadd.f32 %v300, %v413
    %v415 = vpop.f32.mrb[0].mxu0
    %416 = vmatprep.mubr.f32.mxu0 0.0
    %417 = vmatmul.mubr.f32.gmra.mrb[0].mxu0 %v161
    %v418 = vpop.f32.mrb[0].mxu0
    %v419 = vadd.f32 %v300, %v418
    %v420 = vpop.f32.mrb[0].mxu0
    %421 = vmatprep.mubr.f32.mxu0 0.0
    %422 = vmatmul.mubr.f32.gmra.mrb[0].mxu0 %v162
    %v423 = vpop.f32.mrb[0].mxu0
    %v424 = vadd.f32 %v300, %v423
    %v425 = vpop.f32.mrb[0].mxu0
    %426 = vmatprep.mubr.f32.mxu0 0.0
    %427 = vmatmul.mubr.f32.gmra.mrb[0].mxu0 %v163
    %v428 = vpop.f32.mrb[0].mxu0
    %v429 = vadd.f32 %v300, %v428
    %v430 = vpop.f32.mrb[0].mxu0
    %431 = vmatprep.mubr.f32.mxu0 0.0
    %432 = vmatmul.mubr.f32.gmra.mrb[0].mxu0 %v164
    %v433 = vpop.f32.mrb[0].mxu0
    %v434 = vadd.f32 %v300, %v433
    %v435 = vpop.f32.mrb[0].mxu0
    %436 = vmatprep.mubr.f32.mxu0 0.0
    %437 = vmatmul.mubr.f32.gmra.mrb[0].mxu0 %v165
    %v438 = vpop.f32.mrb[0].mxu0
    %v439 = vadd.f32 %v300, %v438
    %v440 = vpop.f32.mrb[0].mxu0
    %441 = vmatprep.mubr.f32.mxu0 0.0
    %442 = vmatmul.mubr.f32.gmra.mrb[0].mxu0 %v166
    %v443 = vpop.f32.mrb[0].mxu0
    %v444 = vadd.f32 %v300, %v443
    %v445 = vpop.f32.mrb[0].mxu0
    %446 = vmatprep.mubr.f32.mxu0 0.0
    %447 = vmatmul.mubr.f32.gmra.mrb[0].mxu0 %v167
    %v448 = vpop.f32.mrb[0].mxu0
    %v449 = vadd.f32 %v300, %v448
    %v450 = vpop.f32.mrb[0].mxu0
    %451 = vmatprep.mubr.f32.mxu0 0.0
    %452 = vmatmul.mubr.f32.gmra.mrb[0].mxu0 %v168
    %v453 = vpop.f32.mrb[0].mxu0
    %v454 = vadd.f32 %v300, %v453
    %v455 = vpop.f32.mrb[0].mxu0
    %456 = vmatprep.mubr.f32.mxu0 0.0
    %457 = vmatmul.mubr.f32.gmra.mrb[0].mxu0 %v169
    %v458 = vpop.f32.mrb[0].mxu0
    %v459 = vadd.f32 %v300, %v458
    %v460 = vpop.f32.mrb[0].mxu0
    %461 = vmatprep.mubr.f32.mxu0 0.0
    %462 = vmatmul.mubr.f32.gmra.mrb[0].mxu0 %v170
    %v463 = vpop.f32.mrb[0].mxu0
    %v464 = vadd.f32 %v300, %v463
    %v465 = vpop.f32.mrb[0].mxu0
    %466 = vmatprep.mubr.f32.mxu0 0.0
    %467 = vmatmul.mubr.f32.gmra.mrb[0].mxu0 %v171
    %v468 = vpop.f32.mrb[0].mxu0
    %v469 = vadd.f32 %v300, %v468
    %v470 = vpop.f32.mrb[0].mxu0
    %471 = vmatprep.mubr.f32.mxu0 0.0
    %472 = vmatmul.mubr.f32.gmra.mrb[0].mxu0 %v172
    %v473 = vpop.f32.mrb[0].mxu0
    %v474 = vadd.f32 %v300, %v473
    %v475 = vpop.f32.mrb[0].mxu0
    %476 = vmatprep.mubr.f32.mxu0 0.0
    %477 = vmatmul.mubr.f32.gmra.mrb[0].mxu0 %v173
    %v478 = vpop.f32.mrb[0].mxu0
    %v479 = vadd.f32 %v300, %v478
    %v480 = vpop.f32.mrb[0].mxu0
    %481 = vmatprep.mubr.f32.mxu0 0.0
    %482 = vmatmul.mubr.f32.gmra.mrb[0].mxu0 %v174
    %v483 = vpop.f32.mrb[0].mxu0
    %v484 = vadd.f32 %v300, %v483
    %v485 = vpop.f32.mrb[0].mxu0
    %486 = vmatprep.mubr.f32.mxu0 0.0
    %487 = vmatmul.mubr.f32.gmra.mrb[0].mxu0 %v175
    %v488 = vpop.f32.mrb[0].mxu0
    %v489 = vadd.f32 %v300, %v488
    %v490 = vpop.f32.mrb[0].mxu0
    %491 = vmatprep.mubr.f32.mxu0 0.0
    %492 = vmatmul.mubr.f32.gmra.mrb[0].mxu0 %v176
    %v493 = vpop.f32.mrb[0].mxu0
    %v494 = vadd.f32 %v300, %v493
    %v495 = vpop.f32.mrb[0].mxu0
    %496 = vmatprep.mubr.f32.mxu0 0.0
    %497 = vmatmul.mubr.f32.gmra.mrb[0].mxu0 %v177
    %v498 = vpop.f32.mrb[0].mxu0
    %v499 = vadd.f32 %v300, %v498
    %v500 = vpop.f32.mrb[0].mxu0
    %501 = vmatprep.mubr.f32.mxu0 0.0
    %502 = vmatmul.mubr.f32.gmra.mrb[0].mxu0 %v178
    %v503 = vpop.f32.mrb[0].mxu0
    %v504 = vadd.f32 %v300, %v503
    %v505 = vpop.f32.mrb[0].mxu0
    %506 = vmatprep.mubr.f32.mxu0 0.0
    %507 = vmatmul.mubr.f32.gmra.mrb[0].mxu0 %v179
    %v508 = vpop.f32.mrb[0].mxu0
    %v509 = vadd.f32 %v300, %v508
    %v510 = vpop.f32.mrb[0].mxu0
    %511 = vmatprep.mubr.f32.mxu0 0.0
    %512 = vmatmul.mubr.f32.gmra.mrb[0].mxu0 %v180
    %v513 = vpop.f32.mrb[0].mxu0
    %v514 = vadd.f32 %v300, %v513
    %v515 = vpop.f32.mrb[0].mxu0
    %516 = vmatprep.mubr.f32.mxu0 0.0
    %517 = vmatmul.mubr.f32.gmra.mrb[0].mxu0 %v181
    %v518 = vpop.f32.mrb[0].mxu0
    %v519 = vadd.f32 %v300, %v518
    %v520 = vpop.f32.mrb[0].mxu0
    %521 = vmatprep.mubr.f32.mxu0 0.0
    %522 = vmatmul.mubr.f32.gmra.mrb[0].mxu0 %v182
    %v523 = vpop.f32.mrb[0].mxu0
    %v524 = vadd.f32 %v300, %v523
    %v525 = vpop.f32.mrb[0].mxu0
    %526 = vmatprep.mubr.f32.mxu0 0.0
    %527 = vmatmul.mubr.f32.gmra.mrb[0].mxu0 %v183
    %v528 = vpop.f32.mrb[0].mxu0
    %v529 = vadd.f32 %v300, %v528
    %v530 = vpop.f32.mrb[0].mxu0
    %531 = vmatprep.mubr.f32.mxu0 0.0
    %532 = vmatmul.mubr.f32.gmra.mrb[0].mxu0 %v184
    %v533 = vpop.f32.mrb[0].mxu0
    %v534 = vadd.f32 %v300, %v533
    %v535 = vpop.f32.mrb[0].mxu0
    %536 = vmatprep.mubr.f32.mxu0 0.0
    %537 = vmatmul.mubr.f32.gmra.mrb[0].mxu0 %v185
    %v538 = vpop.f32.mrb[0].mxu0
    %v539 = vadd.f32 %v300, %v538
    %v540 = vpop.f32.mrb[0].mxu0
    %541 = vmatprep.mubr.f32.mxu0 0.0
    %542 = vmatmul.mubr.f32.gmra.mrb[0].mxu0 %v186
    %v543 = vpop.f32.mrb[0].mxu0
    %v544 = vadd.f32 %v300, %v543
    %v545 = vpop.f32.mrb[0].mxu0
    %546 = vmatprep.mubr.f32.mxu0 0.0
    %547 = vmatmul.mubr.f32.gmra.mrb[0].mxu0 %v187
    %v548 = vpop.f32.mrb[0].mxu0
    %v549 = vadd.f32 %v300, %v548
    %v550 = vpop.f32.mrb[0].mxu0
    %551 = vmatprep.mubr.f32.mxu0 0.0
    %552 = vmatmul.mubr.f32.gmra.mrb[0].mxu0 %v188
    %v553 = vpop.f32.mrb[0].mxu0
    %v554 = vadd.f32 %v300, %v553
    %v555 = vpop.f32.mrb[0].mxu0
    %556 = vmatprep.mubr.f32.mxu0 0.0
    %557 = vmatmul.mubr.f32.gmra.mrb[0].mxu0 %v189
    %v558 = vpop.f32.mrb[0].mxu0
    %v559 = vadd.f32 %v300, %v558
    %v560 = vpop.f32.mrb[0].mxu0
    %561 = vmatprep.mubr.f32.mxu0 0.0
    %562 = vmatmul.mubr.f32.gmra.mrb[0].mxu0 %v190
    %v563 = vpop.f32.mrb[0].mxu0
    %v564 = vadd.f32 %v300, %v563
    %v565 = vpop.f32.mrb[0].mxu0
    %566 = vmatprep.mubr.f32.mxu0 0.0
    %567 = vmatmul.mubr.f32.gmra.mrb[0].mxu0 %v191
    %v568 = vpop.f32.mrb[0].mxu0
    %v569 = vadd.f32 %v300, %v568
    %v570 = vpop.f32.mrb[0].mxu0
    %571 = vmatprep.mubr.f32.mxu0 0.0
    %572 = vmatmul.mubr.f32.gmra.mrb[0].mxu0 %v192
    %v573 = vpop.f32.mrb[0].mxu0
    %v574 = vadd.f32 %v300, %v573
    %v575 = vpop.f32.mrb[0].mxu0
    %576 = vmatprep.mubr.f32.mxu0 0.0
    %577 = vmatmul.mubr.f32.gmra.mrb[0].mxu0 %v193
    %v578 = vpop.f32.mrb[0].mxu0
    %v579 = vadd.f32 %v300, %v578
    %v580 = vpop.f32.mrb[0].mxu0
    %581 = vmatprep.mubr.f32.mxu0 0.0
    %582 = vmatmul.mubr.f32.gmra.mrb[0].mxu0 %v194
    %v583 = vpop.f32.mrb[0].mxu0
    %v584 = vadd.f32 %v300, %v583
    %v585 = vpop.f32.mrb[0].mxu0
    %586 = vmatprep.mubr.f32.mxu0 0.0
    %587 = vmatmul.mubr.f32.gmra.mrb[0].mxu0 %v195
    %v588 = vpop.f32.mrb[0].mxu0
    %v589 = vadd.f32 %v300, %v588
    %v590 = vpop.f32.mrb[0].mxu0
    %591 = vmatprep.mubr.f32.mxu0 0.0
    %592 = vmatmul.mubr.f32.gmra.mrb[0].mxu0 %v196
    %v593 = vpop.f32.mrb[0].mxu0
    %v594 = vadd.f32 %v300, %v593
    %v595 = vpop.f32.mrb[0].mxu0
    %596 = vmatprep.mubr.f32.mxu0 0.0
    %597 = vmatmul.mubr.f32.gmra.mrb[0].mxu0 %v197
    %v598 = vpop.f32.mrb[0].mxu0
    %v599 = vadd.f32 %v300, %v598
    %v600 = vpop.f32.mrb[0].mxu0
    %601 = vmatprep.mubr.f32.mxu0 0.0
    %602 = vmatmul.mubr.f32.gmra.mrb[0].mxu0 %v198
    %v603 = vpop.f32.mrb[0].mxu0
    %v604 = vadd.f32 %v300, %v603
    %v605 = vpop.f32.mrb[0].mxu0
    %606 = vmatprep.mubr.f32.mxu0 0.0
    %607 = vmatmul.mubr.f32.gmra.mrb[0].mxu0 %v199
    %v608 = vpop.f32.mrb[0].mxu0
    %v609 = vadd.f32 %v300, %v608
    %v610 = vpop.f32.mrb[0].mxu0
    %611 = vmatprep.mubr.f32.mxu0 0.0
    %612 = vmatmul.mubr.f32.gmra.mrb[0].mxu0 %v200
    %v613 = vpop.f32.mrb[0].mxu0
    %v614 = vadd.f32 %v300, %v613
    %v615 = vpop.f32.mrb[0].mxu0
    %616 = vmatprep.mubr.f32.mxu0 0.0
    %617 = vmatmul.mubr.f32.gmra.mrb[0].mxu0 %v201
    %v618 = vpop.f32.mrb[0].mxu0
    %v619 = vadd.f32 %v300, %v618
    %v620 = vpop.f32.mrb[0].mxu0
    %621 = vmatprep.mubr.f32.mxu0 0.0
    %622 = vmatmul.mubr.f32.gmra.mrb[0].mxu0 %v202
    %v623 = vpop.f32.mrb[0].mxu0
    %v624 = vadd.f32 %v300, %v623
    %v625 = vpop.f32.mrb[0].mxu0
    %626 = vmatprep.mubr.f32.mxu0 0.0
    %627 = vmatmul.mubr.f32.gmra.mrb[0].mxu0 %v203
    %v628 = vpop.f32.mrb[0].mxu0
    %v629 = vadd.f32 %v300, %v628
    %v630 = vpop.f32.mrb[0].mxu0
    %631 = vmatprep.mubr.f32.mxu0 0.0
    %632 = vmatmul.mubr.f32.gmra.mrb[0].mxu0 %v204
    %v633 = vpop.f32.mrb[0].mxu0
    %v634 = vadd.f32 %v300, %v633
    %v635 = vpop.f32.mrb[0].mxu0
    %636 = vmatprep.mubr.f32.mxu0 0.0
    %637 = vmatmul.mubr.f32.gmra.mrb[0].mxu0 %v205
    %v638 = vpop.f32.mrb[0].mxu0
    %v639 = vadd.f32 %v300, %v638
    %v640 = vpop.f32.mrb[0].mxu0
    %641 = vmatprep.mubr.f32.mxu0 0.0
    %642 = vmatmul.mubr.f32.gmra.mrb[0].mxu0 %v206
    %v643 = vpop.f32.mrb[0].mxu0
    %v644 = vadd.f32 %v300, %v643
    %v645 = vpop.f32.mrb[0].mxu0
    %646 = vmatprep.mubr.f32.mxu0 0.0
    %647 = vmatmul.mubr.f32.gmra.mrb[0].mxu0 %v207
    %v648 = vpop.f32.mrb[0].mxu0
    %v649 = vadd.f32 %v300, %v648
    %v650 = vpop.f32.mrb[0].mxu0
    %651 = vmatprep.mubr.f32.mxu0 0.0
    %652 = vmatmul.mubr.f32.gmra.mrb[0].mxu0 %v208
    %v653 = vpop.f32.mrb[0].mxu0
    %v654 = vadd.f32 %v300, %v653
    %v655 = vpop.f32.mrb[0].mxu0
    %656 = vmatprep.mubr.f32.mxu0 0.0
    %657 = vmatmul.mubr.f32.gmra.mrb[0].mxu0 %v209
    %v658 = vpop.f32.mrb[0].mxu0
    %v659 = vadd.f32 %v300, %v658
    %v660 = vpop.f32.mrb[0].mxu0
    %661 = vmatprep.mubr.f32.mxu0 0.0
    %662 = vmatmul.mubr.f32.gmra.mrb[0].mxu0 %v210
    %v663 = vpop.f32.mrb[0].mxu0
    %v664 = vadd.f32 %v300, %v663
    %v665 = vpop.f32.mrb[0].mxu0
    %666 = vmatprep.mubr.f32.mxu0 0.0
    %667 = vmatmul.mubr.f32.gmra.mrb[0].mxu0 %v211
    %v668 = vpop.f32.mrb[0].mxu0
    %v669 = vadd.f32 %v300, %v668
    %v670 = vpop.f32.mrb[0].mxu0
    %671 = vmatprep.mubr.f32.mxu0 0.0
    %672 = vmatmul.mubr.f32.gmra.mrb[0].mxu0 %v212
    %v673 = vpop.f32.mrb[0].mxu0
    %v674 = vadd.f32 %v300, %v673
    %v675 = vpop.f32.mrb[0].mxu0
    %676 = vmatprep.mubr.f32.mxu0 0.0
    %677 = vmatmul.mubr.f32.gmra.mrb[0].mxu0 %v213
    %v678 = vpop.f32.mrb[0].mxu0
    %v679 = vadd.f32 %v300, %v678
    %v680 = vpop.f32.mrb[0].mxu0
    %681 = vmatprep.mubr.f32.mxu0 0.0
    %682 = vmatmul.mubr.f32.gmra.mrb[0].mxu0 %v214
    %v683 = vpop.f32.mrb[0].mxu0
    %v684 = vadd.f32 %v300, %v683
    %v685 = vpop.f32.mrb[0].mxu0
    %686 = vmatprep.mubr.f32.mxu0 0.0
    %687 = vmatmul.mubr.f32.gmra.mrb[0].mxu0 %v215
    %v688 = vpop.f32.mrb[0].mxu0
    %v689 = vadd.f32 %v300, %v688
    %v690 = vpop.f32.mrb[0].mxu0
    %691 = vmatprep.mubr.f32.mxu0 0.0
    %692 = vmatmul.mubr.f32.gmra.mrb[0].mxu0 %v216
    %v693 = vpop.f32.mrb[0].mxu0
    %v694 = vadd.f32 %v300, %v693
    %v695 = vpop.f32.mrb[0].mxu0
    %696 = vmatprep.mubr.f32.mxu0 0.0
    %697 = vmatmul.mubr.f32.gmra.mrb[0].mxu0 %v217
    %v698 = vpop.f32.mrb[0].mxu0
    %v699 = vadd.f32 %v300, %v698
    %v700 = vpop.f32.mrb[0].mxu0
    %701 = vmatprep.mubr.f32.mxu0 0.0
    %702 = vmatmul.mubr.f32.gmra.mrb[0].mxu0 %v218
    %v703 = vpop.f32.mrb[0].mxu0
    %v704 = vadd.f32 %v300, %v703
    %v705 = vpop.f32.mrb[0].mxu0
    %706 = vmatprep.mubr.f32.mxu0 0.0
    %707 = vmatmul.mubr.f32.gmra.mrb[0].mxu0 %v219
    %v708 = vpop.f32.mrb[0].mxu0
    %v709 = vadd.f32 %v300, %v708
    %v710 = vpop.f32.mrb[0].mxu0
    %711 = vmatprep.mubr.f32.mxu0 0.0
    %712 = vmatmul.mubr.f32.gmra.mrb[0].mxu0 %v220
    %v713 = vpop.f32.mrb[0].mxu0
    %v714 = vadd.f32 %v300, %v713
    %v715 = vpop.f32.mrb[0].mxu0
    %716 = vmatprep.mubr.f32.mxu0 0.0
    %717 = vmatmul.mubr.f32.gmra.mrb[0].mxu0 %v221
    %v718 = vpop.f32.mrb[0].mxu0
    %v719 = vadd.f32 %v300, %v718
    %v720 = vpop.f32.mrb[0].mxu0
    %721 = vmatprep.mubr.f32.mxu0 0.0
    %722 = vmatmul.mubr.f32.gmra.mrb[0].mxu0 %v222
    %v723 = vpop.f32.mrb[0].mxu0
    %v724 = vadd.f32 %v300, %v723
    %v725 = vpop.f32.mrb[0].mxu0
    %726 = vmatprep.mubr.f32.mxu0 0.0
    %727 = vmatmul.mubr.f32.gmra.mrb[0].mxu0 %v223
    %v728 = vpop.f32.mrb[0].mxu0
    %v729 = vadd.f32 %v300, %v728
    %v730 = vpop.f32.mrb[0].mxu0
    %731 = vmatprep.mubr.f32.mxu0 0.0
    %732 = vmatmul.mubr.f32.gmra.mrb[0].mxu0 %v224
    %v733 = vpop.f32.mrb[0].mxu0
    %v734 = vadd.f32 %v300, %v733
    %v735 = vpop.f32.mrb[0].mxu0
    %736 = vmatprep.mubr.f32.mxu0 0.0
    %737 = vmatmul.mubr.f32.gmra.mrb[0].mxu0 %v225
    %v738 = vpop.f32.mrb[0].mxu0
    %v739 = vadd.f32 %v300, %v738
    %v740 = vpop.f32.mrb[0].mxu0
    %741 = vmatprep.mubr.f32.mxu0 0.0
    %742 = vmatmul.mubr.f32.gmra.mrb[0].mxu0 %v226
    %v743 = vpop.f32.mrb[0].mxu0
    %v744 = vadd.f32 %v300, %v743
    %v745 = vpop.f32.mrb[0].mxu0
    %746 = vmatprep.mubr.f32.mxu0 0.0
    %747 = vmatmul.mubr.f32.gmra.mrb[0].mxu0 %v227
    %v748 = vpop.f32.mrb[0].mxu0
    %v749 = vadd.f32 %v300, %v748
    %v750 = vpop.f32.mrb[0].mxu0
    %751 = vmatprep.mubr.f32.mxu0 0.0
    %752 = vmatmul.mubr.f32.gmra.mrb[0].mxu0 %v228
    %v753 = vpop.f32.mrb[0].mxu0
    %v754 = vadd.f32 %v300, %v753
    %v755 = vpop.f32.mrb[0].mxu0
    %756 = vmatprep.mubr.f32.mxu0 0.0
    %757 = vmatmul.mubr.f32.gmra.mrb[0].mxu0 %v229
    %v758 = vpop.f32.mrb[0].mxu0
    %v759 = vadd.f32 %v300, %v758
    %v760 = vpop.f32.mrb[0].mxu0
    %761 = vmatprep.mubr.f32.mxu0 0.0
    %762 = vmatmul.mubr.f32.gmra.mrb[0].mxu0 %v230
    %v763 = vpop.f32.mrb[0].mxu0
    %v764 = vadd.f32 %v300, %v763
    %v765 = vpop.f32.mrb[0].mxu0
    %766 = vmatprep.mubr.f32.mxu0 0.0
    %767 = vmatmul.mubr.f32.gmra.mrb[0].mxu0 %v231
    %v768 = vpop.f32.mrb[0].mxu0
    %v769 = vadd.f32 %v300, %v768
    %v770 = vpop.f32.mrb[0].mxu0
    %771 = vmatprep.mubr.f32.mxu0 0.0
    %772 = vmatmul.mubr.f32.gmra.mrb[0].mxu0 %v232
    %v773 = vpop.f32.mrb[0].mxu0
    %v774 = vadd.f32 %v300, %v773
    %v775 = vpop.f32.mrb[0].mxu0
    %776 = vmatprep.mubr.f32.mxu0 0.0
    %777 = vmatmul.mubr.f32.gmra.mrb[0].mxu0 %v233
    %v778 = vpop.f32.mrb[0].mxu0
    %v779 = vadd.f32 %v300, %v778
    %v780 = vpop.f32.mrb[0].mxu0
    %781 = vmatprep.mubr.f32.mxu0 0.0
    %782 = vmatmul.mubr.f32.gmra.mrb[0].mxu0 %v234
    %v783 = vpop.f32.mrb[0].mxu0
    %v784 = vadd.f32 %v300, %v783
    %v785 = vpop.f32.mrb[0].mxu0
    %786 = vmatprep.mubr.f32.mxu0 0.0
    %787 = vmatmul.mubr.f32.gmra.mrb[0].mxu0 %v235
    %v788 = vpop.f32.mrb[0].mxu0
    %v789 = vadd.f32 %v300, %v788
    %v790 = vpop.f32.mrb[0].mxu0
    %791 = vmatprep.mubr.f32.mxu0 0.0
    %792 = vmatmul.mubr.f32.gmra.mrb[0].mxu0 %v236
    %v793 = vpop.f32.mrb[0].mxu0
    %v794 = vadd.f32 %v300, %v793
    %v795 = vpop.f32.mrb[0].mxu0
    %796 = vmatprep.mubr.f32.mxu0 0.0
    %797 = vmatmul.mubr.f32.gmra.mrb[0].mxu0 %v237
    %v798 = vpop.f32.mrb[0].mxu0
    %v799 = vadd.f32 %v300, %v798
    %v800 = vpop.f32.mrb[0].mxu0
    %801 = vmatprep.mubr.f32.mxu0 0.0
    %802 = vmatmul.mubr.f32.gmra.mrb[0].mxu0 %v238
    %v803 = vpop.f32.mrb[0].mxu0
    %v804 = vadd.f32 %v300, %v803
    %v805 = vpop.f32.mrb[0].mxu0
    %806 = vmatprep.mubr.f32.mxu0 0.0
    %807 = vmatmul.mubr.f32.gmra.mrb[0].mxu0 %v239
    %v808 = vpop.f32.mrb[0].mxu0
    %v809 = vadd.f32 %v300, %v808
    %v810 = vpop.f32.mrb[0].mxu0
    %811 = vmatprep.mubr.f32.mxu0 0.0
    %812 = vmatmul.mubr.f32.gmra.mrb[0].mxu0 %v240
    %v813 = vpop.f32.mrb[0].mxu0
    %v814 = vadd.f32 %v300, %v813
    %v815 = vpop.f32.mrb[0].mxu0
    %816 = vmatprep.mubr.f32.mxu0 0.0
    %817 = vmatmul.mubr.f32.gmra.mrb[0].mxu0 %v241
    %v818 = vpop.f32.mrb[0].mxu0
    %v819 = vadd.f32 %v300, %v818
    %v820 = vpop.f32.mrb[0].mxu0
    %821 = vmatprep.mubr.f32.mxu0 0.0
    %822 = vmatmul.mubr.f32.gmra.mrb[0].mxu0 %v242
    %v823 = vpop.f32.mrb[0].mxu0
    %v824 = vadd.f32 %v300, %v823
    %v825 = vpop.f32.mrb[0].mxu0
    %826 = vmatprep.mubr.f32.mxu0 0.0
    %827 = vmatmul.mubr.f32.gmra.mrb[0].mxu0 %v243
    %v828 = vpop.f32.mrb[0].mxu0
    %v829 = vadd.f32 %v300, %v828
    %v830 = vpop.f32.mrb[0].mxu0
    %831 = vmatprep.mubr.f32.mxu0 0.0
    %832 = vmatmul.mubr.f32.gmra.mrb[0].mxu0 %v244
    %v833 = vpop.f32.mrb[0].mxu0
    %v834 = vadd.f32 %v300, %v833
    %v835 = vpop.f32.mrb[0].mxu0
    %836 = vmatprep.mubr.f32.mxu0 0.0
    %837 = vmatmul.mubr.f32.gmra.mrb[0].mxu0 %v245
    %v838 = vpop.f32.mrb[0].mxu0
    %v839 = vadd.f32 %v300, %v838
    %v840 = vpop.f32.mrb[0].mxu0
    %841 = vmatprep.mubr.f32.mxu0 0.0
    %842 = vmatmul.mubr.f32.gmra.mrb[0].mxu0 %v246
    %v843 = vpop.f32.mrb[0].mxu0
    %v844 = vadd.f32 %v300, %v843
    %v845 = vpop.f32.mrb[0].mxu0
    %846 = vmatprep.mubr.f32.mxu0 0.0
    %847 = vmatmul.mubr.f32.gmra.mrb[0].mxu0 %v247
    %v848 = vpop.f32.mrb[0].mxu0
    %v849 = vadd.f32 %v300, %v848
    %v850 = vpop.f32.mrb[0].mxu0
    %851 = vmatprep.mubr.f32.mxu0 0.0
    %852 = vmatmul.mubr.f32.gmra.mrb[0].mxu0 %v248
    %v853 = vpop.f32.mrb[0].mxu0
    %v854 = vadd.f32 %v300, %v853
    %v855 = vpop.f32.mrb[0].mxu0
    %856 = vmatprep.mubr.f32.mxu0 0.0
    %857 = vmatmul.mubr.f32.gmra.mrb[0].mxu0 %v249
    %v858 = vpop.f32.mrb[0].mxu0
    %v859 = vadd.f32 %v300, %v858
    %v860 = vpop.f32.mrb[0].mxu0
    %861 = vmatprep.mubr.f32.mxu0 0.0
    %862 = vmatmul.mubr.f32.gmra.mrb[0].mxu0 %v250
    %v863 = vpop.f32.mrb[0].mxu0
    %v864 = vadd.f32 %v300, %v863
    %v865 = vpop.f32.mrb[0].mxu0
    %866 = vmatprep.mubr.f32.mxu0 0.0
    %867 = vmatmul.mubr.f32.gmra.mrb[0].mxu0 %v251
    %v868 = vpop.f32.mrb[0].mxu0
    %v869 = vadd.f32 %v300, %v868
    %v870 = vpop.f32.mrb[0].mxu0
    %871 = vmatprep.mubr.f32.mxu0 0.0
    %872 = vmatmul.mubr.f32.gmra.mrb[0].mxu0 %v252
    %v873 = vpop.f32.mrb[0].mxu0
    %v874 = vadd.f32 %v300, %v873
    %v875 = vpop.f32.mrb[0].mxu0
    %876 = vmatprep.mubr.f32.mxu0 0.0
    %877 = vmatmul.mubr.f32.gmra.mrb[0].mxu0 %v253
    %v878 = vpop.f32.mrb[0].mxu0
    %v879 = vadd.f32 %v300, %v878
    %v880 = vpop.f32.mrb[0].mxu0
    %881 = vmatprep.mubr.f32.mxu0 0.0
    %882 = vmatmul.mubr.f32.gmra.mrb[0].mxu0 %v254
    %v883 = vpop.f32.mrb[0].mxu0
    %v884 = vadd.f32 %v300, %v883
    %v885 = vpop.f32.mrb[0].mxu0
    %886 = vmatprep.mubr.f32.mxu0 0.0
    %887 = vmatmul.mubr.f32.gmra.mrb[0].mxu0 %v255
    %v888 = vpop.f32.mrb[0].mxu0
    %v889 = vadd.f32 %v300, %v888
    %v890 = vpop.f32.mrb[0].mxu0
    %891 = vmatprep.mubr.f32.mxu0 0.0
    %892 = vmatmul.mubr.f32.gmra.mrb[0].mxu0 %v256
    %v893 = vpop.f32.mrb[0].mxu0
    %v894 = vadd.f32 %v300, %v893
    %v895 = vpop.f32.mrb[0].mxu0
    %896 = vmatprep.mubr.f32.mxu0 0.0
    %897 = vmatmul.mubr.f32.gmra.mrb[0].mxu0 %v257
    %v898 = vpop.f32.mrb[0].mxu0
    %v899 = vadd.f32 %v300, %v898
    %v900 = vpop.f32.mrb[0].mxu0
    %901 = vmatprep.mubr.f32.mxu0 0.0
    %902 = vmatmul.mubr.f32.gmra.mrb[0].mxu0 %v258
    %v903 = vpop.f32.mrb[0].mxu0
    %v904 = vadd.f32 %v300, %v903
    %v905 = vpop.f32.mrb[0].mxu0
    %906 = vmatprep.mubr.f32.mxu0 0.0
    %907 = vmatmul.mubr.f32.gmra.mrb[0].mxu0 %v259
    %v908 = vpop.f32.mrb[0].mxu0
    %v909 = vadd.f32 %v300, %v908
    %v910 = vpop.f32.mrb[0].mxu0
    %911 = vmatprep.mubr.f32.mxu0 0.0
    %912 = vmatmul.mubr.f32.gmra.mrb[0].mxu0 %v260
    %v913 = vpop.f32.mrb[0].mxu0
    %v914 = vadd.f32 %v300, %v913
    %v915 = vpop.f32.mrb[0].mxu0
    %916 = vmatprep.mubr.f32.mxu0 0.0
    %917 = vmatmul.mubr.f32.gmra.mrb[0].mxu0 %v261
    %v918 = vpop.f32.mrb[0].mxu0
    %v919 = vadd.f32 %v300, %v918
    %v920 = vpop.f32.mrb[0].mxu0
    %921 = vmatprep.mubr.f32.mxu0 0.0
    %922 = vmatmul.mubr.f32.gmra.mrb[0].mxu0 %v262
    %v923 = vpop.f32.mrb[0].mxu0
    %v924 = vadd.f32 %v300, %v923
    %v925 = vpop.f32.mrb[0].mxu0
    %926 = vmatprep.mubr.f32.mxu0 0.0
    %927 = vmatmul.mubr.f32.gmra.mrb[0].mxu0 %v263
    %v928 = vpop.f32.mrb[0].mxu0
    %v929 = vadd.f32 %v300, %v928
    %v930 = vpop.f32.mrb[0].mxu0
    %931 = vmatprep.mubr.f32.mxu0 0.0
    %932 = vmatmul.mubr.f32.gmra.mrb[0].mxu0 %v264
    %v933 = vpop.f32.mrb[0].mxu0
    %v934 = vadd.f32 %v300, %v933
    %v935 = vpop.f32.mrb[0].mxu0
    %936 = vmatprep.mubr.f32.mxu0 0.0
    %937 = vmatmul.mubr.f32.gmra.mrb[0].mxu0 %v265
    %v938 = vpop.f32.mrb[0].mxu0
    %v939 = vadd.f32 %v300, %v938
    %v940 = vpop.f32.mrb[0].mxu0
    %941 = vmatprep.mubr.f32.mxu0 0.0
    %942 = vmatmul.mubr.f32.gmra.mrb[0].mxu0 %v266
    %v943 = vpop.f32.mrb[0].mxu0
    %v944 = vadd.f32 %v300, %v943
    %v945 = vpop.f32.mrb[0].mxu0
    %946 = vmatprep.mubr.f32.mxu0 0.0
    %947 = vmatmul.mubr.f32.gmra.mrb[0].mxu0 %v267
    %v948 = vpop.f32.mrb[0].mxu0
    %v949 = vadd.f32 %v300, %v948
    %v950 = vpop.f32.mrb[0].mxu0
    %951 = vmatprep.mubr.f32.mxu0 0.0
    %952 = vmatmul.mubr.f32.gmra.mrb[0].mxu0 %v268
    %v953 = vpop.f32.mrb[0].mxu0
    %v954 = vadd.f32 %v300, %v953
    %v955 = vpop.f32.mrb[0].mxu0
    %956 = vmatprep.mubr.f32.mxu0 0.0
    %957 = vmatmul.mubr.f32.gmra.mrb[0].mxu0 %v269
    %v958 = vpop.f32.mrb[0].mxu0
    %v959 = vadd.f32 %v300, %v958
    %v960 = vpop.f32.mrb[0].mxu0
    %961 = vmatprep.mubr.f32.mxu0 0.0
    %962 = vmatmul.mubr.f32.gmra.mrb[0].mxu0 %v270
    %v963 = vpop.f32.mrb[0].mxu0
    %v964 = vadd.f32 %v300, %v963
    %v965 = vpop.f32.mrb[0].mxu0
    %966 = vmatprep.mubr.f32.mxu0 0.0
    %967 = vmatmul.mubr.f32.gmra.mrb[0].mxu0 %v271
    %v968 = vpop.f32.mrb[0].mxu0
    %v969 = vadd.f32 %v300, %v968
    %v970 = vpop.f32.mrb[0].mxu0
    %971 = vmatprep.mubr.f32.mxu0 0.0
    %972 = vmatmul.mubr.f32.gmra.mrb[0].mxu0 %v272
    %v973 = vpop.f32.mrb[0].mxu0
    %v974 = vadd.f32 %v300, %v973
    %v975 = vpop.f32.mrb[0].mxu0
    %976 = vmatprep.mubr.f32.mxu0 0.0
    %977 = vmatmul.mubr.f32.gmra.mrb[0].mxu0 %v273
    %v978 = vpop.f32.mrb[0].mxu0
    %v979 = vadd.f32 %v300, %v978
    %v980 = vpop.f32.mrb[0].mxu0
    %981 = vmatprep.mubr.f32.mxu0 0.0
    %982 = vmatmul.mubr.f32.gmra.mrb[0].mxu0 %v274
    %v983 = vpop.f32.mrb[0].mxu0
    %v984 = vadd.f32 %v300, %v983
    %v985 = vpop.f32.mrb[0].mxu0
    %986 = vmatprep.mubr.f32.mxu0 0.0
    %987 = vmatmul.mubr.f32.gmra.mrb[0].mxu0 %v275
    %v988 = vpop.f32.mrb[0].mxu0
    %v989 = vadd.f32 %v300, %v988
    %v990 = vpop.f32.mrb[0].mxu0
    %991 = vmatprep.mubr.f32.mxu0 0.0
    %992 = vmatmul.mubr.f32.gmra.mrb[0].mxu0 %v276
    %v993 = vpop.f32.mrb[0].mxu0
    %v994 = vadd.f32 %v300, %v993
    %v995 = vpop.f32.mrb[0].mxu0
    %996 = vmatprep.mubr.f32.mxu0 0.0
    %997 = vmatmul.mubr.f32.gmra.mrb[0].mxu0 %v277
    %v998 = vpop.f32.mrb[0].mxu0
    %v999 = vadd.f32 %v300, %v998
    %v1000 = vpop.f32.mrb[0].mxu0
    %1001 = vmatprep.mubr.f32.mxu0 0.0
    %1002 = vmatmul.mubr.f32.gmra.mrb[0].mxu0 %v278
    %v1003 = vpop.f32.mrb[0].mxu0
    %v1004 = vadd.f32 %v300, %v1003
    %v1005 = vpop.f32.mrb[0].mxu0
    %1006 = vdwg.mxu0
    %1007 = vst [vmem:[#allocation2] sm:$0xff] %v369
    %1008 = vst [vmem:[#allocation2 + $0x8] sm:$0xff] %v374
    %1009 = vst [vmem:[#allocation2 + $0x10] sm:$0xff] %v379
    %1010 = vst [vmem:[#allocation2 + $0x18] sm:$0xff] %v384
    %1011 = vst [vmem:[#allocation2 + $0x20] sm:$0xff] %v389
    %1012 = vst [vmem:[#allocation2 + $0x28] sm:$0xff] %v394
    %1013 = vst [vmem:[#allocation2 + $0x30] sm:$0xff] %v399
    %1014 = vst [vmem:[#allocation2 + $0x38] sm:$0xff] %v404
    %1015 = vst [vmem:[#allocation2 + $0x40] sm:$0xff] %v409
    %1016 = vst [vmem:[#allocation2 + $0x48] sm:$0xff] %v414
    %1017 = vst [vmem:[#allocation2 + $0x50] sm:$0xff] %v419
    %1018 = vst [vmem:[#allocation2 + $0x58] sm:$0xff] %v424
    %1019 = vst [vmem:[#allocation2 + $0x60] sm:$0xff] %v429
    %1020 = vst [vmem:[#allocation2 + $0x68] sm:$0xff] %v434
    %1021 = vst [vmem:[#allocation2 + $0x70] sm:$0xff] %v439
    %1022 = vst [vmem:[#allocation2 + $0x78] sm:$0xff] %v444
    %1023 = vst [vmem:[#allocation2 + $0x80] sm:$0xff] %v449
    %1024 = vst [vmem:[#allocation2 + $0x88] sm:$0xff] %v454
    %1025 = vst [vmem:[#allocation2 + $0x90] sm:$0xff] %v459
    %1026 = vst [vmem:[#allocation2 + $0x98] sm:$0xff] %v464
    %1027 = vst [vmem:[#allocation2 + $0xa0] sm:$0xff] %v469
    %1028 = vst [vmem:[#allocation2 + $0xa8] sm:$0xff] %v474
    %1029 = vst [vmem:[#allocation2 + $0xb0] sm:$0xff] %v479
    %1030 = vst [vmem:[#allocation2 + $0xb8] sm:$0xff] %v484
    %1031 = vst [vmem:[#allocation2 + $0xc0] sm:$0xff] %v489
    %1032 = vst [vmem:[#allocation2 + $0xc8] sm:$0xff] %v494
    %1033 = vst [vmem:[#allocation2 + $0xd0] sm:$0xff] %v499
    %1034 = vst [vmem:[#allocation2 + $0xd8] sm:$0xff] %v504
    %1035 = vst [vmem:[#allocation2 + $0xe0] sm:$0xff] %v509
    %1036 = vst [vmem:[#allocation2 + $0xe8] sm:$0xff] %v514
    %1037 = vst [vmem:[#allocation2 + $0xf0] sm:$0xff] %v519
    %1038 = vst [vmem:[#allocation2 + $0xf8] sm:$0xff] %v524
    %1039 = vst [vmem:[#allocation2 + $0x100] sm:$0xff] %v529
    %1040 = vst [vmem:[#allocation2 + $0x108] sm:$0xff] %v534
    %1041 = vst [vmem:[#allocation2 + $0x110] sm:$0xff] %v539
    %1042 = vst [vmem:[#allocation2 + $0x118] sm:$0xff] %v544
    %1043 = vst [vmem:[#allocation2 + $0x120] sm:$0xff] %v549
    %1044 = vst [vmem:[#allocation2 + $0x128] sm:$0xff] %v554
    %1045 = vst [vmem:[#allocation2 + $0x130] sm:$0xff] %v559
    %1046 = vst [vmem:[#allocation2 + $0x138] sm:$0xff] %v564
    %1047 = vst [vmem:[#allocation2 + $0x140] sm:$0xff] %v569
    %1048 = vst [vmem:[#allocation2 + $0x148] sm:$0xff] %v574
    %1049 = vst [vmem:[#allocation2 + $0x150] sm:$0xff] %v579
    %1050 = vst [vmem:[#allocation2 + $0x158] sm:$0xff] %v584
    %1051 = vst [vmem:[#allocation2 + $0x160] sm:$0xff] %v589
    %1052 = vst [vmem:[#allocation2 + $0x168] sm:$0xff] %v594
    %1053 = vst [vmem:[#allocation2 + $0x170] sm:$0xff] %v599
    %1054 = vst [vmem:[#allocation2 + $0x178] sm:$0xff] %v604
    %1055 = vst [vmem:[#allocation2 + $0x180] sm:$0xff] %v609
    %1056 = vst [vmem:[#allocation2 + $0x188] sm:$0xff] %v614
    %1057 = vst [vmem:[#allocation2 + $0x190] sm:$0xff] %v619
    %1058 = vst [vmem:[#allocation2 + $0x198] sm:$0xff] %v624
    %1059 = vst [vmem:[#allocation2 + $0x1a0] sm:$0xff] %v629
    %1060 = vst [vmem:[#allocation2 + $0x1a8] sm:$0xff] %v634
    %1061 = vst [vmem:[#allocation2 + $0x1b0] sm:$0xff] %v639
    %1062 = vst [vmem:[#allocation2 + $0x1b8] sm:$0xff] %v644
    %1063 = vst [vmem:[#allocation2 + $0x1c0] sm:$0xff] %v649
    %1064 = vst [vmem:[#allocation2 + $0x1c8] sm:$0xff] %v654
    %1065 = vst [vmem:[#allocation2 + $0x1d0] sm:$0xff] %v659
    %1066 = vst [vmem:[#allocation2 + $0x1d8] sm:$0xff] %v664
    %1067 = vst [vmem:[#allocation2 + $0x1e0] sm:$0xff] %v669
    %1068 = vst [vmem:[#allocation2 + $0x1e8] sm:$0xff] %v674
    %1069 = vst [vmem:[#allocation2 + $0x1f0] sm:$0xff] %v679
    %1070 = vst [vmem:[#allocation2 + $0x1f8] sm:$0xff] %v684
    %1071 = vst [vmem:[#allocation2 + $0x200] sm:$0xff] %v689
    %1072 = vst [vmem:[#allocation2 + $0x208] sm:$0xff] %v694
    %1073 = vst [vmem:[#allocation2 + $0x210] sm:$0xff] %v699
    %1074 = vst [vmem:[#allocation2 + $0x218] sm:$0xff] %v704
    %1075 = vst [vmem:[#allocation2 + $0x220] sm:$0xff] %v709
    %1076 = vst [vmem:[#allocation2 + $0x228] sm:$0xff] %v714
    %1077 = vst [vmem:[#allocation2 + $0x230] sm:$0xff] %v719
    %1078 = vst [vmem:[#allocation2 + $0x238] sm:$0xff] %v724
    %1079 = vst [vmem:[#allocation2 + $0x240] sm:$0xff] %v729
    %1080 = vst [vmem:[#allocation2 + $0x248] sm:$0xff] %v734
    %1081 = vst [vmem:[#allocation2 + $0x250] sm:$0xff] %v739
    %1082 = vst [vmem:[#allocation2 + $0x258] sm:$0xff] %v744
    %1083 = vst [vmem:[#allocation2 + $0x260] sm:$0xff] %v749
    %1084 = vst [vmem:[#allocation2 + $0x268] sm:$0xff] %v754
    %1085 = vst [vmem:[#allocation2 + $0x270] sm:$0xff] %v759
    %1086 = vst [vmem:[#allocation2 + $0x278] sm:$0xff] %v764
    %1087 = vst [vmem:[#allocation2 + $0x280] sm:$0xff] %v769
    %1088 = vst [vmem:[#allocation2 + $0x288] sm:$0xff] %v774
    %1089 = vst [vmem:[#allocation2 + $0x290] sm:$0xff] %v779
    %1090 = vst [vmem:[#allocation2 + $0x298] sm:$0xff] %v784
    %1091 = vst [vmem:[#allocation2 + $0x2a0] sm:$0xff] %v789
    %1092 = vst [vmem:[#allocation2 + $0x2a8] sm:$0xff] %v794
    %1093 = vst [vmem:[#allocation2 + $0x2b0] sm:$0xff] %v799
    %1094 = vst [vmem:[#allocation2 + $0x2b8] sm:$0xff] %v804
    %1095 = vst [vmem:[#allocation2 + $0x2c0] sm:$0xff] %v809
    %1096 = vst [vmem:[#allocation2 + $0x2c8] sm:$0xff] %v814
    %1097 = vst [vmem:[#allocation2 + $0x2d0] sm:$0xff] %v819
    %1098 = vst [vmem:[#allocation2 + $0x2d8] sm:$0xff] %v824
    %1099 = vst [vmem:[#allocation2 + $0x2e0] sm:$0xff] %v829
    %1100 = vst [vmem:[#allocation2 + $0x2e8] sm:$0xff] %v834
    %1101 = vst [vmem:[#allocation2 + $0x2f0] sm:$0xff] %v839
    %1102 = vst [vmem:[#allocation2 + $0x2f8] sm:$0xff] %v844
    %1103 = vst [vmem:[#allocation2 + $0x300] sm:$0xff] %v849
    %1104 = vst [vmem:[#allocation2 + $0x308] sm:$0xff] %v854
    %1105 = vst [vmem:[#allocation2 + $0x310] sm:$0xff] %v859
    %1106 = vst [vmem:[#allocation2 + $0x318] sm:$0xff] %v864
    %1107 = vst [vmem:[#allocation2 + $0x320] sm:$0xff] %v869
    %1108 = vst [vmem:[#allocation2 + $0x328] sm:$0xff] %v874
    %1109 = vst [vmem:[#allocation2 + $0x330] sm:$0xff] %v879
    %1110 = vst [vmem:[#allocation2 + $0x338] sm:$0xff] %v884
    %1111 = vst [vmem:[#allocation2 + $0x340] sm:$0xff] %v889
    %1112 = vst [vmem:[#allocation2 + $0x348] sm:$0xff] %v894
    %1113 = vst [vmem:[#allocation2 + $0x350] sm:$0xff] %v899
    %1114 = vst [vmem:[#allocation2 + $0x358] sm:$0xff] %v904
    %1115 = vst [vmem:[#allocation2 + $0x360] sm:$0xff] %v909
    %1116 = vst [vmem:[#allocation2 + $0x368] sm:$0xff] %v914
    %1117 = vst [vmem:[#allocation2 + $0x370] sm:$0xff] %v919
    %1118 = vst [vmem:[#allocation2 + $0x378] sm:$0xff] %v924
    %1119 = vst [vmem:[#allocation2 + $0x380] sm:$0xff] %v929
    %1120 = vst [vmem:[#allocation2 + $0x388] sm:$0xff] %v934
    %1121 = vst [vmem:[#allocation2 + $0x390] sm:$0xff] %v939
    %1122 = vst [vmem:[#allocation2 + $0x398] sm:$0xff] %v944
    %1123 = vst [vmem:[#allocation2 + $0x3a0] sm:$0xff] %v949
    %1124 = vst [vmem:[#allocation2 + $0x3a8] sm:$0xff] %v954
    %1125 = vst [vmem:[#allocation2 + $0x3b0] sm:$0xff] %v959
    %1126 = vst [vmem:[#allocation2 + $0x3b8] sm:$0xff] %v964
    %1127 = vst [vmem:[#allocation2 + $0x3c0] sm:$0xff] %v969
    %1128 = vst [vmem:[#allocation2 + $0x3c8] sm:$0xff] %v974
    %1129 = vst [vmem:[#allocation2 + $0x3d0] sm:$0xff] %v979
    %1130 = vst [vmem:[#allocation2 + $0x3d8] sm:$0xff] %v984
    %1131 = vst [vmem:[#allocation2 + $0x3e0] sm:$0xff] %v989
    %1132 = vst [vmem:[#allocation2 + $0x3e8] sm:$0xff] %v994
    %1133 = vst [vmem:[#allocation2 + $0x3f0] sm:$0xff] %v999
    %1134 = vst [vmem:[#allocation2 + $0x3f8] sm:$0xff] %v1004
    %v1135 = vld [vmem:[#allocation5] sm:$0xff]
    %v1136 = vld [vmem:[#allocation5 + $0x8] sm:$0xff]
    %v1137 = vld [vmem:[#allocation5 + $0x10] sm:$0xff]
    %v1138 = vld [vmem:[#allocation5 + $0x18] sm:$0xff]
    %v1139 = vld [vmem:[#allocation5 + $0x20] sm:$0xff]
    %v1140 = vld [vmem:[#allocation5 + $0x28] sm:$0xff]
    %v1141 = vld [vmem:[#allocation5 + $0x30] sm:$0xff]
    %v1142 = vld [vmem:[#allocation5 + $0x38] sm:$0xff]
    %v1143 = vld [vmem:[#allocation5 + $0x40] sm:$0xff]
    %v1144 = vld [vmem:[#allocation5 + $0x48] sm:$0xff]
    %v1145 = vld [vmem:[#allocation5 + $0x50] sm:$0xff]
    %v1146 = vld [vmem:[#allocation5 + $0x58] sm:$0xff]
    %v1147 = vld [vmem:[#allocation5 + $0x60] sm:$0xff]
    %v1148 = vld [vmem:[#allocation5 + $0x68] sm:$0xff]
    %v1149 = vld [vmem:[#allocation5 + $0x70] sm:$0xff]
    %v1150 = vld [vmem:[#allocation5 + $0x78] sm:$0xff]
    %v1151 = vld [vmem:[#allocation5 + $0x80] sm:$0xff]
    %v1152 = vld [vmem:[#allocation5 + $0x88] sm:$0xff]
    %v1153 = vld [vmem:[#allocation5 + $0x90] sm:$0xff]
    %v1154 = vld [vmem:[#allocation5 + $0x98] sm:$0xff]
    %v1155 = vld [vmem:[#allocation5 + $0xa0] sm:$0xff]
    %v1156 = vld [vmem:[#allocation5 + $0xa8] sm:$0xff]
    %v1157 = vld [vmem:[#allocation5 + $0xb0] sm:$0xff]
    %v1158 = vld [vmem:[#allocation5 + $0xb8] sm:$0xff]
    %v1159 = vld [vmem:[#allocation5 + $0xc0] sm:$0xff]
    %v1160 = vld [vmem:[#allocation5 + $0xc8] sm:$0xff]
    %v1161 = vld [vmem:[#allocation5 + $0xd0] sm:$0xff]
    %v1162 = vld [vmem:[#allocation5 + $0xd8] sm:$0xff]
    %v1163 = vld [vmem:[#allocation5 + $0xe0] sm:$0xff]
    %v1164 = vld [vmem:[#allocation5 + $0xe8] sm:$0xff]
    %v1165 = vld [vmem:[#allocation5 + $0xf0] sm:$0xff]
    %v1166 = vld [vmem:[#allocation5 + $0xf8] sm:$0xff]
    %v1167 = vld [vmem:[#allocation5 + $0x100] sm:$0xff]
    %v1168 = vld [vmem:[#allocation5 + $0x108] sm:$0xff]
    %v1169 = vld [vmem:[#allocation5 + $0x110] sm:$0xff]
    %v1170 = vld [vmem:[#allocation5 + $0x118] sm:$0xff]
    %v1171 = vld [vmem:[#allocation5 + $0x120] sm:$0xff]
    %v1172 = vld [vmem:[#allocation5 + $0x128] sm:$0xff]
    %v1173 = vld [vmem:[#allocation5 + $0x130] sm:$0xff]
    %v1174 = vld [vmem:[#allocation5 + $0x138] sm:$0xff]
    %v1175 = vld [vmem:[#allocation5 + $0x140] sm:$0xff]
    %v1176 = vld [vmem:[#allocation5 + $0x148] sm:$0xff]
    %v1177 = vld [vmem:[#allocation5 + $0x150] sm:$0xff]
    %v1178 = vld [vmem:[#allocation5 + $0x158] sm:$0xff]
    %v1179 = vld [vmem:[#allocation5 + $0x160] sm:$0xff]
    %v1180 = vld [vmem:[#allocation5 + $0x168] sm:$0xff]
    %v1181 = vld [vmem:[#allocation5 + $0x170] sm:$0xff]
    %v1182 = vld [vmem:[#allocation5 + $0x178] sm:$0xff]
    %v1183 = vld [vmem:[#allocation5 + $0x180] sm:$0xff]
    %v1184 = vld [vmem:[#allocation5 + $0x188] sm:$0xff]
    %v1185 = vld [vmem:[#allocation5 + $0x190] sm:$0xff]
    %v1186 = vld [vmem:[#allocation5 + $0x198] sm:$0xff]
    %v1187 = vld [vmem:[#allocation5 + $0x1a0] sm:$0xff]
    %v1188 = vld [vmem:[#allocation5 + $0x1a8] sm:$0xff]
    %v1189 = vld [vmem:[#allocation5 + $0x1b0] sm:$0xff]
    %v1190 = vld [vmem:[#allocation5 + $0x1b8] sm:$0xff]
    %v1191 = vld [vmem:[#allocation5 + $0x1c0] sm:$0xff]
    %v1192 = vld [vmem:[#allocation5 + $0x1c8] sm:$0xff]
    %v1193 = vld [vmem:[#allocation5 + $0x1d0] sm:$0xff]
    %v1194 = vld [vmem:[#allocation5 + $0x1d8] sm:$0xff]
    %v1195 = vld [vmem:[#allocation5 + $0x1e0] sm:$0xff]
    %v1196 = vld [vmem:[#allocation5 + $0x1e8] sm:$0xff]
    %v1197 = vld [vmem:[#allocation5 + $0x1f0] sm:$0xff]
    %v1198 = vld [vmem:[#allocation5 + $0x1f8] sm:$0xff]
    %v1199 = vld [vmem:[#allocation11] sm:$0xff]
    %v1200 = vld [vmem:[#allocation11 + $0x8] sm:$0xff]
    %v1201 = vld [vmem:[#allocation11 + $0x10] sm:$0xff]
    %v1202 = vld [vmem:[#allocation11 + $0x18] sm:$0xff]
    %v1203 = vld [vmem:[#allocation11 + $0x20] sm:$0xff]
    %v1204 = vld [vmem:[#allocation11 + $0x28] sm:$0xff]
    %v1205 = vld [vmem:[#allocation11 + $0x30] sm:$0xff]
    %v1206 = vld [vmem:[#allocation11 + $0x38] sm:$0xff]
    %v1207 = vld [vmem:[#allocation11 + $0x40] sm:$0xff]
    %v1208 = vld [vmem:[#allocation11 + $0x48] sm:$0xff]
    %v1209 = vld [vmem:[#allocation11 + $0x50] sm:$0xff]
    %v1210 = vld [vmem:[#allocation11 + $0x58] sm:$0xff]
    %v1211 = vld [vmem:[#allocation11 + $0x60] sm:$0xff]
    %v1212 = vld [vmem:[#allocation11 + $0x68] sm:$0xff]
    %v1213 = vld [vmem:[#allocation11 + $0x70] sm:$0xff]
    %v1214 = vld [vmem:[#allocation11 + $0x78] sm:$0xff]
    %v1215 = vld [vmem:[%s6] sm:$0x1]
    %v1217 = vlaneseq
    %v1218 = vshrl.u32 %v1217, 7
    %v1219 = vsub.s32 0, %v1218
    %v1220 = vrot.slane %v1215, %v1219
    %1222 = vmatprep.subr.mxu0 0.0
    %1223 = vmatpush1.msra.mxu0 %v1199
    %1224 = vmatprep.subr.mxu0 0.0
    %1225 = vmatpush1.msra.mxu0 %v1200
    %1226 = vmatprep.subr.mxu0 0.0
    %1227 = vmatpush1.msra.mxu0 %v1201
    %1228 = vmatprep.subr.mxu0 0.0
    %1229 = vmatpush1.msra.mxu0 %v1202
    %1230 = vmatprep.subr.mxu0 0.0
    %1231 = vmatpush1.msra.mxu0 %v1203
    %1232 = vmatprep.subr.mxu0 0.0
    %1233 = vmatpush1.msra.mxu0 %v1204
    %1234 = vmatprep.subr.mxu0 0.0
    %1235 = vmatpush1.msra.mxu0 %v1205
    %1236 = vmatprep.subr.mxu0 0.0
    %1237 = vmatpush1.msra.mxu0 %v1206
    %1238 = vmatprep.subr.mxu0 0.0
    %1239 = vmatpush1.msra.mxu0 %v1207
    %1240 = vmatprep.subr.mxu0 0.0
    %1241 = vmatpush1.msra.mxu0 %v1208
    %1242 = vmatprep.subr.mxu0 0.0
    %1243 = vmatpush1.msra.mxu0 %v1209
    %1244 = vmatprep.subr.mxu0 0.0
    %1245 = vmatpush1.msra.mxu0 %v1210
    %1246 = vmatprep.subr.mxu0 0.0
    %1247 = vmatpush1.msra.mxu0 %v1211
    %1248 = vmatprep.subr.mxu0 0.0
    %1249 = vmatpush1.msra.mxu0 %v1212
    %1250 = vmatprep.subr.mxu0 0.0
    %1251 = vmatpush1.msra.mxu0 %v1213
    %1252 = vmatprep.subr.mxu0 0.0
    %1253 = vmatpush1.msra.mxu0 %v1214
    %1254 = vmatprep.subr.mxu0 0.0
    %1255 = vmatpush1.msra.mxu0 0.0
    %1256 = vmatprep.subr.mxu0 0.0
    %1257 = vmatpush1.msra.mxu0 0.0
    %1258 = vmatprep.subr.mxu0 0.0
    %1259 = vmatpush1.msra.mxu0 0.0
    %1260 = vmatprep.subr.mxu0 0.0
    %1261 = vmatpush1.msra.mxu0 0.0
    %1262 = vmatprep.subr.mxu0 0.0
    %1263 = vmatpush1.msra.mxu0 0.0
    %1264 = vmatprep.subr.mxu0 0.0
    %1265 = vmatpush1.msra.mxu0 0.0
    %1266 = vmatprep.subr.mxu0 0.0
    %1267 = vmatpush1.msra.mxu0 0.0
    %1268 = vmatprep.subr.mxu0 0.0
    %1269 = vmatpush1.msra.mxu0 0.0
    %1270 = vmatprep.subr.mxu0 0.0
    %1271 = vmatpush1.msra.mxu0 0.0
    %1272 = vmatprep.subr.mxu0 0.0
    %1273 = vmatpush1.msra.mxu0 0.0
    %1274 = vmatprep.subr.mxu0 0.0
    %1275 = vmatpush1.msra.mxu0 0.0
    %1276 = vmatprep.subr.mxu0 0.0
    %1277 = vmatpush1.msra.mxu0 0.0
    %1278 = vmatprep.subr.mxu0 0.0
    %1279 = vmatpush1.msra.mxu0 0.0
    %1280 = vmatprep.subr.mxu0 0.0
    %1281 = vmatpush1.msra.mxu0 0.0
    %1282 = vmatprep.subr.mxu0 0.0
    %1283 = vmatpush1.msra.mxu0 0.0
    %1284 = vmatprep.subr.mxu0 0.0
    %1285 = vmatpush1.msra.mxu0 0.0
    %1286 = vmatprep.mubr.f32.mxu0 0.0
    %1287 = vmatmul.mubr.f32.gmra.mrb[0].mxu0 %v1135
    %v1288 = vpop.f32.mrb[0].mxu0
    %v1289 = vadd.f32 %v1220, %v1288
    %v1290 = vpop.f32.mrb[0].mxu0
    %1291 = vmatprep.mubr.f32.mxu0 0.0
    %1292 = vmatmul.mubr.f32.gmra.mrb[0].mxu0 %v1136
    %v1293 = vpop.f32.mrb[0].mxu0
    %v1294 = vadd.f32 %v1220, %v1293
    %v1295 = vpop.f32.mrb[0].mxu0
    %1296 = vmatprep.mubr.f32.mxu0 0.0
    %1297 = vmatmul.mubr.f32.gmra.mrb[0].mxu0 %v1137
    %v1298 = vpop.f32.mrb[0].mxu0
    %v1299 = vadd.f32 %v1220, %v1298
    %v1300 = vpop.f32.mrb[0].mxu0
    %1301 = vmatprep.mubr.f32.mxu0 0.0
    %1302 = vmatmul.mubr.f32.gmra.mrb[0].mxu0 %v1138
    %v1303 = vpop.f32.mrb[0].mxu0
    %v1304 = vadd.f32 %v1220, %v1303
    %v1305 = vpop.f32.mrb[0].mxu0
    %1306 = vmatprep.mubr.f32.mxu0 0.0
    %1307 = vmatmul.mubr.f32.gmra.mrb[0].mxu0 %v1139
    %v1308 = vpop.f32.mrb[0].mxu0
    %v1309 = vadd.f32 %v1220, %v1308
    %v1310 = vpop.f32.mrb[0].mxu0
    %1311 = vmatprep.mubr.f32.mxu0 0.0
    %1312 = vmatmul.mubr.f32.gmra.mrb[0].mxu0 %v1140
    %v1313 = vpop.f32.mrb[0].mxu0
    %v1314 = vadd.f32 %v1220, %v1313
    %v1315 = vpop.f32.mrb[0].mxu0
    %1316 = vmatprep.mubr.f32.mxu0 0.0
    %1317 = vmatmul.mubr.f32.gmra.mrb[0].mxu0 %v1141
    %v1318 = vpop.f32.mrb[0].mxu0
    %v1319 = vadd.f32 %v1220, %v1318
    %v1320 = vpop.f32.mrb[0].mxu0
    %1321 = vmatprep.mubr.f32.mxu0 0.0
    %1322 = vmatmul.mubr.f32.gmra.mrb[0].mxu0 %v1142
    %v1323 = vpop.f32.mrb[0].mxu0
    %v1324 = vadd.f32 %v1220, %v1323
    %v1325 = vpop.f32.mrb[0].mxu0
    %1326 = vmatprep.mubr.f32.mxu0 0.0
    %1327 = vmatmul.mubr.f32.gmra.mrb[0].mxu0 %v1143
    %v1328 = vpop.f32.mrb[0].mxu0
    %v1329 = vadd.f32 %v1220, %v1328
    %v1330 = vpop.f32.mrb[0].mxu0
    %1331 = vmatprep.mubr.f32.mxu0 0.0
    %1332 = vmatmul.mubr.f32.gmra.mrb[0].mxu0 %v1144
    %v1333 = vpop.f32.mrb[0].mxu0
    %v1334 = vadd.f32 %v1220, %v1333
    %v1335 = vpop.f32.mrb[0].mxu0
    %1336 = vmatprep.mubr.f32.mxu0 0.0
    %1337 = vmatmul.mubr.f32.gmra.mrb[0].mxu0 %v1145
    %v1338 = vpop.f32.mrb[0].mxu0
    %v1339 = vadd.f32 %v1220, %v1338
    %v1340 = vpop.f32.mrb[0].mxu0
    %1341 = vmatprep.mubr.f32.mxu0 0.0
    %1342 = vmatmul.mubr.f32.gmra.mrb[0].mxu0 %v1146
    %v1343 = vpop.f32.mrb[0].mxu0
    %v1344 = vadd.f32 %v1220, %v1343
    %v1345 = vpop.f32.mrb[0].mxu0
    %1346 = vmatprep.mubr.f32.mxu0 0.0
    %1347 = vmatmul.mubr.f32.gmra.mrb[0].mxu0 %v1147
    %v1348 = vpop.f32.mrb[0].mxu0
    %v1349 = vadd.f32 %v1220, %v1348
    %v1350 = vpop.f32.mrb[0].mxu0
    %1351 = vmatprep.mubr.f32.mxu0 0.0
    %1352 = vmatmul.mubr.f32.gmra.mrb[0].mxu0 %v1148
    %v1353 = vpop.f32.mrb[0].mxu0
    %v1354 = vadd.f32 %v1220, %v1353
    %v1355 = vpop.f32.mrb[0].mxu0
    %1356 = vmatprep.mubr.f32.mxu0 0.0
    %1357 = vmatmul.mubr.f32.gmra.mrb[0].mxu0 %v1149
    %v1358 = vpop.f32.mrb[0].mxu0
    %v1359 = vadd.f32 %v1220, %v1358
    %v1360 = vpop.f32.mrb[0].mxu0
    %1361 = vmatprep.mubr.f32.mxu0 0.0
    %1362 = vmatmul.mubr.f32.gmra.mrb[0].mxu0 %v1150
    %v1363 = vpop.f32.mrb[0].mxu0
    %v1364 = vadd.f32 %v1220, %v1363
    %v1365 = vpop.f32.mrb[0].mxu0
    %1366 = vmatprep.mubr.f32.mxu0 0.0
    %1367 = vmatmul.mubr.f32.gmra.mrb[0].mxu0 %v1151
    %v1368 = vpop.f32.mrb[0].mxu0
    %v1369 = vadd.f32 %v1220, %v1368
    %v1370 = vpop.f32.mrb[0].mxu0
    %1371 = vmatprep.mubr.f32.mxu0 0.0
    %1372 = vmatmul.mubr.f32.gmra.mrb[0].mxu0 %v1152
    %v1373 = vpop.f32.mrb[0].mxu0
    %v1374 = vadd.f32 %v1220, %v1373
    %v1375 = vpop.f32.mrb[0].mxu0
    %1376 = vmatprep.mubr.f32.mxu0 0.0
    %1377 = vmatmul.mubr.f32.gmra.mrb[0].mxu0 %v1153
    %v1378 = vpop.f32.mrb[0].mxu0
    %v1379 = vadd.f32 %v1220, %v1378
    %v1380 = vpop.f32.mrb[0].mxu0
    %1381 = vmatprep.mubr.f32.mxu0 0.0
    %1382 = vmatmul.mubr.f32.gmra.mrb[0].mxu0 %v1154
    %v1383 = vpop.f32.mrb[0].mxu0
    %v1384 = vadd.f32 %v1220, %v1383
    %v1385 = vpop.f32.mrb[0].mxu0
    %1386 = vmatprep.mubr.f32.mxu0 0.0
    %1387 = vmatmul.mubr.f32.gmra.mrb[0].mxu0 %v1155
    %v1388 = vpop.f32.mrb[0].mxu0
    %v1389 = vadd.f32 %v1220, %v1388
    %v1390 = vpop.f32.mrb[0].mxu0
    %1391 = vmatprep.mubr.f32.mxu0 0.0
    %1392 = vmatmul.mubr.f32.gmra.mrb[0].mxu0 %v1156
    %v1393 = vpop.f32.mrb[0].mxu0
    %v1394 = vadd.f32 %v1220, %v1393
    %v1395 = vpop.f32.mrb[0].mxu0
    %1396 = vmatprep.mubr.f32.mxu0 0.0
    %1397 = vmatmul.mubr.f32.gmra.mrb[0].mxu0 %v1157
    %v1398 = vpop.f32.mrb[0].mxu0
    %v1399 = vadd.f32 %v1220, %v1398
    %v1400 = vpop.f32.mrb[0].mxu0
    %1401 = vmatprep.mubr.f32.mxu0 0.0
    %1402 = vmatmul.mubr.f32.gmra.mrb[0].mxu0 %v1158
    %v1403 = vpop.f32.mrb[0].mxu0
    %v1404 = vadd.f32 %v1220, %v1403
    %v1405 = vpop.f32.mrb[0].mxu0
    %1406 = vmatprep.mubr.f32.mxu0 0.0
    %1407 = vmatmul.mubr.f32.gmra.mrb[0].mxu0 %v1159
    %v1408 = vpop.f32.mrb[0].mxu0
    %v1409 = vadd.f32 %v1220, %v1408
    %v1410 = vpop.f32.mrb[0].mxu0
    %1411 = vmatprep.mubr.f32.mxu0 0.0
    %1412 = vmatmul.mubr.f32.gmra.mrb[0].mxu0 %v1160
    %v1413 = vpop.f32.mrb[0].mxu0
    %v1414 = vadd.f32 %v1220, %v1413
    %v1415 = vpop.f32.mrb[0].mxu0
    %1416 = vmatprep.mubr.f32.mxu0 0.0
    %1417 = vmatmul.mubr.f32.gmra.mrb[0].mxu0 %v1161
    %v1418 = vpop.f32.mrb[0].mxu0
    %v1419 = vadd.f32 %v1220, %v1418
    %v1420 = vpop.f32.mrb[0].mxu0
    %1421 = vmatprep.mubr.f32.mxu0 0.0
    %1422 = vmatmul.mubr.f32.gmra.mrb[0].mxu0 %v1162
    %v1423 = vpop.f32.mrb[0].mxu0
    %v1424 = vadd.f32 %v1220, %v1423
    %v1425 = vpop.f32.mrb[0].mxu0
    %1426 = vmatprep.mubr.f32.mxu0 0.0
    %1427 = vmatmul.mubr.f32.gmra.mrb[0].mxu0 %v1163
    %v1428 = vpop.f32.mrb[0].mxu0
    %v1429 = vadd.f32 %v1220, %v1428
    %v1430 = vpop.f32.mrb[0].mxu0
    %1431 = vmatprep.mubr.f32.mxu0 0.0
    %1432 = vmatmul.mubr.f32.gmra.mrb[0].mxu0 %v1164
    %v1433 = vpop.f32.mrb[0].mxu0
    %v1434 = vadd.f32 %v1220, %v1433
    %v1435 = vpop.f32.mrb[0].mxu0
    %1436 = vmatprep.mubr.f32.mxu0 0.0
    %1437 = vmatmul.mubr.f32.gmra.mrb[0].mxu0 %v1165
    %v1438 = vpop.f32.mrb[0].mxu0
    %v1439 = vadd.f32 %v1220, %v1438
    %v1440 = vpop.f32.mrb[0].mxu0
    %1441 = vmatprep.mubr.f32.mxu0 0.0
    %1442 = vmatmul.mubr.f32.gmra.mrb[0].mxu0 %v1166
    %v1443 = vpop.f32.mrb[0].mxu0
    %v1444 = vadd.f32 %v1220, %v1443
    %v1445 = vpop.f32.mrb[0].mxu0
    %1446 = vmatprep.mubr.f32.mxu0 0.0
    %1447 = vmatmul.mubr.f32.gmra.mrb[0].mxu0 %v1167
    %v1448 = vpop.f32.mrb[0].mxu0
    %v1449 = vadd.f32 %v1220, %v1448
    %v1450 = vpop.f32.mrb[0].mxu0
    %1451 = vmatprep.mubr.f32.mxu0 0.0
    %1452 = vmatmul.mubr.f32.gmra.mrb[0].mxu0 %v1168
    %v1453 = vpop.f32.mrb[0].mxu0
    %v1454 = vadd.f32 %v1220, %v1453
    %v1455 = vpop.f32.mrb[0].mxu0
    %1456 = vmatprep.mubr.f32.mxu0 0.0
    %1457 = vmatmul.mubr.f32.gmra.mrb[0].mxu0 %v1169
    %v1458 = vpop.f32.mrb[0].mxu0
    %v1459 = vadd.f32 %v1220, %v1458
    %v1460 = vpop.f32.mrb[0].mxu0
    %1461 = vmatprep.mubr.f32.mxu0 0.0
    %1462 = vmatmul.mubr.f32.gmra.mrb[0].mxu0 %v1170
    %v1463 = vpop.f32.mrb[0].mxu0
    %v1464 = vadd.f32 %v1220, %v1463
    %v1465 = vpop.f32.mrb[0].mxu0
    %1466 = vmatprep.mubr.f32.mxu0 0.0
    %1467 = vmatmul.mubr.f32.gmra.mrb[0].mxu0 %v1171
    %v1468 = vpop.f32.mrb[0].mxu0
    %v1469 = vadd.f32 %v1220, %v1468
    %v1470 = vpop.f32.mrb[0].mxu0
    %1471 = vmatprep.mubr.f32.mxu0 0.0
    %1472 = vmatmul.mubr.f32.gmra.mrb[0].mxu0 %v1172
    %v1473 = vpop.f32.mrb[0].mxu0
    %v1474 = vadd.f32 %v1220, %v1473
    %v1475 = vpop.f32.mrb[0].mxu0
    %1476 = vmatprep.mubr.f32.mxu0 0.0
    %1477 = vmatmul.mubr.f32.gmra.mrb[0].mxu0 %v1173
    %v1478 = vpop.f32.mrb[0].mxu0
    %v1479 = vadd.f32 %v1220, %v1478
    %v1480 = vpop.f32.mrb[0].mxu0
    %1481 = vmatprep.mubr.f32.mxu0 0.0
    %1482 = vmatmul.mubr.f32.gmra.mrb[0].mxu0 %v1174
    %v1483 = vpop.f32.mrb[0].mxu0
    %v1484 = vadd.f32 %v1220, %v1483
    %v1485 = vpop.f32.mrb[0].mxu0
    %1486 = vmatprep.mubr.f32.mxu0 0.0
    %1487 = vmatmul.mubr.f32.gmra.mrb[0].mxu0 %v1175
    %v1488 = vpop.f32.mrb[0].mxu0
    %v1489 = vadd.f32 %v1220, %v1488
    %v1490 = vpop.f32.mrb[0].mxu0
    %1491 = vmatprep.mubr.f32.mxu0 0.0
    %1492 = vmatmul.mubr.f32.gmra.mrb[0].mxu0 %v1176
    %v1493 = vpop.f32.mrb[0].mxu0
    %v1494 = vadd.f32 %v1220, %v1493
    %v1495 = vpop.f32.mrb[0].mxu0
    %1496 = vmatprep.mubr.f32.mxu0 0.0
    %1497 = vmatmul.mubr.f32.gmra.mrb[0].mxu0 %v1177
    %v1498 = vpop.f32.mrb[0].mxu0
    %v1499 = vadd.f32 %v1220, %v1498
    %v1500 = vpop.f32.mrb[0].mxu0
    %1501 = vmatprep.mubr.f32.mxu0 0.0
    %1502 = vmatmul.mubr.f32.gmra.mrb[0].mxu0 %v1178
    %v1503 = vpop.f32.mrb[0].mxu0
    %v1504 = vadd.f32 %v1220, %v1503
    %v1505 = vpop.f32.mrb[0].mxu0
    %1506 = vmatprep.mubr.f32.mxu0 0.0
    %1507 = vmatmul.mubr.f32.gmra.mrb[0].mxu0 %v1179
    %v1508 = vpop.f32.mrb[0].mxu0
    %v1509 = vadd.f32 %v1220, %v1508
    %v1510 = vpop.f32.mrb[0].mxu0
    %1511 = vmatprep.mubr.f32.mxu0 0.0
    %1512 = vmatmul.mubr.f32.gmra.mrb[0].mxu0 %v1180
    %v1513 = vpop.f32.mrb[0].mxu0
    %v1514 = vadd.f32 %v1220, %v1513
    %v1515 = vpop.f32.mrb[0].mxu0
    %1516 = vmatprep.mubr.f32.mxu0 0.0
    %1517 = vmatmul.mubr.f32.gmra.mrb[0].mxu0 %v1181
    %v1518 = vpop.f32.mrb[0].mxu0
    %v1519 = vadd.f32 %v1220, %v1518
    %v1520 = vpop.f32.mrb[0].mxu0
    %1521 = vmatprep.mubr.f32.mxu0 0.0
    %1522 = vmatmul.mubr.f32.gmra.mrb[0].mxu0 %v1182
    %v1523 = vpop.f32.mrb[0].mxu0
    %v1524 = vadd.f32 %v1220, %v1523
    %v1525 = vpop.f32.mrb[0].mxu0
    %1526 = vmatprep.mubr.f32.mxu0 0.0
    %1527 = vmatmul.mubr.f32.gmra.mrb[0].mxu0 %v1183
    %v1528 = vpop.f32.mrb[0].mxu0
    %v1529 = vadd.f32 %v1220, %v1528
    %v1530 = vpop.f32.mrb[0].mxu0
    %1531 = vmatprep.mubr.f32.mxu0 0.0
    %1532 = vmatmul.mubr.f32.gmra.mrb[0].mxu0 %v1184
    %v1533 = vpop.f32.mrb[0].mxu0
    %v1534 = vadd.f32 %v1220, %v1533
    %v1535 = vpop.f32.mrb[0].mxu0
    %1536 = vmatprep.mubr.f32.mxu0 0.0
    %1537 = vmatmul.mubr.f32.gmra.mrb[0].mxu0 %v1185
    %v1538 = vpop.f32.mrb[0].mxu0
    %v1539 = vadd.f32 %v1220, %v1538
    %v1540 = vpop.f32.mrb[0].mxu0
    %1541 = vmatprep.mubr.f32.mxu0 0.0
    %1542 = vmatmul.mubr.f32.gmra.mrb[0].mxu0 %v1186
    %v1543 = vpop.f32.mrb[0].mxu0
    %v1544 = vadd.f32 %v1220, %v1543
    %v1545 = vpop.f32.mrb[0].mxu0
    %1546 = vmatprep.mubr.f32.mxu0 0.0
    %1547 = vmatmul.mubr.f32.gmra.mrb[0].mxu0 %v1187
    %v1548 = vpop.f32.mrb[0].mxu0
    %v1549 = vadd.f32 %v1220, %v1548
    %v1550 = vpop.f32.mrb[0].mxu0
    %1551 = vmatprep.mubr.f32.mxu0 0.0
    %1552 = vmatmul.mubr.f32.gmra.mrb[0].mxu0 %v1188
    %v1553 = vpop.f32.mrb[0].mxu0
    %v1554 = vadd.f32 %v1220, %v1553
    %v1555 = vpop.f32.mrb[0].mxu0
    %1556 = vmatprep.mubr.f32.mxu0 0.0
    %1557 = vmatmul.mubr.f32.gmra.mrb[0].mxu0 %v1189
    %v1558 = vpop.f32.mrb[0].mxu0
    %v1559 = vadd.f32 %v1220, %v1558
    %v1560 = vpop.f32.mrb[0].mxu0
    %1561 = vmatprep.mubr.f32.mxu0 0.0
    %1562 = vmatmul.mubr.f32.gmra.mrb[0].mxu0 %v1190
    %v1563 = vpop.f32.mrb[0].mxu0
    %v1564 = vadd.f32 %v1220, %v1563
    %v1565 = vpop.f32.mrb[0].mxu0
    %1566 = vmatprep.mubr.f32.mxu0 0.0
    %1567 = vmatmul.mubr.f32.gmra.mrb[0].mxu0 %v1191
    %v1568 = vpop.f32.mrb[0].mxu0
    %v1569 = vadd.f32 %v1220, %v1568
    %v1570 = vpop.f32.mrb[0].mxu0
    %1571 = vmatprep.mubr.f32.mxu0 0.0
    %1572 = vmatmul.mubr.f32.gmra.mrb[0].mxu0 %v1192
    %v1573 = vpop.f32.mrb[0].mxu0
    %v1574 = vadd.f32 %v1220, %v1573
    %v1575 = vpop.f32.mrb[0].mxu0
    %1576 = vmatprep.mubr.f32.mxu0 0.0
    %1577 = vmatmul.mubr.f32.gmra.mrb[0].mxu0 %v1193
    %v1578 = vpop.f32.mrb[0].mxu0
    %v1579 = vadd.f32 %v1220, %v1578
    %v1580 = vpop.f32.mrb[0].mxu0
    %1581 = vmatprep.mubr.f32.mxu0 0.0
    %1582 = vmatmul.mubr.f32.gmra.mrb[0].mxu0 %v1194
    %v1583 = vpop.f32.mrb[0].mxu0
    %v1584 = vadd.f32 %v1220, %v1583
    %v1585 = vpop.f32.mrb[0].mxu0
    %1586 = vmatprep.mubr.f32.mxu0 0.0
    %1587 = vmatmul.mubr.f32.gmra.mrb[0].mxu0 %v1195
    %v1588 = vpop.f32.mrb[0].mxu0
    %v1589 = vadd.f32 %v1220, %v1588
    %v1590 = vpop.f32.mrb[0].mxu0
    %1591 = vmatprep.mubr.f32.mxu0 0.0
    %1592 = vmatmul.mubr.f32.gmra.mrb[0].mxu0 %v1196
    %v1593 = vpop.f32.mrb[0].mxu0
    %v1594 = vadd.f32 %v1220, %v1593
    %v1595 = vpop.f32.mrb[0].mxu0
    %1596 = vmatprep.mubr.f32.mxu0 0.0
    %1597 = vmatmul.mubr.f32.gmra.mrb[0].mxu0 %v1197
    %v1598 = vpop.f32.mrb[0].mxu0
    %v1599 = vadd.f32 %v1220, %v1598
    %v1600 = vpop.f32.mrb[0].mxu0
    %1601 = vmatprep.mubr.f32.mxu0 0.0
    %1602 = vmatmul.mubr.f32.gmra.mrb[0].mxu0 %v1198
    %v1603 = vpop.f32.mrb[0].mxu0
    %v1604 = vadd.f32 %v1220, %v1603
    %v1605 = vpop.f32.mrb[0].mxu0
    %1606 = vdwg.mxu0
    %1607 = vst [vmem:[#allocation3] sm:$0xff] %v1289
    %1608 = vst [vmem:[#allocation3 + $0x8] sm:$0xff] %v1294
    %1609 = vst [vmem:[#allocation3 + $0x10] sm:$0xff] %v1299
    %1610 = vst [vmem:[#allocation3 + $0x18] sm:$0xff] %v1304
    %1611 = vst [vmem:[#allocation3 + $0x20] sm:$0xff] %v1309
    %1612 = vst [vmem:[#allocation3 + $0x28] sm:$0xff] %v1314
    %1613 = vst [vmem:[#allocation3 + $0x30] sm:$0xff] %v1319
    %1614 = vst [vmem:[#allocation3 + $0x38] sm:$0xff] %v1324
    %1615 = vst [vmem:[#allocation3 + $0x40] sm:$0xff] %v1329
    %1616 = vst [vmem:[#allocation3 + $0x48] sm:$0xff] %v1334
    %1617 = vst [vmem:[#allocation3 + $0x50] sm:$0xff] %v1339
    %1618 = vst [vmem:[#allocation3 + $0x58] sm:$0xff] %v1344
    %1619 = vst [vmem:[#allocation3 + $0x60] sm:$0xff] %v1349
    %1620 = vst [vmem:[#allocation3 + $0x68] sm:$0xff] %v1354
    %1621 = vst [vmem:[#allocation3 + $0x70] sm:$0xff] %v1359
    %1622 = vst [vmem:[#allocation3 + $0x78] sm:$0xff] %v1364
    %1623 = vst [vmem:[#allocation3 + $0x80] sm:$0xff] %v1369
    %1624 = vst [vmem:[#allocation3 + $0x88] sm:$0xff] %v1374
    %1625 = vst [vmem:[#allocation3 + $0x90] sm:$0xff] %v1379
    %1626 = vst [vmem:[#allocation3 + $0x98] sm:$0xff] %v1384
    %1627 = vst [vmem:[#allocation3 + $0xa0] sm:$0xff] %v1389
    %1628 = vst [vmem:[#allocation3 + $0xa8] sm:$0xff] %v1394
    %1629 = vst [vmem:[#allocation3 + $0xb0] sm:$0xff] %v1399
    %1630 = vst [vmem:[#allocation3 + $0xb8] sm:$0xff] %v1404
    %1631 = vst [vmem:[#allocation3 + $0xc0] sm:$0xff] %v1409
    %1632 = vst [vmem:[#allocation3 + $0xc8] sm:$0xff] %v1414
    %1633 = vst [vmem:[#allocation3 + $0xd0] sm:$0xff] %v1419
    %1634 = vst [vmem:[#allocation3 + $0xd8] sm:$0xff] %v1424
    %1635 = vst [vmem:[#allocation3 + $0xe0] sm:$0xff] %v1429
    %1636 = vst [vmem:[#allocation3 + $0xe8] sm:$0xff] %v1434
    %1637 = vst [vmem:[#allocation3 + $0xf0] sm:$0xff] %v1439
    %1638 = vst [vmem:[#allocation3 + $0xf8] sm:$0xff] %v1444
    %1639 = vst [vmem:[#allocation3 + $0x100] sm:$0xff] %v1449
    %1640 = vst [vmem:[#allocation3 + $0x108] sm:$0xff] %v1454
    %1641 = vst [vmem:[#allocation3 + $0x110] sm:$0xff] %v1459
    %1642 = vst [vmem:[#allocation3 + $0x118] sm:$0xff] %v1464
    %1643 = vst [vmem:[#allocation3 + $0x120] sm:$0xff] %v1469
    %1644 = vst [vmem:[#allocation3 + $0x128] sm:$0xff] %v1474
    %1645 = vst [vmem:[#allocation3 + $0x130] sm:$0xff] %v1479
    %1646 = vst [vmem:[#allocation3 + $0x138] sm:$0xff] %v1484
    %1647 = vst [vmem:[#allocation3 + $0x140] sm:$0xff] %v1489
    %1648 = vst [vmem:[#allocation3 + $0x148] sm:$0xff] %v1494
    %1649 = vst [vmem:[#allocation3 + $0x150] sm:$0xff] %v1499
    %1650 = vst [vmem:[#allocation3 + $0x158] sm:$0xff] %v1504
    %1651 = vst [vmem:[#allocation3 + $0x160] sm:$0xff] %v1509
    %1652 = vst [vmem:[#allocation3 + $0x168] sm:$0xff] %v1514
    %1653 = vst [vmem:[#allocation3 + $0x170] sm:$0xff] %v1519
    %1654 = vst [vmem:[#allocation3 + $0x178] sm:$0xff] %v1524
    %1655 = vst [vmem:[#allocation3 + $0x180] sm:$0xff] %v1529
    %1656 = vst [vmem:[#allocation3 + $0x188] sm:$0xff] %v1534
    %1657 = vst [vmem:[#allocation3 + $0x190] sm:$0xff] %v1539
    %1658 = vst [vmem:[#allocation3 + $0x198] sm:$0xff] %v1544
    %1659 = vst [vmem:[#allocation3 + $0x1a0] sm:$0xff] %v1549
    %1660 = vst [vmem:[#allocation3 + $0x1a8] sm:$0xff] %v1554
    %1661 = vst [vmem:[#allocation3 + $0x1b0] sm:$0xff] %v1559
    %1662 = vst [vmem:[#allocation3 + $0x1b8] sm:$0xff] %v1564
    %1663 = vst [vmem:[#allocation3 + $0x1c0] sm:$0xff] %v1569
    %1664 = vst [vmem:[#allocation3 + $0x1c8] sm:$0xff] %v1574
    %1665 = vst [vmem:[#allocation3 + $0x1d0] sm:$0xff] %v1579
    %1666 = vst [vmem:[#allocation3 + $0x1d8] sm:$0xff] %v1584
    %1667 = vst [vmem:[#allocation3 + $0x1e0] sm:$0xff] %v1589
    %1668 = vst [vmem:[#allocation3 + $0x1e8] sm:$0xff] %v1594
    %1669 = vst [vmem:[#allocation3 + $0x1f0] sm:$0xff] %v1599
    %1670 = vst [vmem:[#allocation3 + $0x1f8] sm:$0xff] %v1604
    %v1671 = vld [vmem:[%s2] sm:$0xff]
    %v1672 = vld [vmem:[%s9] sm:$0x1]
    %s1673 = sld [smem:[#allocation4]]
    %v1674 = vld [vmem:[%s8] sm:$0x1]
    %v1675 = vld [vmem:[%s12] sm:$0x3]
    %v1676 = vld [vmem:[%s14] sm:$0xf]
    loop: start=0, step=1, limit=64
    $region90: #{tpu_custom_call.1} parent=1 // loop_pre_header
      _
    $region91: #{tpu_custom_call.1} parent=1 // loop_header
      %s1678 = sphi 0, %s1682
      %p1679 = scmp.ge.s32.totalorder %s1678, 64
      %v1683 = vphi 0.0, %v9271
      %v1684 = vphi 0.0, %v9269
    $region92: #{tpu_custom_call.1} parent=1 // loop_header_branch
      %1681 = sbr.rel (%p1679) target = $region96
    $region93: #{tpu_custom_call.1} parent=1 // loop_body
      %v1685 = vld [vmem:[#allocation13] sm:$0xff]
      %v1686 = vld [vmem:[#allocation13 + $0x8] sm:$0xff]
      %v1687 = vld [vmem:[#allocation13 + $0x10] sm:$0xff]
      %v1688 = vld [vmem:[#allocation13 + $0x18] sm:$0xff]
      %v1689 = vld [vmem:[#allocation13 + $0x20] sm:$0xff]
      %v1690 = vld [vmem:[#allocation13 + $0x28] sm:$0xff]
      %v1691 = vld [vmem:[#allocation13 + $0x30] sm:$0xff]
      %v1692 = vld [vmem:[#allocation13 + $0x38] sm:$0xff]
      %v1693 = vld [vmem:[#allocation13 + $0x40] sm:$0xff]
      %v1694 = vld [vmem:[#allocation13 + $0x48] sm:$0xff]
      %v1695 = vld [vmem:[#allocation13 + $0x50] sm:$0xff]
      %v1696 = vld [vmem:[#allocation13 + $0x58] sm:$0xff]
      %v1697 = vld [vmem:[#allocation13 + $0x60] sm:$0xff]
      %v1698 = vld [vmem:[#allocation13 + $0x68] sm:$0xff]
      %v1699 = vld [vmem:[#allocation13 + $0x70] sm:$0xff]
      %v1700 = vld [vmem:[#allocation13 + $0x78] sm:$0xff]
      %v1702 = vlaneseq
      %v1703 = vshrl.u32 %v1702, 7
      %v1704 = vsub.s32 0, %v1703
      %v1705 = vrot.slane %v1674, %v1704
      %1707 = vmatprep.subr.mxu0 0.0
      %1708 = vmatpush1.msra.mxu0 %v1685
      %1709 = vmatprep.subr.mxu0 0.0
      %1710 = vmatpush1.msra.mxu0 %v1686
      %1711 = vmatprep.subr.mxu0 0.0
      %1712 = vmatpush1.msra.mxu0 %v1687
      %1713 = vmatprep.subr.mxu0 0.0
      %1714 = vmatpush1.msra.mxu0 %v1688
      %1715 = vmatprep.subr.mxu0 0.0
      %1716 = vmatpush1.msra.mxu0 %v1689
      %1717 = vmatprep.subr.mxu0 0.0
      %1718 = vmatpush1.msra.mxu0 %v1690
      %1719 = vmatprep.subr.mxu0 0.0
      %1720 = vmatpush1.msra.mxu0 %v1691
      %1721 = vmatprep.subr.mxu0 0.0
      %1722 = vmatpush1.msra.mxu0 %v1692
      %1723 = vmatprep.subr.mxu0 0.0
      %1724 = vmatpush1.msra.mxu0 %v1693
      %1725 = vmatprep.subr.mxu0 0.0
      %1726 = vmatpush1.msra.mxu0 %v1694
      %1727 = vmatprep.subr.mxu0 0.0
      %1728 = vmatpush1.msra.mxu0 %v1695
      %1729 = vmatprep.subr.mxu0 0.0
      %1730 = vmatpush1.msra.mxu0 %v1696
      %1731 = vmatprep.subr.mxu0 0.0
      %1732 = vmatpush1.msra.mxu0 %v1697
      %1733 = vmatprep.subr.mxu0 0.0
      %1734 = vmatpush1.msra.mxu0 %v1698
      %1735 = vmatprep.subr.mxu0 0.0
      %1736 = vmatpush1.msra.mxu0 %v1699
      %1737 = vmatprep.subr.mxu0 0.0
      %1738 = vmatpush1.msra.mxu0 %v1700
      %1739 = vmatprep.subr.mxu0 0.0
      %1740 = vmatpush1.msra.mxu0 0.0
      %1741 = vmatprep.subr.mxu0 0.0
      %1742 = vmatpush1.msra.mxu0 0.0
      %1743 = vmatprep.subr.mxu0 0.0
      %1744 = vmatpush1.msra.mxu0 0.0
      %1745 = vmatprep.subr.mxu0 0.0
      %1746 = vmatpush1.msra.mxu0 0.0
      %1747 = vmatprep.subr.mxu0 0.0
      %1748 = vmatpush1.msra.mxu0 0.0
      %1749 = vmatprep.subr.mxu0 0.0
      %1750 = vmatpush1.msra.mxu0 0.0
      %1751 = vmatprep.subr.mxu0 0.0
      %1752 = vmatpush1.msra.mxu0 0.0
      %1753 = vmatprep.subr.mxu0 0.0
      %1754 = vmatpush1.msra.mxu0 0.0
      %1755 = vmatprep.subr.mxu0 0.0
      %1756 = vmatpush1.msra.mxu0 0.0
      %1757 = vmatprep.subr.mxu0 0.0
      %1758 = vmatpush1.msra.mxu0 0.0
      %1759 = vmatprep.subr.mxu0 0.0
      %1760 = vmatpush1.msra.mxu0 0.0
      %1761 = vmatprep.subr.mxu0 0.0
      %1762 = vmatpush1.msra.mxu0 0.0
      %1763 = vmatprep.subr.mxu0 0.0
      %1764 = vmatpush1.msra.mxu0 0.0
      %1765 = vmatprep.subr.mxu0 0.0
      %1766 = vmatpush1.msra.mxu0 0.0
      %1767 = vmatprep.subr.mxu0 0.0
      %1768 = vmatpush1.msra.mxu0 0.0
      %1769 = vmatprep.subr.mxu0 0.0
      %1770 = vmatpush1.msra.mxu0 0.0
      %1771 = vmatprep.mubr.f32.mxu0 0.0
      %1772 = vmatmul.mubr.f32.gmra.mrb[0].mxu0 %v1683
      %v1773 = vpop.f32.mrb[0].mxu0
      %v1774 = vadd.f32 %v1705, %v1773
      %v1775 = vpop.f32.mrb[0].mxu0
      %1776 = vdwg.mxu0
      %v1777 = vld [vmem:[#allocation2] sm:$0xff]
      %v1778 = vld [vmem:[#allocation2 + $0x8] sm:$0xff]
      %v1779 = vld [vmem:[#allocation2 + $0x10] sm:$0xff]
      %v1780 = vld [vmem:[#allocation2 + $0x18] sm:$0xff]
      %v1781 = vld [vmem:[#allocation2 + $0x20] sm:$0xff]
      %v1782 = vld [vmem:[#allocation2 + $0x28] sm:$0xff]
      %v1783 = vld [vmem:[#allocation2 + $0x30] sm:$0xff]
      %v1784 = vld [vmem:[#allocation2 + $0x38] sm:$0xff]
      %v1785 = vld [vmem:[#allocation2 + $0x40] sm:$0xff]
      %v1786 = vld [vmem:[#allocation2 + $0x48] sm:$0xff]
      %v1787 = vld [vmem:[#allocation2 + $0x50] sm:$0xff]
      %v1788 = vld [vmem:[#allocation2 + $0x58] sm:$0xff]
      %v1789 = vld [vmem:[#allocation2 + $0x60] sm:$0xff]
      %v1790 = vld [vmem:[#allocation2 + $0x68] sm:$0xff]
      %v1791 = vld [vmem:[#allocation2 + $0x70] sm:$0xff]
      %v1792 = vld [vmem:[#allocation2 + $0x78] sm:$0xff]
      %v1793 = vld [vmem:[#allocation2 + $0x80] sm:$0xff]
      %v1794 = vld [vmem:[#allocation2 + $0x88] sm:$0xff]
      %v1795 = vld [vmem:[#allocation2 + $0x90] sm:$0xff]
      %v1796 = vld [vmem:[#allocation2 + $0x98] sm:$0xff]
      %v1797 = vld [vmem:[#allocation2 + $0xa0] sm:$0xff]
      %v1798 = vld [vmem:[#allocation2 + $0xa8] sm:$0xff]
      %v1799 = vld [vmem:[#allocation2 + $0xb0] sm:$0xff]
      %v1800 = vld [vmem:[#allocation2 + $0xb8] sm:$0xff]
      %v1801 = vld [vmem:[#allocation2 + $0xc0] sm:$0xff]
      %v1802 = vld [vmem:[#allocation2 + $0xc8] sm:$0xff]
      %v1803 = vld [vmem:[#allocation2 + $0xd0] sm:$0xff]
      %v1804 = vld [vmem:[#allocation2 + $0xd8] sm:$0xff]
      %v1805 = vld [vmem:[#allocation2 + $0xe0] sm:$0xff]
      %v1806 = vld [vmem:[#allocation2 + $0xe8] sm:$0xff]
      %v1807 = vld [vmem:[#allocation2 + $0xf0] sm:$0xff]
      %v1808 = vld [vmem:[#allocation2 + $0xf8] sm:$0xff]
      %v1809 = vld [vmem:[#allocation2 + $0x100] sm:$0xff]
      %v1810 = vld [vmem:[#allocation2 + $0x108] sm:$0xff]
      %v1811 = vld [vmem:[#allocation2 + $0x110] sm:$0xff]
      %v1812 = vld [vmem:[#allocation2 + $0x118] sm:$0xff]
      %v1813 = vld [vmem:[#allocation2 + $0x120] sm:$0xff]
      %v1814 = vld [vmem:[#allocation2 + $0x128] sm:$0xff]
      %v1815 = vld [vmem:[#allocation2 + $0x130] sm:$0xff]
      %v1816 = vld [vmem:[#allocation2 + $0x138] sm:$0xff]
      %v1817 = vld [vmem:[#allocation2 + $0x140] sm:$0xff]
      %v1818 = vld [vmem:[#allocation2 + $0x148] sm:$0xff]
      %v1819 = vld [vmem:[#allocation2 + $0x150] sm:$0xff]
      %v1820 = vld [vmem:[#allocation2 + $0x158] sm:$0xff]
      %v1821 = vld [vmem:[#allocation2 + $0x160] sm:$0xff]
      %v1822 = vld [vmem:[#allocation2 + $0x168] sm:$0xff]
      %v1823 = vld [vmem:[#allocation2 + $0x170] sm:$0xff]
      %v1824 = vld [vmem:[#allocation2 + $0x178] sm:$0xff]
      %v1825 = vld [vmem:[#allocation2 + $0x180] sm:$0xff]
      %v1826 = vld [vmem:[#allocation2 + $0x188] sm:$0xff]
      %v1827 = vld [vmem:[#allocation2 + $0x190] sm:$0xff]
      %v1828 = vld [vmem:[#allocation2 + $0x198] sm:$0xff]
      %v1829 = vld [vmem:[#allocation2 + $0x1a0] sm:$0xff]
      %v1830 = vld [vmem:[#allocation2 + $0x1a8] sm:$0xff]
      %v1831 = vld [vmem:[#allocation2 + $0x1b0] sm:$0xff]
      %v1832 = vld [vmem:[#allocation2 + $0x1b8] sm:$0xff]
      %v1833 = vld [vmem:[#allocation2 + $0x1c0] sm:$0xff]
      %v1834 = vld [vmem:[#allocation2 + $0x1c8] sm:$0xff]
      %v1835 = vld [vmem:[#allocation2 + $0x1d0] sm:$0xff]
      %v1836 = vld [vmem:[#allocation2 + $0x1d8] sm:$0xff]
      %v1837 = vld [vmem:[#allocation2 + $0x1e0] sm:$0xff]
      %v1838 = vld [vmem:[#allocation2 + $0x1e8] sm:$0xff]
      %v1839 = vld [vmem:[#allocation2 + $0x1f0] sm:$0xff]
      %v1840 = vld [vmem:[#allocation2 + $0x1f8] sm:$0xff]
      %v1841 = vld [vmem:[#allocation2 + $0x200] sm:$0xff]
      %v1842 = vld [vmem:[#allocation2 + $0x208] sm:$0xff]
      %v1843 = vld [vmem:[#allocation2 + $0x210] sm:$0xff]
      %v1844 = vld [vmem:[#allocation2 + $0x218] sm:$0xff]
      %v1845 = vld [vmem:[#allocation2 + $0x220] sm:$0xff]
      %v1846 = vld [vmem:[#allocation2 + $0x228] sm:$0xff]
      %v1847 = vld [vmem:[#allocation2 + $0x230] sm:$0xff]
      %v1848 = vld [vmem:[#allocation2 + $0x238] sm:$0xff]
      %v1849 = vld [vmem:[#allocation2 + $0x240] sm:$0xff]
      %v1850 = vld [vmem:[#allocation2 + $0x248] sm:$0xff]
      %v1851 = vld [vmem:[#allocation2 + $0x250] sm:$0xff]
      %v1852 = vld [vmem:[#allocation2 + $0x258] sm:$0xff]
      %v1853 = vld [vmem:[#allocation2 + $0x260] sm:$0xff]
      %v1854 = vld [vmem:[#allocation2 + $0x268] sm:$0xff]
      %v1855 = vld [vmem:[#allocation2 + $0x270] sm:$0xff]
      %v1856 = vld [vmem:[#allocation2 + $0x278] sm:$0xff]
      %v1857 = vld [vmem:[#allocation2 + $0x280] sm:$0xff]
      %v1858 = vld [vmem:[#allocation2 + $0x288] sm:$0xff]
      %v1859 = vld [vmem:[#allocation2 + $0x290] sm:$0xff]
      %v1860 = vld [vmem:[#allocation2 + $0x298] sm:$0xff]
      %v1861 = vld [vmem:[#allocation2 + $0x2a0] sm:$0xff]
      %v1862 = vld [vmem:[#allocation2 + $0x2a8] sm:$0xff]
      %v1863 = vld [vmem:[#allocation2 + $0x2b0] sm:$0xff]
      %v1864 = vld [vmem:[#allocation2 + $0x2b8] sm:$0xff]
      %v1865 = vld [vmem:[#allocation2 + $0x2c0] sm:$0xff]
      %v1866 = vld [vmem:[#allocation2 + $0x2c8] sm:$0xff]
      %v1867 = vld [vmem:[#allocation2 + $0x2d0] sm:$0xff]
      %v1868 = vld [vmem:[#allocation2 + $0x2d8] sm:$0xff]
      %v1869 = vld [vmem:[#allocation2 + $0x2e0] sm:$0xff]
      %v1870 = vld [vmem:[#allocation2 + $0x2e8] sm:$0xff]
      %v1871 = vld [vmem:[#allocation2 + $0x2f0] sm:$0xff]
      %v1872 = vld [vmem:[#allocation2 + $0x2f8] sm:$0xff]
      %v1873 = vld [vmem:[#allocation2 + $0x300] sm:$0xff]
      %v1874 = vld [vmem:[#allocation2 + $0x308] sm:$0xff]
      %v1875 = vld [vmem:[#allocation2 + $0x310] sm:$0xff]
      %v1876 = vld [vmem:[#allocation2 + $0x318] sm:$0xff]
      %v1877 = vld [vmem:[#allocation2 + $0x320] sm:$0xff]
      %v1878 = vld [vmem:[#allocation2 + $0x328] sm:$0xff]
      %v1879 = vld [vmem:[#allocation2 + $0x330] sm:$0xff]
      %v1880 = vld [vmem:[#allocation2 + $0x338] sm:$0xff]
      %v1881 = vld [vmem:[#allocation2 + $0x340] sm:$0xff]
      %v1882 = vld [vmem:[#allocation2 + $0x348] sm:$0xff]
      %v1883 = vld [vmem:[#allocation2 + $0x350] sm:$0xff]
      %v1884 = vld [vmem:[#allocation2 + $0x358] sm:$0xff]
      %v1885 = vld [vmem:[#allocation2 + $0x360] sm:$0xff]
      %v1886 = vld [vmem:[#allocation2 + $0x368] sm:$0xff]
      %v1887 = vld [vmem:[#allocation2 + $0x370] sm:$0xff]
      %v1888 = vld [vmem:[#allocation2 + $0x378] sm:$0xff]
      %v1889 = vld [vmem:[#allocation2 + $0x380] sm:$0xff]
      %v1890 = vld [vmem:[#allocation2 + $0x388] sm:$0xff]
      %v1891 = vld [vmem:[#allocation2 + $0x390] sm:$0xff]
      %v1892 = vld [vmem:[#allocation2 + $0x398] sm:$0xff]
      %v1893 = vld [vmem:[#allocation2 + $0x3a0] sm:$0xff]
      %v1894 = vld [vmem:[#allocation2 + $0x3a8] sm:$0xff]
      %v1895 = vld [vmem:[#allocation2 + $0x3b0] sm:$0xff]
      %v1896 = vld [vmem:[#allocation2 + $0x3b8] sm:$0xff]
      %v1897 = vld [vmem:[#allocation2 + $0x3c0] sm:$0xff]
      %v1898 = vld [vmem:[#allocation2 + $0x3c8] sm:$0xff]
      %v1899 = vld [vmem:[#allocation2 + $0x3d0] sm:$0xff]
      %v1900 = vld [vmem:[#allocation2 + $0x3d8] sm:$0xff]
      %v1901 = vld [vmem:[#allocation2 + $0x3e0] sm:$0xff]
      %v1902 = vld [vmem:[#allocation2 + $0x3e8] sm:$0xff]
      %v1903 = vld [vmem:[#allocation2 + $0x3f0] sm:$0xff]
      %v1904 = vld [vmem:[#allocation2 + $0x3f8] sm:$0xff]
      %s1905 = smul.u32 %s1678, 8
      %s1906 = scalar_lea.vmem [#allocation3], %s1905
      %v1907 = vld [vmem:[%s1906] sm:$0xff]
      %v1909 = vcombine.high %v1907, %v1907
      %v1911 = vunpack.c.l.s4 1966171168
      %v1912 = vunpack.c.0.s8 %v1911
      %v1913 = vlaneseq
      %v1914 = vshrl.u32 %v1913, 7
      %v1915 = vsub.s32 %v1912, %v1914
      %v1916 = vrot.slane %v1907, %v1915
      %v1918 = vunpack.c.l.s4 1966171168
      %v1919 = vunpack.c.0.s8 %v1918
      %v1920 = vlaneseq
      %v1921 = vshrl.u32 %v1920, 7
      %v1922 = vsub.s32 %v1919, %v1921
      %v1923 = vrot.slane %v1909, %v1922
      %v1924 = vcombine.high %v1916, %v1916
      %v1925 = vcombine.high %v1923, %v1923
      %v1927 = vunpack.c.l.s4 1966171168
      %v1928 = vunpack.c.0.s8 %v1927
      %v1929 = vlaneseq
      %v1930 = vshrl.u32 %v1929, 7
      %v1931 = vsub.s32 %v1928, %v1930
      %v1932 = vrot.slane %v1916, %v1931
      %v1934 = vunpack.c.l.s4 1966171168
      %v1935 = vunpack.c.0.s8 %v1934
      %v1936 = vlaneseq
      %v1937 = vshrl.u32 %v1936, 7
      %v1938 = vsub.s32 %v1935, %v1937
      %v1939 = vrot.slane %v1923, %v1938
      %v1941 = vunpack.c.l.s4 1966171168
      %v1942 = vunpack.c.0.s8 %v1941
      %v1943 = vlaneseq
      %v1944 = vshrl.u32 %v1943, 7
      %v1945 = vsub.s32 %v1942, %v1944
      %v1946 = vrot.slane %v1924, %v1945
      %v1948 = vunpack.c.l.s4 1966171168
      %v1949 = vunpack.c.0.s8 %v1948
      %v1950 = vlaneseq
      %v1951 = vshrl.u32 %v1950, 7
      %v1952 = vsub.s32 %v1949, %v1951
      %v1953 = vrot.slane %v1925, %v1952
      %v1954 = vcombine.high %v1932, %v1932
      %v1955 = vcombine.high %v1939, %v1939
      %v1956 = vcombine.high %v1946, %v1946
      %v1957 = vcombine.high %v1953, %v1953
      %v1958 = vlaneseq
      %v1959 = vshrl.u32 %v1958, 7
      %v1960 = vsub.s32 0, %v1959
      %v1961 = vrot.slane %v1932, %v1960
      %v1962 = vlaneseq
      %v1963 = vshrl.u32 %v1962, 7
      %v1964 = vsub.s32 0, %v1963
      %v1965 = vrot.slane %v1946, %v1964
      %v1966 = vlaneseq
      %v1967 = vshrl.u32 %v1966, 7
      %v1968 = vsub.s32 0, %v1967
      %v1969 = vrot.slane %v1954, %v1968
      %v1970 = vlaneseq
      %v1971 = vshrl.u32 %v1970, 7
      %v1972 = vsub.s32 0, %v1971
      %v1973 = vrot.slane %v1956, %v1972
      %v1974 = vlaneseq
      %v1975 = vshrl.u32 %v1974, 7
      %v1976 = vsub.s32 0, %v1975
      %v1977 = vrot.slane %v1939, %v1976
      %v1978 = vlaneseq
      %v1979 = vshrl.u32 %v1978, 7
      %v1980 = vsub.s32 0, %v1979
      %v1981 = vrot.slane %v1953, %v1980
      %v1982 = vlaneseq
      %v1983 = vshrl.u32 %v1982, 7
      %v1984 = vsub.s32 0, %v1983
      %v1985 = vrot.slane %v1955, %v1984
      %v1986 = vlaneseq
      %v1987 = vshrl.u32 %v1986, 7
      %v1988 = vsub.s32 0, %v1987
      %v1989 = vrot.slane %v1957, %v1988
      %v1998 = vadd.f32 %v1777, %v1961
      %v1999 = vadd.f32 %v1778, %v1961
      %v2000 = vadd.f32 %v1779, %v1961
      %v2001 = vadd.f32 %v1780, %v1961
      %v2002 = vadd.f32 %v1781, %v1961
      %v2003 = vadd.f32 %v1782, %v1961
      %v2004 = vadd.f32 %v1783, %v1961
      %v2005 = vadd.f32 %v1784, %v1961
      %v2006 = vadd.f32 %v1785, %v1961
      %v2007 = vadd.f32 %v1786, %v1961
      %v2008 = vadd.f32 %v1787, %v1961
      %v2009 = vadd.f32 %v1788, %v1961
      %v2010 = vadd.f32 %v1789, %v1961
      %v2011 = vadd.f32 %v1790, %v1961
      %v2012 = vadd.f32 %v1791, %v1961
      %v2013 = vadd.f32 %v1792, %v1961
      %v2014 = vadd.f32 %v1793, %v1965
      %v2015 = vadd.f32 %v1794, %v1965
      %v2016 = vadd.f32 %v1795, %v1965
      %v2017 = vadd.f32 %v1796, %v1965
      %v2018 = vadd.f32 %v1797, %v1965
      %v2019 = vadd.f32 %v1798, %v1965
      %v2020 = vadd.f32 %v1799, %v1965
      %v2021 = vadd.f32 %v1800, %v1965
      %v2022 = vadd.f32 %v1801, %v1965
      %v2023 = vadd.f32 %v1802, %v1965
      %v2024 = vadd.f32 %v1803, %v1965
      %v2025 = vadd.f32 %v1804, %v1965
      %v2026 = vadd.f32 %v1805, %v1965
      %v2027 = vadd.f32 %v1806, %v1965
      %v2028 = vadd.f32 %v1807, %v1965
      %v2029 = vadd.f32 %v1808, %v1965
      %v2030 = vadd.f32 %v1809, %v1969
      %v2031 = vadd.f32 %v1810, %v1969
      %v2032 = vadd.f32 %v1811, %v1969
      %v2033 = vadd.f32 %v1812, %v1969
      %v2034 = vadd.f32 %v1813, %v1969
      %v2035 = vadd.f32 %v1814, %v1969
      %v2036 = vadd.f32 %v1815, %v1969
      %v2037 = vadd.f32 %v1816, %v1969
      %v2038 = vadd.f32 %v1817, %v1969
      %v2039 = vadd.f32 %v1818, %v1969
      %v2040 = vadd.f32 %v1819, %v1969
      %v2041 = vadd.f32 %v1820, %v1969
      %v2042 = vadd.f32 %v1821, %v1969
      %v2043 = vadd.f32 %v1822, %v1969
      %v2044 = vadd.f32 %v1823, %v1969
      %v2045 = vadd.f32 %v1824, %v1969
      %v2046 = vadd.f32 %v1825, %v1973
      %v2047 = vadd.f32 %v1826, %v1973
      %v2048 = vadd.f32 %v1827, %v1973
      %v2049 = vadd.f32 %v1828, %v1973
      %v2050 = vadd.f32 %v1829, %v1973
      %v2051 = vadd.f32 %v1830, %v1973
      %v2052 = vadd.f32 %v1831, %v1973
      %v2053 = vadd.f32 %v1832, %v1973
      %v2054 = vadd.f32 %v1833, %v1973
      %v2055 = vadd.f32 %v1834, %v1973
      %v2056 = vadd.f32 %v1835, %v1973
      %v2057 = vadd.f32 %v1836, %v1973
      %v2058 = vadd.f32 %v1837, %v1973
      %v2059 = vadd.f32 %v1838, %v1973
      %v2060 = vadd.f32 %v1839, %v1973
      %v2061 = vadd.f32 %v1840, %v1973
      %v2062 = vadd.f32 %v1841, %v1977
      %v2063 = vadd.f32 %v1842, %v1977
      %v2064 = vadd.f32 %v1843, %v1977
      %v2065 = vadd.f32 %v1844, %v1977
      %v2066 = vadd.f32 %v1845, %v1977
      %v2067 = vadd.f32 %v1846, %v1977
      %v2068 = vadd.f32 %v1847, %v1977
      %v2069 = vadd.f32 %v1848, %v1977
      %v2070 = vadd.f32 %v1849, %v1977
      %v2071 = vadd.f32 %v1850, %v1977
      %v2072 = vadd.f32 %v1851, %v1977
      %v2073 = vadd.f32 %v1852, %v1977
      %v2074 = vadd.f32 %v1853, %v1977
      %v2075 = vadd.f32 %v1854, %v1977
      %v2076 = vadd.f32 %v1855, %v1977
      %v2077 = vadd.f32 %v1856, %v1977
      %v2078 = vadd.f32 %v1857, %v1981
      %v2079 = vadd.f32 %v1858, %v1981
      %v2080 = vadd.f32 %v1859, %v1981
      %v2081 = vadd.f32 %v1860, %v1981
      %v2082 = vadd.f32 %v1861, %v1981
      %v2083 = vadd.f32 %v1862, %v1981
      %v2084 = vadd.f32 %v1863, %v1981
      %v2085 = vadd.f32 %v1864, %v1981
      %v2086 = vadd.f32 %v1865, %v1981
      %v2087 = vadd.f32 %v1866, %v1981
      %v2088 = vadd.f32 %v1867, %v1981
      %v2089 = vadd.f32 %v1868, %v1981
      %v2090 = vadd.f32 %v1869, %v1981
      %v2091 = vadd.f32 %v1870, %v1981
      %v2092 = vadd.f32 %v1871, %v1981
      %v2093 = vadd.f32 %v1872, %v1981
      %v2094 = vadd.f32 %v1873, %v1985
      %v2095 = vadd.f32 %v1874, %v1985
      %v2096 = vadd.f32 %v1875, %v1985
      %v2097 = vadd.f32 %v1876, %v1985
      %v2098 = vadd.f32 %v1877, %v1985
      %v2099 = vadd.f32 %v1878, %v1985
      %v2100 = vadd.f32 %v1879, %v1985
      %v2101 = vadd.f32 %v1880, %v1985
      %v2102 = vadd.f32 %v1881, %v1985
      %v2103 = vadd.f32 %v1882, %v1985
      %v2104 = vadd.f32 %v1883, %v1985
      %v2105 = vadd.f32 %v1884, %v1985
      %v2106 = vadd.f32 %v1885, %v1985
      %v2107 = vadd.f32 %v1886, %v1985
      %v2108 = vadd.f32 %v1887, %v1985
      %v2109 = vadd.f32 %v1888, %v1985
      %v2110 = vadd.f32 %v1889, %v1989
      %v2111 = vadd.f32 %v1890, %v1989
      %v2112 = vadd.f32 %v1891, %v1989
      %v2113 = vadd.f32 %v1892, %v1989
      %v2114 = vadd.f32 %v1893, %v1989
      %v2115 = vadd.f32 %v1894, %v1989
      %v2116 = vadd.f32 %v1895, %v1989
      %v2117 = vadd.f32 %v1896, %v1989
      %v2118 = vadd.f32 %v1897, %v1989
      %v2119 = vadd.f32 %v1898, %v1989
      %v2120 = vadd.f32 %v1899, %v1989
      %v2121 = vadd.f32 %v1900, %v1989
      %v2122 = vadd.f32 %v1901, %v1989
      %v2123 = vadd.f32 %v1902, %v1989
      %v2124 = vadd.f32 %v1903, %v1989
      %v2125 = vadd.f32 %v1904, %v1989
      %v2127 = vcombine.high %v1774, %v1774
      %v2129 = vunpack.c.l.s4 1966171168
      %v2130 = vunpack.c.0.s8 %v2129
      %v2131 = vlaneseq
      %v2132 = vshrl.u32 %v2131, 7
      %v2133 = vsub.s32 %v2130, %v2132
      %v2134 = vrot.slane %v1774, %v2133
      %v2136 = vunpack.c.l.s4 1966171168
      %v2137 = vunpack.c.0.s8 %v2136
      %v2138 = vlaneseq
      %v2139 = vshrl.u32 %v2138, 7
      %v2140 = vsub.s32 %v2137, %v2139
      %v2141 = vrot.slane %v2127, %v2140
      %v2142 = vcombine.high %v2134, %v2134
      %v2143 = vcombine.high %v2141, %v2141
      %v2145 = vunpack.c.l.s4 1966171168
      %v2146 = vunpack.c.0.s8 %v2145
      %v2147 = vlaneseq
      %v2148 = vshrl.u32 %v2147, 7
      %v2149 = vsub.s32 %v2146, %v2148
      %v2150 = vrot.slane %v2134, %v2149
      %v2152 = vunpack.c.l.s4 1966171168
      %v2153 = vunpack.c.0.s8 %v2152
      %v2154 = vlaneseq
      %v2155 = vshrl.u32 %v2154, 7
      %v2156 = vsub.s32 %v2153, %v2155
      %v2157 = vrot.slane %v2141, %v2156
      %v2159 = vunpack.c.l.s4 1966171168
      %v2160 = vunpack.c.0.s8 %v2159
      %v2161 = vlaneseq
      %v2162 = vshrl.u32 %v2161, 7
      %v2163 = vsub.s32 %v2160, %v2162
      %v2164 = vrot.slane %v2142, %v2163
      %v2166 = vunpack.c.l.s4 1966171168
      %v2167 = vunpack.c.0.s8 %v2166
      %v2168 = vlaneseq
      %v2169 = vshrl.u32 %v2168, 7
      %v2170 = vsub.s32 %v2167, %v2169
      %v2171 = vrot.slane %v2143, %v2170
      %v2172 = vcombine.high %v2150, %v2150
      %v2173 = vcombine.high %v2157, %v2157
      %v2174 = vcombine.high %v2164, %v2164
      %v2175 = vcombine.high %v2171, %v2171
      %v2176 = vlaneseq
      %v2177 = vshrl.u32 %v2176, 7
      %v2178 = vsub.s32 0, %v2177
      %v2179 = vrot.slane %v2150, %v2178
      %v2180 = vlaneseq
      %v2181 = vshrl.u32 %v2180, 7
      %v2182 = vsub.s32 0, %v2181
      %v2183 = vrot.slane %v2164, %v2182
      %v2184 = vlaneseq
      %v2185 = vshrl.u32 %v2184, 7
      %v2186 = vsub.s32 0, %v2185
      %v2187 = vrot.slane %v2172, %v2186
      %v2188 = vlaneseq
      %v2189 = vshrl.u32 %v2188, 7
      %v2190 = vsub.s32 0, %v2189
      %v2191 = vrot.slane %v2174, %v2190
      %v2192 = vlaneseq
      %v2193 = vshrl.u32 %v2192, 7
      %v2194 = vsub.s32 0, %v2193
      %v2195 = vrot.slane %v2157, %v2194
      %v2196 = vlaneseq
      %v2197 = vshrl.u32 %v2196, 7
      %v2198 = vsub.s32 0, %v2197
      %v2199 = vrot.slane %v2171, %v2198
      %v2200 = vlaneseq
      %v2201 = vshrl.u32 %v2200, 7
      %v2202 = vsub.s32 0, %v2201
      %v2203 = vrot.slane %v2173, %v2202
      %v2204 = vlaneseq
      %v2205 = vshrl.u32 %v2204, 7
      %v2206 = vsub.s32 0, %v2205
      %v2207 = vrot.slane %v2175, %v2206
      %v2216 = vadd.f32 %v1998, %v2179
      %v2217 = vadd.f32 %v1999, %v2179
      %v2218 = vadd.f32 %v2000, %v2179
      %v2219 = vadd.f32 %v2001, %v2179
      %v2220 = vadd.f32 %v2002, %v2179
      %v2221 = vadd.f32 %v2003, %v2179
      %v2222 = vadd.f32 %v2004, %v2179
      %v2223 = vadd.f32 %v2005, %v2179
      %v2224 = vadd.f32 %v2006, %v2179
      %v2225 = vadd.f32 %v2007, %v2179
      %v2226 = vadd.f32 %v2008, %v2179
      %v2227 = vadd.f32 %v2009, %v2179
      %v2228 = vadd.f32 %v2010, %v2179
      %v2229 = vadd.f32 %v2011, %v2179
      %v2230 = vadd.f32 %v2012, %v2179
      %v2231 = vadd.f32 %v2013, %v2179
      %v2232 = vadd.f32 %v2014, %v2183
      %v2233 = vadd.f32 %v2015, %v2183
      %v2234 = vadd.f32 %v2016, %v2183
      %v2235 = vadd.f32 %v2017, %v2183
      %v2236 = vadd.f32 %v2018, %v2183
      %v2237 = vadd.f32 %v2019, %v2183
      %v2238 = vadd.f32 %v2020, %v2183
      %v2239 = vadd.f32 %v2021, %v2183
      %v2240 = vadd.f32 %v2022, %v2183
      %v2241 = vadd.f32 %v2023, %v2183
      %v2242 = vadd.f32 %v2024, %v2183
      %v2243 = vadd.f32 %v2025, %v2183
      %v2244 = vadd.f32 %v2026, %v2183
      %v2245 = vadd.f32 %v2027, %v2183
      %v2246 = vadd.f32 %v2028, %v2183
      %v2247 = vadd.f32 %v2029, %v2183
      %v2248 = vadd.f32 %v2030, %v2187
      %v2249 = vadd.f32 %v2031, %v2187
      %v2250 = vadd.f32 %v2032, %v2187
      %v2251 = vadd.f32 %v2033, %v2187
      %v2252 = vadd.f32 %v2034, %v2187
      %v2253 = vadd.f32 %v2035, %v2187
      %v2254 = vadd.f32 %v2036, %v2187
      %v2255 = vadd.f32 %v2037, %v2187
      %v2256 = vadd.f32 %v2038, %v2187
      %v2257 = vadd.f32 %v2039, %v2187
      %v2258 = vadd.f32 %v2040, %v2187
      %v2259 = vadd.f32 %v2041, %v2187
      %v2260 = vadd.f32 %v2042, %v2187
      %v2261 = vadd.f32 %v2043, %v2187
      %v2262 = vadd.f32 %v2044, %v2187
      %v2263 = vadd.f32 %v2045, %v2187
      %v2264 = vadd.f32 %v2046, %v2191
      %v2265 = vadd.f32 %v2047, %v2191
      %v2266 = vadd.f32 %v2048, %v2191
      %v2267 = vadd.f32 %v2049, %v2191
      %v2268 = vadd.f32 %v2050, %v2191
      %v2269 = vadd.f32 %v2051, %v2191
      %v2270 = vadd.f32 %v2052, %v2191
      %v2271 = vadd.f32 %v2053, %v2191
      %v2272 = vadd.f32 %v2054, %v2191
      %v2273 = vadd.f32 %v2055, %v2191
      %v2274 = vadd.f32 %v2056, %v2191
      %v2275 = vadd.f32 %v2057, %v2191
      %v2276 = vadd.f32 %v2058, %v2191
      %v2277 = vadd.f32 %v2059, %v2191
      %v2278 = vadd.f32 %v2060, %v2191
      %v2279 = vadd.f32 %v2061, %v2191
      %v2280 = vadd.f32 %v2062, %v2195
      %v2281 = vadd.f32 %v2063, %v2195
      %v2282 = vadd.f32 %v2064, %v2195
      %v2283 = vadd.f32 %v2065, %v2195
      %v2284 = vadd.f32 %v2066, %v2195
      %v2285 = vadd.f32 %v2067, %v2195
      %v2286 = vadd.f32 %v2068, %v2195
      %v2287 = vadd.f32 %v2069, %v2195
      %v2288 = vadd.f32 %v2070, %v2195
      %v2289 = vadd.f32 %v2071, %v2195
      %v2290 = vadd.f32 %v2072, %v2195
      %v2291 = vadd.f32 %v2073, %v2195
      %v2292 = vadd.f32 %v2074, %v2195
      %v2293 = vadd.f32 %v2075, %v2195
      %v2294 = vadd.f32 %v2076, %v2195
      %v2295 = vadd.f32 %v2077, %v2195
      %v2296 = vadd.f32 %v2078, %v2199
      %v2297 = vadd.f32 %v2079, %v2199
      %v2298 = vadd.f32 %v2080, %v2199
      %v2299 = vadd.f32 %v2081, %v2199
      %v2300 = vadd.f32 %v2082, %v2199
      %v2301 = vadd.f32 %v2083, %v2199
      %v2302 = vadd.f32 %v2084, %v2199
      %v2303 = vadd.f32 %v2085, %v2199
      %v2304 = vadd.f32 %v2086, %v2199
      %v2305 = vadd.f32 %v2087, %v2199
      %v2306 = vadd.f32 %v2088, %v2199
      %v2307 = vadd.f32 %v2089, %v2199
      %v2308 = vadd.f32 %v2090, %v2199
      %v2309 = vadd.f32 %v2091, %v2199
      %v2310 = vadd.f32 %v2092, %v2199
      %v2311 = vadd.f32 %v2093, %v2199
      %v2312 = vadd.f32 %v2094, %v2203
      %v2313 = vadd.f32 %v2095, %v2203
      %v2314 = vadd.f32 %v2096, %v2203
      %v2315 = vadd.f32 %v2097, %v2203
      %v2316 = vadd.f32 %v2098, %v2203
      %v2317 = vadd.f32 %v2099, %v2203
      %v2318 = vadd.f32 %v2100, %v2203
      %v2319 = vadd.f32 %v2101, %v2203
      %v2320 = vadd.f32 %v2102, %v2203
      %v2321 = vadd.f32 %v2103, %v2203
      %v2322 = vadd.f32 %v2104, %v2203
      %v2323 = vadd.f32 %v2105, %v2203
      %v2324 = vadd.f32 %v2106, %v2203
      %v2325 = vadd.f32 %v2107, %v2203
      %v2326 = vadd.f32 %v2108, %v2203
      %v2327 = vadd.f32 %v2109, %v2203
      %v2328 = vadd.f32 %v2110, %v2207
      %v2329 = vadd.f32 %v2111, %v2207
      %v2330 = vadd.f32 %v2112, %v2207
      %v2331 = vadd.f32 %v2113, %v2207
      %v2332 = vadd.f32 %v2114, %v2207
      %v2333 = vadd.f32 %v2115, %v2207
      %v2334 = vadd.f32 %v2116, %v2207
      %v2335 = vadd.f32 %v2117, %v2207
      %v2336 = vadd.f32 %v2118, %v2207
      %v2337 = vadd.f32 %v2119, %v2207
      %v2338 = vadd.f32 %v2120, %v2207
      %v2339 = vadd.f32 %v2121, %v2207
      %v2340 = vadd.f32 %v2122, %v2207
      %v2341 = vadd.f32 %v2123, %v2207
      %v2342 = vadd.f32 %v2124, %v2207
      %v2343 = vadd.f32 %v2125, %v2207
      %v2344 = vtanh.pop %v2216
      %v2345 = vtanh.pop %v2217
      %v2346 = vtanh.pop %v2218
      %v2347 = vtanh.pop %v2219
      %v2348 = vtanh.pop %v2220
      %v2349 = vtanh.pop %v2221
      %v2350 = vtanh.pop %v2222
      %v2351 = vtanh.pop %v2223
      %v2352 = vtanh.pop %v2224
      %v2353 = vtanh.pop %v2225
      %v2354 = vtanh.pop %v2226
      %v2355 = vtanh.pop %v2227
      %v2356 = vtanh.pop %v2228
      %v2357 = vtanh.pop %v2229
      %v2358 = vtanh.pop %v2230
      %v2359 = vtanh.pop %v2231
      %v2360 = vtanh.pop %v2232
      %v2361 = vtanh.pop %v2233
      %v2362 = vtanh.pop %v2234
      %v2363 = vtanh.pop %v2235
      %v2364 = vtanh.pop %v2236
      %v2365 = vtanh.pop %v2237
      %v2366 = vtanh.pop %v2238
      %v2367 = vtanh.pop %v2239
      %v2368 = vtanh.pop %v2240
      %v2369 = vtanh.pop %v2241
      %v2370 = vtanh.pop %v2242
      %v2371 = vtanh.pop %v2243
      %v2372 = vtanh.pop %v2244
      %v2373 = vtanh.pop %v2245
      %v2374 = vtanh.pop %v2246
      %v2375 = vtanh.pop %v2247
      %v2376 = vtanh.pop %v2248
      %v2377 = vtanh.pop %v2249
      %v2378 = vtanh.pop %v2250
      %v2379 = vtanh.pop %v2251
      %v2380 = vtanh.pop %v2252
      %v2381 = vtanh.pop %v2253
      %v2382 = vtanh.pop %v2254
      %v2383 = vtanh.pop %v2255
      %v2384 = vtanh.pop %v2256
      %v2385 = vtanh.pop %v2257
      %v2386 = vtanh.pop %v2258
      %v2387 = vtanh.pop %v2259
      %v2388 = vtanh.pop %v2260
      %v2389 = vtanh.pop %v2261
      %v2390 = vtanh.pop %v2262
      %v2391 = vtanh.pop %v2263
      %v2392 = vtanh.pop %v2264
      %v2393 = vtanh.pop %v2265
      %v2394 = vtanh.pop %v2266
      %v2395 = vtanh.pop %v2267
      %v2396 = vtanh.pop %v2268
      %v2397 = vtanh.pop %v2269
      %v2398 = vtanh.pop %v2270
      %v2399 = vtanh.pop %v2271
      %v2400 = vtanh.pop %v2272
      %v2401 = vtanh.pop %v2273
      %v2402 = vtanh.pop %v2274
      %v2403 = vtanh.pop %v2275
      %v2404 = vtanh.pop %v2276
      %v2405 = vtanh.pop %v2277
      %v2406 = vtanh.pop %v2278
      %v2407 = vtanh.pop %v2279
      %v2408 = vtanh.pop %v2280
      %v2409 = vtanh.pop %v2281
      %v2410 = vtanh.pop %v2282
      %v2411 = vtanh.pop %v2283
      %v2412 = vtanh.pop %v2284
      %v2413 = vtanh.pop %v2285
      %v2414 = vtanh.pop %v2286
      %v2415 = vtanh.pop %v2287
      %v2416 = vtanh.pop %v2288
      %v2417 = vtanh.pop %v2289
      %v2418 = vtanh.pop %v2290
      %v2419 = vtanh.pop %v2291
      %v2420 = vtanh.pop %v2292
      %v2421 = vtanh.pop %v2293
      %v2422 = vtanh.pop %v2294
      %v2423 = vtanh.pop %v2295
      %v2424 = vtanh.pop %v2296
      %v2425 = vtanh.pop %v2297
      %v2426 = vtanh.pop %v2298
      %v2427 = vtanh.pop %v2299
      %v2428 = vtanh.pop %v2300
      %v2429 = vtanh.pop %v2301
      %v2430 = vtanh.pop %v2302
      %v2431 = vtanh.pop %v2303
      %v2432 = vtanh.pop %v2304
      %v2433 = vtanh.pop %v2305
      %v2434 = vtanh.pop %v2306
      %v2435 = vtanh.pop %v2307
      %v2436 = vtanh.pop %v2308
      %v2437 = vtanh.pop %v2309
      %v2438 = vtanh.pop %v2310
      %v2439 = vtanh.pop %v2311
      %v2440 = vtanh.pop %v2312
      %v2441 = vtanh.pop %v2313
      %v2442 = vtanh.pop %v2314
      %v2443 = vtanh.pop %v2315
      %v2444 = vtanh.pop %v2316
      %v2445 = vtanh.pop %v2317
      %v2446 = vtanh.pop %v2318
      %v2447 = vtanh.pop %v2319
      %v2448 = vtanh.pop %v2320
      %v2449 = vtanh.pop %v2321
      %v2450 = vtanh.pop %v2322
      %v2451 = vtanh.pop %v2323
      %v2452 = vtanh.pop %v2324
      %v2453 = vtanh.pop %v2325
      %v2454 = vtanh.pop %v2326
      %v2455 = vtanh.pop %v2327
      %v2456 = vtanh.pop %v2328
      %v2457 = vtanh.pop %v2329
      %v2458 = vtanh.pop %v2330
      %v2459 = vtanh.pop %v2331
      %v2460 = vtanh.pop %v2332
      %v2461 = vtanh.pop %v2333
      %v2462 = vtanh.pop %v2334
      %v2463 = vtanh.pop %v2335
      %v2464 = vtanh.pop %v2336
      %v2465 = vtanh.pop %v2337
      %v2466 = vtanh.pop %v2338
      %v2467 = vtanh.pop %v2339
      %v2468 = vtanh.pop %v2340
      %v2469 = vtanh.pop %v2341
      %v2470 = vtanh.pop %v2342
      %v2471 = vtanh.pop %v2343
      %v2473 = vlaneseq
      %v2474 = vshrl.u32 %v2473, 7
      %v2475 = vsub.s32 0, %v2474
      %v2476 = vrot.slane %v1672, %v2475
      %v2478 = vmul.f32 %v2344, %v2476
      %v2479 = vmul.f32 %v2345, %v2476
      %v2480 = vmul.f32 %v2346, %v2476
      %v2481 = vmul.f32 %v2347, %v2476
      %v2482 = vmul.f32 %v2348, %v2476
      %v2483 = vmul.f32 %v2349, %v2476
      %v2484 = vmul.f32 %v2350, %v2476
      %v2485 = vmul.f32 %v2351, %v2476
      %v2486 = vmul.f32 %v2352, %v2476
      %v2487 = vmul.f32 %v2353, %v2476
      %v2488 = vmul.f32 %v2354, %v2476
      %v2489 = vmul.f32 %v2355, %v2476
      %v2490 = vmul.f32 %v2356, %v2476
      %v2491 = vmul.f32 %v2357, %v2476
      %v2492 = vmul.f32 %v2358, %v2476
      %v2493 = vmul.f32 %v2359, %v2476
      %v2494 = vmul.f32 %v2360, %v2476
      %v2495 = vmul.f32 %v2361, %v2476
      %v2496 = vmul.f32 %v2362, %v2476
      %v2497 = vmul.f32 %v2363, %v2476
      %v2498 = vmul.f32 %v2364, %v2476
      %v2499 = vmul.f32 %v2365, %v2476
      %v2500 = vmul.f32 %v2366, %v2476
      %v2501 = vmul.f32 %v2367, %v2476
      %v2502 = vmul.f32 %v2368, %v2476
      %v2503 = vmul.f32 %v2369, %v2476
      %v2504 = vmul.f32 %v2370, %v2476
      %v2505 = vmul.f32 %v2371, %v2476
      %v2506 = vmul.f32 %v2372, %v2476
      %v2507 = vmul.f32 %v2373, %v2476
      %v2508 = vmul.f32 %v2374, %v2476
      %v2509 = vmul.f32 %v2375, %v2476
      %v2510 = vmul.f32 %v2376, %v2476
      %v2511 = vmul.f32 %v2377, %v2476
      %v2512 = vmul.f32 %v2378, %v2476
      %v2513 = vmul.f32 %v2379, %v2476
      %v2514 = vmul.f32 %v2380, %v2476
      %v2515 = vmul.f32 %v2381, %v2476
      %v2516 = vmul.f32 %v2382, %v2476
      %v2517 = vmul.f32 %v2383, %v2476
      %v2518 = vmul.f32 %v2384, %v2476
      %v2519 = vmul.f32 %v2385, %v2476
      %v2520 = vmul.f32 %v2386, %v2476
      %v2521 = vmul.f32 %v2387, %v2476
      %v2522 = vmul.f32 %v2388, %v2476
      %v2523 = vmul.f32 %v2389, %v2476
      %v2524 = vmul.f32 %v2390, %v2476
      %v2525 = vmul.f32 %v2391, %v2476
      %v2526 = vmul.f32 %v2392, %v2476
      %v2527 = vmul.f32 %v2393, %v2476
      %v2528 = vmul.f32 %v2394, %v2476
      %v2529 = vmul.f32 %v2395, %v2476
      %v2530 = vmul.f32 %v2396, %v2476
      %v2531 = vmul.f32 %v2397, %v2476
      %v2532 = vmul.f32 %v2398, %v2476
      %v2533 = vmul.f32 %v2399, %v2476
      %v2534 = vmul.f32 %v2400, %v2476
      %v2535 = vmul.f32 %v2401, %v2476
      %v2536 = vmul.f32 %v2402, %v2476
      %v2537 = vmul.f32 %v2403, %v2476
      %v2538 = vmul.f32 %v2404, %v2476
      %v2539 = vmul.f32 %v2405, %v2476
      %v2540 = vmul.f32 %v2406, %v2476
      %v2541 = vmul.f32 %v2407, %v2476
      %v2542 = vmul.f32 %v2408, %v2476
      %v2543 = vmul.f32 %v2409, %v2476
      %v2544 = vmul.f32 %v2410, %v2476
      %v2545 = vmul.f32 %v2411, %v2476
      %v2546 = vmul.f32 %v2412, %v2476
      %v2547 = vmul.f32 %v2413, %v2476
      %v2548 = vmul.f32 %v2414, %v2476
      %v2549 = vmul.f32 %v2415, %v2476
      %v2550 = vmul.f32 %v2416, %v2476
      %v2551 = vmul.f32 %v2417, %v2476
      %v2552 = vmul.f32 %v2418, %v2476
      %v2553 = vmul.f32 %v2419, %v2476
      %v2554 = vmul.f32 %v2420, %v2476
      %v2555 = vmul.f32 %v2421, %v2476
      %v2556 = vmul.f32 %v2422, %v2476
      %v2557 = vmul.f32 %v2423, %v2476
      %v2558 = vmul.f32 %v2424, %v2476
      %v2559 = vmul.f32 %v2425, %v2476
      %v2560 = vmul.f32 %v2426, %v2476
      %v2561 = vmul.f32 %v2427, %v2476
      %v2562 = vmul.f32 %v2428, %v2476
      %v2563 = vmul.f32 %v2429, %v2476
      %v2564 = vmul.f32 %v2430, %v2476
      %v2565 = vmul.f32 %v2431, %v2476
      %v2566 = vmul.f32 %v2432, %v2476
      %v2567 = vmul.f32 %v2433, %v2476
      %v2568 = vmul.f32 %v2434, %v2476
      %v2569 = vmul.f32 %v2435, %v2476
      %v2570 = vmul.f32 %v2436, %v2476
      %v2571 = vmul.f32 %v2437, %v2476
      %v2572 = vmul.f32 %v2438, %v2476
      %v2573 = vmul.f32 %v2439, %v2476
      %v2574 = vmul.f32 %v2440, %v2476
      %v2575 = vmul.f32 %v2441, %v2476
      %v2576 = vmul.f32 %v2442, %v2476
      %v2577 = vmul.f32 %v2443, %v2476
      %v2578 = vmul.f32 %v2444, %v2476
      %v2579 = vmul.f32 %v2445, %v2476
      %v2580 = vmul.f32 %v2446, %v2476
      %v2581 = vmul.f32 %v2447, %v2476
      %v2582 = vmul.f32 %v2448, %v2476
      %v2583 = vmul.f32 %v2449, %v2476
      %v2584 = vmul.f32 %v2450, %v2476
      %v2585 = vmul.f32 %v2451, %v2476
      %v2586 = vmul.f32 %v2452, %v2476
      %v2587 = vmul.f32 %v2453, %v2476
      %v2588 = vmul.f32 %v2454, %v2476
      %v2589 = vmul.f32 %v2455, %v2476
      %v2590 = vmul.f32 %v2456, %v2476
      %v2591 = vmul.f32 %v2457, %v2476
      %v2592 = vmul.f32 %v2458, %v2476
      %v2593 = vmul.f32 %v2459, %v2476
      %v2594 = vmul.f32 %v2460, %v2476
      %v2595 = vmul.f32 %v2461, %v2476
      %v2596 = vmul.f32 %v2462, %v2476
      %v2597 = vmul.f32 %v2463, %v2476
      %v2598 = vmul.f32 %v2464, %v2476
      %v2599 = vmul.f32 %v2465, %v2476
      %v2600 = vmul.f32 %v2466, %v2476
      %v2601 = vmul.f32 %v2467, %v2476
      %v2602 = vmul.f32 %v2468, %v2476
      %v2603 = vmul.f32 %v2469, %v2476
      %v2604 = vmul.f32 %v2470, %v2476
      %v2605 = vmul.f32 %v2471, %v2476
      %2606 = vadd.xlane.f32.xlu0 %v2478
      %v2607 = vpop.xlane.xlu0 %2606
      %2608 = vadd.xlane.f32.xlu0 %v2479
      %v2609 = vpop.xlane.xlu0 %2608
      %2610 = vadd.xlane.f32.xlu0 %v2480
      %v2611 = vpop.xlane.xlu0 %2610
      %2612 = vadd.xlane.f32.xlu0 %v2481
      %v2613 = vpop.xlane.xlu0 %2612
      %2614 = vadd.xlane.f32.xlu0 %v2482
      %v2615 = vpop.xlane.xlu0 %2614
      %2616 = vadd.xlane.f32.xlu0 %v2483
      %v2617 = vpop.xlane.xlu0 %2616
      %2618 = vadd.xlane.f32.xlu0 %v2484
      %v2619 = vpop.xlane.xlu0 %2618
      %2620 = vadd.xlane.f32.xlu0 %v2485
      %v2621 = vpop.xlane.xlu0 %2620
      %2622 = vadd.xlane.f32.xlu0 %v2486
      %v2623 = vpop.xlane.xlu0 %2622
      %2624 = vadd.xlane.f32.xlu0 %v2487
      %v2625 = vpop.xlane.xlu0 %2624
      %2626 = vadd.xlane.f32.xlu0 %v2488
      %v2627 = vpop.xlane.xlu0 %2626
      %2628 = vadd.xlane.f32.xlu0 %v2489
      %v2629 = vpop.xlane.xlu0 %2628
      %2630 = vadd.xlane.f32.xlu0 %v2490
      %v2631 = vpop.xlane.xlu0 %2630
      %2632 = vadd.xlane.f32.xlu0 %v2491
      %v2633 = vpop.xlane.xlu0 %2632
      %2634 = vadd.xlane.f32.xlu0 %v2492
      %v2635 = vpop.xlane.xlu0 %2634
      %2636 = vadd.xlane.f32.xlu0 %v2493
      %v2637 = vpop.xlane.xlu0 %2636
      %2638 = vadd.xlane.f32.xlu0 %v2494
      %v2639 = vpop.xlane.xlu0 %2638
      %2640 = vadd.xlane.f32.xlu0 %v2495
      %v2641 = vpop.xlane.xlu0 %2640
      %2642 = vadd.xlane.f32.xlu0 %v2496
      %v2643 = vpop.xlane.xlu0 %2642
      %2644 = vadd.xlane.f32.xlu0 %v2497
      %v2645 = vpop.xlane.xlu0 %2644
      %2646 = vadd.xlane.f32.xlu0 %v2498
      %v2647 = vpop.xlane.xlu0 %2646
      %2648 = vadd.xlane.f32.xlu0 %v2499
      %v2649 = vpop.xlane.xlu0 %2648
      %2650 = vadd.xlane.f32.xlu0 %v2500
      %v2651 = vpop.xlane.xlu0 %2650
      %2652 = vadd.xlane.f32.xlu0 %v2501
      %v2653 = vpop.xlane.xlu0 %2652
      %2654 = vadd.xlane.f32.xlu0 %v2502
      %v2655 = vpop.xlane.xlu0 %2654
      %2656 = vadd.xlane.f32.xlu0 %v2503
      %v2657 = vpop.xlane.xlu0 %2656
      %2658 = vadd.xlane.f32.xlu0 %v2504
      %v2659 = vpop.xlane.xlu0 %2658
      %2660 = vadd.xlane.f32.xlu0 %v2505
      %v2661 = vpop.xlane.xlu0 %2660
      %2662 = vadd.xlane.f32.xlu0 %v2506
      %v2663 = vpop.xlane.xlu0 %2662
      %2664 = vadd.xlane.f32.xlu0 %v2507
      %v2665 = vpop.xlane.xlu0 %2664
      %2666 = vadd.xlane.f32.xlu0 %v2508
      %v2667 = vpop.xlane.xlu0 %2666
      %2668 = vadd.xlane.f32.xlu0 %v2509
      %v2669 = vpop.xlane.xlu0 %2668
      %2670 = vadd.xlane.f32.xlu0 %v2510
      %v2671 = vpop.xlane.xlu0 %2670
      %2672 = vadd.xlane.f32.xlu0 %v2511
      %v2673 = vpop.xlane.xlu0 %2672
      %2674 = vadd.xlane.f32.xlu0 %v2512
      %v2675 = vpop.xlane.xlu0 %2674
      %2676 = vadd.xlane.f32.xlu0 %v2513
      %v2677 = vpop.xlane.xlu0 %2676
      %2678 = vadd.xlane.f32.xlu0 %v2514
      %v2679 = vpop.xlane.xlu0 %2678
      %2680 = vadd.xlane.f32.xlu0 %v2515
      %v2681 = vpop.xlane.xlu0 %2680
      %2682 = vadd.xlane.f32.xlu0 %v2516
      %v2683 = vpop.xlane.xlu0 %2682
      %2684 = vadd.xlane.f32.xlu0 %v2517
      %v2685 = vpop.xlane.xlu0 %2684
      %2686 = vadd.xlane.f32.xlu0 %v2518
      %v2687 = vpop.xlane.xlu0 %2686
      %2688 = vadd.xlane.f32.xlu0 %v2519
      %v2689 = vpop.xlane.xlu0 %2688
      %2690 = vadd.xlane.f32.xlu0 %v2520
      %v2691 = vpop.xlane.xlu0 %2690
      %2692 = vadd.xlane.f32.xlu0 %v2521
      %v2693 = vpop.xlane.xlu0 %2692
      %2694 = vadd.xlane.f32.xlu0 %v2522
      %v2695 = vpop.xlane.xlu0 %2694
      %2696 = vadd.xlane.f32.xlu0 %v2523
      %v2697 = vpop.xlane.xlu0 %2696
      %2698 = vadd.xlane.f32.xlu0 %v2524
      %v2699 = vpop.xlane.xlu0 %2698
      %2700 = vadd.xlane.f32.xlu0 %v2525
      %v2701 = vpop.xlane.xlu0 %2700
      %2702 = vadd.xlane.f32.xlu0 %v2526
      %v2703 = vpop.xlane.xlu0 %2702
      %2704 = vadd.xlane.f32.xlu0 %v2527
      %v2705 = vpop.xlane.xlu0 %2704
      %2706 = vadd.xlane.f32.xlu0 %v2528
      %v2707 = vpop.xlane.xlu0 %2706
      %2708 = vadd.xlane.f32.xlu0 %v2529
      %v2709 = vpop.xlane.xlu0 %2708
      %2710 = vadd.xlane.f32.xlu0 %v2530
      %v2711 = vpop.xlane.xlu0 %2710
      %2712 = vadd.xlane.f32.xlu0 %v2531
      %v2713 = vpop.xlane.xlu0 %2712
      %2714 = vadd.xlane.f32.xlu0 %v2532
      %v2715 = vpop.xlane.xlu0 %2714
      %2716 = vadd.xlane.f32.xlu0 %v2533
      %v2717 = vpop.xlane.xlu0 %2716
      %2718 = vadd.xlane.f32.xlu0 %v2534
      %v2719 = vpop.xlane.xlu0 %2718
      %2720 = vadd.xlane.f32.xlu0 %v2535
      %v2721 = vpop.xlane.xlu0 %2720
      %2722 = vadd.xlane.f32.xlu0 %v2536
      %v2723 = vpop.xlane.xlu0 %2722
      %2724 = vadd.xlane.f32.xlu0 %v2537
      %v2725 = vpop.xlane.xlu0 %2724
      %2726 = vadd.xlane.f32.xlu0 %v2538
      %v2727 = vpop.xlane.xlu0 %2726
      %2728 = vadd.xlane.f32.xlu0 %v2539
      %v2729 = vpop.xlane.xlu0 %2728
      %2730 = vadd.xlane.f32.xlu0 %v2540
      %v2731 = vpop.xlane.xlu0 %2730
      %2732 = vadd.xlane.f32.xlu0 %v2541
      %v2733 = vpop.xlane.xlu0 %2732
      %2734 = vadd.xlane.f32.xlu0 %v2542
      %v2735 = vpop.xlane.xlu0 %2734
      %2736 = vadd.xlane.f32.xlu0 %v2543
      %v2737 = vpop.xlane.xlu0 %2736
      %2738 = vadd.xlane.f32.xlu0 %v2544
      %v2739 = vpop.xlane.xlu0 %2738
      %2740 = vadd.xlane.f32.xlu0 %v2545
      %v2741 = vpop.xlane.xlu0 %2740
      %2742 = vadd.xlane.f32.xlu0 %v2546
      %v2743 = vpop.xlane.xlu0 %2742
      %2744 = vadd.xlane.f32.xlu0 %v2547
      %v2745 = vpop.xlane.xlu0 %2744
      %2746 = vadd.xlane.f32.xlu0 %v2548
      %v2747 = vpop.xlane.xlu0 %2746
      %2748 = vadd.xlane.f32.xlu0 %v2549
      %v2749 = vpop.xlane.xlu0 %2748
      %2750 = vadd.xlane.f32.xlu0 %v2550
      %v2751 = vpop.xlane.xlu0 %2750
      %2752 = vadd.xlane.f32.xlu0 %v2551
      %v2753 = vpop.xlane.xlu0 %2752
      %2754 = vadd.xlane.f32.xlu0 %v2552
      %v2755 = vpop.xlane.xlu0 %2754
      %2756 = vadd.xlane.f32.xlu0 %v2553
      %v2757 = vpop.xlane.xlu0 %2756
      %2758 = vadd.xlane.f32.xlu0 %v2554
      %v2759 = vpop.xlane.xlu0 %2758
      %2760 = vadd.xlane.f32.xlu0 %v2555
      %v2761 = vpop.xlane.xlu0 %2760
      %2762 = vadd.xlane.f32.xlu0 %v2556
      %v2763 = vpop.xlane.xlu0 %2762
      %2764 = vadd.xlane.f32.xlu0 %v2557
      %v2765 = vpop.xlane.xlu0 %2764
      %2766 = vadd.xlane.f32.xlu0 %v2558
      %v2767 = vpop.xlane.xlu0 %2766
      %2768 = vadd.xlane.f32.xlu0 %v2559
      %v2769 = vpop.xlane.xlu0 %2768
      %2770 = vadd.xlane.f32.xlu0 %v2560
      %v2771 = vpop.xlane.xlu0 %2770
      %2772 = vadd.xlane.f32.xlu0 %v2561
      %v2773 = vpop.xlane.xlu0 %2772
      %2774 = vadd.xlane.f32.xlu0 %v2562
      %v2775 = vpop.xlane.xlu0 %2774
      %2776 = vadd.xlane.f32.xlu0 %v2563
      %v2777 = vpop.xlane.xlu0 %2776
      %2778 = vadd.xlane.f32.xlu0 %v2564
      %v2779 = vpop.xlane.xlu0 %2778
      %2780 = vadd.xlane.f32.xlu0 %v2565
      %v2781 = vpop.xlane.xlu0 %2780
      %2782 = vadd.xlane.f32.xlu0 %v2566
      %v2783 = vpop.xlane.xlu0 %2782
      %2784 = vadd.xlane.f32.xlu0 %v2567
      %v2785 = vpop.xlane.xlu0 %2784
      %2786 = vadd.xlane.f32.xlu0 %v2568
      %v2787 = vpop.xlane.xlu0 %2786
      %2788 = vadd.xlane.f32.xlu0 %v2569
      %v2789 = vpop.xlane.xlu0 %2788
      %2790 = vadd.xlane.f32.xlu0 %v2570
      %v2791 = vpop.xlane.xlu0 %2790
      %2792 = vadd.xlane.f32.xlu0 %v2571
      %v2793 = vpop.xlane.xlu0 %2792
      %2794 = vadd.xlane.f32.xlu0 %v2572
      %v2795 = vpop.xlane.xlu0 %2794
      %2796 = vadd.xlane.f32.xlu0 %v2573
      %v2797 = vpop.xlane.xlu0 %2796
      %2798 = vadd.xlane.f32.xlu0 %v2574
      %v2799 = vpop.xlane.xlu0 %2798
      %2800 = vadd.xlane.f32.xlu0 %v2575
      %v2801 = vpop.xlane.xlu0 %2800
      %2802 = vadd.xlane.f32.xlu0 %v2576
      %v2803 = vpop.xlane.xlu0 %2802
      %2804 = vadd.xlane.f32.xlu0 %v2577
      %v2805 = vpop.xlane.xlu0 %2804
      %2806 = vadd.xlane.f32.xlu0 %v2578
      %v2807 = vpop.xlane.xlu0 %2806
      %2808 = vadd.xlane.f32.xlu0 %v2579
      %v2809 = vpop.xlane.xlu0 %2808
      %2810 = vadd.xlane.f32.xlu0 %v2580
      %v2811 = vpop.xlane.xlu0 %2810
      %2812 = vadd.xlane.f32.xlu0 %v2581
      %v2813 = vpop.xlane.xlu0 %2812
      %2814 = vadd.xlane.f32.xlu0 %v2582
      %v2815 = vpop.xlane.xlu0 %2814
      %2816 = vadd.xlane.f32.xlu0 %v2583
      %v2817 = vpop.xlane.xlu0 %2816
      %2818 = vadd.xlane.f32.xlu0 %v2584
      %v2819 = vpop.xlane.xlu0 %2818
      %2820 = vadd.xlane.f32.xlu0 %v2585
      %v2821 = vpop.xlane.xlu0 %2820
      %2822 = vadd.xlane.f32.xlu0 %v2586
      %v2823 = vpop.xlane.xlu0 %2822
      %2824 = vadd.xlane.f32.xlu0 %v2587
      %v2825 = vpop.xlane.xlu0 %2824
      %2826 = vadd.xlane.f32.xlu0 %v2588
      %v2827 = vpop.xlane.xlu0 %2826
      %2828 = vadd.xlane.f32.xlu0 %v2589
      %v2829 = vpop.xlane.xlu0 %2828
      %2830 = vadd.xlane.f32.xlu0 %v2590
      %v2831 = vpop.xlane.xlu0 %2830
      %2832 = vadd.xlane.f32.xlu0 %v2591
      %v2833 = vpop.xlane.xlu0 %2832
      %2834 = vadd.xlane.f32.xlu0 %v2592
      %v2835 = vpop.xlane.xlu0 %2834
      %2836 = vadd.xlane.f32.xlu0 %v2593
      %v2837 = vpop.xlane.xlu0 %2836
      %2838 = vadd.xlane.f32.xlu0 %v2594
      %v2839 = vpop.xlane.xlu0 %2838
      %2840 = vadd.xlane.f32.xlu0 %v2595
      %v2841 = vpop.xlane.xlu0 %2840
      %2842 = vadd.xlane.f32.xlu0 %v2596
      %v2843 = vpop.xlane.xlu0 %2842
      %2844 = vadd.xlane.f32.xlu0 %v2597
      %v2845 = vpop.xlane.xlu0 %2844
      %2846 = vadd.xlane.f32.xlu0 %v2598
      %v2847 = vpop.xlane.xlu0 %2846
      %2848 = vadd.xlane.f32.xlu0 %v2599
      %v2849 = vpop.xlane.xlu0 %2848
      %2850 = vadd.xlane.f32.xlu0 %v2600
      %v2851 = vpop.xlane.xlu0 %2850
      %2852 = vadd.xlane.f32.xlu0 %v2601
      %v2853 = vpop.xlane.xlu0 %2852
      %2854 = vadd.xlane.f32.xlu0 %v2602
      %v2855 = vpop.xlane.xlu0 %2854
      %2856 = vadd.xlane.f32.xlu0 %v2603
      %v2857 = vpop.xlane.xlu0 %2856
      %2858 = vadd.xlane.f32.xlu0 %v2604
      %v2859 = vpop.xlane.xlu0 %2858
      %2860 = vadd.xlane.f32.xlu0 %v2605
      %v2861 = vpop.xlane.xlu0 %2860
      %v2862 = vstv %s1673
      %v2863 = vadd.f32 %v2607, %v2862
      %v2864 = vadd.f32 %v2609, %v2862
      %v2865 = vadd.f32 %v2611, %v2862
      %v2866 = vadd.f32 %v2613, %v2862
      %v2867 = vadd.f32 %v2615, %v2862
      %v2868 = vadd.f32 %v2617, %v2862
      %v2869 = vadd.f32 %v2619, %v2862
      %v2870 = vadd.f32 %v2621, %v2862
      %v2871 = vadd.f32 %v2623, %v2862
      %v2872 = vadd.f32 %v2625, %v2862
      %v2873 = vadd.f32 %v2627, %v2862
      %v2874 = vadd.f32 %v2629, %v2862
      %v2875 = vadd.f32 %v2631, %v2862
      %v2876 = vadd.f32 %v2633, %v2862
      %v2877 = vadd.f32 %v2635, %v2862
      %v2878 = vadd.f32 %v2637, %v2862
      %v2879 = vadd.f32 %v2639, %v2862
      %v2880 = vadd.f32 %v2641, %v2862
      %v2881 = vadd.f32 %v2643, %v2862
      %v2882 = vadd.f32 %v2645, %v2862
      %v2883 = vadd.f32 %v2647, %v2862
      %v2884 = vadd.f32 %v2649, %v2862
      %v2885 = vadd.f32 %v2651, %v2862
      %v2886 = vadd.f32 %v2653, %v2862
      %v2887 = vadd.f32 %v2655, %v2862
      %v2888 = vadd.f32 %v2657, %v2862
      %v2889 = vadd.f32 %v2659, %v2862
      %v2890 = vadd.f32 %v2661, %v2862
      %v2891 = vadd.f32 %v2663, %v2862
      %v2892 = vadd.f32 %v2665, %v2862
      %v2893 = vadd.f32 %v2667, %v2862
      %v2894 = vadd.f32 %v2669, %v2862
      %v2895 = vadd.f32 %v2671, %v2862
      %v2896 = vadd.f32 %v2673, %v2862
      %v2897 = vadd.f32 %v2675, %v2862
      %v2898 = vadd.f32 %v2677, %v2862
      %v2899 = vadd.f32 %v2679, %v2862
      %v2900 = vadd.f32 %v2681, %v2862
      %v2901 = vadd.f32 %v2683, %v2862
      %v2902 = vadd.f32 %v2685, %v2862
      %v2903 = vadd.f32 %v2687, %v2862
      %v2904 = vadd.f32 %v2689, %v2862
      %v2905 = vadd.f32 %v2691, %v2862
      %v2906 = vadd.f32 %v2693, %v2862
      %v2907 = vadd.f32 %v2695, %v2862
      %v2908 = vadd.f32 %v2697, %v2862
      %v2909 = vadd.f32 %v2699, %v2862
      %v2910 = vadd.f32 %v2701, %v2862
      %v2911 = vadd.f32 %v2703, %v2862
      %v2912 = vadd.f32 %v2705, %v2862
      %v2913 = vadd.f32 %v2707, %v2862
      %v2914 = vadd.f32 %v2709, %v2862
      %v2915 = vadd.f32 %v2711, %v2862
      %v2916 = vadd.f32 %v2713, %v2862
      %v2917 = vadd.f32 %v2715, %v2862
      %v2918 = vadd.f32 %v2717, %v2862
      %v2919 = vadd.f32 %v2719, %v2862
      %v2920 = vadd.f32 %v2721, %v2862
      %v2921 = vadd.f32 %v2723, %v2862
      %v2922 = vadd.f32 %v2725, %v2862
      %v2923 = vadd.f32 %v2727, %v2862
      %v2924 = vadd.f32 %v2729, %v2862
      %v2925 = vadd.f32 %v2731, %v2862
      %v2926 = vadd.f32 %v2733, %v2862
      %v2927 = vadd.f32 %v2735, %v2862
      %v2928 = vadd.f32 %v2737, %v2862
      %v2929 = vadd.f32 %v2739, %v2862
      %v2930 = vadd.f32 %v2741, %v2862
      %v2931 = vadd.f32 %v2743, %v2862
      %v2932 = vadd.f32 %v2745, %v2862
      %v2933 = vadd.f32 %v2747, %v2862
      %v2934 = vadd.f32 %v2749, %v2862
      %v2935 = vadd.f32 %v2751, %v2862
      %v2936 = vadd.f32 %v2753, %v2862
      %v2937 = vadd.f32 %v2755, %v2862
      %v2938 = vadd.f32 %v2757, %v2862
      %v2939 = vadd.f32 %v2759, %v2862
      %v2940 = vadd.f32 %v2761, %v2862
      %v2941 = vadd.f32 %v2763, %v2862
      %v2942 = vadd.f32 %v2765, %v2862
      %v2943 = vadd.f32 %v2767, %v2862
      %v2944 = vadd.f32 %v2769, %v2862
      %v2945 = vadd.f32 %v2771, %v2862
      %v2946 = vadd.f32 %v2773, %v2862
      %v2947 = vadd.f32 %v2775, %v2862
      %v2948 = vadd.f32 %v2777, %v2862
      %v2949 = vadd.f32 %v2779, %v2862
      %v2950 = vadd.f32 %v2781, %v2862
      %v2951 = vadd.f32 %v2783, %v2862
      %v2952 = vadd.f32 %v2785, %v2862
      %v2953 = vadd.f32 %v2787, %v2862
      %v2954 = vadd.f32 %v2789, %v2862
      %v2955 = vadd.f32 %v2791, %v2862
      %v2956 = vadd.f32 %v2793, %v2862
      %v2957 = vadd.f32 %v2795, %v2862
      %v2958 = vadd.f32 %v2797, %v2862
      %v2959 = vadd.f32 %v2799, %v2862
      %v2960 = vadd.f32 %v2801, %v2862
      %v2961 = vadd.f32 %v2803, %v2862
      %v2962 = vadd.f32 %v2805, %v2862
      %v2963 = vadd.f32 %v2807, %v2862
      %v2964 = vadd.f32 %v2809, %v2862
      %v2965 = vadd.f32 %v2811, %v2862
      %v2966 = vadd.f32 %v2813, %v2862
      %v2967 = vadd.f32 %v2815, %v2862
      %v2968 = vadd.f32 %v2817, %v2862
      %v2969 = vadd.f32 %v2819, %v2862
      %v2970 = vadd.f32 %v2821, %v2862
      %v2971 = vadd.f32 %v2823, %v2862
      %v2972 = vadd.f32 %v2825, %v2862
      %v2973 = vadd.f32 %v2827, %v2862
      %v2974 = vadd.f32 %v2829, %v2862
      %v2975 = vadd.f32 %v2831, %v2862
      %v2976 = vadd.f32 %v2833, %v2862
      %v2977 = vadd.f32 %v2835, %v2862
      %v2978 = vadd.f32 %v2837, %v2862
      %v2979 = vadd.f32 %v2839, %v2862
      %v2980 = vadd.f32 %v2841, %v2862
      %v2981 = vadd.f32 %v2843, %v2862
      %v2982 = vadd.f32 %v2845, %v2862
      %v2983 = vadd.f32 %v2847, %v2862
      %v2984 = vadd.f32 %v2849, %v2862
      %v2985 = vadd.f32 %v2851, %v2862
      %v2986 = vadd.f32 %v2853, %v2862
      %v2987 = vadd.f32 %v2855, %v2862
      %v2988 = vadd.f32 %v2857, %v2862
      %v2989 = vadd.f32 %v2859, %v2862
      %v2990 = vadd.f32 %v2861, %v2862
      %v2992 = vlaneseq
      %v2993 = vshrl.u32 %v2992, 7
      %v2994 = vsub.s32 0, %v2993
      %v2995 = vrot.slane %v1671, %v2994
      %2997 = vbcast.lane.b32.xlu0 %v2995, 256
      %v2998 = vpop.permute.xlu0 %2997
      %s3000 = sor.u32 256, 8
      %3001 = vbcast.lane.b32.xlu0 %v2995, %s3000
      %v3002 = vpop.permute.xlu0 %3001
      %s3004 = sor.u32 256, 16
      %3005 = vbcast.lane.b32.xlu0 %v2995, %s3004
      %v3006 = vpop.permute.xlu0 %3005
      %s3008 = sor.u32 256, 24
      %3009 = vbcast.lane.b32.xlu0 %v2995, %s3008
      %v3010 = vpop.permute.xlu0 %3009
      %s3012 = sor.u32 256, 32
      %3013 = vbcast.lane.b32.xlu0 %v2995, %s3012
      %v3014 = vpop.permute.xlu0 %3013
      %s3016 = sor.u32 256, 40
      %3017 = vbcast.lane.b32.xlu0 %v2995, %s3016
      %v3018 = vpop.permute.xlu0 %3017
      %s3020 = sor.u32 256, 48
      %3021 = vbcast.lane.b32.xlu0 %v2995, %s3020
      %v3022 = vpop.permute.xlu0 %3021
      %s3024 = sor.u32 256, 56
      %3025 = vbcast.lane.b32.xlu0 %v2995, %s3024
      %v3026 = vpop.permute.xlu0 %3025
      %s3028 = sor.u32 256, 64
      %3029 = vbcast.lane.b32.xlu0 %v2995, %s3028
      %v3030 = vpop.permute.xlu0 %3029
      %s3032 = sor.u32 256, 72
      %3033 = vbcast.lane.b32.xlu0 %v2995, %s3032
      %v3034 = vpop.permute.xlu0 %3033
      %s3036 = sor.u32 256, 80
      %3037 = vbcast.lane.b32.xlu0 %v2995, %s3036
      %v3038 = vpop.permute.xlu0 %3037
      %s3040 = sor.u32 256, 88
      %3041 = vbcast.lane.b32.xlu0 %v2995, %s3040
      %v3042 = vpop.permute.xlu0 %3041
      %s3044 = sor.u32 256, 96
      %3045 = vbcast.lane.b32.xlu0 %v2995, %s3044
      %v3046 = vpop.permute.xlu0 %3045
      %s3048 = sor.u32 256, 104
      %3049 = vbcast.lane.b32.xlu0 %v2995, %s3048
      %v3050 = vpop.permute.xlu0 %3049
      %s3052 = sor.u32 256, 112
      %3053 = vbcast.lane.b32.xlu0 %v2995, %s3052
      %v3054 = vpop.permute.xlu0 %3053
      %s3056 = sor.u32 256, 120
      %3057 = vbcast.lane.b32.xlu0 %v2995, %s3056
      %v3058 = vpop.permute.xlu0 %3057
      %v3059 = vlaneseq
      %v3060 = vshrl.u32 %v3059, 7
      %v3061 = vsub.s32 1, %v3060
      %v3062 = vrot.slane %v1671, %v3061
      %3064 = vbcast.lane.b32.xlu0 %v3062, 256
      %v3065 = vpop.permute.xlu0 %3064
      %s3067 = sor.u32 256, 8
      %3068 = vbcast.lane.b32.xlu0 %v3062, %s3067
      %v3069 = vpop.permute.xlu0 %3068
      %s3071 = sor.u32 256, 16
      %3072 = vbcast.lane.b32.xlu0 %v3062, %s3071
      %v3073 = vpop.permute.xlu0 %3072
      %s3075 = sor.u32 256, 24
      %3076 = vbcast.lane.b32.xlu0 %v3062, %s3075
      %v3077 = vpop.permute.xlu0 %3076
      %s3079 = sor.u32 256, 32
      %3080 = vbcast.lane.b32.xlu0 %v3062, %s3079
      %v3081 = vpop.permute.xlu0 %3080
      %s3083 = sor.u32 256, 40
      %3084 = vbcast.lane.b32.xlu0 %v3062, %s3083
      %v3085 = vpop.permute.xlu0 %3084
      %s3087 = sor.u32 256, 48
      %3088 = vbcast.lane.b32.xlu0 %v3062, %s3087
      %v3089 = vpop.permute.xlu0 %3088
      %s3091 = sor.u32 256, 56
      %3092 = vbcast.lane.b32.xlu0 %v3062, %s3091
      %v3093 = vpop.permute.xlu0 %3092
      %s3095 = sor.u32 256, 64
      %3096 = vbcast.lane.b32.xlu0 %v3062, %s3095
      %v3097 = vpop.permute.xlu0 %3096
      %s3099 = sor.u32 256, 72
      %3100 = vbcast.lane.b32.xlu0 %v3062, %s3099
      %v3101 = vpop.permute.xlu0 %3100
      %s3103 = sor.u32 256, 80
      %3104 = vbcast.lane.b32.xlu0 %v3062, %s3103
      %v3105 = vpop.permute.xlu0 %3104
      %s3107 = sor.u32 256, 88
      %3108 = vbcast.lane.b32.xlu0 %v3062, %s3107
      %v3109 = vpop.permute.xlu0 %3108
      %s3111 = sor.u32 256, 96
      %3112 = vbcast.lane.b32.xlu0 %v3062, %s3111
      %v3113 = vpop.permute.xlu0 %3112
      %s3115 = sor.u32 256, 104
      %3116 = vbcast.lane.b32.xlu0 %v3062, %s3115
      %v3117 = vpop.permute.xlu0 %3116
      %s3119 = sor.u32 256, 112
      %3120 = vbcast.lane.b32.xlu0 %v3062, %s3119
      %v3121 = vpop.permute.xlu0 %3120
      %s3123 = sor.u32 256, 120
      %3124 = vbcast.lane.b32.xlu0 %v3062, %s3123
      %v3125 = vpop.permute.xlu0 %3124
      %v3126 = vlaneseq
      %v3127 = vshrl.u32 %v3126, 7
      %v3128 = vsub.s32 2, %v3127
      %v3129 = vrot.slane %v1671, %v3128
      %3131 = vbcast.lane.b32.xlu0 %v3129, 256
      %v3132 = vpop.permute.xlu0 %3131
      %s3134 = sor.u32 256, 8
      %3135 = vbcast.lane.b32.xlu0 %v3129, %s3134
      %v3136 = vpop.permute.xlu0 %3135
      %s3138 = sor.u32 256, 16
      %3139 = vbcast.lane.b32.xlu0 %v3129, %s3138
      %v3140 = vpop.permute.xlu0 %3139
      %s3142 = sor.u32 256, 24
      %3143 = vbcast.lane.b32.xlu0 %v3129, %s3142
      %v3144 = vpop.permute.xlu0 %3143
      %s3146 = sor.u32 256, 32
      %3147 = vbcast.lane.b32.xlu0 %v3129, %s3146
      %v3148 = vpop.permute.xlu0 %3147
      %s3150 = sor.u32 256, 40
      %3151 = vbcast.lane.b32.xlu0 %v3129, %s3150
      %v3152 = vpop.permute.xlu0 %3151
      %s3154 = sor.u32 256, 48
      %3155 = vbcast.lane.b32.xlu0 %v3129, %s3154
      %v3156 = vpop.permute.xlu0 %3155
      %s3158 = sor.u32 256, 56
      %3159 = vbcast.lane.b32.xlu0 %v3129, %s3158
      %v3160 = vpop.permute.xlu0 %3159
      %s3162 = sor.u32 256, 64
      %3163 = vbcast.lane.b32.xlu0 %v3129, %s3162
      %v3164 = vpop.permute.xlu0 %3163
      %s3166 = sor.u32 256, 72
      %3167 = vbcast.lane.b32.xlu0 %v3129, %s3166
      %v3168 = vpop.permute.xlu0 %3167
      %s3170 = sor.u32 256, 80
      %3171 = vbcast.lane.b32.xlu0 %v3129, %s3170
      %v3172 = vpop.permute.xlu0 %3171
      %s3174 = sor.u32 256, 88
      %3175 = vbcast.lane.b32.xlu0 %v3129, %s3174
      %v3176 = vpop.permute.xlu0 %3175
      %s3178 = sor.u32 256, 96
      %3179 = vbcast.lane.b32.xlu0 %v3129, %s3178
      %v3180 = vpop.permute.xlu0 %3179
      %s3182 = sor.u32 256, 104
      %3183 = vbcast.lane.b32.xlu0 %v3129, %s3182
      %v3184 = vpop.permute.xlu0 %3183
      %s3186 = sor.u32 256, 112
      %3187 = vbcast.lane.b32.xlu0 %v3129, %s3186
      %v3188 = vpop.permute.xlu0 %3187
      %s3190 = sor.u32 256, 120
      %3191 = vbcast.lane.b32.xlu0 %v3129, %s3190
      %v3192 = vpop.permute.xlu0 %3191
      %v3193 = vlaneseq
      %v3194 = vshrl.u32 %v3193, 7
      %v3195 = vsub.s32 3, %v3194
      %v3196 = vrot.slane %v1671, %v3195
      %3198 = vbcast.lane.b32.xlu0 %v3196, 256
      %v3199 = vpop.permute.xlu0 %3198
      %s3201 = sor.u32 256, 8
      %3202 = vbcast.lane.b32.xlu0 %v3196, %s3201
      %v3203 = vpop.permute.xlu0 %3202
      %s3205 = sor.u32 256, 16
      %3206 = vbcast.lane.b32.xlu0 %v3196, %s3205
      %v3207 = vpop.permute.xlu0 %3206
      %s3209 = sor.u32 256, 24
      %3210 = vbcast.lane.b32.xlu0 %v3196, %s3209
      %v3211 = vpop.permute.xlu0 %3210
      %s3213 = sor.u32 256, 32
      %3214 = vbcast.lane.b32.xlu0 %v3196, %s3213
      %v3215 = vpop.permute.xlu0 %3214
      %s3217 = sor.u32 256, 40
      %3218 = vbcast.lane.b32.xlu0 %v3196, %s3217
      %v3219 = vpop.permute.xlu0 %3218
      %s3221 = sor.u32 256, 48
      %3222 = vbcast.lane.b32.xlu0 %v3196, %s3221
      %v3223 = vpop.permute.xlu0 %3222
      %s3225 = sor.u32 256, 56
      %3226 = vbcast.lane.b32.xlu0 %v3196, %s3225
      %v3227 = vpop.permute.xlu0 %3226
      %s3229 = sor.u32 256, 64
      %3230 = vbcast.lane.b32.xlu0 %v3196, %s3229
      %v3231 = vpop.permute.xlu0 %3230
      %s3233 = sor.u32 256, 72
      %3234 = vbcast.lane.b32.xlu0 %v3196, %s3233
      %v3235 = vpop.permute.xlu0 %3234
      %s3237 = sor.u32 256, 80
      %3238 = vbcast.lane.b32.xlu0 %v3196, %s3237
      %v3239 = vpop.permute.xlu0 %3238
      %s3241 = sor.u32 256, 88
      %3242 = vbcast.lane.b32.xlu0 %v3196, %s3241
      %v3243 = vpop.permute.xlu0 %3242
      %s3245 = sor.u32 256, 96
      %3246 = vbcast.lane.b32.xlu0 %v3196, %s3245
      %v3247 = vpop.permute.xlu0 %3246
      %s3249 = sor.u32 256, 104
      %3250 = vbcast.lane.b32.xlu0 %v3196, %s3249
      %v3251 = vpop.permute.xlu0 %3250
      %s3253 = sor.u32 256, 112
      %3254 = vbcast.lane.b32.xlu0 %v3196, %s3253
      %v3255 = vpop.permute.xlu0 %3254
      %s3257 = sor.u32 256, 120
      %3258 = vbcast.lane.b32.xlu0 %v3196, %s3257
      %v3259 = vpop.permute.xlu0 %3258
      %v3260 = vlaneseq
      %v3261 = vshrl.u32 %v3260, 7
      %v3262 = vsub.s32 4, %v3261
      %v3263 = vrot.slane %v1671, %v3262
      %3265 = vbcast.lane.b32.xlu0 %v3263, 256
      %v3266 = vpop.permute.xlu0 %3265
      %s3268 = sor.u32 256, 8
      %3269 = vbcast.lane.b32.xlu0 %v3263, %s3268
      %v3270 = vpop.permute.xlu0 %3269
      %s3272 = sor.u32 256, 16
      %3273 = vbcast.lane.b32.xlu0 %v3263, %s3272
      %v3274 = vpop.permute.xlu0 %3273
      %s3276 = sor.u32 256, 24
      %3277 = vbcast.lane.b32.xlu0 %v3263, %s3276
      %v3278 = vpop.permute.xlu0 %3277
      %s3280 = sor.u32 256, 32
      %3281 = vbcast.lane.b32.xlu0 %v3263, %s3280
      %v3282 = vpop.permute.xlu0 %3281
      %s3284 = sor.u32 256, 40
      %3285 = vbcast.lane.b32.xlu0 %v3263, %s3284
      %v3286 = vpop.permute.xlu0 %3285
      %s3288 = sor.u32 256, 48
      %3289 = vbcast.lane.b32.xlu0 %v3263, %s3288
      %v3290 = vpop.permute.xlu0 %3289
      %s3292 = sor.u32 256, 56
      %3293 = vbcast.lane.b32.xlu0 %v3263, %s3292
      %v3294 = vpop.permute.xlu0 %3293
      %s3296 = sor.u32 256, 64
      %3297 = vbcast.lane.b32.xlu0 %v3263, %s3296
      %v3298 = vpop.permute.xlu0 %3297
      %s3300 = sor.u32 256, 72
      %3301 = vbcast.lane.b32.xlu0 %v3263, %s3300
      %v3302 = vpop.permute.xlu0 %3301
      %s3304 = sor.u32 256, 80
      %3305 = vbcast.lane.b32.xlu0 %v3263, %s3304
      %v3306 = vpop.permute.xlu0 %3305
      %s3308 = sor.u32 256, 88
      %3309 = vbcast.lane.b32.xlu0 %v3263, %s3308
      %v3310 = vpop.permute.xlu0 %3309
      %s3312 = sor.u32 256, 96
      %3313 = vbcast.lane.b32.xlu0 %v3263, %s3312
      %v3314 = vpop.permute.xlu0 %3313
      %s3316 = sor.u32 256, 104
      %3317 = vbcast.lane.b32.xlu0 %v3263, %s3316
      %v3318 = vpop.permute.xlu0 %3317
      %s3320 = sor.u32 256, 112
      %3321 = vbcast.lane.b32.xlu0 %v3263, %s3320
      %v3322 = vpop.permute.xlu0 %3321
      %s3324 = sor.u32 256, 120
      %3325 = vbcast.lane.b32.xlu0 %v3263, %s3324
      %v3326 = vpop.permute.xlu0 %3325
      %v3327 = vlaneseq
      %v3328 = vshrl.u32 %v3327, 7
      %v3329 = vsub.s32 5, %v3328
      %v3330 = vrot.slane %v1671, %v3329
      %3332 = vbcast.lane.b32.xlu0 %v3330, 256
      %v3333 = vpop.permute.xlu0 %3332
      %s3335 = sor.u32 256, 8
      %3336 = vbcast.lane.b32.xlu0 %v3330, %s3335
      %v3337 = vpop.permute.xlu0 %3336
      %s3339 = sor.u32 256, 16
      %3340 = vbcast.lane.b32.xlu0 %v3330, %s3339
      %v3341 = vpop.permute.xlu0 %3340
      %s3343 = sor.u32 256, 24
      %3344 = vbcast.lane.b32.xlu0 %v3330, %s3343
      %v3345 = vpop.permute.xlu0 %3344
      %s3347 = sor.u32 256, 32
      %3348 = vbcast.lane.b32.xlu0 %v3330, %s3347
      %v3349 = vpop.permute.xlu0 %3348
      %s3351 = sor.u32 256, 40
      %3352 = vbcast.lane.b32.xlu0 %v3330, %s3351
      %v3353 = vpop.permute.xlu0 %3352
      %s3355 = sor.u32 256, 48
      %3356 = vbcast.lane.b32.xlu0 %v3330, %s3355
      %v3357 = vpop.permute.xlu0 %3356
      %s3359 = sor.u32 256, 56
      %3360 = vbcast.lane.b32.xlu0 %v3330, %s3359
      %v3361 = vpop.permute.xlu0 %3360
      %s3363 = sor.u32 256, 64
      %3364 = vbcast.lane.b32.xlu0 %v3330, %s3363
      %v3365 = vpop.permute.xlu0 %3364
      %s3367 = sor.u32 256, 72
      %3368 = vbcast.lane.b32.xlu0 %v3330, %s3367
      %v3369 = vpop.permute.xlu0 %3368
      %s3371 = sor.u32 256, 80
      %3372 = vbcast.lane.b32.xlu0 %v3330, %s3371
      %v3373 = vpop.permute.xlu0 %3372
      %s3375 = sor.u32 256, 88
      %3376 = vbcast.lane.b32.xlu0 %v3330, %s3375
      %v3377 = vpop.permute.xlu0 %3376
      %s3379 = sor.u32 256, 96
      %3380 = vbcast.lane.b32.xlu0 %v3330, %s3379
      %v3381 = vpop.permute.xlu0 %3380
      %s3383 = sor.u32 256, 104
      %3384 = vbcast.lane.b32.xlu0 %v3330, %s3383
      %v3385 = vpop.permute.xlu0 %3384
      %s3387 = sor.u32 256, 112
      %3388 = vbcast.lane.b32.xlu0 %v3330, %s3387
      %v3389 = vpop.permute.xlu0 %3388
      %s3391 = sor.u32 256, 120
      %3392 = vbcast.lane.b32.xlu0 %v3330, %s3391
      %v3393 = vpop.permute.xlu0 %3392
      %v3394 = vlaneseq
      %v3395 = vshrl.u32 %v3394, 7
      %v3396 = vsub.s32 6, %v3395
      %v3397 = vrot.slane %v1671, %v3396
      %3399 = vbcast.lane.b32.xlu0 %v3397, 256
      %v3400 = vpop.permute.xlu0 %3399
      %s3402 = sor.u32 256, 8
      %3403 = vbcast.lane.b32.xlu0 %v3397, %s3402
      %v3404 = vpop.permute.xlu0 %3403
      %s3406 = sor.u32 256, 16
      %3407 = vbcast.lane.b32.xlu0 %v3397, %s3406
      %v3408 = vpop.permute.xlu0 %3407
      %s3410 = sor.u32 256, 24
      %3411 = vbcast.lane.b32.xlu0 %v3397, %s3410
      %v3412 = vpop.permute.xlu0 %3411
      %s3414 = sor.u32 256, 32
      %3415 = vbcast.lane.b32.xlu0 %v3397, %s3414
      %v3416 = vpop.permute.xlu0 %3415
      %s3418 = sor.u32 256, 40
      %3419 = vbcast.lane.b32.xlu0 %v3397, %s3418
      %v3420 = vpop.permute.xlu0 %3419
      %s3422 = sor.u32 256, 48
      %3423 = vbcast.lane.b32.xlu0 %v3397, %s3422
      %v3424 = vpop.permute.xlu0 %3423
      %s3426 = sor.u32 256, 56
      %3427 = vbcast.lane.b32.xlu0 %v3397, %s3426
      %v3428 = vpop.permute.xlu0 %3427
      %s3430 = sor.u32 256, 64
      %3431 = vbcast.lane.b32.xlu0 %v3397, %s3430
      %v3432 = vpop.permute.xlu0 %3431
      %s3434 = sor.u32 256, 72
      %3435 = vbcast.lane.b32.xlu0 %v3397, %s3434
      %v3436 = vpop.permute.xlu0 %3435
      %s3438 = sor.u32 256, 80
      %3439 = vbcast.lane.b32.xlu0 %v3397, %s3438
      %v3440 = vpop.permute.xlu0 %3439
      %s3442 = sor.u32 256, 88
      %3443 = vbcast.lane.b32.xlu0 %v3397, %s3442
      %v3444 = vpop.permute.xlu0 %3443
      %s3446 = sor.u32 256, 96
      %3447 = vbcast.lane.b32.xlu0 %v3397, %s3446
      %v3448 = vpop.permute.xlu0 %3447
      %s3450 = sor.u32 256, 104
      %3451 = vbcast.lane.b32.xlu0 %v3397, %s3450
      %v3452 = vpop.permute.xlu0 %3451
      %s3454 = sor.u32 256, 112
      %3455 = vbcast.lane.b32.xlu0 %v3397, %s3454
      %v3456 = vpop.permute.xlu0 %3455
      %s3458 = sor.u32 256, 120
      %3459 = vbcast.lane.b32.xlu0 %v3397, %s3458
      %v3460 = vpop.permute.xlu0 %3459
      %v3461 = vlaneseq
      %v3462 = vshrl.u32 %v3461, 7
      %v3463 = vsub.s32 7, %v3462
      %v3464 = vrot.slane %v1671, %v3463
      %3466 = vbcast.lane.b32.xlu0 %v3464, 256
      %v3467 = vpop.permute.xlu0 %3466
      %s3469 = sor.u32 256, 8
      %3470 = vbcast.lane.b32.xlu0 %v3464, %s3469
      %v3471 = vpop.permute.xlu0 %3470
      %s3473 = sor.u32 256, 16
      %3474 = vbcast.lane.b32.xlu0 %v3464, %s3473
      %v3475 = vpop.permute.xlu0 %3474
      %s3477 = sor.u32 256, 24
      %3478 = vbcast.lane.b32.xlu0 %v3464, %s3477
      %v3479 = vpop.permute.xlu0 %3478
      %s3481 = sor.u32 256, 32
      %3482 = vbcast.lane.b32.xlu0 %v3464, %s3481
      %v3483 = vpop.permute.xlu0 %3482
      %s3485 = sor.u32 256, 40
      %3486 = vbcast.lane.b32.xlu0 %v3464, %s3485
      %v3487 = vpop.permute.xlu0 %3486
      %s3489 = sor.u32 256, 48
      %3490 = vbcast.lane.b32.xlu0 %v3464, %s3489
      %v3491 = vpop.permute.xlu0 %3490
      %s3493 = sor.u32 256, 56
      %3494 = vbcast.lane.b32.xlu0 %v3464, %s3493
      %v3495 = vpop.permute.xlu0 %3494
      %s3497 = sor.u32 256, 64
      %3498 = vbcast.lane.b32.xlu0 %v3464, %s3497
      %v3499 = vpop.permute.xlu0 %3498
      %s3501 = sor.u32 256, 72
      %3502 = vbcast.lane.b32.xlu0 %v3464, %s3501
      %v3503 = vpop.permute.xlu0 %3502
      %s3505 = sor.u32 256, 80
      %3506 = vbcast.lane.b32.xlu0 %v3464, %s3505
      %v3507 = vpop.permute.xlu0 %3506
      %s3509 = sor.u32 256, 88
      %3510 = vbcast.lane.b32.xlu0 %v3464, %s3509
      %v3511 = vpop.permute.xlu0 %3510
      %s3513 = sor.u32 256, 96
      %3514 = vbcast.lane.b32.xlu0 %v3464, %s3513
      %v3515 = vpop.permute.xlu0 %3514
      %s3517 = sor.u32 256, 104
      %3518 = vbcast.lane.b32.xlu0 %v3464, %s3517
      %v3519 = vpop.permute.xlu0 %3518
      %s3521 = sor.u32 256, 112
      %3522 = vbcast.lane.b32.xlu0 %v3464, %s3521
      %v3523 = vpop.permute.xlu0 %3522
      %s3525 = sor.u32 256, 120
      %3526 = vbcast.lane.b32.xlu0 %v3464, %s3525
      %v3527 = vpop.permute.xlu0 %3526
      %v3656 = vmul.f32 %v2863, %v2998
      %v3657 = vmul.f32 %v2864, %v3002
      %v3658 = vmul.f32 %v2865, %v3006
      %v3659 = vmul.f32 %v2866, %v3010
      %v3660 = vmul.f32 %v2867, %v3014
      %v3661 = vmul.f32 %v2868, %v3018
      %v3662 = vmul.f32 %v2869, %v3022
      %v3663 = vmul.f32 %v2870, %v3026
      %v3664 = vmul.f32 %v2871, %v3030
      %v3665 = vmul.f32 %v2872, %v3034
      %v3666 = vmul.f32 %v2873, %v3038
      %v3667 = vmul.f32 %v2874, %v3042
      %v3668 = vmul.f32 %v2875, %v3046
      %v3669 = vmul.f32 %v2876, %v3050
      %v3670 = vmul.f32 %v2877, %v3054
      %v3671 = vmul.f32 %v2878, %v3058
      %v3672 = vmul.f32 %v2879, %v3065
      %v3673 = vmul.f32 %v2880, %v3069
      %v3674 = vmul.f32 %v2881, %v3073
      %v3675 = vmul.f32 %v2882, %v3077
      %v3676 = vmul.f32 %v2883, %v3081
      %v3677 = vmul.f32 %v2884, %v3085
      %v3678 = vmul.f32 %v2885, %v3089
      %v3679 = vmul.f32 %v2886, %v3093
      %v3680 = vmul.f32 %v2887, %v3097
      %v3681 = vmul.f32 %v2888, %v3101
      %v3682 = vmul.f32 %v2889, %v3105
      %v3683 = vmul.f32 %v2890, %v3109
      %v3684 = vmul.f32 %v2891, %v3113
      %v3685 = vmul.f32 %v2892, %v3117
      %v3686 = vmul.f32 %v2893, %v3121
      %v3687 = vmul.f32 %v2894, %v3125
      %v3688 = vmul.f32 %v2895, %v3132
      %v3689 = vmul.f32 %v2896, %v3136
      %v3690 = vmul.f32 %v2897, %v3140
      %v3691 = vmul.f32 %v2898, %v3144
      %v3692 = vmul.f32 %v2899, %v3148
      %v3693 = vmul.f32 %v2900, %v3152
      %v3694 = vmul.f32 %v2901, %v3156
      %v3695 = vmul.f32 %v2902, %v3160
      %v3696 = vmul.f32 %v2903, %v3164
      %v3697 = vmul.f32 %v2904, %v3168
      %v3698 = vmul.f32 %v2905, %v3172
      %v3699 = vmul.f32 %v2906, %v3176
      %v3700 = vmul.f32 %v2907, %v3180
      %v3701 = vmul.f32 %v2908, %v3184
      %v3702 = vmul.f32 %v2909, %v3188
      %v3703 = vmul.f32 %v2910, %v3192
      %v3704 = vmul.f32 %v2911, %v3199
      %v3705 = vmul.f32 %v2912, %v3203
      %v3706 = vmul.f32 %v2913, %v3207
      %v3707 = vmul.f32 %v2914, %v3211
      %v3708 = vmul.f32 %v2915, %v3215
      %v3709 = vmul.f32 %v2916, %v3219
      %v3710 = vmul.f32 %v2917, %v3223
      %v3711 = vmul.f32 %v2918, %v3227
      %v3712 = vmul.f32 %v2919, %v3231
      %v3713 = vmul.f32 %v2920, %v3235
      %v3714 = vmul.f32 %v2921, %v3239
      %v3715 = vmul.f32 %v2922, %v3243
      %v3716 = vmul.f32 %v2923, %v3247
      %v3717 = vmul.f32 %v2924, %v3251
      %v3718 = vmul.f32 %v2925, %v3255
      %v3719 = vmul.f32 %v2926, %v3259
      %v3720 = vmul.f32 %v2927, %v3266
      %v3721 = vmul.f32 %v2928, %v3270
      %v3722 = vmul.f32 %v2929, %v3274
      %v3723 = vmul.f32 %v2930, %v3278
      %v3724 = vmul.f32 %v2931, %v3282
      %v3725 = vmul.f32 %v2932, %v3286
      %v3726 = vmul.f32 %v2933, %v3290
      %v3727 = vmul.f32 %v2934, %v3294
      %v3728 = vmul.f32 %v2935, %v3298
      %v3729 = vmul.f32 %v2936, %v3302
      %v3730 = vmul.f32 %v2937, %v3306
      %v3731 = vmul.f32 %v2938, %v3310
      %v3732 = vmul.f32 %v2939, %v3314
      %v3733 = vmul.f32 %v2940, %v3318
      %v3734 = vmul.f32 %v2941, %v3322
      %v3735 = vmul.f32 %v2942, %v3326
      %v3736 = vmul.f32 %v2943, %v3333
      %v3737 = vmul.f32 %v2944, %v3337
      %v3738 = vmul.f32 %v2945, %v3341
      %v3739 = vmul.f32 %v2946, %v3345
      %v3740 = vmul.f32 %v2947, %v3349
      %v3741 = vmul.f32 %v2948, %v3353
      %v3742 = vmul.f32 %v2949, %v3357
      %v3743 = vmul.f32 %v2950, %v3361
      %v3744 = vmul.f32 %v2951, %v3365
      %v3745 = vmul.f32 %v2952, %v3369
      %v3746 = vmul.f32 %v2953, %v3373
      %v3747 = vmul.f32 %v2954, %v3377
      %v3748 = vmul.f32 %v2955, %v3381
      %v3749 = vmul.f32 %v2956, %v3385
      %v3750 = vmul.f32 %v2957, %v3389
      %v3751 = vmul.f32 %v2958, %v3393
      %v3752 = vmul.f32 %v2959, %v3400
      %v3753 = vmul.f32 %v2960, %v3404
      %v3754 = vmul.f32 %v2961, %v3408
      %v3755 = vmul.f32 %v2962, %v3412
      %v3756 = vmul.f32 %v2963, %v3416
      %v3757 = vmul.f32 %v2964, %v3420
      %v3758 = vmul.f32 %v2965, %v3424
      %v3759 = vmul.f32 %v2966, %v3428
      %v3760 = vmul.f32 %v2967, %v3432
      %v3761 = vmul.f32 %v2968, %v3436
      %v3762 = vmul.f32 %v2969, %v3440
      %v3763 = vmul.f32 %v2970, %v3444
      %v3764 = vmul.f32 %v2971, %v3448
      %v3765 = vmul.f32 %v2972, %v3452
      %v3766 = vmul.f32 %v2973, %v3456
      %v3767 = vmul.f32 %v2974, %v3460
      %v3768 = vmul.f32 %v2975, %v3467
      %v3769 = vmul.f32 %v2976, %v3471
      %v3770 = vmul.f32 %v2977, %v3475
      %v3771 = vmul.f32 %v2978, %v3479
      %v3772 = vmul.f32 %v2979, %v3483
      %v3773 = vmul.f32 %v2980, %v3487
      %v3774 = vmul.f32 %v2981, %v3491
      %v3775 = vmul.f32 %v2982, %v3495
      %v3776 = vmul.f32 %v2983, %v3499
      %v3777 = vmul.f32 %v2984, %v3503
      %v3778 = vmul.f32 %v2985, %v3507
      %v3779 = vmul.f32 %v2986, %v3511
      %v3780 = vmul.f32 %v2987, %v3515
      %v3781 = vmul.f32 %v2988, %v3519
      %v3782 = vmul.f32 %v2989, %v3523
      %v3783 = vmul.f32 %v2990, %v3527
      %3912 = vset.pattern.permute.xlu0 0
      %3913 = vperm.xlu0 %3912, %v3656
      %v3914 = vpop.permute.xlu0 %3913
      %3915 = vset.pattern.permute.xlu0 0
      %3916 = vperm.xlu0 %3915, %v3657
      %v3917 = vpop.permute.xlu0 %3916
      %3918 = vset.pattern.permute.xlu0 0
      %3919 = vperm.xlu0 %3918, %v3658
      %v3920 = vpop.permute.xlu0 %3919
      %3921 = vset.pattern.permute.xlu0 0
      %3922 = vperm.xlu0 %3921, %v3659
      %v3923 = vpop.permute.xlu0 %3922
      %3924 = vset.pattern.permute.xlu0 0
      %3925 = vperm.xlu0 %3924, %v3660
      %v3926 = vpop.permute.xlu0 %3925
      %3927 = vset.pattern.permute.xlu0 0
      %3928 = vperm.xlu0 %3927, %v3661
      %v3929 = vpop.permute.xlu0 %3928
      %3930 = vset.pattern.permute.xlu0 0
      %3931 = vperm.xlu0 %3930, %v3662
      %v3932 = vpop.permute.xlu0 %3931
      %3933 = vset.pattern.permute.xlu0 0
      %3934 = vperm.xlu0 %3933, %v3663
      %v3935 = vpop.permute.xlu0 %3934
      %3936 = vset.pattern.permute.xlu0 0
      %3937 = vperm.xlu0 %3936, %v3664
      %v3938 = vpop.permute.xlu0 %3937
      %3939 = vset.pattern.permute.xlu0 0
      %3940 = vperm.xlu0 %3939, %v3665
      %v3941 = vpop.permute.xlu0 %3940
      %3942 = vset.pattern.permute.xlu0 0
      %3943 = vperm.xlu0 %3942, %v3666
      %v3944 = vpop.permute.xlu0 %3943
      %3945 = vset.pattern.permute.xlu0 0
      %3946 = vperm.xlu0 %3945, %v3667
      %v3947 = vpop.permute.xlu0 %3946
      %3948 = vset.pattern.permute.xlu0 0
      %3949 = vperm.xlu0 %3948, %v3668
      %v3950 = vpop.permute.xlu0 %3949
      %3951 = vset.pattern.permute.xlu0 0
      %3952 = vperm.xlu0 %3951, %v3669
      %v3953 = vpop.permute.xlu0 %3952
      %3954 = vset.pattern.permute.xlu0 0
      %3955 = vperm.xlu0 %3954, %v3670
      %v3956 = vpop.permute.xlu0 %3955
      %3957 = vset.pattern.permute.xlu0 0
      %3958 = vperm.xlu0 %3957, %v3671
      %v3959 = vpop.permute.xlu0 %3958
      %3960 = vset.pattern.permute.xlu0 0
      %3961 = vperm.xlu0 %3960, %v3672
      %v3962 = vpop.permute.xlu0 %3961
      %3963 = vset.pattern.permute.xlu0 0
      %3964 = vperm.xlu0 %3963, %v3673
      %v3965 = vpop.permute.xlu0 %3964
      %3966 = vset.pattern.permute.xlu0 0
      %3967 = vperm.xlu0 %3966, %v3674
      %v3968 = vpop.permute.xlu0 %3967
      %3969 = vset.pattern.permute.xlu0 0
      %3970 = vperm.xlu0 %3969, %v3675
      %v3971 = vpop.permute.xlu0 %3970
      %3972 = vset.pattern.permute.xlu0 0
      %3973 = vperm.xlu0 %3972, %v3676
      %v3974 = vpop.permute.xlu0 %3973
      %3975 = vset.pattern.permute.xlu0 0
      %3976 = vperm.xlu0 %3975, %v3677
      %v3977 = vpop.permute.xlu0 %3976
      %3978 = vset.pattern.permute.xlu0 0
      %3979 = vperm.xlu0 %3978, %v3678
      %v3980 = vpop.permute.xlu0 %3979
      %3981 = vset.pattern.permute.xlu0 0
      %3982 = vperm.xlu0 %3981, %v3679
      %v3983 = vpop.permute.xlu0 %3982
      %3984 = vset.pattern.permute.xlu0 0
      %3985 = vperm.xlu0 %3984, %v3680
      %v3986 = vpop.permute.xlu0 %3985
      %3987 = vset.pattern.permute.xlu0 0
      %3988 = vperm.xlu0 %3987, %v3681
      %v3989 = vpop.permute.xlu0 %3988
      %3990 = vset.pattern.permute.xlu0 0
      %3991 = vperm.xlu0 %3990, %v3682
      %v3992 = vpop.permute.xlu0 %3991
      %3993 = vset.pattern.permute.xlu0 0
      %3994 = vperm.xlu0 %3993, %v3683
      %v3995 = vpop.permute.xlu0 %3994
      %3996 = vset.pattern.permute.xlu0 0
      %3997 = vperm.xlu0 %3996, %v3684
      %v3998 = vpop.permute.xlu0 %3997
      %3999 = vset.pattern.permute.xlu0 0
      %4000 = vperm.xlu0 %3999, %v3685
      %v4001 = vpop.permute.xlu0 %4000
      %4002 = vset.pattern.permute.xlu0 0
      %4003 = vperm.xlu0 %4002, %v3686
      %v4004 = vpop.permute.xlu0 %4003
      %4005 = vset.pattern.permute.xlu0 0
      %4006 = vperm.xlu0 %4005, %v3687
      %v4007 = vpop.permute.xlu0 %4006
      %4008 = vset.pattern.permute.xlu0 0
      %4009 = vperm.xlu0 %4008, %v3688
      %v4010 = vpop.permute.xlu0 %4009
      %4011 = vset.pattern.permute.xlu0 0
      %4012 = vperm.xlu0 %4011, %v3689
      %v4013 = vpop.permute.xlu0 %4012
      %4014 = vset.pattern.permute.xlu0 0
      %4015 = vperm.xlu0 %4014, %v3690
      %v4016 = vpop.permute.xlu0 %4015
      %4017 = vset.pattern.permute.xlu0 0
      %4018 = vperm.xlu0 %4017, %v3691
      %v4019 = vpop.permute.xlu0 %4018
      %4020 = vset.pattern.permute.xlu0 0
      %4021 = vperm.xlu0 %4020, %v3692
      %v4022 = vpop.permute.xlu0 %4021
      %4023 = vset.pattern.permute.xlu0 0
      %4024 = vperm.xlu0 %4023, %v3693
      %v4025 = vpop.permute.xlu0 %4024
      %4026 = vset.pattern.permute.xlu0 0
      %4027 = vperm.xlu0 %4026, %v3694
      %v4028 = vpop.permute.xlu0 %4027
      %4029 = vset.pattern.permute.xlu0 0
      %4030 = vperm.xlu0 %4029, %v3695
      %v4031 = vpop.permute.xlu0 %4030
      %4032 = vset.pattern.permute.xlu0 0
      %4033 = vperm.xlu0 %4032, %v3696
      %v4034 = vpop.permute.xlu0 %4033
      %4035 = vset.pattern.permute.xlu0 0
      %4036 = vperm.xlu0 %4035, %v3697
      %v4037 = vpop.permute.xlu0 %4036
      %4038 = vset.pattern.permute.xlu0 0
      %4039 = vperm.xlu0 %4038, %v3698
      %v4040 = vpop.permute.xlu0 %4039
      %4041 = vset.pattern.permute.xlu0 0
      %4042 = vperm.xlu0 %4041, %v3699
      %v4043 = vpop.permute.xlu0 %4042
      %4044 = vset.pattern.permute.xlu0 0
      %4045 = vperm.xlu0 %4044, %v3700
      %v4046 = vpop.permute.xlu0 %4045
      %4047 = vset.pattern.permute.xlu0 0
      %4048 = vperm.xlu0 %4047, %v3701
      %v4049 = vpop.permute.xlu0 %4048
      %4050 = vset.pattern.permute.xlu0 0
      %4051 = vperm.xlu0 %4050, %v3702
      %v4052 = vpop.permute.xlu0 %4051
      %4053 = vset.pattern.permute.xlu0 0
      %4054 = vperm.xlu0 %4053, %v3703
      %v4055 = vpop.permute.xlu0 %4054
      %4056 = vset.pattern.permute.xlu0 0
      %4057 = vperm.xlu0 %4056, %v3704
      %v4058 = vpop.permute.xlu0 %4057
      %4059 = vset.pattern.permute.xlu0 0
      %4060 = vperm.xlu0 %4059, %v3705
      %v4061 = vpop.permute.xlu0 %4060
      %4062 = vset.pattern.permute.xlu0 0
      %4063 = vperm.xlu0 %4062, %v3706
      %v4064 = vpop.permute.xlu0 %4063
      %4065 = vset.pattern.permute.xlu0 0
      %4066 = vperm.xlu0 %4065, %v3707
      %v4067 = vpop.permute.xlu0 %4066
      %4068 = vset.pattern.permute.xlu0 0
      %4069 = vperm.xlu0 %4068, %v3708
      %v4070 = vpop.permute.xlu0 %4069
      %4071 = vset.pattern.permute.xlu0 0
      %4072 = vperm.xlu0 %4071, %v3709
      %v4073 = vpop.permute.xlu0 %4072
      %4074 = vset.pattern.permute.xlu0 0
      %4075 = vperm.xlu0 %4074, %v3710
      %v4076 = vpop.permute.xlu0 %4075
      %4077 = vset.pattern.permute.xlu0 0
      %4078 = vperm.xlu0 %4077, %v3711
      %v4079 = vpop.permute.xlu0 %4078
      %4080 = vset.pattern.permute.xlu0 0
      %4081 = vperm.xlu0 %4080, %v3712
      %v4082 = vpop.permute.xlu0 %4081
      %4083 = vset.pattern.permute.xlu0 0
      %4084 = vperm.xlu0 %4083, %v3713
      %v4085 = vpop.permute.xlu0 %4084
      %4086 = vset.pattern.permute.xlu0 0
      %4087 = vperm.xlu0 %4086, %v3714
      %v4088 = vpop.permute.xlu0 %4087
      %4089 = vset.pattern.permute.xlu0 0
      %4090 = vperm.xlu0 %4089, %v3715
      %v4091 = vpop.permute.xlu0 %4090
      %4092 = vset.pattern.permute.xlu0 0
      %4093 = vperm.xlu0 %4092, %v3716
      %v4094 = vpop.permute.xlu0 %4093
      %4095 = vset.pattern.permute.xlu0 0
      %4096 = vperm.xlu0 %4095, %v3717
      %v4097 = vpop.permute.xlu0 %4096
      %4098 = vset.pattern.permute.xlu0 0
      %4099 = vperm.xlu0 %4098, %v3718
      %v4100 = vpop.permute.xlu0 %4099
      %4101 = vset.pattern.permute.xlu0 0
      %4102 = vperm.xlu0 %4101, %v3719
      %v4103 = vpop.permute.xlu0 %4102
      %4104 = vset.pattern.permute.xlu0 0
      %4105 = vperm.xlu0 %4104, %v3720
      %v4106 = vpop.permute.xlu0 %4105
      %4107 = vset.pattern.permute.xlu0 0
      %4108 = vperm.xlu0 %4107, %v3721
      %v4109 = vpop.permute.xlu0 %4108
      %4110 = vset.pattern.permute.xlu0 0
      %4111 = vperm.xlu0 %4110, %v3722
      %v4112 = vpop.permute.xlu0 %4111
      %4113 = vset.pattern.permute.xlu0 0
      %4114 = vperm.xlu0 %4113, %v3723
      %v4115 = vpop.permute.xlu0 %4114
      %4116 = vset.pattern.permute.xlu0 0
      %4117 = vperm.xlu0 %4116, %v3724
      %v4118 = vpop.permute.xlu0 %4117
      %4119 = vset.pattern.permute.xlu0 0
      %4120 = vperm.xlu0 %4119, %v3725
      %v4121 = vpop.permute.xlu0 %4120
      %4122 = vset.pattern.permute.xlu0 0
      %4123 = vperm.xlu0 %4122, %v3726
      %v4124 = vpop.permute.xlu0 %4123
      %4125 = vset.pattern.permute.xlu0 0
      %4126 = vperm.xlu0 %4125, %v3727
      %v4127 = vpop.permute.xlu0 %4126
      %4128 = vset.pattern.permute.xlu0 0
      %4129 = vperm.xlu0 %4128, %v3728
      %v4130 = vpop.permute.xlu0 %4129
      %4131 = vset.pattern.permute.xlu0 0
      %4132 = vperm.xlu0 %4131, %v3729
      %v4133 = vpop.permute.xlu0 %4132
      %4134 = vset.pattern.permute.xlu0 0
      %4135 = vperm.xlu0 %4134, %v3730
      %v4136 = vpop.permute.xlu0 %4135
      %4137 = vset.pattern.permute.xlu0 0
      %4138 = vperm.xlu0 %4137, %v3731
      %v4139 = vpop.permute.xlu0 %4138
      %4140 = vset.pattern.permute.xlu0 0
      %4141 = vperm.xlu0 %4140, %v3732
      %v4142 = vpop.permute.xlu0 %4141
      %4143 = vset.pattern.permute.xlu0 0
      %4144 = vperm.xlu0 %4143, %v3733
      %v4145 = vpop.permute.xlu0 %4144
      %4146 = vset.pattern.permute.xlu0 0
      %4147 = vperm.xlu0 %4146, %v3734
      %v4148 = vpop.permute.xlu0 %4147
      %4149 = vset.pattern.permute.xlu0 0
      %4150 = vperm.xlu0 %4149, %v3735
      %v4151 = vpop.permute.xlu0 %4150
      %4152 = vset.pattern.permute.xlu0 0
      %4153 = vperm.xlu0 %4152, %v3736
      %v4154 = vpop.permute.xlu0 %4153
      %4155 = vset.pattern.permute.xlu0 0
      %4156 = vperm.xlu0 %4155, %v3737
      %v4157 = vpop.permute.xlu0 %4156
      %4158 = vset.pattern.permute.xlu0 0
      %4159 = vperm.xlu0 %4158, %v3738
      %v4160 = vpop.permute.xlu0 %4159
      %4161 = vset.pattern.permute.xlu0 0
      %4162 = vperm.xlu0 %4161, %v3739
      %v4163 = vpop.permute.xlu0 %4162
      %4164 = vset.pattern.permute.xlu0 0
      %4165 = vperm.xlu0 %4164, %v3740
      %v4166 = vpop.permute.xlu0 %4165
      %4167 = vset.pattern.permute.xlu0 0
      %4168 = vperm.xlu0 %4167, %v3741
      %v4169 = vpop.permute.xlu0 %4168
      %4170 = vset.pattern.permute.xlu0 0
      %4171 = vperm.xlu0 %4170, %v3742
      %v4172 = vpop.permute.xlu0 %4171
      %4173 = vset.pattern.permute.xlu0 0
      %4174 = vperm.xlu0 %4173, %v3743
      %v4175 = vpop.permute.xlu0 %4174
      %4176 = vset.pattern.permute.xlu0 0
      %4177 = vperm.xlu0 %4176, %v3744
      %v4178 = vpop.permute.xlu0 %4177
      %4179 = vset.pattern.permute.xlu0 0
      %4180 = vperm.xlu0 %4179, %v3745
      %v4181 = vpop.permute.xlu0 %4180
      %4182 = vset.pattern.permute.xlu0 0
      %4183 = vperm.xlu0 %4182, %v3746
      %v4184 = vpop.permute.xlu0 %4183
      %4185 = vset.pattern.permute.xlu0 0
      %4186 = vperm.xlu0 %4185, %v3747
      %v4187 = vpop.permute.xlu0 %4186
      %4188 = vset.pattern.permute.xlu0 0
      %4189 = vperm.xlu0 %4188, %v3748
      %v4190 = vpop.permute.xlu0 %4189
      %4191 = vset.pattern.permute.xlu0 0
      %4192 = vperm.xlu0 %4191, %v3749
      %v4193 = vpop.permute.xlu0 %4192
      %4194 = vset.pattern.permute.xlu0 0
      %4195 = vperm.xlu0 %4194, %v3750
      %v4196 = vpop.permute.xlu0 %4195
      %4197 = vset.pattern.permute.xlu0 0
      %4198 = vperm.xlu0 %4197, %v3751
      %v4199 = vpop.permute.xlu0 %4198
      %4200 = vset.pattern.permute.xlu0 0
      %4201 = vperm.xlu0 %4200, %v3752
      %v4202 = vpop.permute.xlu0 %4201
      %4203 = vset.pattern.permute.xlu0 0
      %4204 = vperm.xlu0 %4203, %v3753
      %v4205 = vpop.permute.xlu0 %4204
      %4206 = vset.pattern.permute.xlu0 0
      %4207 = vperm.xlu0 %4206, %v3754
      %v4208 = vpop.permute.xlu0 %4207
      %4209 = vset.pattern.permute.xlu0 0
      %4210 = vperm.xlu0 %4209, %v3755
      %v4211 = vpop.permute.xlu0 %4210
      %4212 = vset.pattern.permute.xlu0 0
      %4213 = vperm.xlu0 %4212, %v3756
      %v4214 = vpop.permute.xlu0 %4213
      %4215 = vset.pattern.permute.xlu0 0
      %4216 = vperm.xlu0 %4215, %v3757
      %v4217 = vpop.permute.xlu0 %4216
      %4218 = vset.pattern.permute.xlu0 0
      %4219 = vperm.xlu0 %4218, %v3758
      %v4220 = vpop.permute.xlu0 %4219
      %4221 = vset.pattern.permute.xlu0 0
      %4222 = vperm.xlu0 %4221, %v3759
      %v4223 = vpop.permute.xlu0 %4222
      %4224 = vset.pattern.permute.xlu0 0
      %4225 = vperm.xlu0 %4224, %v3760
      %v4226 = vpop.permute.xlu0 %4225
      %4227 = vset.pattern.permute.xlu0 0
      %4228 = vperm.xlu0 %4227, %v3761
      %v4229 = vpop.permute.xlu0 %4228
      %4230 = vset.pattern.permute.xlu0 0
      %4231 = vperm.xlu0 %4230, %v3762
      %v4232 = vpop.permute.xlu0 %4231
      %4233 = vset.pattern.permute.xlu0 0
      %4234 = vperm.xlu0 %4233, %v3763
      %v4235 = vpop.permute.xlu0 %4234
      %4236 = vset.pattern.permute.xlu0 0
      %4237 = vperm.xlu0 %4236, %v3764
      %v4238 = vpop.permute.xlu0 %4237
      %4239 = vset.pattern.permute.xlu0 0
      %4240 = vperm.xlu0 %4239, %v3765
      %v4241 = vpop.permute.xlu0 %4240
      %4242 = vset.pattern.permute.xlu0 0
      %4243 = vperm.xlu0 %4242, %v3766
      %v4244 = vpop.permute.xlu0 %4243
      %4245 = vset.pattern.permute.xlu0 0
      %4246 = vperm.xlu0 %4245, %v3767
      %v4247 = vpop.permute.xlu0 %4246
      %4248 = vset.pattern.permute.xlu0 0
      %4249 = vperm.xlu0 %4248, %v3768
      %v4250 = vpop.permute.xlu0 %4249
      %4251 = vset.pattern.permute.xlu0 0
      %4252 = vperm.xlu0 %4251, %v3769
      %v4253 = vpop.permute.xlu0 %4252
      %4254 = vset.pattern.permute.xlu0 0
      %4255 = vperm.xlu0 %4254, %v3770
      %v4256 = vpop.permute.xlu0 %4255
      %4257 = vset.pattern.permute.xlu0 0
      %4258 = vperm.xlu0 %4257, %v3771
      %v4259 = vpop.permute.xlu0 %4258
      %4260 = vset.pattern.permute.xlu0 0
      %4261 = vperm.xlu0 %4260, %v3772
      %v4262 = vpop.permute.xlu0 %4261
      %4263 = vset.pattern.permute.xlu0 0
      %4264 = vperm.xlu0 %4263, %v3773
      %v4265 = vpop.permute.xlu0 %4264
      %4266 = vset.pattern.permute.xlu0 0
      %4267 = vperm.xlu0 %4266, %v3774
      %v4268 = vpop.permute.xlu0 %4267
      %4269 = vset.pattern.permute.xlu0 0
      %4270 = vperm.xlu0 %4269, %v3775
      %v4271 = vpop.permute.xlu0 %4270
      %4272 = vset.pattern.permute.xlu0 0
      %4273 = vperm.xlu0 %4272, %v3776
      %v4274 = vpop.permute.xlu0 %4273
      %4275 = vset.pattern.permute.xlu0 0
      %4276 = vperm.xlu0 %4275, %v3777
      %v4277 = vpop.permute.xlu0 %4276
      %4278 = vset.pattern.permute.xlu0 0
      %4279 = vperm.xlu0 %4278, %v3778
      %v4280 = vpop.permute.xlu0 %4279
      %4281 = vset.pattern.permute.xlu0 0
      %4282 = vperm.xlu0 %4281, %v3779
      %v4283 = vpop.permute.xlu0 %4282
      %4284 = vset.pattern.permute.xlu0 0
      %4285 = vperm.xlu0 %4284, %v3780
      %v4286 = vpop.permute.xlu0 %4285
      %4287 = vset.pattern.permute.xlu0 0
      %4288 = vperm.xlu0 %4287, %v3781
      %v4289 = vpop.permute.xlu0 %4288
      %4290 = vset.pattern.permute.xlu0 0
      %4291 = vperm.xlu0 %4290, %v3782
      %v4292 = vpop.permute.xlu0 %4291
      %4293 = vset.pattern.permute.xlu0 0
      %4294 = vperm.xlu0 %4293, %v3783
      %v4295 = vpop.permute.xlu0 %4294
      %v4296 = vlaneseq
      %v4297 = vand.u32 %v4296, 127
      %v4298 = vlaneseq
      %v4299 = vshrl.u32 %v4298, 7
      %v4300 = vsub.s32 %v4297, %v4299
      %v4301 = vrot.slane %v3914, %v4300
      %v4302 = vadd.s32 %v4297, 4294967288
      %v4303 = vlaneseq
      %v4304 = vshrl.u32 %v4303, 7
      %v4305 = vsub.s32 %v4302, %v4304
      %v4306 = vrot.slane %v3917, %v4305
      %vm4307 = vcmask 130112
      %v4308 = vsel %vm4307, %v4306, %v4301
      %v4309 = vadd.s32 %v4297, 4294967280
      %v4310 = vlaneseq
      %v4311 = vshrl.u32 %v4310, 7
      %v4312 = vsub.s32 %v4309, %v4311
      %v4313 = vrot.slane %v3920, %v4312
      %vm4314 = vcmask 195712
      %v4315 = vsel %vm4314, %v4313, %v4308
      %v4316 = vadd.s32 %v4297, 4294967272
      %v4317 = vlaneseq
      %v4318 = vshrl.u32 %v4317, 7
      %v4319 = vsub.s32 %v4316, %v4318
      %v4320 = vrot.slane %v3923, %v4319
      %vm4321 = vcmask 261312
      %v4322 = vsel %vm4321, %v4320, %v4315
      %v4323 = vadd.s32 %v4297, 4294967264
      %v4324 = vlaneseq
      %v4325 = vshrl.u32 %v4324, 7
      %v4326 = vsub.s32 %v4323, %v4325
      %v4327 = vrot.slane %v3926, %v4326
      %vm4328 = vcmask 326912
      %v4329 = vsel %vm4328, %v4327, %v4322
      %v4330 = vadd.s32 %v4297, 4294967256
      %v4331 = vlaneseq
      %v4332 = vshrl.u32 %v4331, 7
      %v4333 = vsub.s32 %v4330, %v4332
      %v4334 = vrot.slane %v3929, %v4333
      %vm4335 = vcmask 392512
      %v4336 = vsel %vm4335, %v4334, %v4329
      %v4337 = vadd.s32 %v4297, 4294967248
      %v4338 = vlaneseq
      %v4339 = vshrl.u32 %v4338, 7
      %v4340 = vsub.s32 %v4337, %v4339
      %v4341 = vrot.slane %v3932, %v4340
      %vm4342 = vcmask 458112
      %v4343 = vsel %vm4342, %v4341, %v4336
      %v4344 = vadd.s32 %v4297, 4294967240
      %v4345 = vlaneseq
      %v4346 = vshrl.u32 %v4345, 7
      %v4347 = vsub.s32 %v4344, %v4346
      %v4348 = vrot.slane %v3935, %v4347
      %vm4349 = vcmask 523712
      %v4350 = vsel %vm4349, %v4348, %v4343
      %v4351 = vadd.s32 %v4297, 4294967232
      %v4352 = vlaneseq
      %v4353 = vshrl.u32 %v4352, 7
      %v4354 = vsub.s32 %v4351, %v4353
      %v4355 = vrot.slane %v3938, %v4354
      %vm4356 = vcmask 589312
      %v4357 = vsel %vm4356, %v4355, %v4350
      %v4358 = vadd.s32 %v4297, 4294967224
      %v4359 = vlaneseq
      %v4360 = vshrl.u32 %v4359, 7
      %v4361 = vsub.s32 %v4358, %v4360
      %v4362 = vrot.slane %v3941, %v4361
      %vm4363 = vcmask 654912
      %v4364 = vsel %vm4363, %v4362, %v4357
      %v4365 = vadd.s32 %v4297, 4294967216
      %v4366 = vlaneseq
      %v4367 = vshrl.u32 %v4366, 7
      %v4368 = vsub.s32 %v4365, %v4367
      %v4369 = vrot.slane %v3944, %v4368
      %vm4370 = vcmask 720512
      %v4371 = vsel %vm4370, %v4369, %v4364
      %v4372 = vadd.s32 %v4297, 4294967208
      %v4373 = vlaneseq
      %v4374 = vshrl.u32 %v4373, 7
      %v4375 = vsub.s32 %v4372, %v4374
      %v4376 = vrot.slane %v3947, %v4375
      %vm4377 = vcmask 786112
      %v4378 = vsel %vm4377, %v4376, %v4371
      %v4379 = vadd.s32 %v4297, 4294967200
      %v4380 = vlaneseq
      %v4381 = vshrl.u32 %v4380, 7
      %v4382 = vsub.s32 %v4379, %v4381
      %v4383 = vrot.slane %v3950, %v4382
      %vm4384 = vcmask 851712
      %v4385 = vsel %vm4384, %v4383, %v4378
      %v4386 = vadd.s32 %v4297, 4294967192
      %v4387 = vlaneseq
      %v4388 = vshrl.u32 %v4387, 7
      %v4389 = vsub.s32 %v4386, %v4388
      %v4390 = vrot.slane %v3953, %v4389
      %vm4391 = vcmask 917312
      %v4392 = vsel %vm4391, %v4390, %v4385
      %v4393 = vadd.s32 %v4297, 4294967184
      %v4394 = vlaneseq
      %v4395 = vshrl.u32 %v4394, 7
      %v4396 = vsub.s32 %v4393, %v4395
      %v4397 = vrot.slane %v3956, %v4396
      %vm4398 = vcmask 982912
      %v4399 = vsel %vm4398, %v4397, %v4392
      %v4400 = vadd.s32 %v4297, 4294967176
      %v4401 = vlaneseq
      %v4402 = vshrl.u32 %v4401, 7
      %v4403 = vsub.s32 %v4400, %v4402
      %v4404 = vrot.slane %v3959, %v4403
      %vm4405 = vcmask 1048512
      %v4406 = vsel %vm4405, %v4404, %v4399
      %v4407 = vlaneseq
      %v4408 = vshrl.u32 %v4407, 7
      %v4409 = vsub.s32 %v4297, %v4408
      %v4410 = vrot.slane %v3962, %v4409
      %v4411 = vlaneseq
      %v4412 = vshrl.u32 %v4411, 7
      %v4413 = vsub.s32 %v4302, %v4412
      %v4414 = vrot.slane %v3965, %v4413
      %v4415 = vsel %vm4307, %v4414, %v4410
      %v4416 = vlaneseq
      %v4417 = vshrl.u32 %v4416, 7
      %v4418 = vsub.s32 %v4309, %v4417
      %v4419 = vrot.slane %v3968, %v4418
      %v4420 = vsel %vm4314, %v4419, %v4415
      %v4421 = vlaneseq
      %v4422 = vshrl.u32 %v4421, 7
      %v4423 = vsub.s32 %v4316, %v4422
      %v4424 = vrot.slane %v3971, %v4423
      %v4425 = vsel %vm4321, %v4424, %v4420
      %v4426 = vlaneseq
      %v4427 = vshrl.u32 %v4426, 7
      %v4428 = vsub.s32 %v4323, %v4427
      %v4429 = vrot.slane %v3974, %v4428
      %v4430 = vsel %vm4328, %v4429, %v4425
      %v4431 = vlaneseq
      %v4432 = vshrl.u32 %v4431, 7
      %v4433 = vsub.s32 %v4330, %v4432
      %v4434 = vrot.slane %v3977, %v4433
      %v4435 = vsel %vm4335, %v4434, %v4430
      %v4436 = vlaneseq
      %v4437 = vshrl.u32 %v4436, 7
      %v4438 = vsub.s32 %v4337, %v4437
      %v4439 = vrot.slane %v3980, %v4438
      %v4440 = vsel %vm4342, %v4439, %v4435
      %v4441 = vlaneseq
      %v4442 = vshrl.u32 %v4441, 7
      %v4443 = vsub.s32 %v4344, %v4442
      %v4444 = vrot.slane %v3983, %v4443
      %v4445 = vsel %vm4349, %v4444, %v4440
      %v4446 = vlaneseq
      %v4447 = vshrl.u32 %v4446, 7
      %v4448 = vsub.s32 %v4351, %v4447
      %v4449 = vrot.slane %v3986, %v4448
      %v4450 = vsel %vm4356, %v4449, %v4445
      %v4451 = vlaneseq
      %v4452 = vshrl.u32 %v4451, 7
      %v4453 = vsub.s32 %v4358, %v4452
      %v4454 = vrot.slane %v3989, %v4453
      %v4455 = vsel %vm4363, %v4454, %v4450
      %v4456 = vlaneseq
      %v4457 = vshrl.u32 %v4456, 7
      %v4458 = vsub.s32 %v4365, %v4457
      %v4459 = vrot.slane %v3992, %v4458
      %v4460 = vsel %vm4370, %v4459, %v4455
      %v4461 = vlaneseq
      %v4462 = vshrl.u32 %v4461, 7
      %v4463 = vsub.s32 %v4372, %v4462
      %v4464 = vrot.slane %v3995, %v4463
      %v4465 = vsel %vm4377, %v4464, %v4460
      %v4466 = vlaneseq
      %v4467 = vshrl.u32 %v4466, 7
      %v4468 = vsub.s32 %v4379, %v4467
      %v4469 = vrot.slane %v3998, %v4468
      %v4470 = vsel %vm4384, %v4469, %v4465
      %v4471 = vlaneseq
      %v4472 = vshrl.u32 %v4471, 7
      %v4473 = vsub.s32 %v4386, %v4472
      %v4474 = vrot.slane %v4001, %v4473
      %v4475 = vsel %vm4391, %v4474, %v4470
      %v4476 = vlaneseq
      %v4477 = vshrl.u32 %v4476, 7
      %v4478 = vsub.s32 %v4393, %v4477
      %v4479 = vrot.slane %v4004, %v4478
      %v4480 = vsel %vm4398, %v4479, %v4475
      %v4481 = vlaneseq
      %v4482 = vshrl.u32 %v4481, 7
      %v4483 = vsub.s32 %v4400, %v4482
      %v4484 = vrot.slane %v4007, %v4483
      %v4485 = vsel %vm4405, %v4484, %v4480
      %v4486 = vlaneseq
      %v4487 = vshrl.u32 %v4486, 7
      %v4488 = vsub.s32 %v4297, %v4487
      %v4489 = vrot.slane %v4010, %v4488
      %v4490 = vlaneseq
      %v4491 = vshrl.u32 %v4490, 7
      %v4492 = vsub.s32 %v4302, %v4491
      %v4493 = vrot.slane %v4013, %v4492
      %v4494 = vsel %vm4307, %v4493, %v4489
      %v4495 = vlaneseq
      %v4496 = vshrl.u32 %v4495, 7
      %v4497 = vsub.s32 %v4309, %v4496
      %v4498 = vrot.slane %v4016, %v4497
      %v4499 = vsel %vm4314, %v4498, %v4494
      %v4500 = vlaneseq
      %v4501 = vshrl.u32 %v4500, 7
      %v4502 = vsub.s32 %v4316, %v4501
      %v4503 = vrot.slane %v4019, %v4502
      %v4504 = vsel %vm4321, %v4503, %v4499
      %v4505 = vlaneseq
      %v4506 = vshrl.u32 %v4505, 7
      %v4507 = vsub.s32 %v4323, %v4506
      %v4508 = vrot.slane %v4022, %v4507
      %v4509 = vsel %vm4328, %v4508, %v4504
      %v4510 = vlaneseq
      %v4511 = vshrl.u32 %v4510, 7
      %v4512 = vsub.s32 %v4330, %v4511
      %v4513 = vrot.slane %v4025, %v4512
      %v4514 = vsel %vm4335, %v4513, %v4509
      %v4515 = vlaneseq
      %v4516 = vshrl.u32 %v4515, 7
      %v4517 = vsub.s32 %v4337, %v4516
      %v4518 = vrot.slane %v4028, %v4517
      %v4519 = vsel %vm4342, %v4518, %v4514
      %v4520 = vlaneseq
      %v4521 = vshrl.u32 %v4520, 7
      %v4522 = vsub.s32 %v4344, %v4521
      %v4523 = vrot.slane %v4031, %v4522
      %v4524 = vsel %vm4349, %v4523, %v4519
      %v4525 = vlaneseq
      %v4526 = vshrl.u32 %v4525, 7
      %v4527 = vsub.s32 %v4351, %v4526
      %v4528 = vrot.slane %v4034, %v4527
      %v4529 = vsel %vm4356, %v4528, %v4524
      %v4530 = vlaneseq
      %v4531 = vshrl.u32 %v4530, 7
      %v4532 = vsub.s32 %v4358, %v4531
      %v4533 = vrot.slane %v4037, %v4532
      %v4534 = vsel %vm4363, %v4533, %v4529
      %v4535 = vlaneseq
      %v4536 = vshrl.u32 %v4535, 7
      %v4537 = vsub.s32 %v4365, %v4536
      %v4538 = vrot.slane %v4040, %v4537
      %v4539 = vsel %vm4370, %v4538, %v4534
      %v4540 = vlaneseq
      %v4541 = vshrl.u32 %v4540, 7
      %v4542 = vsub.s32 %v4372, %v4541
      %v4543 = vrot.slane %v4043, %v4542
      %v4544 = vsel %vm4377, %v4543, %v4539
      %v4545 = vlaneseq
      %v4546 = vshrl.u32 %v4545, 7
      %v4547 = vsub.s32 %v4379, %v4546
      %v4548 = vrot.slane %v4046, %v4547
      %v4549 = vsel %vm4384, %v4548, %v4544
      %v4550 = vlaneseq
      %v4551 = vshrl.u32 %v4550, 7
      %v4552 = vsub.s32 %v4386, %v4551
      %v4553 = vrot.slane %v4049, %v4552
      %v4554 = vsel %vm4391, %v4553, %v4549
      %v4555 = vlaneseq
      %v4556 = vshrl.u32 %v4555, 7
      %v4557 = vsub.s32 %v4393, %v4556
      %v4558 = vrot.slane %v4052, %v4557
      %v4559 = vsel %vm4398, %v4558, %v4554
      %v4560 = vlaneseq
      %v4561 = vshrl.u32 %v4560, 7
      %v4562 = vsub.s32 %v4400, %v4561
      %v4563 = vrot.slane %v4055, %v4562
      %v4564 = vsel %vm4405, %v4563, %v4559
      %v4565 = vlaneseq
      %v4566 = vshrl.u32 %v4565, 7
      %v4567 = vsub.s32 %v4297, %v4566
      %v4568 = vrot.slane %v4058, %v4567
      %v4569 = vlaneseq
      %v4570 = vshrl.u32 %v4569, 7
      %v4571 = vsub.s32 %v4302, %v4570
      %v4572 = vrot.slane %v4061, %v4571
      %v4573 = vsel %vm4307, %v4572, %v4568
      %v4574 = vlaneseq
      %v4575 = vshrl.u32 %v4574, 7
      %v4576 = vsub.s32 %v4309, %v4575
      %v4577 = vrot.slane %v4064, %v4576
      %v4578 = vsel %vm4314, %v4577, %v4573
      %v4579 = vlaneseq
      %v4580 = vshrl.u32 %v4579, 7
      %v4581 = vsub.s32 %v4316, %v4580
      %v4582 = vrot.slane %v4067, %v4581
      %v4583 = vsel %vm4321, %v4582, %v4578
      %v4584 = vlaneseq
      %v4585 = vshrl.u32 %v4584, 7
      %v4586 = vsub.s32 %v4323, %v4585
      %v4587 = vrot.slane %v4070, %v4586
      %v4588 = vsel %vm4328, %v4587, %v4583
      %v4589 = vlaneseq
      %v4590 = vshrl.u32 %v4589, 7
      %v4591 = vsub.s32 %v4330, %v4590
      %v4592 = vrot.slane %v4073, %v4591
      %v4593 = vsel %vm4335, %v4592, %v4588
      %v4594 = vlaneseq
      %v4595 = vshrl.u32 %v4594, 7
      %v4596 = vsub.s32 %v4337, %v4595
      %v4597 = vrot.slane %v4076, %v4596
      %v4598 = vsel %vm4342, %v4597, %v4593
      %v4599 = vlaneseq
      %v4600 = vshrl.u32 %v4599, 7
      %v4601 = vsub.s32 %v4344, %v4600
      %v4602 = vrot.slane %v4079, %v4601
      %v4603 = vsel %vm4349, %v4602, %v4598
      %v4604 = vlaneseq
      %v4605 = vshrl.u32 %v4604, 7
      %v4606 = vsub.s32 %v4351, %v4605
      %v4607 = vrot.slane %v4082, %v4606
      %v4608 = vsel %vm4356, %v4607, %v4603
      %v4609 = vlaneseq
      %v4610 = vshrl.u32 %v4609, 7
      %v4611 = vsub.s32 %v4358, %v4610
      %v4612 = vrot.slane %v4085, %v4611
      %v4613 = vsel %vm4363, %v4612, %v4608
      %v4614 = vlaneseq
      %v4615 = vshrl.u32 %v4614, 7
      %v4616 = vsub.s32 %v4365, %v4615
      %v4617 = vrot.slane %v4088, %v4616
      %v4618 = vsel %vm4370, %v4617, %v4613
      %v4619 = vlaneseq
      %v4620 = vshrl.u32 %v4619, 7
      %v4621 = vsub.s32 %v4372, %v4620
      %v4622 = vrot.slane %v4091, %v4621
      %v4623 = vsel %vm4377, %v4622, %v4618
      %v4624 = vlaneseq
      %v4625 = vshrl.u32 %v4624, 7
      %v4626 = vsub.s32 %v4379, %v4625
      %v4627 = vrot.slane %v4094, %v4626
      %v4628 = vsel %vm4384, %v4627, %v4623
      %v4629 = vlaneseq
      %v4630 = vshrl.u32 %v4629, 7
      %v4631 = vsub.s32 %v4386, %v4630
      %v4632 = vrot.slane %v4097, %v4631
      %v4633 = vsel %vm4391, %v4632, %v4628
      %v4634 = vlaneseq
      %v4635 = vshrl.u32 %v4634, 7
      %v4636 = vsub.s32 %v4393, %v4635
      %v4637 = vrot.slane %v4100, %v4636
      %v4638 = vsel %vm4398, %v4637, %v4633
      %v4639 = vlaneseq
      %v4640 = vshrl.u32 %v4639, 7
      %v4641 = vsub.s32 %v4400, %v4640
      %v4642 = vrot.slane %v4103, %v4641
      %v4643 = vsel %vm4405, %v4642, %v4638
      %v4644 = vlaneseq
      %v4645 = vshrl.u32 %v4644, 7
      %v4646 = vsub.s32 %v4297, %v4645
      %v4647 = vrot.slane %v4106, %v4646
      %v4648 = vlaneseq
      %v4649 = vshrl.u32 %v4648, 7
      %v4650 = vsub.s32 %v4302, %v4649
      %v4651 = vrot.slane %v4109, %v4650
      %v4652 = vsel %vm4307, %v4651, %v4647
      %v4653 = vlaneseq
      %v4654 = vshrl.u32 %v4653, 7
      %v4655 = vsub.s32 %v4309, %v4654
      %v4656 = vrot.slane %v4112, %v4655
      %v4657 = vsel %vm4314, %v4656, %v4652
      %v4658 = vlaneseq
      %v4659 = vshrl.u32 %v4658, 7
      %v4660 = vsub.s32 %v4316, %v4659
      %v4661 = vrot.slane %v4115, %v4660
      %v4662 = vsel %vm4321, %v4661, %v4657
      %v4663 = vlaneseq
      %v4664 = vshrl.u32 %v4663, 7
      %v4665 = vsub.s32 %v4323, %v4664
      %v4666 = vrot.slane %v4118, %v4665
      %v4667 = vsel %vm4328, %v4666, %v4662
      %v4668 = vlaneseq
      %v4669 = vshrl.u32 %v4668, 7
      %v4670 = vsub.s32 %v4330, %v4669
      %v4671 = vrot.slane %v4121, %v4670
      %v4672 = vsel %vm4335, %v4671, %v4667
      %v4673 = vlaneseq
      %v4674 = vshrl.u32 %v4673, 7
      %v4675 = vsub.s32 %v4337, %v4674
      %v4676 = vrot.slane %v4124, %v4675
      %v4677 = vsel %vm4342, %v4676, %v4672
      %v4678 = vlaneseq
      %v4679 = vshrl.u32 %v4678, 7
      %v4680 = vsub.s32 %v4344, %v4679
      %v4681 = vrot.slane %v4127, %v4680
      %v4682 = vsel %vm4349, %v4681, %v4677
      %v4683 = vlaneseq
      %v4684 = vshrl.u32 %v4683, 7
      %v4685 = vsub.s32 %v4351, %v4684
      %v4686 = vrot.slane %v4130, %v4685
      %v4687 = vsel %vm4356, %v4686, %v4682
      %v4688 = vlaneseq
      %v4689 = vshrl.u32 %v4688, 7
      %v4690 = vsub.s32 %v4358, %v4689
      %v4691 = vrot.slane %v4133, %v4690
      %v4692 = vsel %vm4363, %v4691, %v4687
      %v4693 = vlaneseq
      %v4694 = vshrl.u32 %v4693, 7
      %v4695 = vsub.s32 %v4365, %v4694
      %v4696 = vrot.slane %v4136, %v4695
      %v4697 = vsel %vm4370, %v4696, %v4692
      %v4698 = vlaneseq
      %v4699 = vshrl.u32 %v4698, 7
      %v4700 = vsub.s32 %v4372, %v4699
      %v4701 = vrot.slane %v4139, %v4700
      %v4702 = vsel %vm4377, %v4701, %v4697
      %v4703 = vlaneseq
      %v4704 = vshrl.u32 %v4703, 7
      %v4705 = vsub.s32 %v4379, %v4704
      %v4706 = vrot.slane %v4142, %v4705
      %v4707 = vsel %vm4384, %v4706, %v4702
      %v4708 = vlaneseq
      %v4709 = vshrl.u32 %v4708, 7
      %v4710 = vsub.s32 %v4386, %v4709
      %v4711 = vrot.slane %v4145, %v4710
      %v4712 = vsel %vm4391, %v4711, %v4707
      %v4713 = vlaneseq
      %v4714 = vshrl.u32 %v4713, 7
      %v4715 = vsub.s32 %v4393, %v4714
      %v4716 = vrot.slane %v4148, %v4715
      %v4717 = vsel %vm4398, %v4716, %v4712
      %v4718 = vlaneseq
      %v4719 = vshrl.u32 %v4718, 7
      %v4720 = vsub.s32 %v4400, %v4719
      %v4721 = vrot.slane %v4151, %v4720
      %v4722 = vsel %vm4405, %v4721, %v4717
      %v4723 = vlaneseq
      %v4724 = vshrl.u32 %v4723, 7
      %v4725 = vsub.s32 %v4297, %v4724
      %v4726 = vrot.slane %v4154, %v4725
      %v4727 = vlaneseq
      %v4728 = vshrl.u32 %v4727, 7
      %v4729 = vsub.s32 %v4302, %v4728
      %v4730 = vrot.slane %v4157, %v4729
      %v4731 = vsel %vm4307, %v4730, %v4726
      %v4732 = vlaneseq
      %v4733 = vshrl.u32 %v4732, 7
      %v4734 = vsub.s32 %v4309, %v4733
      %v4735 = vrot.slane %v4160, %v4734
      %v4736 = vsel %vm4314, %v4735, %v4731
      %v4737 = vlaneseq
      %v4738 = vshrl.u32 %v4737, 7
      %v4739 = vsub.s32 %v4316, %v4738
      %v4740 = vrot.slane %v4163, %v4739
      %v4741 = vsel %vm4321, %v4740, %v4736
      %v4742 = vlaneseq
      %v4743 = vshrl.u32 %v4742, 7
      %v4744 = vsub.s32 %v4323, %v4743
      %v4745 = vrot.slane %v4166, %v4744
      %v4746 = vsel %vm4328, %v4745, %v4741
      %v4747 = vlaneseq
      %v4748 = vshrl.u32 %v4747, 7
      %v4749 = vsub.s32 %v4330, %v4748
      %v4750 = vrot.slane %v4169, %v4749
      %v4751 = vsel %vm4335, %v4750, %v4746
      %v4752 = vlaneseq
      %v4753 = vshrl.u32 %v4752, 7
      %v4754 = vsub.s32 %v4337, %v4753
      %v4755 = vrot.slane %v4172, %v4754
      %v4756 = vsel %vm4342, %v4755, %v4751
      %v4757 = vlaneseq
      %v4758 = vshrl.u32 %v4757, 7
      %v4759 = vsub.s32 %v4344, %v4758
      %v4760 = vrot.slane %v4175, %v4759
      %v4761 = vsel %vm4349, %v4760, %v4756
      %v4762 = vlaneseq
      %v4763 = vshrl.u32 %v4762, 7
      %v4764 = vsub.s32 %v4351, %v4763
      %v4765 = vrot.slane %v4178, %v4764
      %v4766 = vsel %vm4356, %v4765, %v4761
      %v4767 = vlaneseq
      %v4768 = vshrl.u32 %v4767, 7
      %v4769 = vsub.s32 %v4358, %v4768
      %v4770 = vrot.slane %v4181, %v4769
      %v4771 = vsel %vm4363, %v4770, %v4766
      %v4772 = vlaneseq
      %v4773 = vshrl.u32 %v4772, 7
      %v4774 = vsub.s32 %v4365, %v4773
      %v4775 = vrot.slane %v4184, %v4774
      %v4776 = vsel %vm4370, %v4775, %v4771
      %v4777 = vlaneseq
      %v4778 = vshrl.u32 %v4777, 7
      %v4779 = vsub.s32 %v4372, %v4778
      %v4780 = vrot.slane %v4187, %v4779
      %v4781 = vsel %vm4377, %v4780, %v4776
      %v4782 = vlaneseq
      %v4783 = vshrl.u32 %v4782, 7
      %v4784 = vsub.s32 %v4379, %v4783
      %v4785 = vrot.slane %v4190, %v4784
      %v4786 = vsel %vm4384, %v4785, %v4781
      %v4787 = vlaneseq
      %v4788 = vshrl.u32 %v4787, 7
      %v4789 = vsub.s32 %v4386, %v4788
      %v4790 = vrot.slane %v4193, %v4789
      %v4791 = vsel %vm4391, %v4790, %v4786
      %v4792 = vlaneseq
      %v4793 = vshrl.u32 %v4792, 7
      %v4794 = vsub.s32 %v4393, %v4793
      %v4795 = vrot.slane %v4196, %v4794
      %v4796 = vsel %vm4398, %v4795, %v4791
      %v4797 = vlaneseq
      %v4798 = vshrl.u32 %v4797, 7
      %v4799 = vsub.s32 %v4400, %v4798
      %v4800 = vrot.slane %v4199, %v4799
      %v4801 = vsel %vm4405, %v4800, %v4796
      %v4802 = vlaneseq
      %v4803 = vshrl.u32 %v4802, 7
      %v4804 = vsub.s32 %v4297, %v4803
      %v4805 = vrot.slane %v4202, %v4804
      %v4806 = vlaneseq
      %v4807 = vshrl.u32 %v4806, 7
      %v4808 = vsub.s32 %v4302, %v4807
      %v4809 = vrot.slane %v4205, %v4808
      %v4810 = vsel %vm4307, %v4809, %v4805
      %v4811 = vlaneseq
      %v4812 = vshrl.u32 %v4811, 7
      %v4813 = vsub.s32 %v4309, %v4812
      %v4814 = vrot.slane %v4208, %v4813
      %v4815 = vsel %vm4314, %v4814, %v4810
      %v4816 = vlaneseq
      %v4817 = vshrl.u32 %v4816, 7
      %v4818 = vsub.s32 %v4316, %v4817
      %v4819 = vrot.slane %v4211, %v4818
      %v4820 = vsel %vm4321, %v4819, %v4815
      %v4821 = vlaneseq
      %v4822 = vshrl.u32 %v4821, 7
      %v4823 = vsub.s32 %v4323, %v4822
      %v4824 = vrot.slane %v4214, %v4823
      %v4825 = vsel %vm4328, %v4824, %v4820
      %v4826 = vlaneseq
      %v4827 = vshrl.u32 %v4826, 7
      %v4828 = vsub.s32 %v4330, %v4827
      %v4829 = vrot.slane %v4217, %v4828
      %v4830 = vsel %vm4335, %v4829, %v4825
      %v4831 = vlaneseq
      %v4832 = vshrl.u32 %v4831, 7
      %v4833 = vsub.s32 %v4337, %v4832
      %v4834 = vrot.slane %v4220, %v4833
      %v4835 = vsel %vm4342, %v4834, %v4830
      %v4836 = vlaneseq
      %v4837 = vshrl.u32 %v4836, 7
      %v4838 = vsub.s32 %v4344, %v4837
      %v4839 = vrot.slane %v4223, %v4838
      %v4840 = vsel %vm4349, %v4839, %v4835
      %v4841 = vlaneseq
      %v4842 = vshrl.u32 %v4841, 7
      %v4843 = vsub.s32 %v4351, %v4842
      %v4844 = vrot.slane %v4226, %v4843
      %v4845 = vsel %vm4356, %v4844, %v4840
      %v4846 = vlaneseq
      %v4847 = vshrl.u32 %v4846, 7
      %v4848 = vsub.s32 %v4358, %v4847
      %v4849 = vrot.slane %v4229, %v4848
      %v4850 = vsel %vm4363, %v4849, %v4845
      %v4851 = vlaneseq
      %v4852 = vshrl.u32 %v4851, 7
      %v4853 = vsub.s32 %v4365, %v4852
      %v4854 = vrot.slane %v4232, %v4853
      %v4855 = vsel %vm4370, %v4854, %v4850
      %v4856 = vlaneseq
      %v4857 = vshrl.u32 %v4856, 7
      %v4858 = vsub.s32 %v4372, %v4857
      %v4859 = vrot.slane %v4235, %v4858
      %v4860 = vsel %vm4377, %v4859, %v4855
      %v4861 = vlaneseq
      %v4862 = vshrl.u32 %v4861, 7
      %v4863 = vsub.s32 %v4379, %v4862
      %v4864 = vrot.slane %v4238, %v4863
      %v4865 = vsel %vm4384, %v4864, %v4860
      %v4866 = vlaneseq
      %v4867 = vshrl.u32 %v4866, 7
      %v4868 = vsub.s32 %v4386, %v4867
      %v4869 = vrot.slane %v4241, %v4868
      %v4870 = vsel %vm4391, %v4869, %v4865
      %v4871 = vlaneseq
      %v4872 = vshrl.u32 %v4871, 7
      %v4873 = vsub.s32 %v4393, %v4872
      %v4874 = vrot.slane %v4244, %v4873
      %v4875 = vsel %vm4398, %v4874, %v4870
      %v4876 = vlaneseq
      %v4877 = vshrl.u32 %v4876, 7
      %v4878 = vsub.s32 %v4400, %v4877
      %v4879 = vrot.slane %v4247, %v4878
      %v4880 = vsel %vm4405, %v4879, %v4875
      %v4881 = vlaneseq
      %v4882 = vshrl.u32 %v4881, 7
      %v4883 = vsub.s32 %v4297, %v4882
      %v4884 = vrot.slane %v4250, %v4883
      %v4885 = vlaneseq
      %v4886 = vshrl.u32 %v4885, 7
      %v4887 = vsub.s32 %v4302, %v4886
      %v4888 = vrot.slane %v4253, %v4887
      %v4889 = vsel %vm4307, %v4888, %v4884
      %v4890 = vlaneseq
      %v4891 = vshrl.u32 %v4890, 7
      %v4892 = vsub.s32 %v4309, %v4891
      %v4893 = vrot.slane %v4256, %v4892
      %v4894 = vsel %vm4314, %v4893, %v4889
      %v4895 = vlaneseq
      %v4896 = vshrl.u32 %v4895, 7
      %v4897 = vsub.s32 %v4316, %v4896
      %v4898 = vrot.slane %v4259, %v4897
      %v4899 = vsel %vm4321, %v4898, %v4894
      %v4900 = vlaneseq
      %v4901 = vshrl.u32 %v4900, 7
      %v4902 = vsub.s32 %v4323, %v4901
      %v4903 = vrot.slane %v4262, %v4902
      %v4904 = vsel %vm4328, %v4903, %v4899
      %v4905 = vlaneseq
      %v4906 = vshrl.u32 %v4905, 7
      %v4907 = vsub.s32 %v4330, %v4906
      %v4908 = vrot.slane %v4265, %v4907
      %v4909 = vsel %vm4335, %v4908, %v4904
      %v4910 = vlaneseq
      %v4911 = vshrl.u32 %v4910, 7
      %v4912 = vsub.s32 %v4337, %v4911
      %v4913 = vrot.slane %v4268, %v4912
      %v4914 = vsel %vm4342, %v4913, %v4909
      %v4915 = vlaneseq
      %v4916 = vshrl.u32 %v4915, 7
      %v4917 = vsub.s32 %v4344, %v4916
      %v4918 = vrot.slane %v4271, %v4917
      %v4919 = vsel %vm4349, %v4918, %v4914
      %v4920 = vlaneseq
      %v4921 = vshrl.u32 %v4920, 7
      %v4922 = vsub.s32 %v4351, %v4921
      %v4923 = vrot.slane %v4274, %v4922
      %v4924 = vsel %vm4356, %v4923, %v4919
      %v4925 = vlaneseq
      %v4926 = vshrl.u32 %v4925, 7
      %v4927 = vsub.s32 %v4358, %v4926
      %v4928 = vrot.slane %v4277, %v4927
      %v4929 = vsel %vm4363, %v4928, %v4924
      %v4930 = vlaneseq
      %v4931 = vshrl.u32 %v4930, 7
      %v4932 = vsub.s32 %v4365, %v4931
      %v4933 = vrot.slane %v4280, %v4932
      %v4934 = vsel %vm4370, %v4933, %v4929
      %v4935 = vlaneseq
      %v4936 = vshrl.u32 %v4935, 7
      %v4937 = vsub.s32 %v4372, %v4936
      %v4938 = vrot.slane %v4283, %v4937
      %v4939 = vsel %vm4377, %v4938, %v4934
      %v4940 = vlaneseq
      %v4941 = vshrl.u32 %v4940, 7
      %v4942 = vsub.s32 %v4379, %v4941
      %v4943 = vrot.slane %v4286, %v4942
      %v4944 = vsel %vm4384, %v4943, %v4939
      %v4945 = vlaneseq
      %v4946 = vshrl.u32 %v4945, 7
      %v4947 = vsub.s32 %v4386, %v4946
      %v4948 = vrot.slane %v4289, %v4947
      %v4949 = vsel %vm4391, %v4948, %v4944
      %v4950 = vlaneseq
      %v4951 = vshrl.u32 %v4950, 7
      %v4952 = vsub.s32 %v4393, %v4951
      %v4953 = vrot.slane %v4292, %v4952
      %v4954 = vsel %vm4398, %v4953, %v4949
      %v4955 = vlaneseq
      %v4956 = vshrl.u32 %v4955, 7
      %v4957 = vsub.s32 %v4400, %v4956
      %v4958 = vrot.slane %v4295, %v4957
      %v4959 = vsel %vm4405, %v4958, %v4954
      %vm4960 = vcmask 1041409
      %v4961 = vsel %vm4960, %v4485, %v4406
      %vm4962 = vcmask 1042434
      %v4963 = vsel %vm4962, %v4564, %v4961
      %vm4964 = vcmask 1043459
      %v4965 = vsel %vm4964, %v4643, %v4963
      %vm4966 = vcmask 1044484
      %v4967 = vsel %vm4966, %v4722, %v4965
      %vm4968 = vcmask 1045509
      %v4969 = vsel %vm4968, %v4801, %v4967
      %vm4970 = vcmask 1046534
      %v4971 = vsel %vm4970, %v4880, %v4969
      %vm4972 = vcmask 1047559
      %v4973 = vsel %vm4972, %v4959, %v4971
      %4975 = vmax.xlane.f32.xlu0 %v4973
      %v4976 = vpop.xlane.xlu0 %4975
      %v4978 = vlaneseq
      %v4979 = vshrl.u32 %v4978, 7
      %v4980 = vsub.s32 0, %v4979
      %v4981 = vrot.slane %v4976, %v4980
      %v4982 = vlaneseq
      %v4983 = vshrl.u32 %v4982, 7
      %v4984 = vsub.s32 1, %v4983
      %v4985 = vrot.slane %v4976, %v4984
      %v4986 = vlaneseq
      %v4987 = vshrl.u32 %v4986, 7
      %v4988 = vsub.s32 2, %v4987
      %v4989 = vrot.slane %v4976, %v4988
      %v4990 = vlaneseq
      %v4991 = vshrl.u32 %v4990, 7
      %v4992 = vsub.s32 3, %v4991
      %v4993 = vrot.slane %v4976, %v4992
      %v4994 = vlaneseq
      %v4995 = vshrl.u32 %v4994, 7
      %v4996 = vsub.s32 4, %v4995
      %v4997 = vrot.slane %v4976, %v4996
      %v4998 = vlaneseq
      %v4999 = vshrl.u32 %v4998, 7
      %v5000 = vsub.s32 5, %v4999
      %v5001 = vrot.slane %v4976, %v5000
      %v5002 = vlaneseq
      %v5003 = vshrl.u32 %v5002, 7
      %v5004 = vsub.s32 6, %v5003
      %v5005 = vrot.slane %v4976, %v5004
      %v5006 = vlaneseq
      %v5007 = vshrl.u32 %v5006, 7
      %v5008 = vsub.s32 7, %v5007
      %v5009 = vrot.slane %v4976, %v5008
      %v5018 = vsub.f32 %v3656, %v4981
      %v5019 = vsub.f32 %v3657, %v4981
      %v5020 = vsub.f32 %v3658, %v4981
      %v5021 = vsub.f32 %v3659, %v4981
      %v5022 = vsub.f32 %v3660, %v4981
      %v5023 = vsub.f32 %v3661, %v4981
      %v5024 = vsub.f32 %v3662, %v4981
      %v5025 = vsub.f32 %v3663, %v4981
      %v5026 = vsub.f32 %v3664, %v4981
      %v5027 = vsub.f32 %v3665, %v4981
      %v5028 = vsub.f32 %v3666, %v4981
      %v5029 = vsub.f32 %v3667, %v4981
      %v5030 = vsub.f32 %v3668, %v4981
      %v5031 = vsub.f32 %v3669, %v4981
      %v5032 = vsub.f32 %v3670, %v4981
      %v5033 = vsub.f32 %v3671, %v4981
      %v5034 = vsub.f32 %v3672, %v4985
      %v5035 = vsub.f32 %v3673, %v4985
      %v5036 = vsub.f32 %v3674, %v4985
      %v5037 = vsub.f32 %v3675, %v4985
      %v5038 = vsub.f32 %v3676, %v4985
      %v5039 = vsub.f32 %v3677, %v4985
      %v5040 = vsub.f32 %v3678, %v4985
      %v5041 = vsub.f32 %v3679, %v4985
      %v5042 = vsub.f32 %v3680, %v4985
      %v5043 = vsub.f32 %v3681, %v4985
      %v5044 = vsub.f32 %v3682, %v4985
      %v5045 = vsub.f32 %v3683, %v4985
      %v5046 = vsub.f32 %v3684, %v4985
      %v5047 = vsub.f32 %v3685, %v4985
      %v5048 = vsub.f32 %v3686, %v4985
      %v5049 = vsub.f32 %v3687, %v4985
      %v5050 = vsub.f32 %v3688, %v4989
      %v5051 = vsub.f32 %v3689, %v4989
      %v5052 = vsub.f32 %v3690, %v4989
      %v5053 = vsub.f32 %v3691, %v4989
      %v5054 = vsub.f32 %v3692, %v4989
      %v5055 = vsub.f32 %v3693, %v4989
      %v5056 = vsub.f32 %v3694, %v4989
      %v5057 = vsub.f32 %v3695, %v4989
      %v5058 = vsub.f32 %v3696, %v4989
      %v5059 = vsub.f32 %v3697, %v4989
      %v5060 = vsub.f32 %v3698, %v4989
      %v5061 = vsub.f32 %v3699, %v4989
      %v5062 = vsub.f32 %v3700, %v4989
      %v5063 = vsub.f32 %v3701, %v4989
      %v5064 = vsub.f32 %v3702, %v4989
      %v5065 = vsub.f32 %v3703, %v4989
      %v5066 = vsub.f32 %v3704, %v4993
      %v5067 = vsub.f32 %v3705, %v4993
      %v5068 = vsub.f32 %v3706, %v4993
      %v5069 = vsub.f32 %v3707, %v4993
      %v5070 = vsub.f32 %v3708, %v4993
      %v5071 = vsub.f32 %v3709, %v4993
      %v5072 = vsub.f32 %v3710, %v4993
      %v5073 = vsub.f32 %v3711, %v4993
      %v5074 = vsub.f32 %v3712, %v4993
      %v5075 = vsub.f32 %v3713, %v4993
      %v5076 = vsub.f32 %v3714, %v4993
      %v5077 = vsub.f32 %v3715, %v4993
      %v5078 = vsub.f32 %v3716, %v4993
      %v5079 = vsub.f32 %v3717, %v4993
      %v5080 = vsub.f32 %v3718, %v4993
      %v5081 = vsub.f32 %v3719, %v4993
      %v5082 = vsub.f32 %v3720, %v4997
      %v5083 = vsub.f32 %v3721, %v4997
      %v5084 = vsub.f32 %v3722, %v4997
      %v5085 = vsub.f32 %v3723, %v4997
      %v5086 = vsub.f32 %v3724, %v4997
      %v5087 = vsub.f32 %v3725, %v4997
      %v5088 = vsub.f32 %v3726, %v4997
      %v5089 = vsub.f32 %v3727, %v4997
      %v5090 = vsub.f32 %v3728, %v4997
      %v5091 = vsub.f32 %v3729, %v4997
      %v5092 = vsub.f32 %v3730, %v4997
      %v5093 = vsub.f32 %v3731, %v4997
      %v5094 = vsub.f32 %v3732, %v4997
      %v5095 = vsub.f32 %v3733, %v4997
      %v5096 = vsub.f32 %v3734, %v4997
      %v5097 = vsub.f32 %v3735, %v4997
      %v5098 = vsub.f32 %v3736, %v5001
      %v5099 = vsub.f32 %v3737, %v5001
      %v5100 = vsub.f32 %v3738, %v5001
      %v5101 = vsub.f32 %v3739, %v5001
      %v5102 = vsub.f32 %v3740, %v5001
      %v5103 = vsub.f32 %v3741, %v5001
      %v5104 = vsub.f32 %v3742, %v5001
      %v5105 = vsub.f32 %v3743, %v5001
      %v5106 = vsub.f32 %v3744, %v5001
      %v5107 = vsub.f32 %v3745, %v5001
      %v5108 = vsub.f32 %v3746, %v5001
      %v5109 = vsub.f32 %v3747, %v5001
      %v5110 = vsub.f32 %v3748, %v5001
      %v5111 = vsub.f32 %v3749, %v5001
      %v5112 = vsub.f32 %v3750, %v5001
      %v5113 = vsub.f32 %v3751, %v5001
      %v5114 = vsub.f32 %v3752, %v5005
      %v5115 = vsub.f32 %v3753, %v5005
      %v5116 = vsub.f32 %v3754, %v5005
      %v5117 = vsub.f32 %v3755, %v5005
      %v5118 = vsub.f32 %v3756, %v5005
      %v5119 = vsub.f32 %v3757, %v5005
      %v5120 = vsub.f32 %v3758, %v5005
      %v5121 = vsub.f32 %v3759, %v5005
      %v5122 = vsub.f32 %v3760, %v5005
      %v5123 = vsub.f32 %v3761, %v5005
      %v5124 = vsub.f32 %v3762, %v5005
      %v5125 = vsub.f32 %v3763, %v5005
      %v5126 = vsub.f32 %v3764, %v5005
      %v5127 = vsub.f32 %v3765, %v5005
      %v5128 = vsub.f32 %v3766, %v5005
      %v5129 = vsub.f32 %v3767, %v5005
      %v5130 = vsub.f32 %v3768, %v5009
      %v5131 = vsub.f32 %v3769, %v5009
      %v5132 = vsub.f32 %v3770, %v5009
      %v5133 = vsub.f32 %v3771, %v5009
      %v5134 = vsub.f32 %v3772, %v5009
      %v5135 = vsub.f32 %v3773, %v5009
      %v5136 = vsub.f32 %v3774, %v5009
      %v5137 = vsub.f32 %v3775, %v5009
      %v5138 = vsub.f32 %v3776, %v5009
      %v5139 = vsub.f32 %v3777, %v5009
      %v5140 = vsub.f32 %v3778, %v5009
      %v5141 = vsub.f32 %v3779, %v5009
      %v5142 = vsub.f32 %v3780, %v5009
      %v5143 = vsub.f32 %v3781, %v5009
      %v5144 = vsub.f32 %v3782, %v5009
      %v5145 = vsub.f32 %v3783, %v5009
      %v5146 = vmul.f32 %v5018, 1.442695
      %v5147 = vpow.pop %v5146
      %v5148 = vmul.f32 %v5019, 1.442695
      %v5149 = vpow.pop %v5148
      %v5150 = vmul.f32 %v5020, 1.442695
      %v5151 = vpow.pop %v5150
      %v5152 = vmul.f32 %v5021, 1.442695
      %v5153 = vpow.pop %v5152
      %v5154 = vmul.f32 %v5022, 1.442695
      %v5155 = vpow.pop %v5154
      %v5156 = vmul.f32 %v5023, 1.442695
      %v5157 = vpow.pop %v5156
      %v5158 = vmul.f32 %v5024, 1.442695
      %v5159 = vpow.pop %v5158
      %v5160 = vmul.f32 %v5025, 1.442695
      %v5161 = vpow.pop %v5160
      %v5162 = vmul.f32 %v5026, 1.442695
      %v5163 = vpow.pop %v5162
      %v5164 = vmul.f32 %v5027, 1.442695
      %v5165 = vpow.pop %v5164
      %v5166 = vmul.f32 %v5028, 1.442695
      %v5167 = vpow.pop %v5166
      %v5168 = vmul.f32 %v5029, 1.442695
      %v5169 = vpow.pop %v5168
      %v5170 = vmul.f32 %v5030, 1.442695
      %v5171 = vpow.pop %v5170
      %v5172 = vmul.f32 %v5031, 1.442695
      %v5173 = vpow.pop %v5172
      %v5174 = vmul.f32 %v5032, 1.442695
      %v5175 = vpow.pop %v5174
      %v5176 = vmul.f32 %v5033, 1.442695
      %v5177 = vpow.pop %v5176
      %v5178 = vmul.f32 %v5034, 1.442695
      %v5179 = vpow.pop %v5178
      %v5180 = vmul.f32 %v5035, 1.442695
      %v5181 = vpow.pop %v5180
      %v5182 = vmul.f32 %v5036, 1.442695
      %v5183 = vpow.pop %v5182
      %v5184 = vmul.f32 %v5037, 1.442695
      %v5185 = vpow.pop %v5184
      %v5186 = vmul.f32 %v5038, 1.442695
      %v5187 = vpow.pop %v5186
      %v5188 = vmul.f32 %v5039, 1.442695
      %v5189 = vpow.pop %v5188
      %v5190 = vmul.f32 %v5040, 1.442695
      %v5191 = vpow.pop %v5190
      %v5192 = vmul.f32 %v5041, 1.442695
      %v5193 = vpow.pop %v5192
      %v5194 = vmul.f32 %v5042, 1.442695
      %v5195 = vpow.pop %v5194
      %v5196 = vmul.f32 %v5043, 1.442695
      %v5197 = vpow.pop %v5196
      %v5198 = vmul.f32 %v5044, 1.442695
      %v5199 = vpow.pop %v5198
      %v5200 = vmul.f32 %v5045, 1.442695
      %v5201 = vpow.pop %v5200
      %v5202 = vmul.f32 %v5046, 1.442695
      %v5203 = vpow.pop %v5202
      %v5204 = vmul.f32 %v5047, 1.442695
      %v5205 = vpow.pop %v5204
      %v5206 = vmul.f32 %v5048, 1.442695
      %v5207 = vpow.pop %v5206
      %v5208 = vmul.f32 %v5049, 1.442695
      %v5209 = vpow.pop %v5208
      %v5210 = vmul.f32 %v5050, 1.442695
      %v5211 = vpow.pop %v5210
      %v5212 = vmul.f32 %v5051, 1.442695
      %v5213 = vpow.pop %v5212
      %v5214 = vmul.f32 %v5052, 1.442695
      %v5215 = vpow.pop %v5214
      %v5216 = vmul.f32 %v5053, 1.442695
      %v5217 = vpow.pop %v5216
      %v5218 = vmul.f32 %v5054, 1.442695
      %v5219 = vpow.pop %v5218
      %v5220 = vmul.f32 %v5055, 1.442695
      %v5221 = vpow.pop %v5220
      %v5222 = vmul.f32 %v5056, 1.442695
      %v5223 = vpow.pop %v5222
      %v5224 = vmul.f32 %v5057, 1.442695
      %v5225 = vpow.pop %v5224
      %v5226 = vmul.f32 %v5058, 1.442695
      %v5227 = vpow.pop %v5226
      %v5228 = vmul.f32 %v5059, 1.442695
      %v5229 = vpow.pop %v5228
      %v5230 = vmul.f32 %v5060, 1.442695
      %v5231 = vpow.pop %v5230
      %v5232 = vmul.f32 %v5061, 1.442695
      %v5233 = vpow.pop %v5232
      %v5234 = vmul.f32 %v5062, 1.442695
      %v5235 = vpow.pop %v5234
      %v5236 = vmul.f32 %v5063, 1.442695
      %v5237 = vpow.pop %v5236
      %v5238 = vmul.f32 %v5064, 1.442695
      %v5239 = vpow.pop %v5238
      %v5240 = vmul.f32 %v5065, 1.442695
      %v5241 = vpow.pop %v5240
      %v5242 = vmul.f32 %v5066, 1.442695
      %v5243 = vpow.pop %v5242
      %v5244 = vmul.f32 %v5067, 1.442695
      %v5245 = vpow.pop %v5244
      %v5246 = vmul.f32 %v5068, 1.442695
      %v5247 = vpow.pop %v5246
      %v5248 = vmul.f32 %v5069, 1.442695
      %v5249 = vpow.pop %v5248
      %v5250 = vmul.f32 %v5070, 1.442695
      %v5251 = vpow.pop %v5250
      %v5252 = vmul.f32 %v5071, 1.442695
      %v5253 = vpow.pop %v5252
      %v5254 = vmul.f32 %v5072, 1.442695
      %v5255 = vpow.pop %v5254
      %v5256 = vmul.f32 %v5073, 1.442695
      %v5257 = vpow.pop %v5256
      %v5258 = vmul.f32 %v5074, 1.442695
      %v5259 = vpow.pop %v5258
      %v5260 = vmul.f32 %v5075, 1.442695
      %v5261 = vpow.pop %v5260
      %v5262 = vmul.f32 %v5076, 1.442695
      %v5263 = vpow.pop %v5262
      %v5264 = vmul.f32 %v5077, 1.442695
      %v5265 = vpow.pop %v5264
      %v5266 = vmul.f32 %v5078, 1.442695
      %v5267 = vpow.pop %v5266
      %v5268 = vmul.f32 %v5079, 1.442695
      %v5269 = vpow.pop %v5268
      %v5270 = vmul.f32 %v5080, 1.442695
      %v5271 = vpow.pop %v5270
      %v5272 = vmul.f32 %v5081, 1.442695
      %v5273 = vpow.pop %v5272
      %v5274 = vmul.f32 %v5082, 1.442695
      %v5275 = vpow.pop %v5274
      %v5276 = vmul.f32 %v5083, 1.442695
      %v5277 = vpow.pop %v5276
      %v5278 = vmul.f32 %v5084, 1.442695
      %v5279 = vpow.pop %v5278
      %v5280 = vmul.f32 %v5085, 1.442695
      %v5281 = vpow.pop %v5280
      %v5282 = vmul.f32 %v5086, 1.442695
      %v5283 = vpow.pop %v5282
      %v5284 = vmul.f32 %v5087, 1.442695
      %v5285 = vpow.pop %v5284
      %v5286 = vmul.f32 %v5088, 1.442695
      %v5287 = vpow.pop %v5286
      %v5288 = vmul.f32 %v5089, 1.442695
      %v5289 = vpow.pop %v5288
      %v5290 = vmul.f32 %v5090, 1.442695
      %v5291 = vpow.pop %v5290
      %v5292 = vmul.f32 %v5091, 1.442695
      %v5293 = vpow.pop %v5292
      %v5294 = vmul.f32 %v5092, 1.442695
      %v5295 = vpow.pop %v5294
      %v5296 = vmul.f32 %v5093, 1.442695
      %v5297 = vpow.pop %v5296
      %v5298 = vmul.f32 %v5094, 1.442695
      %v5299 = vpow.pop %v5298
      %v5300 = vmul.f32 %v5095, 1.442695
      %v5301 = vpow.pop %v5300
      %v5302 = vmul.f32 %v5096, 1.442695
      %v5303 = vpow.pop %v5302
      %v5304 = vmul.f32 %v5097, 1.442695
      %v5305 = vpow.pop %v5304
      %v5306 = vmul.f32 %v5098, 1.442695
      %v5307 = vpow.pop %v5306
      %v5308 = vmul.f32 %v5099, 1.442695
      %v5309 = vpow.pop %v5308
      %v5310 = vmul.f32 %v5100, 1.442695
      %v5311 = vpow.pop %v5310
      %v5312 = vmul.f32 %v5101, 1.442695
      %v5313 = vpow.pop %v5312
      %v5314 = vmul.f32 %v5102, 1.442695
      %v5315 = vpow.pop %v5314
      %v5316 = vmul.f32 %v5103, 1.442695
      %v5317 = vpow.pop %v5316
      %v5318 = vmul.f32 %v5104, 1.442695
      %v5319 = vpow.pop %v5318
      %v5320 = vmul.f32 %v5105, 1.442695
      %v5321 = vpow.pop %v5320
      %v5322 = vmul.f32 %v5106, 1.442695
      %v5323 = vpow.pop %v5322
      %v5324 = vmul.f32 %v5107, 1.442695
      %v5325 = vpow.pop %v5324
      %v5326 = vmul.f32 %v5108, 1.442695
      %v5327 = vpow.pop %v5326
      %v5328 = vmul.f32 %v5109, 1.442695
      %v5329 = vpow.pop %v5328
      %v5330 = vmul.f32 %v5110, 1.442695
      %v5331 = vpow.pop %v5330
      %v5332 = vmul.f32 %v5111, 1.442695
      %v5333 = vpow.pop %v5332
      %v5334 = vmul.f32 %v5112, 1.442695
      %v5335 = vpow.pop %v5334
      %v5336 = vmul.f32 %v5113, 1.442695
      %v5337 = vpow.pop %v5336
      %v5338 = vmul.f32 %v5114, 1.442695
      %v5339 = vpow.pop %v5338
      %v5340 = vmul.f32 %v5115, 1.442695
      %v5341 = vpow.pop %v5340
      %v5342 = vmul.f32 %v5116, 1.442695
      %v5343 = vpow.pop %v5342
      %v5344 = vmul.f32 %v5117, 1.442695
      %v5345 = vpow.pop %v5344
      %v5346 = vmul.f32 %v5118, 1.442695
      %v5347 = vpow.pop %v5346
      %v5348 = vmul.f32 %v5119, 1.442695
      %v5349 = vpow.pop %v5348
      %v5350 = vmul.f32 %v5120, 1.442695
      %v5351 = vpow.pop %v5350
      %v5352 = vmul.f32 %v5121, 1.442695
      %v5353 = vpow.pop %v5352
      %v5354 = vmul.f32 %v5122, 1.442695
      %v5355 = vpow.pop %v5354
      %v5356 = vmul.f32 %v5123, 1.442695
      %v5357 = vpow.pop %v5356
      %v5358 = vmul.f32 %v5124, 1.442695
      %v5359 = vpow.pop %v5358
      %v5360 = vmul.f32 %v5125, 1.442695
      %v5361 = vpow.pop %v5360
      %v5362 = vmul.f32 %v5126, 1.442695
      %v5363 = vpow.pop %v5362
      %v5364 = vmul.f32 %v5127, 1.442695
      %v5365 = vpow.pop %v5364
      %v5366 = vmul.f32 %v5128, 1.442695
      %v5367 = vpow.pop %v5366
      %v5368 = vmul.f32 %v5129, 1.442695
      %v5369 = vpow.pop %v5368
      %v5370 = vmul.f32 %v5130, 1.442695
      %v5371 = vpow.pop %v5370
      %v5372 = vmul.f32 %v5131, 1.442695
      %v5373 = vpow.pop %v5372
      %v5374 = vmul.f32 %v5132, 1.442695
      %v5375 = vpow.pop %v5374
      %v5376 = vmul.f32 %v5133, 1.442695
      %v5377 = vpow.pop %v5376
      %v5378 = vmul.f32 %v5134, 1.442695
      %v5379 = vpow.pop %v5378
      %v5380 = vmul.f32 %v5135, 1.442695
      %v5381 = vpow.pop %v5380
      %v5382 = vmul.f32 %v5136, 1.442695
      %v5383 = vpow.pop %v5382
      %v5384 = vmul.f32 %v5137, 1.442695
      %v5385 = vpow.pop %v5384
      %v5386 = vmul.f32 %v5138, 1.442695
      %v5387 = vpow.pop %v5386
      %v5388 = vmul.f32 %v5139, 1.442695
      %v5389 = vpow.pop %v5388
      %v5390 = vmul.f32 %v5140, 1.442695
      %v5391 = vpow.pop %v5390
      %v5392 = vmul.f32 %v5141, 1.442695
      %v5393 = vpow.pop %v5392
      %v5394 = vmul.f32 %v5142, 1.442695
      %v5395 = vpow.pop %v5394
      %v5396 = vmul.f32 %v5143, 1.442695
      %v5397 = vpow.pop %v5396
      %v5398 = vmul.f32 %v5144, 1.442695
      %v5399 = vpow.pop %v5398
      %v5400 = vmul.f32 %v5145, 1.442695
      %v5401 = vpow.pop %v5400
      %v5402 = vmul.f32 %v5147, %v2998
      %v5403 = vmul.f32 %v5149, %v3002
      %v5404 = vmul.f32 %v5151, %v3006
      %v5405 = vmul.f32 %v5153, %v3010
      %v5406 = vmul.f32 %v5155, %v3014
      %v5407 = vmul.f32 %v5157, %v3018
      %v5408 = vmul.f32 %v5159, %v3022
      %v5409 = vmul.f32 %v5161, %v3026
      %v5410 = vmul.f32 %v5163, %v3030
      %v5411 = vmul.f32 %v5165, %v3034
      %v5412 = vmul.f32 %v5167, %v3038
      %v5413 = vmul.f32 %v5169, %v3042
      %v5414 = vmul.f32 %v5171, %v3046
      %v5415 = vmul.f32 %v5173, %v3050
      %v5416 = vmul.f32 %v5175, %v3054
      %v5417 = vmul.f32 %v5177, %v3058
      %v5418 = vmul.f32 %v5179, %v3065
      %v5419 = vmul.f32 %v5181, %v3069
      %v5420 = vmul.f32 %v5183, %v3073
      %v5421 = vmul.f32 %v5185, %v3077
      %v5422 = vmul.f32 %v5187, %v3081
      %v5423 = vmul.f32 %v5189, %v3085
      %v5424 = vmul.f32 %v5191, %v3089
      %v5425 = vmul.f32 %v5193, %v3093
      %v5426 = vmul.f32 %v5195, %v3097
      %v5427 = vmul.f32 %v5197, %v3101
      %v5428 = vmul.f32 %v5199, %v3105
      %v5429 = vmul.f32 %v5201, %v3109
      %v5430 = vmul.f32 %v5203, %v3113
      %v5431 = vmul.f32 %v5205, %v3117
      %v5432 = vmul.f32 %v5207, %v3121
      %v5433 = vmul.f32 %v5209, %v3125
      %v5434 = vmul.f32 %v5211, %v3132
      %v5435 = vmul.f32 %v5213, %v3136
      %v5436 = vmul.f32 %v5215, %v3140
      %v5437 = vmul.f32 %v5217, %v3144
      %v5438 = vmul.f32 %v5219, %v3148
      %v5439 = vmul.f32 %v5221, %v3152
      %v5440 = vmul.f32 %v5223, %v3156
      %v5441 = vmul.f32 %v5225, %v3160
      %v5442 = vmul.f32 %v5227, %v3164
      %v5443 = vmul.f32 %v5229, %v3168
      %v5444 = vmul.f32 %v5231, %v3172
      %v5445 = vmul.f32 %v5233, %v3176
      %v5446 = vmul.f32 %v5235, %v3180
      %v5447 = vmul.f32 %v5237, %v3184
      %v5448 = vmul.f32 %v5239, %v3188
      %v5449 = vmul.f32 %v5241, %v3192
      %v5450 = vmul.f32 %v5243, %v3199
      %v5451 = vmul.f32 %v5245, %v3203
      %v5452 = vmul.f32 %v5247, %v3207
      %v5453 = vmul.f32 %v5249, %v3211
      %v5454 = vmul.f32 %v5251, %v3215
      %v5455 = vmul.f32 %v5253, %v3219
      %v5456 = vmul.f32 %v5255, %v3223
      %v5457 = vmul.f32 %v5257, %v3227
      %v5458 = vmul.f32 %v5259, %v3231
      %v5459 = vmul.f32 %v5261, %v3235
      %v5460 = vmul.f32 %v5263, %v3239
      %v5461 = vmul.f32 %v5265, %v3243
      %v5462 = vmul.f32 %v5267, %v3247
      %v5463 = vmul.f32 %v5269, %v3251
      %v5464 = vmul.f32 %v5271, %v3255
      %v5465 = vmul.f32 %v5273, %v3259
      %v5466 = vmul.f32 %v5275, %v3266
      %v5467 = vmul.f32 %v5277, %v3270
      %v5468 = vmul.f32 %v5279, %v3274
      %v5469 = vmul.f32 %v5281, %v3278
      %v5470 = vmul.f32 %v5283, %v3282
      %v5471 = vmul.f32 %v5285, %v3286
      %v5472 = vmul.f32 %v5287, %v3290
      %v5473 = vmul.f32 %v5289, %v3294
      %v5474 = vmul.f32 %v5291, %v3298
      %v5475 = vmul.f32 %v5293, %v3302
      %v5476 = vmul.f32 %v5295, %v3306
      %v5477 = vmul.f32 %v5297, %v3310
      %v5478 = vmul.f32 %v5299, %v3314
      %v5479 = vmul.f32 %v5301, %v3318
      %v5480 = vmul.f32 %v5303, %v3322
      %v5481 = vmul.f32 %v5305, %v3326
      %v5482 = vmul.f32 %v5307, %v3333
      %v5483 = vmul.f32 %v5309, %v3337
      %v5484 = vmul.f32 %v5311, %v3341
      %v5485 = vmul.f32 %v5313, %v3345
      %v5486 = vmul.f32 %v5315, %v3349
      %v5487 = vmul.f32 %v5317, %v3353
      %v5488 = vmul.f32 %v5319, %v3357
      %v5489 = vmul.f32 %v5321, %v3361
      %v5490 = vmul.f32 %v5323, %v3365
      %v5491 = vmul.f32 %v5325, %v3369
      %v5492 = vmul.f32 %v5327, %v3373
      %v5493 = vmul.f32 %v5329, %v3377
      %v5494 = vmul.f32 %v5331, %v3381
      %v5495 = vmul.f32 %v5333, %v3385
      %v5496 = vmul.f32 %v5335, %v3389
      %v5497 = vmul.f32 %v5337, %v3393
      %v5498 = vmul.f32 %v5339, %v3400
      %v5499 = vmul.f32 %v5341, %v3404
      %v5500 = vmul.f32 %v5343, %v3408
      %v5501 = vmul.f32 %v5345, %v3412
      %v5502 = vmul.f32 %v5347, %v3416
      %v5503 = vmul.f32 %v5349, %v3420
      %v5504 = vmul.f32 %v5351, %v3424
      %v5505 = vmul.f32 %v5353, %v3428
      %v5506 = vmul.f32 %v5355, %v3432
      %v5507 = vmul.f32 %v5357, %v3436
      %v5508 = vmul.f32 %v5359, %v3440
      %v5509 = vmul.f32 %v5361, %v3444
      %v5510 = vmul.f32 %v5363, %v3448
      %v5511 = vmul.f32 %v5365, %v3452
      %v5512 = vmul.f32 %v5367, %v3456
      %v5513 = vmul.f32 %v5369, %v3460
      %v5514 = vmul.f32 %v5371, %v3467
      %v5515 = vmul.f32 %v5373, %v3471
      %v5516 = vmul.f32 %v5375, %v3475
      %v5517 = vmul.f32 %v5377, %v3479
      %v5518 = vmul.f32 %v5379, %v3483
      %v5519 = vmul.f32 %v5381, %v3487
      %v5520 = vmul.f32 %v5383, %v3491
      %v5521 = vmul.f32 %v5385, %v3495
      %v5522 = vmul.f32 %v5387, %v3499
      %v5523 = vmul.f32 %v5389, %v3503
      %v5524 = vmul.f32 %v5391, %v3507
      %v5525 = vmul.f32 %v5393, %v3511
      %v5526 = vmul.f32 %v5395, %v3515
      %v5527 = vmul.f32 %v5397, %v3519
      %v5528 = vmul.f32 %v5399, %v3523
      %v5529 = vmul.f32 %v5401, %v3527
      %5658 = vset.pattern.permute.xlu0 0
      %5659 = vperm.xlu0 %5658, %v5402
      %v5660 = vpop.permute.xlu0 %5659
      %5661 = vset.pattern.permute.xlu0 0
      %5662 = vperm.xlu0 %5661, %v5403
      %v5663 = vpop.permute.xlu0 %5662
      %5664 = vset.pattern.permute.xlu0 0
      %5665 = vperm.xlu0 %5664, %v5404
      %v5666 = vpop.permute.xlu0 %5665
      %5667 = vset.pattern.permute.xlu0 0
      %5668 = vperm.xlu0 %5667, %v5405
      %v5669 = vpop.permute.xlu0 %5668
      %5670 = vset.pattern.permute.xlu0 0
      %5671 = vperm.xlu0 %5670, %v5406
      %v5672 = vpop.permute.xlu0 %5671
      %5673 = vset.pattern.permute.xlu0 0
      %5674 = vperm.xlu0 %5673, %v5407
      %v5675 = vpop.permute.xlu0 %5674
      %5676 = vset.pattern.permute.xlu0 0
      %5677 = vperm.xlu0 %5676, %v5408
      %v5678 = vpop.permute.xlu0 %5677
      %5679 = vset.pattern.permute.xlu0 0
      %5680 = vperm.xlu0 %5679, %v5409
      %v5681 = vpop.permute.xlu0 %5680
      %5682 = vset.pattern.permute.xlu0 0
      %5683 = vperm.xlu0 %5682, %v5410
      %v5684 = vpop.permute.xlu0 %5683
      %5685 = vset.pattern.permute.xlu0 0
      %5686 = vperm.xlu0 %5685, %v5411
      %v5687 = vpop.permute.xlu0 %5686
      %5688 = vset.pattern.permute.xlu0 0
      %5689 = vperm.xlu0 %5688, %v5412
      %v5690 = vpop.permute.xlu0 %5689
      %5691 = vset.pattern.permute.xlu0 0
      %5692 = vperm.xlu0 %5691, %v5413
      %v5693 = vpop.permute.xlu0 %5692
      %5694 = vset.pattern.permute.xlu0 0
      %5695 = vperm.xlu0 %5694, %v5414
      %v5696 = vpop.permute.xlu0 %5695
      %5697 = vset.pattern.permute.xlu0 0
      %5698 = vperm.xlu0 %5697, %v5415
      %v5699 = vpop.permute.xlu0 %5698
      %5700 = vset.pattern.permute.xlu0 0
      %5701 = vperm.xlu0 %5700, %v5416
      %v5702 = vpop.permute.xlu0 %5701
      %5703 = vset.pattern.permute.xlu0 0
      %5704 = vperm.xlu0 %5703, %v5417
      %v5705 = vpop.permute.xlu0 %5704
      %5706 = vset.pattern.permute.xlu0 0
      %5707 = vperm.xlu0 %5706, %v5418
      %v5708 = vpop.permute.xlu0 %5707
      %5709 = vset.pattern.permute.xlu0 0
      %5710 = vperm.xlu0 %5709, %v5419
      %v5711 = vpop.permute.xlu0 %5710
      %5712 = vset.pattern.permute.xlu0 0
      %5713 = vperm.xlu0 %5712, %v5420
      %v5714 = vpop.permute.xlu0 %5713
      %5715 = vset.pattern.permute.xlu0 0
      %5716 = vperm.xlu0 %5715, %v5421
      %v5717 = vpop.permute.xlu0 %5716
      %5718 = vset.pattern.permute.xlu0 0
      %5719 = vperm.xlu0 %5718, %v5422
      %v5720 = vpop.permute.xlu0 %5719
      %5721 = vset.pattern.permute.xlu0 0
      %5722 = vperm.xlu0 %5721, %v5423
      %v5723 = vpop.permute.xlu0 %5722
      %5724 = vset.pattern.permute.xlu0 0
      %5725 = vperm.xlu0 %5724, %v5424
      %v5726 = vpop.permute.xlu0 %5725
      %5727 = vset.pattern.permute.xlu0 0
      %5728 = vperm.xlu0 %5727, %v5425
      %v5729 = vpop.permute.xlu0 %5728
      %5730 = vset.pattern.permute.xlu0 0
      %5731 = vperm.xlu0 %5730, %v5426
      %v5732 = vpop.permute.xlu0 %5731
      %5733 = vset.pattern.permute.xlu0 0
      %5734 = vperm.xlu0 %5733, %v5427
      %v5735 = vpop.permute.xlu0 %5734
      %5736 = vset.pattern.permute.xlu0 0
      %5737 = vperm.xlu0 %5736, %v5428
      %v5738 = vpop.permute.xlu0 %5737
      %5739 = vset.pattern.permute.xlu0 0
      %5740 = vperm.xlu0 %5739, %v5429
      %v5741 = vpop.permute.xlu0 %5740
      %5742 = vset.pattern.permute.xlu0 0
      %5743 = vperm.xlu0 %5742, %v5430
      %v5744 = vpop.permute.xlu0 %5743
      %5745 = vset.pattern.permute.xlu0 0
      %5746 = vperm.xlu0 %5745, %v5431
      %v5747 = vpop.permute.xlu0 %5746
      %5748 = vset.pattern.permute.xlu0 0
      %5749 = vperm.xlu0 %5748, %v5432
      %v5750 = vpop.permute.xlu0 %5749
      %5751 = vset.pattern.permute.xlu0 0
      %5752 = vperm.xlu0 %5751, %v5433
      %v5753 = vpop.permute.xlu0 %5752
      %5754 = vset.pattern.permute.xlu0 0
      %5755 = vperm.xlu0 %5754, %v5434
      %v5756 = vpop.permute.xlu0 %5755
      %5757 = vset.pattern.permute.xlu0 0
      %5758 = vperm.xlu0 %5757, %v5435
      %v5759 = vpop.permute.xlu0 %5758
      %5760 = vset.pattern.permute.xlu0 0
      %5761 = vperm.xlu0 %5760, %v5436
      %v5762 = vpop.permute.xlu0 %5761
      %5763 = vset.pattern.permute.xlu0 0
      %5764 = vperm.xlu0 %5763, %v5437
      %v5765 = vpop.permute.xlu0 %5764
      %5766 = vset.pattern.permute.xlu0 0
      %5767 = vperm.xlu0 %5766, %v5438
      %v5768 = vpop.permute.xlu0 %5767
      %5769 = vset.pattern.permute.xlu0 0
      %5770 = vperm.xlu0 %5769, %v5439
      %v5771 = vpop.permute.xlu0 %5770
      %5772 = vset.pattern.permute.xlu0 0
      %5773 = vperm.xlu0 %5772, %v5440
      %v5774 = vpop.permute.xlu0 %5773
      %5775 = vset.pattern.permute.xlu0 0
      %5776 = vperm.xlu0 %5775, %v5441
      %v5777 = vpop.permute.xlu0 %5776
      %5778 = vset.pattern.permute.xlu0 0
      %5779 = vperm.xlu0 %5778, %v5442
      %v5780 = vpop.permute.xlu0 %5779
      %5781 = vset.pattern.permute.xlu0 0
      %5782 = vperm.xlu0 %5781, %v5443
      %v5783 = vpop.permute.xlu0 %5782
      %5784 = vset.pattern.permute.xlu0 0
      %5785 = vperm.xlu0 %5784, %v5444
      %v5786 = vpop.permute.xlu0 %5785
      %5787 = vset.pattern.permute.xlu0 0
      %5788 = vperm.xlu0 %5787, %v5445
      %v5789 = vpop.permute.xlu0 %5788
      %5790 = vset.pattern.permute.xlu0 0
      %5791 = vperm.xlu0 %5790, %v5446
      %v5792 = vpop.permute.xlu0 %5791
      %5793 = vset.pattern.permute.xlu0 0
      %5794 = vperm.xlu0 %5793, %v5447
      %v5795 = vpop.permute.xlu0 %5794
      %5796 = vset.pattern.permute.xlu0 0
      %5797 = vperm.xlu0 %5796, %v5448
      %v5798 = vpop.permute.xlu0 %5797
      %5799 = vset.pattern.permute.xlu0 0
      %5800 = vperm.xlu0 %5799, %v5449
      %v5801 = vpop.permute.xlu0 %5800
      %5802 = vset.pattern.permute.xlu0 0
      %5803 = vperm.xlu0 %5802, %v5450
      %v5804 = vpop.permute.xlu0 %5803
      %5805 = vset.pattern.permute.xlu0 0
      %5806 = vperm.xlu0 %5805, %v5451
      %v5807 = vpop.permute.xlu0 %5806
      %5808 = vset.pattern.permute.xlu0 0
      %5809 = vperm.xlu0 %5808, %v5452
      %v5810 = vpop.permute.xlu0 %5809
      %5811 = vset.pattern.permute.xlu0 0
      %5812 = vperm.xlu0 %5811, %v5453
      %v5813 = vpop.permute.xlu0 %5812
      %5814 = vset.pattern.permute.xlu0 0
      %5815 = vperm.xlu0 %5814, %v5454
      %v5816 = vpop.permute.xlu0 %5815
      %5817 = vset.pattern.permute.xlu0 0
      %5818 = vperm.xlu0 %5817, %v5455
      %v5819 = vpop.permute.xlu0 %5818
      %5820 = vset.pattern.permute.xlu0 0
      %5821 = vperm.xlu0 %5820, %v5456
      %v5822 = vpop.permute.xlu0 %5821
      %5823 = vset.pattern.permute.xlu0 0
      %5824 = vperm.xlu0 %5823, %v5457
      %v5825 = vpop.permute.xlu0 %5824
      %5826 = vset.pattern.permute.xlu0 0
      %5827 = vperm.xlu0 %5826, %v5458
      %v5828 = vpop.permute.xlu0 %5827
      %5829 = vset.pattern.permute.xlu0 0
      %5830 = vperm.xlu0 %5829, %v5459
      %v5831 = vpop.permute.xlu0 %5830
      %5832 = vset.pattern.permute.xlu0 0
      %5833 = vperm.xlu0 %5832, %v5460
      %v5834 = vpop.permute.xlu0 %5833
      %5835 = vset.pattern.permute.xlu0 0
      %5836 = vperm.xlu0 %5835, %v5461
      %v5837 = vpop.permute.xlu0 %5836
      %5838 = vset.pattern.permute.xlu0 0
      %5839 = vperm.xlu0 %5838, %v5462
      %v5840 = vpop.permute.xlu0 %5839
      %5841 = vset.pattern.permute.xlu0 0
      %5842 = vperm.xlu0 %5841, %v5463
      %v5843 = vpop.permute.xlu0 %5842
      %5844 = vset.pattern.permute.xlu0 0
      %5845 = vperm.xlu0 %5844, %v5464
      %v5846 = vpop.permute.xlu0 %5845
      %5847 = vset.pattern.permute.xlu0 0
      %5848 = vperm.xlu0 %5847, %v5465
      %v5849 = vpop.permute.xlu0 %5848
      %5850 = vset.pattern.permute.xlu0 0
      %5851 = vperm.xlu0 %5850, %v5466
      %v5852 = vpop.permute.xlu0 %5851
      %5853 = vset.pattern.permute.xlu0 0
      %5854 = vperm.xlu0 %5853, %v5467
      %v5855 = vpop.permute.xlu0 %5854
      %5856 = vset.pattern.permute.xlu0 0
      %5857 = vperm.xlu0 %5856, %v5468
      %v5858 = vpop.permute.xlu0 %5857
      %5859 = vset.pattern.permute.xlu0 0
      %5860 = vperm.xlu0 %5859, %v5469
      %v5861 = vpop.permute.xlu0 %5860
      %5862 = vset.pattern.permute.xlu0 0
      %5863 = vperm.xlu0 %5862, %v5470
      %v5864 = vpop.permute.xlu0 %5863
      %5865 = vset.pattern.permute.xlu0 0
      %5866 = vperm.xlu0 %5865, %v5471
      %v5867 = vpop.permute.xlu0 %5866
      %5868 = vset.pattern.permute.xlu0 0
      %5869 = vperm.xlu0 %5868, %v5472
      %v5870 = vpop.permute.xlu0 %5869
      %5871 = vset.pattern.permute.xlu0 0
      %5872 = vperm.xlu0 %5871, %v5473
      %v5873 = vpop.permute.xlu0 %5872
      %5874 = vset.pattern.permute.xlu0 0
      %5875 = vperm.xlu0 %5874, %v5474
      %v5876 = vpop.permute.xlu0 %5875
      %5877 = vset.pattern.permute.xlu0 0
      %5878 = vperm.xlu0 %5877, %v5475
      %v5879 = vpop.permute.xlu0 %5878
      %5880 = vset.pattern.permute.xlu0 0
      %5881 = vperm.xlu0 %5880, %v5476
      %v5882 = vpop.permute.xlu0 %5881
      %5883 = vset.pattern.permute.xlu0 0
      %5884 = vperm.xlu0 %5883, %v5477
      %v5885 = vpop.permute.xlu0 %5884
      %5886 = vset.pattern.permute.xlu0 0
      %5887 = vperm.xlu0 %5886, %v5478
      %v5888 = vpop.permute.xlu0 %5887
      %5889 = vset.pattern.permute.xlu0 0
      %5890 = vperm.xlu0 %5889, %v5479
      %v5891 = vpop.permute.xlu0 %5890
      %5892 = vset.pattern.permute.xlu0 0
      %5893 = vperm.xlu0 %5892, %v5480
      %v5894 = vpop.permute.xlu0 %5893
      %5895 = vset.pattern.permute.xlu0 0
      %5896 = vperm.xlu0 %5895, %v5481
      %v5897 = vpop.permute.xlu0 %5896
      %5898 = vset.pattern.permute.xlu0 0
      %5899 = vperm.xlu0 %5898, %v5482
      %v5900 = vpop.permute.xlu0 %5899
      %5901 = vset.pattern.permute.xlu0 0
      %5902 = vperm.xlu0 %5901, %v5483
      %v5903 = vpop.permute.xlu0 %5902
      %5904 = vset.pattern.permute.xlu0 0
      %5905 = vperm.xlu0 %5904, %v5484
      %v5906 = vpop.permute.xlu0 %5905
      %5907 = vset.pattern.permute.xlu0 0
      %5908 = vperm.xlu0 %5907, %v5485
      %v5909 = vpop.permute.xlu0 %5908
      %5910 = vset.pattern.permute.xlu0 0
      %5911 = vperm.xlu0 %5910, %v5486
      %v5912 = vpop.permute.xlu0 %5911
      %5913 = vset.pattern.permute.xlu0 0
      %5914 = vperm.xlu0 %5913, %v5487
      %v5915 = vpop.permute.xlu0 %5914
      %5916 = vset.pattern.permute.xlu0 0
      %5917 = vperm.xlu0 %5916, %v5488
      %v5918 = vpop.permute.xlu0 %5917
      %5919 = vset.pattern.permute.xlu0 0
      %5920 = vperm.xlu0 %5919, %v5489
      %v5921 = vpop.permute.xlu0 %5920
      %5922 = vset.pattern.permute.xlu0 0
      %5923 = vperm.xlu0 %5922, %v5490
      %v5924 = vpop.permute.xlu0 %5923
      %5925 = vset.pattern.permute.xlu0 0
      %5926 = vperm.xlu0 %5925, %v5491
      %v5927 = vpop.permute.xlu0 %5926
      %5928 = vset.pattern.permute.xlu0 0
      %5929 = vperm.xlu0 %5928, %v5492
      %v5930 = vpop.permute.xlu0 %5929
      %5931 = vset.pattern.permute.xlu0 0
      %5932 = vperm.xlu0 %5931, %v5493
      %v5933 = vpop.permute.xlu0 %5932
      %5934 = vset.pattern.permute.xlu0 0
      %5935 = vperm.xlu0 %5934, %v5494
      %v5936 = vpop.permute.xlu0 %5935
      %5937 = vset.pattern.permute.xlu0 0
      %5938 = vperm.xlu0 %5937, %v5495
      %v5939 = vpop.permute.xlu0 %5938
      %5940 = vset.pattern.permute.xlu0 0
      %5941 = vperm.xlu0 %5940, %v5496
      %v5942 = vpop.permute.xlu0 %5941
      %5943 = vset.pattern.permute.xlu0 0
      %5944 = vperm.xlu0 %5943, %v5497
      %v5945 = vpop.permute.xlu0 %5944
      %5946 = vset.pattern.permute.xlu0 0
      %5947 = vperm.xlu0 %5946, %v5498
      %v5948 = vpop.permute.xlu0 %5947
      %5949 = vset.pattern.permute.xlu0 0
      %5950 = vperm.xlu0 %5949, %v5499
      %v5951 = vpop.permute.xlu0 %5950
      %5952 = vset.pattern.permute.xlu0 0
      %5953 = vperm.xlu0 %5952, %v5500
      %v5954 = vpop.permute.xlu0 %5953
      %5955 = vset.pattern.permute.xlu0 0
      %5956 = vperm.xlu0 %5955, %v5501
      %v5957 = vpop.permute.xlu0 %5956
      %5958 = vset.pattern.permute.xlu0 0
      %5959 = vperm.xlu0 %5958, %v5502
      %v5960 = vpop.permute.xlu0 %5959
      %5961 = vset.pattern.permute.xlu0 0
      %5962 = vperm.xlu0 %5961, %v5503
      %v5963 = vpop.permute.xlu0 %5962
      %5964 = vset.pattern.permute.xlu0 0
      %5965 = vperm.xlu0 %5964, %v5504
      %v5966 = vpop.permute.xlu0 %5965
      %5967 = vset.pattern.permute.xlu0 0
      %5968 = vperm.xlu0 %5967, %v5505
      %v5969 = vpop.permute.xlu0 %5968
      %5970 = vset.pattern.permute.xlu0 0
      %5971 = vperm.xlu0 %5970, %v5506
      %v5972 = vpop.permute.xlu0 %5971
      %5973 = vset.pattern.permute.xlu0 0
      %5974 = vperm.xlu0 %5973, %v5507
      %v5975 = vpop.permute.xlu0 %5974
      %5976 = vset.pattern.permute.xlu0 0
      %5977 = vperm.xlu0 %5976, %v5508
      %v5978 = vpop.permute.xlu0 %5977
      %5979 = vset.pattern.permute.xlu0 0
      %5980 = vperm.xlu0 %5979, %v5509
      %v5981 = vpop.permute.xlu0 %5980
      %5982 = vset.pattern.permute.xlu0 0
      %5983 = vperm.xlu0 %5982, %v5510
      %v5984 = vpop.permute.xlu0 %5983
      %5985 = vset.pattern.permute.xlu0 0
      %5986 = vperm.xlu0 %5985, %v5511
      %v5987 = vpop.permute.xlu0 %5986
      %5988 = vset.pattern.permute.xlu0 0
      %5989 = vperm.xlu0 %5988, %v5512
      %v5990 = vpop.permute.xlu0 %5989
      %5991 = vset.pattern.permute.xlu0 0
      %5992 = vperm.xlu0 %5991, %v5513
      %v5993 = vpop.permute.xlu0 %5992
      %5994 = vset.pattern.permute.xlu0 0
      %5995 = vperm.xlu0 %5994, %v5514
      %v5996 = vpop.permute.xlu0 %5995
      %5997 = vset.pattern.permute.xlu0 0
      %5998 = vperm.xlu0 %5997, %v5515
      %v5999 = vpop.permute.xlu0 %5998
      %6000 = vset.pattern.permute.xlu0 0
      %6001 = vperm.xlu0 %6000, %v5516
      %v6002 = vpop.permute.xlu0 %6001
      %6003 = vset.pattern.permute.xlu0 0
      %6004 = vperm.xlu0 %6003, %v5517
      %v6005 = vpop.permute.xlu0 %6004
      %6006 = vset.pattern.permute.xlu0 0
      %6007 = vperm.xlu0 %6006, %v5518
      %v6008 = vpop.permute.xlu0 %6007
      %6009 = vset.pattern.permute.xlu0 0
      %6010 = vperm.xlu0 %6009, %v5519
      %v6011 = vpop.permute.xlu0 %6010
      %6012 = vset.pattern.permute.xlu0 0
      %6013 = vperm.xlu0 %6012, %v5520
      %v6014 = vpop.permute.xlu0 %6013
      %6015 = vset.pattern.permute.xlu0 0
      %6016 = vperm.xlu0 %6015, %v5521
      %v6017 = vpop.permute.xlu0 %6016
      %6018 = vset.pattern.permute.xlu0 0
      %6019 = vperm.xlu0 %6018, %v5522
      %v6020 = vpop.permute.xlu0 %6019
      %6021 = vset.pattern.permute.xlu0 0
      %6022 = vperm.xlu0 %6021, %v5523
      %v6023 = vpop.permute.xlu0 %6022
      %6024 = vset.pattern.permute.xlu0 0
      %6025 = vperm.xlu0 %6024, %v5524
      %v6026 = vpop.permute.xlu0 %6025
      %6027 = vset.pattern.permute.xlu0 0
      %6028 = vperm.xlu0 %6027, %v5525
      %v6029 = vpop.permute.xlu0 %6028
      %6030 = vset.pattern.permute.xlu0 0
      %6031 = vperm.xlu0 %6030, %v5526
      %v6032 = vpop.permute.xlu0 %6031
      %6033 = vset.pattern.permute.xlu0 0
      %6034 = vperm.xlu0 %6033, %v5527
      %v6035 = vpop.permute.xlu0 %6034
      %6036 = vset.pattern.permute.xlu0 0
      %6037 = vperm.xlu0 %6036, %v5528
      %v6038 = vpop.permute.xlu0 %6037
      %6039 = vset.pattern.permute.xlu0 0
      %6040 = vperm.xlu0 %6039, %v5529
      %v6041 = vpop.permute.xlu0 %6040
      %v6042 = vlaneseq
      %v6043 = vshrl.u32 %v6042, 7
      %v6044 = vsub.s32 %v4297, %v6043
      %v6045 = vrot.slane %v5660, %v6044
      %v6046 = vlaneseq
      %v6047 = vshrl.u32 %v6046, 7
      %v6048 = vsub.s32 %v4302, %v6047
      %v6049 = vrot.slane %v5663, %v6048
      %v6050 = vsel %vm4307, %v6049, %v6045
      %v6051 = vlaneseq
      %v6052 = vshrl.u32 %v6051, 7
      %v6053 = vsub.s32 %v4309, %v6052
      %v6054 = vrot.slane %v5666, %v6053
      %v6055 = vsel %vm4314, %v6054, %v6050
      %v6056 = vlaneseq
      %v6057 = vshrl.u32 %v6056, 7
      %v6058 = vsub.s32 %v4316, %v6057
      %v6059 = vrot.slane %v5669, %v6058
      %v6060 = vsel %vm4321, %v6059, %v6055
      %v6061 = vlaneseq
      %v6062 = vshrl.u32 %v6061, 7
      %v6063 = vsub.s32 %v4323, %v6062
      %v6064 = vrot.slane %v5672, %v6063
      %v6065 = vsel %vm4328, %v6064, %v6060
      %v6066 = vlaneseq
      %v6067 = vshrl.u32 %v6066, 7
      %v6068 = vsub.s32 %v4330, %v6067
      %v6069 = vrot.slane %v5675, %v6068
      %v6070 = vsel %vm4335, %v6069, %v6065
      %v6071 = vlaneseq
      %v6072 = vshrl.u32 %v6071, 7
      %v6073 = vsub.s32 %v4337, %v6072
      %v6074 = vrot.slane %v5678, %v6073
      %v6075 = vsel %vm4342, %v6074, %v6070
      %v6076 = vlaneseq
      %v6077 = vshrl.u32 %v6076, 7
      %v6078 = vsub.s32 %v4344, %v6077
      %v6079 = vrot.slane %v5681, %v6078
      %v6080 = vsel %vm4349, %v6079, %v6075
      %v6081 = vlaneseq
      %v6082 = vshrl.u32 %v6081, 7
      %v6083 = vsub.s32 %v4351, %v6082
      %v6084 = vrot.slane %v5684, %v6083
      %v6085 = vsel %vm4356, %v6084, %v6080
      %v6086 = vlaneseq
      %v6087 = vshrl.u32 %v6086, 7
      %v6088 = vsub.s32 %v4358, %v6087
      %v6089 = vrot.slane %v5687, %v6088
      %v6090 = vsel %vm4363, %v6089, %v6085
      %v6091 = vlaneseq
      %v6092 = vshrl.u32 %v6091, 7
      %v6093 = vsub.s32 %v4365, %v6092
      %v6094 = vrot.slane %v5690, %v6093
      %v6095 = vsel %vm4370, %v6094, %v6090
      %v6096 = vlaneseq
      %v6097 = vshrl.u32 %v6096, 7
      %v6098 = vsub.s32 %v4372, %v6097
      %v6099 = vrot.slane %v5693, %v6098
      %v6100 = vsel %vm4377, %v6099, %v6095
      %v6101 = vlaneseq
      %v6102 = vshrl.u32 %v6101, 7
      %v6103 = vsub.s32 %v4379, %v6102
      %v6104 = vrot.slane %v5696, %v6103
      %v6105 = vsel %vm4384, %v6104, %v6100
      %v6106 = vlaneseq
      %v6107 = vshrl.u32 %v6106, 7
      %v6108 = vsub.s32 %v4386, %v6107
      %v6109 = vrot.slane %v5699, %v6108
      %v6110 = vsel %vm4391, %v6109, %v6105
      %v6111 = vlaneseq
      %v6112 = vshrl.u32 %v6111, 7
      %v6113 = vsub.s32 %v4393, %v6112
      %v6114 = vrot.slane %v5702, %v6113
      %v6115 = vsel %vm4398, %v6114, %v6110
      %v6116 = vlaneseq
      %v6117 = vshrl.u32 %v6116, 7
      %v6118 = vsub.s32 %v4400, %v6117
      %v6119 = vrot.slane %v5705, %v6118
      %v6120 = vsel %vm4405, %v6119, %v6115
      %v6121 = vlaneseq
      %v6122 = vshrl.u32 %v6121, 7
      %v6123 = vsub.s32 %v4297, %v6122
      %v6124 = vrot.slane %v5708, %v6123
      %v6125 = vlaneseq
      %v6126 = vshrl.u32 %v6125, 7
      %v6127 = vsub.s32 %v4302, %v6126
      %v6128 = vrot.slane %v5711, %v6127
      %v6129 = vsel %vm4307, %v6128, %v6124
      %v6130 = vlaneseq
      %v6131 = vshrl.u32 %v6130, 7
      %v6132 = vsub.s32 %v4309, %v6131
      %v6133 = vrot.slane %v5714, %v6132
      %v6134 = vsel %vm4314, %v6133, %v6129
      %v6135 = vlaneseq
      %v6136 = vshrl.u32 %v6135, 7
      %v6137 = vsub.s32 %v4316, %v6136
      %v6138 = vrot.slane %v5717, %v6137
      %v6139 = vsel %vm4321, %v6138, %v6134
      %v6140 = vlaneseq
      %v6141 = vshrl.u32 %v6140, 7
      %v6142 = vsub.s32 %v4323, %v6141
      %v6143 = vrot.slane %v5720, %v6142
      %v6144 = vsel %vm4328, %v6143, %v6139
      %v6145 = vlaneseq
      %v6146 = vshrl.u32 %v6145, 7
      %v6147 = vsub.s32 %v4330, %v6146
      %v6148 = vrot.slane %v5723, %v6147
      %v6149 = vsel %vm4335, %v6148, %v6144
      %v6150 = vlaneseq
      %v6151 = vshrl.u32 %v6150, 7
      %v6152 = vsub.s32 %v4337, %v6151
      %v6153 = vrot.slane %v5726, %v6152
      %v6154 = vsel %vm4342, %v6153, %v6149
      %v6155 = vlaneseq
      %v6156 = vshrl.u32 %v6155, 7
      %v6157 = vsub.s32 %v4344, %v6156
      %v6158 = vrot.slane %v5729, %v6157
      %v6159 = vsel %vm4349, %v6158, %v6154
      %v6160 = vlaneseq
      %v6161 = vshrl.u32 %v6160, 7
      %v6162 = vsub.s32 %v4351, %v6161
      %v6163 = vrot.slane %v5732, %v6162
      %v6164 = vsel %vm4356, %v6163, %v6159
      %v6165 = vlaneseq
      %v6166 = vshrl.u32 %v6165, 7
      %v6167 = vsub.s32 %v4358, %v6166
      %v6168 = vrot.slane %v5735, %v6167
      %v6169 = vsel %vm4363, %v6168, %v6164
      %v6170 = vlaneseq
      %v6171 = vshrl.u32 %v6170, 7
      %v6172 = vsub.s32 %v4365, %v6171
      %v6173 = vrot.slane %v5738, %v6172
      %v6174 = vsel %vm4370, %v6173, %v6169
      %v6175 = vlaneseq
      %v6176 = vshrl.u32 %v6175, 7
      %v6177 = vsub.s32 %v4372, %v6176
      %v6178 = vrot.slane %v5741, %v6177
      %v6179 = vsel %vm4377, %v6178, %v6174
      %v6180 = vlaneseq
      %v6181 = vshrl.u32 %v6180, 7
      %v6182 = vsub.s32 %v4379, %v6181
      %v6183 = vrot.slane %v5744, %v6182
      %v6184 = vsel %vm4384, %v6183, %v6179
      %v6185 = vlaneseq
      %v6186 = vshrl.u32 %v6185, 7
      %v6187 = vsub.s32 %v4386, %v6186
      %v6188 = vrot.slane %v5747, %v6187
      %v6189 = vsel %vm4391, %v6188, %v6184
      %v6190 = vlaneseq
      %v6191 = vshrl.u32 %v6190, 7
      %v6192 = vsub.s32 %v4393, %v6191
      %v6193 = vrot.slane %v5750, %v6192
      %v6194 = vsel %vm4398, %v6193, %v6189
      %v6195 = vlaneseq
      %v6196 = vshrl.u32 %v6195, 7
      %v6197 = vsub.s32 %v4400, %v6196
      %v6198 = vrot.slane %v5753, %v6197
      %v6199 = vsel %vm4405, %v6198, %v6194
      %v6200 = vlaneseq
      %v6201 = vshrl.u32 %v6200, 7
      %v6202 = vsub.s32 %v4297, %v6201
      %v6203 = vrot.slane %v5756, %v6202
      %v6204 = vlaneseq
      %v6205 = vshrl.u32 %v6204, 7
      %v6206 = vsub.s32 %v4302, %v6205
      %v6207 = vrot.slane %v5759, %v6206
      %v6208 = vsel %vm4307, %v6207, %v6203
      %v6209 = vlaneseq
      %v6210 = vshrl.u32 %v6209, 7
      %v6211 = vsub.s32 %v4309, %v6210
      %v6212 = vrot.slane %v5762, %v6211
      %v6213 = vsel %vm4314, %v6212, %v6208
      %v6214 = vlaneseq
      %v6215 = vshrl.u32 %v6214, 7
      %v6216 = vsub.s32 %v4316, %v6215
      %v6217 = vrot.slane %v5765, %v6216
      %v6218 = vsel %vm4321, %v6217, %v6213
      %v6219 = vlaneseq
      %v6220 = vshrl.u32 %v6219, 7
      %v6221 = vsub.s32 %v4323, %v6220
      %v6222 = vrot.slane %v5768, %v6221
      %v6223 = vsel %vm4328, %v6222, %v6218
      %v6224 = vlaneseq
      %v6225 = vshrl.u32 %v6224, 7
      %v6226 = vsub.s32 %v4330, %v6225
      %v6227 = vrot.slane %v5771, %v6226
      %v6228 = vsel %vm4335, %v6227, %v6223
      %v6229 = vlaneseq
      %v6230 = vshrl.u32 %v6229, 7
      %v6231 = vsub.s32 %v4337, %v6230
      %v6232 = vrot.slane %v5774, %v6231
      %v6233 = vsel %vm4342, %v6232, %v6228
      %v6234 = vlaneseq
      %v6235 = vshrl.u32 %v6234, 7
      %v6236 = vsub.s32 %v4344, %v6235
      %v6237 = vrot.slane %v5777, %v6236
      %v6238 = vsel %vm4349, %v6237, %v6233
      %v6239 = vlaneseq
      %v6240 = vshrl.u32 %v6239, 7
      %v6241 = vsub.s32 %v4351, %v6240
      %v6242 = vrot.slane %v5780, %v6241
      %v6243 = vsel %vm4356, %v6242, %v6238
      %v6244 = vlaneseq
      %v6245 = vshrl.u32 %v6244, 7
      %v6246 = vsub.s32 %v4358, %v6245
      %v6247 = vrot.slane %v5783, %v6246
      %v6248 = vsel %vm4363, %v6247, %v6243
      %v6249 = vlaneseq
      %v6250 = vshrl.u32 %v6249, 7
      %v6251 = vsub.s32 %v4365, %v6250
      %v6252 = vrot.slane %v5786, %v6251
      %v6253 = vsel %vm4370, %v6252, %v6248
      %v6254 = vlaneseq
      %v6255 = vshrl.u32 %v6254, 7
      %v6256 = vsub.s32 %v4372, %v6255
      %v6257 = vrot.slane %v5789, %v6256
      %v6258 = vsel %vm4377, %v6257, %v6253
      %v6259 = vlaneseq
      %v6260 = vshrl.u32 %v6259, 7
      %v6261 = vsub.s32 %v4379, %v6260
      %v6262 = vrot.slane %v5792, %v6261
      %v6263 = vsel %vm4384, %v6262, %v6258
      %v6264 = vlaneseq
      %v6265 = vshrl.u32 %v6264, 7
      %v6266 = vsub.s32 %v4386, %v6265
      %v6267 = vrot.slane %v5795, %v6266
      %v6268 = vsel %vm4391, %v6267, %v6263
      %v6269 = vlaneseq
      %v6270 = vshrl.u32 %v6269, 7
      %v6271 = vsub.s32 %v4393, %v6270
      %v6272 = vrot.slane %v5798, %v6271
      %v6273 = vsel %vm4398, %v6272, %v6268
      %v6274 = vlaneseq
      %v6275 = vshrl.u32 %v6274, 7
      %v6276 = vsub.s32 %v4400, %v6275
      %v6277 = vrot.slane %v5801, %v6276
      %v6278 = vsel %vm4405, %v6277, %v6273
      %v6279 = vlaneseq
      %v6280 = vshrl.u32 %v6279, 7
      %v6281 = vsub.s32 %v4297, %v6280
      %v6282 = vrot.slane %v5804, %v6281
      %v6283 = vlaneseq
      %v6284 = vshrl.u32 %v6283, 7
      %v6285 = vsub.s32 %v4302, %v6284
      %v6286 = vrot.slane %v5807, %v6285
      %v6287 = vsel %vm4307, %v6286, %v6282
      %v6288 = vlaneseq
      %v6289 = vshrl.u32 %v6288, 7
      %v6290 = vsub.s32 %v4309, %v6289
      %v6291 = vrot.slane %v5810, %v6290
      %v6292 = vsel %vm4314, %v6291, %v6287
      %v6293 = vlaneseq
      %v6294 = vshrl.u32 %v6293, 7
      %v6295 = vsub.s32 %v4316, %v6294
      %v6296 = vrot.slane %v5813, %v6295
      %v6297 = vsel %vm4321, %v6296, %v6292
      %v6298 = vlaneseq
      %v6299 = vshrl.u32 %v6298, 7
      %v6300 = vsub.s32 %v4323, %v6299
      %v6301 = vrot.slane %v5816, %v6300
      %v6302 = vsel %vm4328, %v6301, %v6297
      %v6303 = vlaneseq
      %v6304 = vshrl.u32 %v6303, 7
      %v6305 = vsub.s32 %v4330, %v6304
      %v6306 = vrot.slane %v5819, %v6305
      %v6307 = vsel %vm4335, %v6306, %v6302
      %v6308 = vlaneseq
      %v6309 = vshrl.u32 %v6308, 7
      %v6310 = vsub.s32 %v4337, %v6309
      %v6311 = vrot.slane %v5822, %v6310
      %v6312 = vsel %vm4342, %v6311, %v6307
      %v6313 = vlaneseq
      %v6314 = vshrl.u32 %v6313, 7
      %v6315 = vsub.s32 %v4344, %v6314
      %v6316 = vrot.slane %v5825, %v6315
      %v6317 = vsel %vm4349, %v6316, %v6312
      %v6318 = vlaneseq
      %v6319 = vshrl.u32 %v6318, 7
      %v6320 = vsub.s32 %v4351, %v6319
      %v6321 = vrot.slane %v5828, %v6320
      %v6322 = vsel %vm4356, %v6321, %v6317
      %v6323 = vlaneseq
      %v6324 = vshrl.u32 %v6323, 7
      %v6325 = vsub.s32 %v4358, %v6324
      %v6326 = vrot.slane %v5831, %v6325
      %v6327 = vsel %vm4363, %v6326, %v6322
      %v6328 = vlaneseq
      %v6329 = vshrl.u32 %v6328, 7
      %v6330 = vsub.s32 %v4365, %v6329
      %v6331 = vrot.slane %v5834, %v6330
      %v6332 = vsel %vm4370, %v6331, %v6327
      %v6333 = vlaneseq
      %v6334 = vshrl.u32 %v6333, 7
      %v6335 = vsub.s32 %v4372, %v6334
      %v6336 = vrot.slane %v5837, %v6335
      %v6337 = vsel %vm4377, %v6336, %v6332
      %v6338 = vlaneseq
      %v6339 = vshrl.u32 %v6338, 7
      %v6340 = vsub.s32 %v4379, %v6339
      %v6341 = vrot.slane %v5840, %v6340
      %v6342 = vsel %vm4384, %v6341, %v6337
      %v6343 = vlaneseq
      %v6344 = vshrl.u32 %v6343, 7
      %v6345 = vsub.s32 %v4386, %v6344
      %v6346 = vrot.slane %v5843, %v6345
      %v6347 = vsel %vm4391, %v6346, %v6342
      %v6348 = vlaneseq
      %v6349 = vshrl.u32 %v6348, 7
      %v6350 = vsub.s32 %v4393, %v6349
      %v6351 = vrot.slane %v5846, %v6350
      %v6352 = vsel %vm4398, %v6351, %v6347
      %v6353 = vlaneseq
      %v6354 = vshrl.u32 %v6353, 7
      %v6355 = vsub.s32 %v4400, %v6354
      %v6356 = vrot.slane %v5849, %v6355
      %v6357 = vsel %vm4405, %v6356, %v6352
      %v6358 = vlaneseq
      %v6359 = vshrl.u32 %v6358, 7
      %v6360 = vsub.s32 %v4297, %v6359
      %v6361 = vrot.slane %v5852, %v6360
      %v6362 = vlaneseq
      %v6363 = vshrl.u32 %v6362, 7
      %v6364 = vsub.s32 %v4302, %v6363
      %v6365 = vrot.slane %v5855, %v6364
      %v6366 = vsel %vm4307, %v6365, %v6361
      %v6367 = vlaneseq
      %v6368 = vshrl.u32 %v6367, 7
      %v6369 = vsub.s32 %v4309, %v6368
      %v6370 = vrot.slane %v5858, %v6369
      %v6371 = vsel %vm4314, %v6370, %v6366
      %v6372 = vlaneseq
      %v6373 = vshrl.u32 %v6372, 7
      %v6374 = vsub.s32 %v4316, %v6373
      %v6375 = vrot.slane %v5861, %v6374
      %v6376 = vsel %vm4321, %v6375, %v6371
      %v6377 = vlaneseq
      %v6378 = vshrl.u32 %v6377, 7
      %v6379 = vsub.s32 %v4323, %v6378
      %v6380 = vrot.slane %v5864, %v6379
      %v6381 = vsel %vm4328, %v6380, %v6376
      %v6382 = vlaneseq
      %v6383 = vshrl.u32 %v6382, 7
      %v6384 = vsub.s32 %v4330, %v6383
      %v6385 = vrot.slane %v5867, %v6384
      %v6386 = vsel %vm4335, %v6385, %v6381
      %v6387 = vlaneseq
      %v6388 = vshrl.u32 %v6387, 7
      %v6389 = vsub.s32 %v4337, %v6388
      %v6390 = vrot.slane %v5870, %v6389
      %v6391 = vsel %vm4342, %v6390, %v6386
      %v6392 = vlaneseq
      %v6393 = vshrl.u32 %v6392, 7
      %v6394 = vsub.s32 %v4344, %v6393
      %v6395 = vrot.slane %v5873, %v6394
      %v6396 = vsel %vm4349, %v6395, %v6391
      %v6397 = vlaneseq
      %v6398 = vshrl.u32 %v6397, 7
      %v6399 = vsub.s32 %v4351, %v6398
      %v6400 = vrot.slane %v5876, %v6399
      %v6401 = vsel %vm4356, %v6400, %v6396
      %v6402 = vlaneseq
      %v6403 = vshrl.u32 %v6402, 7
      %v6404 = vsub.s32 %v4358, %v6403
      %v6405 = vrot.slane %v5879, %v6404
      %v6406 = vsel %vm4363, %v6405, %v6401
      %v6407 = vlaneseq
      %v6408 = vshrl.u32 %v6407, 7
      %v6409 = vsub.s32 %v4365, %v6408
      %v6410 = vrot.slane %v5882, %v6409
      %v6411 = vsel %vm4370, %v6410, %v6406
      %v6412 = vlaneseq
      %v6413 = vshrl.u32 %v6412, 7
      %v6414 = vsub.s32 %v4372, %v6413
      %v6415 = vrot.slane %v5885, %v6414
      %v6416 = vsel %vm4377, %v6415, %v6411
      %v6417 = vlaneseq
      %v6418 = vshrl.u32 %v6417, 7
      %v6419 = vsub.s32 %v4379, %v6418
      %v6420 = vrot.slane %v5888, %v6419
      %v6421 = vsel %vm4384, %v6420, %v6416
      %v6422 = vlaneseq
      %v6423 = vshrl.u32 %v6422, 7
      %v6424 = vsub.s32 %v4386, %v6423
      %v6425 = vrot.slane %v5891, %v6424
      %v6426 = vsel %vm4391, %v6425, %v6421
      %v6427 = vlaneseq
      %v6428 = vshrl.u32 %v6427, 7
      %v6429 = vsub.s32 %v4393, %v6428
      %v6430 = vrot.slane %v5894, %v6429
      %v6431 = vsel %vm4398, %v6430, %v6426
      %v6432 = vlaneseq
      %v6433 = vshrl.u32 %v6432, 7
      %v6434 = vsub.s32 %v4400, %v6433
      %v6435 = vrot.slane %v5897, %v6434
      %v6436 = vsel %vm4405, %v6435, %v6431
      %v6437 = vlaneseq
      %v6438 = vshrl.u32 %v6437, 7
      %v6439 = vsub.s32 %v4297, %v6438
      %v6440 = vrot.slane %v5900, %v6439
      %v6441 = vlaneseq
      %v6442 = vshrl.u32 %v6441, 7
      %v6443 = vsub.s32 %v4302, %v6442
      %v6444 = vrot.slane %v5903, %v6443
      %v6445 = vsel %vm4307, %v6444, %v6440
      %v6446 = vlaneseq
      %v6447 = vshrl.u32 %v6446, 7
      %v6448 = vsub.s32 %v4309, %v6447
      %v6449 = vrot.slane %v5906, %v6448
      %v6450 = vsel %vm4314, %v6449, %v6445
      %v6451 = vlaneseq
      %v6452 = vshrl.u32 %v6451, 7
      %v6453 = vsub.s32 %v4316, %v6452
      %v6454 = vrot.slane %v5909, %v6453
      %v6455 = vsel %vm4321, %v6454, %v6450
      %v6456 = vlaneseq
      %v6457 = vshrl.u32 %v6456, 7
      %v6458 = vsub.s32 %v4323, %v6457
      %v6459 = vrot.slane %v5912, %v6458
      %v6460 = vsel %vm4328, %v6459, %v6455
      %v6461 = vlaneseq
      %v6462 = vshrl.u32 %v6461, 7
      %v6463 = vsub.s32 %v4330, %v6462
      %v6464 = vrot.slane %v5915, %v6463
      %v6465 = vsel %vm4335, %v6464, %v6460
      %v6466 = vlaneseq
      %v6467 = vshrl.u32 %v6466, 7
      %v6468 = vsub.s32 %v4337, %v6467
      %v6469 = vrot.slane %v5918, %v6468
      %v6470 = vsel %vm4342, %v6469, %v6465
      %v6471 = vlaneseq
      %v6472 = vshrl.u32 %v6471, 7
      %v6473 = vsub.s32 %v4344, %v6472
      %v6474 = vrot.slane %v5921, %v6473
      %v6475 = vsel %vm4349, %v6474, %v6470
      %v6476 = vlaneseq
      %v6477 = vshrl.u32 %v6476, 7
      %v6478 = vsub.s32 %v4351, %v6477
      %v6479 = vrot.slane %v5924, %v6478
      %v6480 = vsel %vm4356, %v6479, %v6475
      %v6481 = vlaneseq
      %v6482 = vshrl.u32 %v6481, 7
      %v6483 = vsub.s32 %v4358, %v6482
      %v6484 = vrot.slane %v5927, %v6483
      %v6485 = vsel %vm4363, %v6484, %v6480
      %v6486 = vlaneseq
      %v6487 = vshrl.u32 %v6486, 7
      %v6488 = vsub.s32 %v4365, %v6487
      %v6489 = vrot.slane %v5930, %v6488
      %v6490 = vsel %vm4370, %v6489, %v6485
      %v6491 = vlaneseq
      %v6492 = vshrl.u32 %v6491, 7
      %v6493 = vsub.s32 %v4372, %v6492
      %v6494 = vrot.slane %v5933, %v6493
      %v6495 = vsel %vm4377, %v6494, %v6490
      %v6496 = vlaneseq
      %v6497 = vshrl.u32 %v6496, 7
      %v6498 = vsub.s32 %v4379, %v6497
      %v6499 = vrot.slane %v5936, %v6498
      %v6500 = vsel %vm4384, %v6499, %v6495
      %v6501 = vlaneseq
      %v6502 = vshrl.u32 %v6501, 7
      %v6503 = vsub.s32 %v4386, %v6502
      %v6504 = vrot.slane %v5939, %v6503
      %v6505 = vsel %vm4391, %v6504, %v6500
      %v6506 = vlaneseq
      %v6507 = vshrl.u32 %v6506, 7
      %v6508 = vsub.s32 %v4393, %v6507
      %v6509 = vrot.slane %v5942, %v6508
      %v6510 = vsel %vm4398, %v6509, %v6505
      %v6511 = vlaneseq
      %v6512 = vshrl.u32 %v6511, 7
      %v6513 = vsub.s32 %v4400, %v6512
      %v6514 = vrot.slane %v5945, %v6513
      %v6515 = vsel %vm4405, %v6514, %v6510
      %v6516 = vlaneseq
      %v6517 = vshrl.u32 %v6516, 7
      %v6518 = vsub.s32 %v4297, %v6517
      %v6519 = vrot.slane %v5948, %v6518
      %v6520 = vlaneseq
      %v6521 = vshrl.u32 %v6520, 7
      %v6522 = vsub.s32 %v4302, %v6521
      %v6523 = vrot.slane %v5951, %v6522
      %v6524 = vsel %vm4307, %v6523, %v6519
      %v6525 = vlaneseq
      %v6526 = vshrl.u32 %v6525, 7
      %v6527 = vsub.s32 %v4309, %v6526
      %v6528 = vrot.slane %v5954, %v6527
      %v6529 = vsel %vm4314, %v6528, %v6524
      %v6530 = vlaneseq
      %v6531 = vshrl.u32 %v6530, 7
      %v6532 = vsub.s32 %v4316, %v6531
      %v6533 = vrot.slane %v5957, %v6532
      %v6534 = vsel %vm4321, %v6533, %v6529
      %v6535 = vlaneseq
      %v6536 = vshrl.u32 %v6535, 7
      %v6537 = vsub.s32 %v4323, %v6536
      %v6538 = vrot.slane %v5960, %v6537
      %v6539 = vsel %vm4328, %v6538, %v6534
      %v6540 = vlaneseq
      %v6541 = vshrl.u32 %v6540, 7
      %v6542 = vsub.s32 %v4330, %v6541
      %v6543 = vrot.slane %v5963, %v6542
      %v6544 = vsel %vm4335, %v6543, %v6539
      %v6545 = vlaneseq
      %v6546 = vshrl.u32 %v6545, 7
      %v6547 = vsub.s32 %v4337, %v6546
      %v6548 = vrot.slane %v5966, %v6547
      %v6549 = vsel %vm4342, %v6548, %v6544
      %v6550 = vlaneseq
      %v6551 = vshrl.u32 %v6550, 7
      %v6552 = vsub.s32 %v4344, %v6551
      %v6553 = vrot.slane %v5969, %v6552
      %v6554 = vsel %vm4349, %v6553, %v6549
      %v6555 = vlaneseq
      %v6556 = vshrl.u32 %v6555, 7
      %v6557 = vsub.s32 %v4351, %v6556
      %v6558 = vrot.slane %v5972, %v6557
      %v6559 = vsel %vm4356, %v6558, %v6554
      %v6560 = vlaneseq
      %v6561 = vshrl.u32 %v6560, 7
      %v6562 = vsub.s32 %v4358, %v6561
      %v6563 = vrot.slane %v5975, %v6562
      %v6564 = vsel %vm4363, %v6563, %v6559
      %v6565 = vlaneseq
      %v6566 = vshrl.u32 %v6565, 7
      %v6567 = vsub.s32 %v4365, %v6566
      %v6568 = vrot.slane %v5978, %v6567
      %v6569 = vsel %vm4370, %v6568, %v6564
      %v6570 = vlaneseq
      %v6571 = vshrl.u32 %v6570, 7
      %v6572 = vsub.s32 %v4372, %v6571
      %v6573 = vrot.slane %v5981, %v6572
      %v6574 = vsel %vm4377, %v6573, %v6569
      %v6575 = vlaneseq
      %v6576 = vshrl.u32 %v6575, 7
      %v6577 = vsub.s32 %v4379, %v6576
      %v6578 = vrot.slane %v5984, %v6577
      %v6579 = vsel %vm4384, %v6578, %v6574
      %v6580 = vlaneseq
      %v6581 = vshrl.u32 %v6580, 7
      %v6582 = vsub.s32 %v4386, %v6581
      %v6583 = vrot.slane %v5987, %v6582
      %v6584 = vsel %vm4391, %v6583, %v6579
      %v6585 = vlaneseq
      %v6586 = vshrl.u32 %v6585, 7
      %v6587 = vsub.s32 %v4393, %v6586
      %v6588 = vrot.slane %v5990, %v6587
      %v6589 = vsel %vm4398, %v6588, %v6584
      %v6590 = vlaneseq
      %v6591 = vshrl.u32 %v6590, 7
      %v6592 = vsub.s32 %v4400, %v6591
      %v6593 = vrot.slane %v5993, %v6592
      %v6594 = vsel %vm4405, %v6593, %v6589
      %v6595 = vlaneseq
      %v6596 = vshrl.u32 %v6595, 7
      %v6597 = vsub.s32 %v4297, %v6596
      %v6598 = vrot.slane %v5996, %v6597
      %v6599 = vlaneseq
      %v6600 = vshrl.u32 %v6599, 7
      %v6601 = vsub.s32 %v4302, %v6600
      %v6602 = vrot.slane %v5999, %v6601
      %v6603 = vsel %vm4307, %v6602, %v6598
      %v6604 = vlaneseq
      %v6605 = vshrl.u32 %v6604, 7
      %v6606 = vsub.s32 %v4309, %v6605
      %v6607 = vrot.slane %v6002, %v6606
      %v6608 = vsel %vm4314, %v6607, %v6603
      %v6609 = vlaneseq
      %v6610 = vshrl.u32 %v6609, 7
      %v6611 = vsub.s32 %v4316, %v6610
      %v6612 = vrot.slane %v6005, %v6611
      %v6613 = vsel %vm4321, %v6612, %v6608
      %v6614 = vlaneseq
      %v6615 = vshrl.u32 %v6614, 7
      %v6616 = vsub.s32 %v4323, %v6615
      %v6617 = vrot.slane %v6008, %v6616
      %v6618 = vsel %vm4328, %v6617, %v6613
      %v6619 = vlaneseq
      %v6620 = vshrl.u32 %v6619, 7
      %v6621 = vsub.s32 %v4330, %v6620
      %v6622 = vrot.slane %v6011, %v6621
      %v6623 = vsel %vm4335, %v6622, %v6618
      %v6624 = vlaneseq
      %v6625 = vshrl.u32 %v6624, 7
      %v6626 = vsub.s32 %v4337, %v6625
      %v6627 = vrot.slane %v6014, %v6626
      %v6628 = vsel %vm4342, %v6627, %v6623
      %v6629 = vlaneseq
      %v6630 = vshrl.u32 %v6629, 7
      %v6631 = vsub.s32 %v4344, %v6630
      %v6632 = vrot.slane %v6017, %v6631
      %v6633 = vsel %vm4349, %v6632, %v6628
      %v6634 = vlaneseq
      %v6635 = vshrl.u32 %v6634, 7
      %v6636 = vsub.s32 %v4351, %v6635
      %v6637 = vrot.slane %v6020, %v6636
      %v6638 = vsel %vm4356, %v6637, %v6633
      %v6639 = vlaneseq
      %v6640 = vshrl.u32 %v6639, 7
      %v6641 = vsub.s32 %v4358, %v6640
      %v6642 = vrot.slane %v6023, %v6641
      %v6643 = vsel %vm4363, %v6642, %v6638
      %v6644 = vlaneseq
      %v6645 = vshrl.u32 %v6644, 7
      %v6646 = vsub.s32 %v4365, %v6645
      %v6647 = vrot.slane %v6026, %v6646
      %v6648 = vsel %vm4370, %v6647, %v6643
      %v6649 = vlaneseq
      %v6650 = vshrl.u32 %v6649, 7
      %v6651 = vsub.s32 %v4372, %v6650
      %v6652 = vrot.slane %v6029, %v6651
      %v6653 = vsel %vm4377, %v6652, %v6648
      %v6654 = vlaneseq
      %v6655 = vshrl.u32 %v6654, 7
      %v6656 = vsub.s32 %v4379, %v6655
      %v6657 = vrot.slane %v6032, %v6656
      %v6658 = vsel %vm4384, %v6657, %v6653
      %v6659 = vlaneseq
      %v6660 = vshrl.u32 %v6659, 7
      %v6661 = vsub.s32 %v4386, %v6660
      %v6662 = vrot.slane %v6035, %v6661
      %v6663 = vsel %vm4391, %v6662, %v6658
      %v6664 = vlaneseq
      %v6665 = vshrl.u32 %v6664, 7
      %v6666 = vsub.s32 %v4393, %v6665
      %v6667 = vrot.slane %v6038, %v6666
      %v6668 = vsel %vm4398, %v6667, %v6663
      %v6669 = vlaneseq
      %v6670 = vshrl.u32 %v6669, 7
      %v6671 = vsub.s32 %v4400, %v6670
      %v6672 = vrot.slane %v6041, %v6671
      %v6673 = vsel %vm4405, %v6672, %v6668
      %v6674 = vsel %vm4960, %v6199, %v6120
      %v6675 = vsel %vm4962, %v6278, %v6674
      %v6676 = vsel %vm4964, %v6357, %v6675
      %v6677 = vsel %vm4966, %v6436, %v6676
      %v6678 = vsel %vm4968, %v6515, %v6677
      %v6679 = vsel %vm4970, %v6594, %v6678
      %v6680 = vsel %vm4972, %v6673, %v6679
      %6682 = vadd.xlane.f32.xlu0 %v6680
      %v6683 = vpop.xlane.xlu0 %6682
      %v6684 = vadd.f32 %v6683, 1e-06
      %v6686 = vlaneseq
      %v6687 = vshrl.u32 %v6686, 7
      %v6688 = vsub.s32 0, %v6687
      %v6689 = vrot.slane %v6684, %v6688
      %v6690 = vlaneseq
      %v6691 = vshrl.u32 %v6690, 7
      %v6692 = vsub.s32 1, %v6691
      %v6693 = vrot.slane %v6684, %v6692
      %v6694 = vlaneseq
      %v6695 = vshrl.u32 %v6694, 7
      %v6696 = vsub.s32 2, %v6695
      %v6697 = vrot.slane %v6684, %v6696
      %v6698 = vlaneseq
      %v6699 = vshrl.u32 %v6698, 7
      %v6700 = vsub.s32 3, %v6699
      %v6701 = vrot.slane %v6684, %v6700
      %v6702 = vlaneseq
      %v6703 = vshrl.u32 %v6702, 7
      %v6704 = vsub.s32 4, %v6703
      %v6705 = vrot.slane %v6684, %v6704
      %v6706 = vlaneseq
      %v6707 = vshrl.u32 %v6706, 7
      %v6708 = vsub.s32 5, %v6707
      %v6709 = vrot.slane %v6684, %v6708
      %v6710 = vlaneseq
      %v6711 = vshrl.u32 %v6710, 7
      %v6712 = vsub.s32 6, %v6711
      %v6713 = vrot.slane %v6684, %v6712
      %v6714 = vlaneseq
      %v6715 = vshrl.u32 %v6714, 7
      %v6716 = vsub.s32 7, %v6715
      %v6717 = vrot.slane %v6684, %v6716
      %v6726 = vrcp.pop %v6689
      %v6727 = vmul.f32 %v5402, %v6726
      %v6728 = vmul.f32 %v5403, %v6726
      %v6729 = vmul.f32 %v5404, %v6726
      %v6730 = vmul.f32 %v5405, %v6726
      %v6731 = vmul.f32 %v5406, %v6726
      %v6732 = vmul.f32 %v5407, %v6726
      %v6733 = vmul.f32 %v5408, %v6726
      %v6734 = vmul.f32 %v5409, %v6726
      %v6735 = vmul.f32 %v5410, %v6726
      %v6736 = vmul.f32 %v5411, %v6726
      %v6737 = vmul.f32 %v5412, %v6726
      %v6738 = vmul.f32 %v5413, %v6726
      %v6739 = vmul.f32 %v5414, %v6726
      %v6740 = vmul.f32 %v5415, %v6726
      %v6741 = vmul.f32 %v5416, %v6726
      %v6742 = vmul.f32 %v5417, %v6726
      %v6743 = vrcp.pop %v6693
      %v6744 = vmul.f32 %v5418, %v6743
      %v6745 = vmul.f32 %v5419, %v6743
      %v6746 = vmul.f32 %v5420, %v6743
      %v6747 = vmul.f32 %v5421, %v6743
      %v6748 = vmul.f32 %v5422, %v6743
      %v6749 = vmul.f32 %v5423, %v6743
      %v6750 = vmul.f32 %v5424, %v6743
      %v6751 = vmul.f32 %v5425, %v6743
      %v6752 = vmul.f32 %v5426, %v6743
      %v6753 = vmul.f32 %v5427, %v6743
      %v6754 = vmul.f32 %v5428, %v6743
      %v6755 = vmul.f32 %v5429, %v6743
      %v6756 = vmul.f32 %v5430, %v6743
      %v6757 = vmul.f32 %v5431, %v6743
      %v6758 = vmul.f32 %v5432, %v6743
      %v6759 = vmul.f32 %v5433, %v6743
      %v6760 = vrcp.pop %v6697
      %v6761 = vmul.f32 %v5434, %v6760
      %v6762 = vmul.f32 %v5435, %v6760
      %v6763 = vmul.f32 %v5436, %v6760
      %v6764 = vmul.f32 %v5437, %v6760
      %v6765 = vmul.f32 %v5438, %v6760
      %v6766 = vmul.f32 %v5439, %v6760
      %v6767 = vmul.f32 %v5440, %v6760
      %v6768 = vmul.f32 %v5441, %v6760
      %v6769 = vmul.f32 %v5442, %v6760
      %v6770 = vmul.f32 %v5443, %v6760
      %v6771 = vmul.f32 %v5444, %v6760
      %v6772 = vmul.f32 %v5445, %v6760
      %v6773 = vmul.f32 %v5446, %v6760
      %v6774 = vmul.f32 %v5447, %v6760
      %v6775 = vmul.f32 %v5448, %v6760
      %v6776 = vmul.f32 %v5449, %v6760
      %v6777 = vrcp.pop %v6701
      %v6778 = vmul.f32 %v5450, %v6777
      %v6779 = vmul.f32 %v5451, %v6777
      %v6780 = vmul.f32 %v5452, %v6777
      %v6781 = vmul.f32 %v5453, %v6777
      %v6782 = vmul.f32 %v5454, %v6777
      %v6783 = vmul.f32 %v5455, %v6777
      %v6784 = vmul.f32 %v5456, %v6777
      %v6785 = vmul.f32 %v5457, %v6777
      %v6786 = vmul.f32 %v5458, %v6777
      %v6787 = vmul.f32 %v5459, %v6777
      %v6788 = vmul.f32 %v5460, %v6777
      %v6789 = vmul.f32 %v5461, %v6777
      %v6790 = vmul.f32 %v5462, %v6777
      %v6791 = vmul.f32 %v5463, %v6777
      %v6792 = vmul.f32 %v5464, %v6777
      %v6793 = vmul.f32 %v5465, %v6777
      %v6794 = vrcp.pop %v6705
      %v6795 = vmul.f32 %v5466, %v6794
      %v6796 = vmul.f32 %v5467, %v6794
      %v6797 = vmul.f32 %v5468, %v6794
      %v6798 = vmul.f32 %v5469, %v6794
      %v6799 = vmul.f32 %v5470, %v6794
      %v6800 = vmul.f32 %v5471, %v6794
      %v6801 = vmul.f32 %v5472, %v6794
      %v6802 = vmul.f32 %v5473, %v6794
      %v6803 = vmul.f32 %v5474, %v6794
      %v6804 = vmul.f32 %v5475, %v6794
      %v6805 = vmul.f32 %v5476, %v6794
      %v6806 = vmul.f32 %v5477, %v6794
      %v6807 = vmul.f32 %v5478, %v6794
      %v6808 = vmul.f32 %v5479, %v6794
      %v6809 = vmul.f32 %v5480, %v6794
      %v6810 = vmul.f32 %v5481, %v6794
      %v6811 = vrcp.pop %v6709
      %v6812 = vmul.f32 %v5482, %v6811
      %v6813 = vmul.f32 %v5483, %v6811
      %v6814 = vmul.f32 %v5484, %v6811
      %v6815 = vmul.f32 %v5485, %v6811
      %v6816 = vmul.f32 %v5486, %v6811
      %v6817 = vmul.f32 %v5487, %v6811
      %v6818 = vmul.f32 %v5488, %v6811
      %v6819 = vmul.f32 %v5489, %v6811
      %v6820 = vmul.f32 %v5490, %v6811
      %v6821 = vmul.f32 %v5491, %v6811
      %v6822 = vmul.f32 %v5492, %v6811
      %v6823 = vmul.f32 %v5493, %v6811
      %v6824 = vmul.f32 %v5494, %v6811
      %v6825 = vmul.f32 %v5495, %v6811
      %v6826 = vmul.f32 %v5496, %v6811
      %v6827 = vmul.f32 %v5497, %v6811
      %v6828 = vrcp.pop %v6713
      %v6829 = vmul.f32 %v5498, %v6828
      %v6830 = vmul.f32 %v5499, %v6828
      %v6831 = vmul.f32 %v5500, %v6828
      %v6832 = vmul.f32 %v5501, %v6828
      %v6833 = vmul.f32 %v5502, %v6828
      %v6834 = vmul.f32 %v5503, %v6828
      %v6835 = vmul.f32 %v5504, %v6828
      %v6836 = vmul.f32 %v5505, %v6828
      %v6837 = vmul.f32 %v5506, %v6828
      %v6838 = vmul.f32 %v5507, %v6828
      %v6839 = vmul.f32 %v5508, %v6828
      %v6840 = vmul.f32 %v5509, %v6828
      %v6841 = vmul.f32 %v5510, %v6828
      %v6842 = vmul.f32 %v5511, %v6828
      %v6843 = vmul.f32 %v5512, %v6828
      %v6844 = vmul.f32 %v5513, %v6828
      %v6845 = vrcp.pop %v6717
      %v6846 = vmul.f32 %v5514, %v6845
      %v6847 = vmul.f32 %v5515, %v6845
      %v6848 = vmul.f32 %v5516, %v6845
      %v6849 = vmul.f32 %v5517, %v6845
      %v6850 = vmul.f32 %v5518, %v6845
      %v6851 = vmul.f32 %v5519, %v6845
      %v6852 = vmul.f32 %v5520, %v6845
      %v6853 = vmul.f32 %v5521, %v6845
      %v6854 = vmul.f32 %v5522, %v6845
      %v6855 = vmul.f32 %v5523, %v6845
      %v6856 = vmul.f32 %v5524, %v6845
      %v6857 = vmul.f32 %v5525, %v6845
      %v6858 = vmul.f32 %v5526, %v6845
      %v6859 = vmul.f32 %v5527, %v6845
      %v6860 = vmul.f32 %v5528, %v6845
      %v6861 = vmul.f32 %v5529, %v6845
      %6990 = vset.pattern.permute.xlu0 0
      %6991 = vperm.xlu0 %6990, %v6727
      %v6992 = vpop.permute.xlu0 %6991
      %6993 = vset.pattern.permute.xlu0 0
      %6994 = vperm.xlu0 %6993, %v6728
      %v6995 = vpop.permute.xlu0 %6994
      %6996 = vset.pattern.permute.xlu0 0
      %6997 = vperm.xlu0 %6996, %v6729
      %v6998 = vpop.permute.xlu0 %6997
      %6999 = vset.pattern.permute.xlu0 0
      %7000 = vperm.xlu0 %6999, %v6730
      %v7001 = vpop.permute.xlu0 %7000
      %7002 = vset.pattern.permute.xlu0 0
      %7003 = vperm.xlu0 %7002, %v6731
      %v7004 = vpop.permute.xlu0 %7003
      %7005 = vset.pattern.permute.xlu0 0
      %7006 = vperm.xlu0 %7005, %v6732
      %v7007 = vpop.permute.xlu0 %7006
      %7008 = vset.pattern.permute.xlu0 0
      %7009 = vperm.xlu0 %7008, %v6733
      %v7010 = vpop.permute.xlu0 %7009
      %7011 = vset.pattern.permute.xlu0 0
      %7012 = vperm.xlu0 %7011, %v6734
      %v7013 = vpop.permute.xlu0 %7012
      %7014 = vset.pattern.permute.xlu0 0
      %7015 = vperm.xlu0 %7014, %v6735
      %v7016 = vpop.permute.xlu0 %7015
      %7017 = vset.pattern.permute.xlu0 0
      %7018 = vperm.xlu0 %7017, %v6736
      %v7019 = vpop.permute.xlu0 %7018
      %7020 = vset.pattern.permute.xlu0 0
      %7021 = vperm.xlu0 %7020, %v6737
      %v7022 = vpop.permute.xlu0 %7021
      %7023 = vset.pattern.permute.xlu0 0
      %7024 = vperm.xlu0 %7023, %v6738
      %v7025 = vpop.permute.xlu0 %7024
      %7026 = vset.pattern.permute.xlu0 0
      %7027 = vperm.xlu0 %7026, %v6739
      %v7028 = vpop.permute.xlu0 %7027
      %7029 = vset.pattern.permute.xlu0 0
      %7030 = vperm.xlu0 %7029, %v6740
      %v7031 = vpop.permute.xlu0 %7030
      %7032 = vset.pattern.permute.xlu0 0
      %7033 = vperm.xlu0 %7032, %v6741
      %v7034 = vpop.permute.xlu0 %7033
      %7035 = vset.pattern.permute.xlu0 0
      %7036 = vperm.xlu0 %7035, %v6742
      %v7037 = vpop.permute.xlu0 %7036
      %7038 = vset.pattern.permute.xlu0 0
      %7039 = vperm.xlu0 %7038, %v6744
      %v7040 = vpop.permute.xlu0 %7039
      %7041 = vset.pattern.permute.xlu0 0
      %7042 = vperm.xlu0 %7041, %v6745
      %v7043 = vpop.permute.xlu0 %7042
      %7044 = vset.pattern.permute.xlu0 0
      %7045 = vperm.xlu0 %7044, %v6746
      %v7046 = vpop.permute.xlu0 %7045
      %7047 = vset.pattern.permute.xlu0 0
      %7048 = vperm.xlu0 %7047, %v6747
      %v7049 = vpop.permute.xlu0 %7048
      %7050 = vset.pattern.permute.xlu0 0
      %7051 = vperm.xlu0 %7050, %v6748
      %v7052 = vpop.permute.xlu0 %7051
      %7053 = vset.pattern.permute.xlu0 0
      %7054 = vperm.xlu0 %7053, %v6749
      %v7055 = vpop.permute.xlu0 %7054
      %7056 = vset.pattern.permute.xlu0 0
      %7057 = vperm.xlu0 %7056, %v6750
      %v7058 = vpop.permute.xlu0 %7057
      %7059 = vset.pattern.permute.xlu0 0
      %7060 = vperm.xlu0 %7059, %v6751
      %v7061 = vpop.permute.xlu0 %7060
      %7062 = vset.pattern.permute.xlu0 0
      %7063 = vperm.xlu0 %7062, %v6752
      %v7064 = vpop.permute.xlu0 %7063
      %7065 = vset.pattern.permute.xlu0 0
      %7066 = vperm.xlu0 %7065, %v6753
      %v7067 = vpop.permute.xlu0 %7066
      %7068 = vset.pattern.permute.xlu0 0
      %7069 = vperm.xlu0 %7068, %v6754
      %v7070 = vpop.permute.xlu0 %7069
      %7071 = vset.pattern.permute.xlu0 0
      %7072 = vperm.xlu0 %7071, %v6755
      %v7073 = vpop.permute.xlu0 %7072
      %7074 = vset.pattern.permute.xlu0 0
      %7075 = vperm.xlu0 %7074, %v6756
      %v7076 = vpop.permute.xlu0 %7075
      %7077 = vset.pattern.permute.xlu0 0
      %7078 = vperm.xlu0 %7077, %v6757
      %v7079 = vpop.permute.xlu0 %7078
      %7080 = vset.pattern.permute.xlu0 0
      %7081 = vperm.xlu0 %7080, %v6758
      %v7082 = vpop.permute.xlu0 %7081
      %7083 = vset.pattern.permute.xlu0 0
      %7084 = vperm.xlu0 %7083, %v6759
      %v7085 = vpop.permute.xlu0 %7084
      %7086 = vset.pattern.permute.xlu0 0
      %7087 = vperm.xlu0 %7086, %v6761
      %v7088 = vpop.permute.xlu0 %7087
      %7089 = vset.pattern.permute.xlu0 0
      %7090 = vperm.xlu0 %7089, %v6762
      %v7091 = vpop.permute.xlu0 %7090
      %7092 = vset.pattern.permute.xlu0 0
      %7093 = vperm.xlu0 %7092, %v6763
      %v7094 = vpop.permute.xlu0 %7093
      %7095 = vset.pattern.permute.xlu0 0
      %7096 = vperm.xlu0 %7095, %v6764
      %v7097 = vpop.permute.xlu0 %7096
      %7098 = vset.pattern.permute.xlu0 0
      %7099 = vperm.xlu0 %7098, %v6765
      %v7100 = vpop.permute.xlu0 %7099
      %7101 = vset.pattern.permute.xlu0 0
      %7102 = vperm.xlu0 %7101, %v6766
      %v7103 = vpop.permute.xlu0 %7102
      %7104 = vset.pattern.permute.xlu0 0
      %7105 = vperm.xlu0 %7104, %v6767
      %v7106 = vpop.permute.xlu0 %7105
      %7107 = vset.pattern.permute.xlu0 0
      %7108 = vperm.xlu0 %7107, %v6768
      %v7109 = vpop.permute.xlu0 %7108
      %7110 = vset.pattern.permute.xlu0 0
      %7111 = vperm.xlu0 %7110, %v6769
      %v7112 = vpop.permute.xlu0 %7111
      %7113 = vset.pattern.permute.xlu0 0
      %7114 = vperm.xlu0 %7113, %v6770
      %v7115 = vpop.permute.xlu0 %7114
      %7116 = vset.pattern.permute.xlu0 0
      %7117 = vperm.xlu0 %7116, %v6771
      %v7118 = vpop.permute.xlu0 %7117
      %7119 = vset.pattern.permute.xlu0 0
      %7120 = vperm.xlu0 %7119, %v6772
      %v7121 = vpop.permute.xlu0 %7120
      %7122 = vset.pattern.permute.xlu0 0
      %7123 = vperm.xlu0 %7122, %v6773
      %v7124 = vpop.permute.xlu0 %7123
      %7125 = vset.pattern.permute.xlu0 0
      %7126 = vperm.xlu0 %7125, %v6774
      %v7127 = vpop.permute.xlu0 %7126
      %7128 = vset.pattern.permute.xlu0 0
      %7129 = vperm.xlu0 %7128, %v6775
      %v7130 = vpop.permute.xlu0 %7129
      %7131 = vset.pattern.permute.xlu0 0
      %7132 = vperm.xlu0 %7131, %v6776
      %v7133 = vpop.permute.xlu0 %7132
      %7134 = vset.pattern.permute.xlu0 0
      %7135 = vperm.xlu0 %7134, %v6778
      %v7136 = vpop.permute.xlu0 %7135
      %7137 = vset.pattern.permute.xlu0 0
      %7138 = vperm.xlu0 %7137, %v6779
      %v7139 = vpop.permute.xlu0 %7138
      %7140 = vset.pattern.permute.xlu0 0
      %7141 = vperm.xlu0 %7140, %v6780
      %v7142 = vpop.permute.xlu0 %7141
      %7143 = vset.pattern.permute.xlu0 0
      %7144 = vperm.xlu0 %7143, %v6781
      %v7145 = vpop.permute.xlu0 %7144
      %7146 = vset.pattern.permute.xlu0 0
      %7147 = vperm.xlu0 %7146, %v6782
      %v7148 = vpop.permute.xlu0 %7147
      %7149 = vset.pattern.permute.xlu0 0
      %7150 = vperm.xlu0 %7149, %v6783
      %v7151 = vpop.permute.xlu0 %7150
      %7152 = vset.pattern.permute.xlu0 0
      %7153 = vperm.xlu0 %7152, %v6784
      %v7154 = vpop.permute.xlu0 %7153
      %7155 = vset.pattern.permute.xlu0 0
      %7156 = vperm.xlu0 %7155, %v6785
      %v7157 = vpop.permute.xlu0 %7156
      %7158 = vset.pattern.permute.xlu0 0
      %7159 = vperm.xlu0 %7158, %v6786
      %v7160 = vpop.permute.xlu0 %7159
      %7161 = vset.pattern.permute.xlu0 0
      %7162 = vperm.xlu0 %7161, %v6787
      %v7163 = vpop.permute.xlu0 %7162
      %7164 = vset.pattern.permute.xlu0 0
      %7165 = vperm.xlu0 %7164, %v6788
      %v7166 = vpop.permute.xlu0 %7165
      %7167 = vset.pattern.permute.xlu0 0
      %7168 = vperm.xlu0 %7167, %v6789
      %v7169 = vpop.permute.xlu0 %7168
      %7170 = vset.pattern.permute.xlu0 0
      %7171 = vperm.xlu0 %7170, %v6790
      %v7172 = vpop.permute.xlu0 %7171
      %7173 = vset.pattern.permute.xlu0 0
      %7174 = vperm.xlu0 %7173, %v6791
      %v7175 = vpop.permute.xlu0 %7174
      %7176 = vset.pattern.permute.xlu0 0
      %7177 = vperm.xlu0 %7176, %v6792
      %v7178 = vpop.permute.xlu0 %7177
      %7179 = vset.pattern.permute.xlu0 0
      %7180 = vperm.xlu0 %7179, %v6793
      %v7181 = vpop.permute.xlu0 %7180
      %7182 = vset.pattern.permute.xlu0 0
      %7183 = vperm.xlu0 %7182, %v6795
      %v7184 = vpop.permute.xlu0 %7183
      %7185 = vset.pattern.permute.xlu0 0
      %7186 = vperm.xlu0 %7185, %v6796
      %v7187 = vpop.permute.xlu0 %7186
      %7188 = vset.pattern.permute.xlu0 0
      %7189 = vperm.xlu0 %7188, %v6797
      %v7190 = vpop.permute.xlu0 %7189
      %7191 = vset.pattern.permute.xlu0 0
      %7192 = vperm.xlu0 %7191, %v6798
      %v7193 = vpop.permute.xlu0 %7192
      %7194 = vset.pattern.permute.xlu0 0
      %7195 = vperm.xlu0 %7194, %v6799
      %v7196 = vpop.permute.xlu0 %7195
      %7197 = vset.pattern.permute.xlu0 0
      %7198 = vperm.xlu0 %7197, %v6800
      %v7199 = vpop.permute.xlu0 %7198
      %7200 = vset.pattern.permute.xlu0 0
      %7201 = vperm.xlu0 %7200, %v6801
      %v7202 = vpop.permute.xlu0 %7201
      %7203 = vset.pattern.permute.xlu0 0
      %7204 = vperm.xlu0 %7203, %v6802
      %v7205 = vpop.permute.xlu0 %7204
      %7206 = vset.pattern.permute.xlu0 0
      %7207 = vperm.xlu0 %7206, %v6803
      %v7208 = vpop.permute.xlu0 %7207
      %7209 = vset.pattern.permute.xlu0 0
      %7210 = vperm.xlu0 %7209, %v6804
      %v7211 = vpop.permute.xlu0 %7210
      %7212 = vset.pattern.permute.xlu0 0
      %7213 = vperm.xlu0 %7212, %v6805
      %v7214 = vpop.permute.xlu0 %7213
      %7215 = vset.pattern.permute.xlu0 0
      %7216 = vperm.xlu0 %7215, %v6806
      %v7217 = vpop.permute.xlu0 %7216
      %7218 = vset.pattern.permute.xlu0 0
      %7219 = vperm.xlu0 %7218, %v6807
      %v7220 = vpop.permute.xlu0 %7219
      %7221 = vset.pattern.permute.xlu0 0
      %7222 = vperm.xlu0 %7221, %v6808
      %v7223 = vpop.permute.xlu0 %7222
      %7224 = vset.pattern.permute.xlu0 0
      %7225 = vperm.xlu0 %7224, %v6809
      %v7226 = vpop.permute.xlu0 %7225
      %7227 = vset.pattern.permute.xlu0 0
      %7228 = vperm.xlu0 %7227, %v6810
      %v7229 = vpop.permute.xlu0 %7228
      %7230 = vset.pattern.permute.xlu0 0
      %7231 = vperm.xlu0 %7230, %v6812
      %v7232 = vpop.permute.xlu0 %7231
      %7233 = vset.pattern.permute.xlu0 0
      %7234 = vperm.xlu0 %7233, %v6813
      %v7235 = vpop.permute.xlu0 %7234
      %7236 = vset.pattern.permute.xlu0 0
      %7237 = vperm.xlu0 %7236, %v6814
      %v7238 = vpop.permute.xlu0 %7237
      %7239 = vset.pattern.permute.xlu0 0
      %7240 = vperm.xlu0 %7239, %v6815
      %v7241 = vpop.permute.xlu0 %7240
      %7242 = vset.pattern.permute.xlu0 0
      %7243 = vperm.xlu0 %7242, %v6816
      %v7244 = vpop.permute.xlu0 %7243
      %7245 = vset.pattern.permute.xlu0 0
      %7246 = vperm.xlu0 %7245, %v6817
      %v7247 = vpop.permute.xlu0 %7246
      %7248 = vset.pattern.permute.xlu0 0
      %7249 = vperm.xlu0 %7248, %v6818
      %v7250 = vpop.permute.xlu0 %7249
      %7251 = vset.pattern.permute.xlu0 0
      %7252 = vperm.xlu0 %7251, %v6819
      %v7253 = vpop.permute.xlu0 %7252
      %7254 = vset.pattern.permute.xlu0 0
      %7255 = vperm.xlu0 %7254, %v6820
      %v7256 = vpop.permute.xlu0 %7255
      %7257 = vset.pattern.permute.xlu0 0
      %7258 = vperm.xlu0 %7257, %v6821
      %v7259 = vpop.permute.xlu0 %7258
      %7260 = vset.pattern.permute.xlu0 0
      %7261 = vperm.xlu0 %7260, %v6822
      %v7262 = vpop.permute.xlu0 %7261
      %7263 = vset.pattern.permute.xlu0 0
      %7264 = vperm.xlu0 %7263, %v6823
      %v7265 = vpop.permute.xlu0 %7264
      %7266 = vset.pattern.permute.xlu0 0
      %7267 = vperm.xlu0 %7266, %v6824
      %v7268 = vpop.permute.xlu0 %7267
      %7269 = vset.pattern.permute.xlu0 0
      %7270 = vperm.xlu0 %7269, %v6825
      %v7271 = vpop.permute.xlu0 %7270
      %7272 = vset.pattern.permute.xlu0 0
      %7273 = vperm.xlu0 %7272, %v6826
      %v7274 = vpop.permute.xlu0 %7273
      %7275 = vset.pattern.permute.xlu0 0
      %7276 = vperm.xlu0 %7275, %v6827
      %v7277 = vpop.permute.xlu0 %7276
      %7278 = vset.pattern.permute.xlu0 0
      %7279 = vperm.xlu0 %7278, %v6829
      %v7280 = vpop.permute.xlu0 %7279
      %7281 = vset.pattern.permute.xlu0 0
      %7282 = vperm.xlu0 %7281, %v6830
      %v7283 = vpop.permute.xlu0 %7282
      %7284 = vset.pattern.permute.xlu0 0
      %7285 = vperm.xlu0 %7284, %v6831
      %v7286 = vpop.permute.xlu0 %7285
      %7287 = vset.pattern.permute.xlu0 0
      %7288 = vperm.xlu0 %7287, %v6832
      %v7289 = vpop.permute.xlu0 %7288
      %7290 = vset.pattern.permute.xlu0 0
      %7291 = vperm.xlu0 %7290, %v6833
      %v7292 = vpop.permute.xlu0 %7291
      %7293 = vset.pattern.permute.xlu0 0
      %7294 = vperm.xlu0 %7293, %v6834
      %v7295 = vpop.permute.xlu0 %7294
      %7296 = vset.pattern.permute.xlu0 0
      %7297 = vperm.xlu0 %7296, %v6835
      %v7298 = vpop.permute.xlu0 %7297
      %7299 = vset.pattern.permute.xlu0 0
      %7300 = vperm.xlu0 %7299, %v6836
      %v7301 = vpop.permute.xlu0 %7300
      %7302 = vset.pattern.permute.xlu0 0
      %7303 = vperm.xlu0 %7302, %v6837
      %v7304 = vpop.permute.xlu0 %7303
      %7305 = vset.pattern.permute.xlu0 0
      %7306 = vperm.xlu0 %7305, %v6838
      %v7307 = vpop.permute.xlu0 %7306
      %7308 = vset.pattern.permute.xlu0 0
      %7309 = vperm.xlu0 %7308, %v6839
      %v7310 = vpop.permute.xlu0 %7309
      %7311 = vset.pattern.permute.xlu0 0
      %7312 = vperm.xlu0 %7311, %v6840
      %v7313 = vpop.permute.xlu0 %7312
      %7314 = vset.pattern.permute.xlu0 0
      %7315 = vperm.xlu0 %7314, %v6841
      %v7316 = vpop.permute.xlu0 %7315
      %7317 = vset.pattern.permute.xlu0 0
      %7318 = vperm.xlu0 %7317, %v6842
      %v7319 = vpop.permute.xlu0 %7318
      %7320 = vset.pattern.permute.xlu0 0
      %7321 = vperm.xlu0 %7320, %v6843
      %v7322 = vpop.permute.xlu0 %7321
      %7323 = vset.pattern.permute.xlu0 0
      %7324 = vperm.xlu0 %7323, %v6844
      %v7325 = vpop.permute.xlu0 %7324
      %7326 = vset.pattern.permute.xlu0 0
      %7327 = vperm.xlu0 %7326, %v6846
      %v7328 = vpop.permute.xlu0 %7327
      %7329 = vset.pattern.permute.xlu0 0
      %7330 = vperm.xlu0 %7329, %v6847
      %v7331 = vpop.permute.xlu0 %7330
      %7332 = vset.pattern.permute.xlu0 0
      %7333 = vperm.xlu0 %7332, %v6848
      %v7334 = vpop.permute.xlu0 %7333
      %7335 = vset.pattern.permute.xlu0 0
      %7336 = vperm.xlu0 %7335, %v6849
      %v7337 = vpop.permute.xlu0 %7336
      %7338 = vset.pattern.permute.xlu0 0
      %7339 = vperm.xlu0 %7338, %v6850
      %v7340 = vpop.permute.xlu0 %7339
      %7341 = vset.pattern.permute.xlu0 0
      %7342 = vperm.xlu0 %7341, %v6851
      %v7343 = vpop.permute.xlu0 %7342
      %7344 = vset.pattern.permute.xlu0 0
      %7345 = vperm.xlu0 %7344, %v6852
      %v7346 = vpop.permute.xlu0 %7345
      %7347 = vset.pattern.permute.xlu0 0
      %7348 = vperm.xlu0 %7347, %v6853
      %v7349 = vpop.permute.xlu0 %7348
      %7350 = vset.pattern.permute.xlu0 0
      %7351 = vperm.xlu0 %7350, %v6854
      %v7352 = vpop.permute.xlu0 %7351
      %7353 = vset.pattern.permute.xlu0 0
      %7354 = vperm.xlu0 %7353, %v6855
      %v7355 = vpop.permute.xlu0 %7354
      %7356 = vset.pattern.permute.xlu0 0
      %7357 = vperm.xlu0 %7356, %v6856
      %v7358 = vpop.permute.xlu0 %7357
      %7359 = vset.pattern.permute.xlu0 0
      %7360 = vperm.xlu0 %7359, %v6857
      %v7361 = vpop.permute.xlu0 %7360
      %7362 = vset.pattern.permute.xlu0 0
      %7363 = vperm.xlu0 %7362, %v6858
      %v7364 = vpop.permute.xlu0 %7363
      %7365 = vset.pattern.permute.xlu0 0
      %7366 = vperm.xlu0 %7365, %v6859
      %v7367 = vpop.permute.xlu0 %7366
      %7368 = vset.pattern.permute.xlu0 0
      %7369 = vperm.xlu0 %7368, %v6860
      %v7370 = vpop.permute.xlu0 %7369
      %7371 = vset.pattern.permute.xlu0 0
      %7372 = vperm.xlu0 %7371, %v6861
      %v7373 = vpop.permute.xlu0 %7372
      %v7374 = vlaneseq
      %v7375 = vshrl.u32 %v7374, 7
      %v7376 = vsub.s32 %v4297, %v7375
      %v7377 = vrot.slane %v6992, %v7376
      %v7378 = vlaneseq
      %v7379 = vshrl.u32 %v7378, 7
      %v7380 = vsub.s32 %v4302, %v7379
      %v7381 = vrot.slane %v6995, %v7380
      %v7382 = vsel %vm4307, %v7381, %v7377
      %v7383 = vlaneseq
      %v7384 = vshrl.u32 %v7383, 7
      %v7385 = vsub.s32 %v4309, %v7384
      %v7386 = vrot.slane %v6998, %v7385
      %v7387 = vsel %vm4314, %v7386, %v7382
      %v7388 = vlaneseq
      %v7389 = vshrl.u32 %v7388, 7
      %v7390 = vsub.s32 %v4316, %v7389
      %v7391 = vrot.slane %v7001, %v7390
      %v7392 = vsel %vm4321, %v7391, %v7387
      %v7393 = vlaneseq
      %v7394 = vshrl.u32 %v7393, 7
      %v7395 = vsub.s32 %v4323, %v7394
      %v7396 = vrot.slane %v7004, %v7395
      %v7397 = vsel %vm4328, %v7396, %v7392
      %v7398 = vlaneseq
      %v7399 = vshrl.u32 %v7398, 7
      %v7400 = vsub.s32 %v4330, %v7399
      %v7401 = vrot.slane %v7007, %v7400
      %v7402 = vsel %vm4335, %v7401, %v7397
      %v7403 = vlaneseq
      %v7404 = vshrl.u32 %v7403, 7
      %v7405 = vsub.s32 %v4337, %v7404
      %v7406 = vrot.slane %v7010, %v7405
      %v7407 = vsel %vm4342, %v7406, %v7402
      %v7408 = vlaneseq
      %v7409 = vshrl.u32 %v7408, 7
      %v7410 = vsub.s32 %v4344, %v7409
      %v7411 = vrot.slane %v7013, %v7410
      %v7412 = vsel %vm4349, %v7411, %v7407
      %v7413 = vlaneseq
      %v7414 = vshrl.u32 %v7413, 7
      %v7415 = vsub.s32 %v4351, %v7414
      %v7416 = vrot.slane %v7016, %v7415
      %v7417 = vsel %vm4356, %v7416, %v7412
      %v7418 = vlaneseq
      %v7419 = vshrl.u32 %v7418, 7
      %v7420 = vsub.s32 %v4358, %v7419
      %v7421 = vrot.slane %v7019, %v7420
      %v7422 = vsel %vm4363, %v7421, %v7417
      %v7423 = vlaneseq
      %v7424 = vshrl.u32 %v7423, 7
      %v7425 = vsub.s32 %v4365, %v7424
      %v7426 = vrot.slane %v7022, %v7425
      %v7427 = vsel %vm4370, %v7426, %v7422
      %v7428 = vlaneseq
      %v7429 = vshrl.u32 %v7428, 7
      %v7430 = vsub.s32 %v4372, %v7429
      %v7431 = vrot.slane %v7025, %v7430
      %v7432 = vsel %vm4377, %v7431, %v7427
      %v7433 = vlaneseq
      %v7434 = vshrl.u32 %v7433, 7
      %v7435 = vsub.s32 %v4379, %v7434
      %v7436 = vrot.slane %v7028, %v7435
      %v7437 = vsel %vm4384, %v7436, %v7432
      %v7438 = vlaneseq
      %v7439 = vshrl.u32 %v7438, 7
      %v7440 = vsub.s32 %v4386, %v7439
      %v7441 = vrot.slane %v7031, %v7440
      %v7442 = vsel %vm4391, %v7441, %v7437
      %v7443 = vlaneseq
      %v7444 = vshrl.u32 %v7443, 7
      %v7445 = vsub.s32 %v4393, %v7444
      %v7446 = vrot.slane %v7034, %v7445
      %v7447 = vsel %vm4398, %v7446, %v7442
      %v7448 = vlaneseq
      %v7449 = vshrl.u32 %v7448, 7
      %v7450 = vsub.s32 %v4400, %v7449
      %v7451 = vrot.slane %v7037, %v7450
      %v7452 = vsel %vm4405, %v7451, %v7447
      %v7453 = vlaneseq
      %v7454 = vshrl.u32 %v7453, 7
      %v7455 = vsub.s32 %v4297, %v7454
      %v7456 = vrot.slane %v7040, %v7455
      %v7457 = vlaneseq
      %v7458 = vshrl.u32 %v7457, 7
      %v7459 = vsub.s32 %v4302, %v7458
      %v7460 = vrot.slane %v7043, %v7459
      %v7461 = vsel %vm4307, %v7460, %v7456
      %v7462 = vlaneseq
      %v7463 = vshrl.u32 %v7462, 7
      %v7464 = vsub.s32 %v4309, %v7463
      %v7465 = vrot.slane %v7046, %v7464
      %v7466 = vsel %vm4314, %v7465, %v7461
      %v7467 = vlaneseq
      %v7468 = vshrl.u32 %v7467, 7
      %v7469 = vsub.s32 %v4316, %v7468
      %v7470 = vrot.slane %v7049, %v7469
      %v7471 = vsel %vm4321, %v7470, %v7466
      %v7472 = vlaneseq
      %v7473 = vshrl.u32 %v7472, 7
      %v7474 = vsub.s32 %v4323, %v7473
      %v7475 = vrot.slane %v7052, %v7474
      %v7476 = vsel %vm4328, %v7475, %v7471
      %v7477 = vlaneseq
      %v7478 = vshrl.u32 %v7477, 7
      %v7479 = vsub.s32 %v4330, %v7478
      %v7480 = vrot.slane %v7055, %v7479
      %v7481 = vsel %vm4335, %v7480, %v7476
      %v7482 = vlaneseq
      %v7483 = vshrl.u32 %v7482, 7
      %v7484 = vsub.s32 %v4337, %v7483
      %v7485 = vrot.slane %v7058, %v7484
      %v7486 = vsel %vm4342, %v7485, %v7481
      %v7487 = vlaneseq
      %v7488 = vshrl.u32 %v7487, 7
      %v7489 = vsub.s32 %v4344, %v7488
      %v7490 = vrot.slane %v7061, %v7489
      %v7491 = vsel %vm4349, %v7490, %v7486
      %v7492 = vlaneseq
      %v7493 = vshrl.u32 %v7492, 7
      %v7494 = vsub.s32 %v4351, %v7493
      %v7495 = vrot.slane %v7064, %v7494
      %v7496 = vsel %vm4356, %v7495, %v7491
      %v7497 = vlaneseq
      %v7498 = vshrl.u32 %v7497, 7
      %v7499 = vsub.s32 %v4358, %v7498
      %v7500 = vrot.slane %v7067, %v7499
      %v7501 = vsel %vm4363, %v7500, %v7496
      %v7502 = vlaneseq
      %v7503 = vshrl.u32 %v7502, 7
      %v7504 = vsub.s32 %v4365, %v7503
      %v7505 = vrot.slane %v7070, %v7504
      %v7506 = vsel %vm4370, %v7505, %v7501
      %v7507 = vlaneseq
      %v7508 = vshrl.u32 %v7507, 7
      %v7509 = vsub.s32 %v4372, %v7508
      %v7510 = vrot.slane %v7073, %v7509
      %v7511 = vsel %vm4377, %v7510, %v7506
      %v7512 = vlaneseq
      %v7513 = vshrl.u32 %v7512, 7
      %v7514 = vsub.s32 %v4379, %v7513
      %v7515 = vrot.slane %v7076, %v7514
      %v7516 = vsel %vm4384, %v7515, %v7511
      %v7517 = vlaneseq
      %v7518 = vshrl.u32 %v7517, 7
      %v7519 = vsub.s32 %v4386, %v7518
      %v7520 = vrot.slane %v7079, %v7519
      %v7521 = vsel %vm4391, %v7520, %v7516
      %v7522 = vlaneseq
      %v7523 = vshrl.u32 %v7522, 7
      %v7524 = vsub.s32 %v4393, %v7523
      %v7525 = vrot.slane %v7082, %v7524
      %v7526 = vsel %vm4398, %v7525, %v7521
      %v7527 = vlaneseq
      %v7528 = vshrl.u32 %v7527, 7
      %v7529 = vsub.s32 %v4400, %v7528
      %v7530 = vrot.slane %v7085, %v7529
      %v7531 = vsel %vm4405, %v7530, %v7526
      %v7532 = vlaneseq
      %v7533 = vshrl.u32 %v7532, 7
      %v7534 = vsub.s32 %v4297, %v7533
      %v7535 = vrot.slane %v7088, %v7534
      %v7536 = vlaneseq
      %v7537 = vshrl.u32 %v7536, 7
      %v7538 = vsub.s32 %v4302, %v7537
      %v7539 = vrot.slane %v7091, %v7538
      %v7540 = vsel %vm4307, %v7539, %v7535
      %v7541 = vlaneseq
      %v7542 = vshrl.u32 %v7541, 7
      %v7543 = vsub.s32 %v4309, %v7542
      %v7544 = vrot.slane %v7094, %v7543
      %v7545 = vsel %vm4314, %v7544, %v7540
      %v7546 = vlaneseq
      %v7547 = vshrl.u32 %v7546, 7
      %v7548 = vsub.s32 %v4316, %v7547
      %v7549 = vrot.slane %v7097, %v7548
      %v7550 = vsel %vm4321, %v7549, %v7545
      %v7551 = vlaneseq
      %v7552 = vshrl.u32 %v7551, 7
      %v7553 = vsub.s32 %v4323, %v7552
      %v7554 = vrot.slane %v7100, %v7553
      %v7555 = vsel %vm4328, %v7554, %v7550
      %v7556 = vlaneseq
      %v7557 = vshrl.u32 %v7556, 7
      %v7558 = vsub.s32 %v4330, %v7557
      %v7559 = vrot.slane %v7103, %v7558
      %v7560 = vsel %vm4335, %v7559, %v7555
      %v7561 = vlaneseq
      %v7562 = vshrl.u32 %v7561, 7
      %v7563 = vsub.s32 %v4337, %v7562
      %v7564 = vrot.slane %v7106, %v7563
      %v7565 = vsel %vm4342, %v7564, %v7560
      %v7566 = vlaneseq
      %v7567 = vshrl.u32 %v7566, 7
      %v7568 = vsub.s32 %v4344, %v7567
      %v7569 = vrot.slane %v7109, %v7568
      %v7570 = vsel %vm4349, %v7569, %v7565
      %v7571 = vlaneseq
      %v7572 = vshrl.u32 %v7571, 7
      %v7573 = vsub.s32 %v4351, %v7572
      %v7574 = vrot.slane %v7112, %v7573
      %v7575 = vsel %vm4356, %v7574, %v7570
      %v7576 = vlaneseq
      %v7577 = vshrl.u32 %v7576, 7
      %v7578 = vsub.s32 %v4358, %v7577
      %v7579 = vrot.slane %v7115, %v7578
      %v7580 = vsel %vm4363, %v7579, %v7575
      %v7581 = vlaneseq
      %v7582 = vshrl.u32 %v7581, 7
      %v7583 = vsub.s32 %v4365, %v7582
      %v7584 = vrot.slane %v7118, %v7583
      %v7585 = vsel %vm4370, %v7584, %v7580
      %v7586 = vlaneseq
      %v7587 = vshrl.u32 %v7586, 7
      %v7588 = vsub.s32 %v4372, %v7587
      %v7589 = vrot.slane %v7121, %v7588
      %v7590 = vsel %vm4377, %v7589, %v7585
      %v7591 = vlaneseq
      %v7592 = vshrl.u32 %v7591, 7
      %v7593 = vsub.s32 %v4379, %v7592
      %v7594 = vrot.slane %v7124, %v7593
      %v7595 = vsel %vm4384, %v7594, %v7590
      %v7596 = vlaneseq
      %v7597 = vshrl.u32 %v7596, 7
      %v7598 = vsub.s32 %v4386, %v7597
      %v7599 = vrot.slane %v7127, %v7598
      %v7600 = vsel %vm4391, %v7599, %v7595
      %v7601 = vlaneseq
      %v7602 = vshrl.u32 %v7601, 7
      %v7603 = vsub.s32 %v4393, %v7602
      %v7604 = vrot.slane %v7130, %v7603
      %v7605 = vsel %vm4398, %v7604, %v7600
      %v7606 = vlaneseq
      %v7607 = vshrl.u32 %v7606, 7
      %v7608 = vsub.s32 %v4400, %v7607
      %v7609 = vrot.slane %v7133, %v7608
      %v7610 = vsel %vm4405, %v7609, %v7605
      %v7611 = vlaneseq
      %v7612 = vshrl.u32 %v7611, 7
      %v7613 = vsub.s32 %v4297, %v7612
      %v7614 = vrot.slane %v7136, %v7613
      %v7615 = vlaneseq
      %v7616 = vshrl.u32 %v7615, 7
      %v7617 = vsub.s32 %v4302, %v7616
      %v7618 = vrot.slane %v7139, %v7617
      %v7619 = vsel %vm4307, %v7618, %v7614
      %v7620 = vlaneseq
      %v7621 = vshrl.u32 %v7620, 7
      %v7622 = vsub.s32 %v4309, %v7621
      %v7623 = vrot.slane %v7142, %v7622
      %v7624 = vsel %vm4314, %v7623, %v7619
      %v7625 = vlaneseq
      %v7626 = vshrl.u32 %v7625, 7
      %v7627 = vsub.s32 %v4316, %v7626
      %v7628 = vrot.slane %v7145, %v7627
      %v7629 = vsel %vm4321, %v7628, %v7624
      %v7630 = vlaneseq
      %v7631 = vshrl.u32 %v7630, 7
      %v7632 = vsub.s32 %v4323, %v7631
      %v7633 = vrot.slane %v7148, %v7632
      %v7634 = vsel %vm4328, %v7633, %v7629
      %v7635 = vlaneseq
      %v7636 = vshrl.u32 %v7635, 7
      %v7637 = vsub.s32 %v4330, %v7636
      %v7638 = vrot.slane %v7151, %v7637
      %v7639 = vsel %vm4335, %v7638, %v7634
      %v7640 = vlaneseq
      %v7641 = vshrl.u32 %v7640, 7
      %v7642 = vsub.s32 %v4337, %v7641
      %v7643 = vrot.slane %v7154, %v7642
      %v7644 = vsel %vm4342, %v7643, %v7639
      %v7645 = vlaneseq
      %v7646 = vshrl.u32 %v7645, 7
      %v7647 = vsub.s32 %v4344, %v7646
      %v7648 = vrot.slane %v7157, %v7647
      %v7649 = vsel %vm4349, %v7648, %v7644
      %v7650 = vlaneseq
      %v7651 = vshrl.u32 %v7650, 7
      %v7652 = vsub.s32 %v4351, %v7651
      %v7653 = vrot.slane %v7160, %v7652
      %v7654 = vsel %vm4356, %v7653, %v7649
      %v7655 = vlaneseq
      %v7656 = vshrl.u32 %v7655, 7
      %v7657 = vsub.s32 %v4358, %v7656
      %v7658 = vrot.slane %v7163, %v7657
      %v7659 = vsel %vm4363, %v7658, %v7654
      %v7660 = vlaneseq
      %v7661 = vshrl.u32 %v7660, 7
      %v7662 = vsub.s32 %v4365, %v7661
      %v7663 = vrot.slane %v7166, %v7662
      %v7664 = vsel %vm4370, %v7663, %v7659
      %v7665 = vlaneseq
      %v7666 = vshrl.u32 %v7665, 7
      %v7667 = vsub.s32 %v4372, %v7666
      %v7668 = vrot.slane %v7169, %v7667
      %v7669 = vsel %vm4377, %v7668, %v7664
      %v7670 = vlaneseq
      %v7671 = vshrl.u32 %v7670, 7
      %v7672 = vsub.s32 %v4379, %v7671
      %v7673 = vrot.slane %v7172, %v7672
      %v7674 = vsel %vm4384, %v7673, %v7669
      %v7675 = vlaneseq
      %v7676 = vshrl.u32 %v7675, 7
      %v7677 = vsub.s32 %v4386, %v7676
      %v7678 = vrot.slane %v7175, %v7677
      %v7679 = vsel %vm4391, %v7678, %v7674
      %v7680 = vlaneseq
      %v7681 = vshrl.u32 %v7680, 7
      %v7682 = vsub.s32 %v4393, %v7681
      %v7683 = vrot.slane %v7178, %v7682
      %v7684 = vsel %vm4398, %v7683, %v7679
      %v7685 = vlaneseq
      %v7686 = vshrl.u32 %v7685, 7
      %v7687 = vsub.s32 %v4400, %v7686
      %v7688 = vrot.slane %v7181, %v7687
      %v7689 = vsel %vm4405, %v7688, %v7684
      %v7690 = vlaneseq
      %v7691 = vshrl.u32 %v7690, 7
      %v7692 = vsub.s32 %v4297, %v7691
      %v7693 = vrot.slane %v7184, %v7692
      %v7694 = vlaneseq
      %v7695 = vshrl.u32 %v7694, 7
      %v7696 = vsub.s32 %v4302, %v7695
      %v7697 = vrot.slane %v7187, %v7696
      %v7698 = vsel %vm4307, %v7697, %v7693
      %v7699 = vlaneseq
      %v7700 = vshrl.u32 %v7699, 7
      %v7701 = vsub.s32 %v4309, %v7700
      %v7702 = vrot.slane %v7190, %v7701
      %v7703 = vsel %vm4314, %v7702, %v7698
      %v7704 = vlaneseq
      %v7705 = vshrl.u32 %v7704, 7
      %v7706 = vsub.s32 %v4316, %v7705
      %v7707 = vrot.slane %v7193, %v7706
      %v7708 = vsel %vm4321, %v7707, %v7703
      %v7709 = vlaneseq
      %v7710 = vshrl.u32 %v7709, 7
      %v7711 = vsub.s32 %v4323, %v7710
      %v7712 = vrot.slane %v7196, %v7711
      %v7713 = vsel %vm4328, %v7712, %v7708
      %v7714 = vlaneseq
      %v7715 = vshrl.u32 %v7714, 7
      %v7716 = vsub.s32 %v4330, %v7715
      %v7717 = vrot.slane %v7199, %v7716
      %v7718 = vsel %vm4335, %v7717, %v7713
      %v7719 = vlaneseq
      %v7720 = vshrl.u32 %v7719, 7
      %v7721 = vsub.s32 %v4337, %v7720
      %v7722 = vrot.slane %v7202, %v7721
      %v7723 = vsel %vm4342, %v7722, %v7718
      %v7724 = vlaneseq
      %v7725 = vshrl.u32 %v7724, 7
      %v7726 = vsub.s32 %v4344, %v7725
      %v7727 = vrot.slane %v7205, %v7726
      %v7728 = vsel %vm4349, %v7727, %v7723
      %v7729 = vlaneseq
      %v7730 = vshrl.u32 %v7729, 7
      %v7731 = vsub.s32 %v4351, %v7730
      %v7732 = vrot.slane %v7208, %v7731
      %v7733 = vsel %vm4356, %v7732, %v7728
      %v7734 = vlaneseq
      %v7735 = vshrl.u32 %v7734, 7
      %v7736 = vsub.s32 %v4358, %v7735
      %v7737 = vrot.slane %v7211, %v7736
      %v7738 = vsel %vm4363, %v7737, %v7733
      %v7739 = vlaneseq
      %v7740 = vshrl.u32 %v7739, 7
      %v7741 = vsub.s32 %v4365, %v7740
      %v7742 = vrot.slane %v7214, %v7741
      %v7743 = vsel %vm4370, %v7742, %v7738
      %v7744 = vlaneseq
      %v7745 = vshrl.u32 %v7744, 7
      %v7746 = vsub.s32 %v4372, %v7745
      %v7747 = vrot.slane %v7217, %v7746
      %v7748 = vsel %vm4377, %v7747, %v7743
      %v7749 = vlaneseq
      %v7750 = vshrl.u32 %v7749, 7
      %v7751 = vsub.s32 %v4379, %v7750
      %v7752 = vrot.slane %v7220, %v7751
      %v7753 = vsel %vm4384, %v7752, %v7748
      %v7754 = vlaneseq
      %v7755 = vshrl.u32 %v7754, 7
      %v7756 = vsub.s32 %v4386, %v7755
      %v7757 = vrot.slane %v7223, %v7756
      %v7758 = vsel %vm4391, %v7757, %v7753
      %v7759 = vlaneseq
      %v7760 = vshrl.u32 %v7759, 7
      %v7761 = vsub.s32 %v4393, %v7760
      %v7762 = vrot.slane %v7226, %v7761
      %v7763 = vsel %vm4398, %v7762, %v7758
      %v7764 = vlaneseq
      %v7765 = vshrl.u32 %v7764, 7
      %v7766 = vsub.s32 %v4400, %v7765
      %v7767 = vrot.slane %v7229, %v7766
      %v7768 = vsel %vm4405, %v7767, %v7763
      %v7769 = vlaneseq
      %v7770 = vshrl.u32 %v7769, 7
      %v7771 = vsub.s32 %v4297, %v7770
      %v7772 = vrot.slane %v7232, %v7771
      %v7773 = vlaneseq
      %v7774 = vshrl.u32 %v7773, 7
      %v7775 = vsub.s32 %v4302, %v7774
      %v7776 = vrot.slane %v7235, %v7775
      %v7777 = vsel %vm4307, %v7776, %v7772
      %v7778 = vlaneseq
      %v7779 = vshrl.u32 %v7778, 7
      %v7780 = vsub.s32 %v4309, %v7779
      %v7781 = vrot.slane %v7238, %v7780
      %v7782 = vsel %vm4314, %v7781, %v7777
      %v7783 = vlaneseq
      %v7784 = vshrl.u32 %v7783, 7
      %v7785 = vsub.s32 %v4316, %v7784
      %v7786 = vrot.slane %v7241, %v7785
      %v7787 = vsel %vm4321, %v7786, %v7782
      %v7788 = vlaneseq
      %v7789 = vshrl.u32 %v7788, 7
      %v7790 = vsub.s32 %v4323, %v7789
      %v7791 = vrot.slane %v7244, %v7790
      %v7792 = vsel %vm4328, %v7791, %v7787
      %v7793 = vlaneseq
      %v7794 = vshrl.u32 %v7793, 7
      %v7795 = vsub.s32 %v4330, %v7794
      %v7796 = vrot.slane %v7247, %v7795
      %v7797 = vsel %vm4335, %v7796, %v7792
      %v7798 = vlaneseq
      %v7799 = vshrl.u32 %v7798, 7
      %v7800 = vsub.s32 %v4337, %v7799
      %v7801 = vrot.slane %v7250, %v7800
      %v7802 = vsel %vm4342, %v7801, %v7797
      %v7803 = vlaneseq
      %v7804 = vshrl.u32 %v7803, 7
      %v7805 = vsub.s32 %v4344, %v7804
      %v7806 = vrot.slane %v7253, %v7805
      %v7807 = vsel %vm4349, %v7806, %v7802
      %v7808 = vlaneseq
      %v7809 = vshrl.u32 %v7808, 7
      %v7810 = vsub.s32 %v4351, %v7809
      %v7811 = vrot.slane %v7256, %v7810
      %v7812 = vsel %vm4356, %v7811, %v7807
      %v7813 = vlaneseq
      %v7814 = vshrl.u32 %v7813, 7
      %v7815 = vsub.s32 %v4358, %v7814
      %v7816 = vrot.slane %v7259, %v7815
      %v7817 = vsel %vm4363, %v7816, %v7812
      %v7818 = vlaneseq
      %v7819 = vshrl.u32 %v7818, 7
      %v7820 = vsub.s32 %v4365, %v7819
      %v7821 = vrot.slane %v7262, %v7820
      %v7822 = vsel %vm4370, %v7821, %v7817
      %v7823 = vlaneseq
      %v7824 = vshrl.u32 %v7823, 7
      %v7825 = vsub.s32 %v4372, %v7824
      %v7826 = vrot.slane %v7265, %v7825
      %v7827 = vsel %vm4377, %v7826, %v7822
      %v7828 = vlaneseq
      %v7829 = vshrl.u32 %v7828, 7
      %v7830 = vsub.s32 %v4379, %v7829
      %v7831 = vrot.slane %v7268, %v7830
      %v7832 = vsel %vm4384, %v7831, %v7827
      %v7833 = vlaneseq
      %v7834 = vshrl.u32 %v7833, 7
      %v7835 = vsub.s32 %v4386, %v7834
      %v7836 = vrot.slane %v7271, %v7835
      %v7837 = vsel %vm4391, %v7836, %v7832
      %v7838 = vlaneseq
      %v7839 = vshrl.u32 %v7838, 7
      %v7840 = vsub.s32 %v4393, %v7839
      %v7841 = vrot.slane %v7274, %v7840
      %v7842 = vsel %vm4398, %v7841, %v7837
      %v7843 = vlaneseq
      %v7844 = vshrl.u32 %v7843, 7
      %v7845 = vsub.s32 %v4400, %v7844
      %v7846 = vrot.slane %v7277, %v7845
      %v7847 = vsel %vm4405, %v7846, %v7842
      %v7848 = vlaneseq
      %v7849 = vshrl.u32 %v7848, 7
      %v7850 = vsub.s32 %v4297, %v7849
      %v7851 = vrot.slane %v7280, %v7850
      %v7852 = vlaneseq
      %v7853 = vshrl.u32 %v7852, 7
      %v7854 = vsub.s32 %v4302, %v7853
      %v7855 = vrot.slane %v7283, %v7854
      %v7856 = vsel %vm4307, %v7855, %v7851
      %v7857 = vlaneseq
      %v7858 = vshrl.u32 %v7857, 7
      %v7859 = vsub.s32 %v4309, %v7858
      %v7860 = vrot.slane %v7286, %v7859
      %v7861 = vsel %vm4314, %v7860, %v7856
      %v7862 = vlaneseq
      %v7863 = vshrl.u32 %v7862, 7
      %v7864 = vsub.s32 %v4316, %v7863
      %v7865 = vrot.slane %v7289, %v7864
      %v7866 = vsel %vm4321, %v7865, %v7861
      %v7867 = vlaneseq
      %v7868 = vshrl.u32 %v7867, 7
      %v7869 = vsub.s32 %v4323, %v7868
      %v7870 = vrot.slane %v7292, %v7869
      %v7871 = vsel %vm4328, %v7870, %v7866
      %v7872 = vlaneseq
      %v7873 = vshrl.u32 %v7872, 7
      %v7874 = vsub.s32 %v4330, %v7873
      %v7875 = vrot.slane %v7295, %v7874
      %v7876 = vsel %vm4335, %v7875, %v7871
      %v7877 = vlaneseq
      %v7878 = vshrl.u32 %v7877, 7
      %v7879 = vsub.s32 %v4337, %v7878
      %v7880 = vrot.slane %v7298, %v7879
      %v7881 = vsel %vm4342, %v7880, %v7876
      %v7882 = vlaneseq
      %v7883 = vshrl.u32 %v7882, 7
      %v7884 = vsub.s32 %v4344, %v7883
      %v7885 = vrot.slane %v7301, %v7884
      %v7886 = vsel %vm4349, %v7885, %v7881
      %v7887 = vlaneseq
      %v7888 = vshrl.u32 %v7887, 7
      %v7889 = vsub.s32 %v4351, %v7888
      %v7890 = vrot.slane %v7304, %v7889
      %v7891 = vsel %vm4356, %v7890, %v7886
      %v7892 = vlaneseq
      %v7893 = vshrl.u32 %v7892, 7
      %v7894 = vsub.s32 %v4358, %v7893
      %v7895 = vrot.slane %v7307, %v7894
      %v7896 = vsel %vm4363, %v7895, %v7891
      %v7897 = vlaneseq
      %v7898 = vshrl.u32 %v7897, 7
      %v7899 = vsub.s32 %v4365, %v7898
      %v7900 = vrot.slane %v7310, %v7899
      %v7901 = vsel %vm4370, %v7900, %v7896
      %v7902 = vlaneseq
      %v7903 = vshrl.u32 %v7902, 7
      %v7904 = vsub.s32 %v4372, %v7903
      %v7905 = vrot.slane %v7313, %v7904
      %v7906 = vsel %vm4377, %v7905, %v7901
      %v7907 = vlaneseq
      %v7908 = vshrl.u32 %v7907, 7
      %v7909 = vsub.s32 %v4379, %v7908
      %v7910 = vrot.slane %v7316, %v7909
      %v7911 = vsel %vm4384, %v7910, %v7906
      %v7912 = vlaneseq
      %v7913 = vshrl.u32 %v7912, 7
      %v7914 = vsub.s32 %v4386, %v7913
      %v7915 = vrot.slane %v7319, %v7914
      %v7916 = vsel %vm4391, %v7915, %v7911
      %v7917 = vlaneseq
      %v7918 = vshrl.u32 %v7917, 7
      %v7919 = vsub.s32 %v4393, %v7918
      %v7920 = vrot.slane %v7322, %v7919
      %v7921 = vsel %vm4398, %v7920, %v7916
      %v7922 = vlaneseq
      %v7923 = vshrl.u32 %v7922, 7
      %v7924 = vsub.s32 %v4400, %v7923
      %v7925 = vrot.slane %v7325, %v7924
      %v7926 = vsel %vm4405, %v7925, %v7921
      %v7927 = vlaneseq
      %v7928 = vshrl.u32 %v7927, 7
      %v7929 = vsub.s32 %v4297, %v7928
      %v7930 = vrot.slane %v7328, %v7929
      %v7931 = vlaneseq
      %v7932 = vshrl.u32 %v7931, 7
      %v7933 = vsub.s32 %v4302, %v7932
      %v7934 = vrot.slane %v7331, %v7933
      %v7935 = vsel %vm4307, %v7934, %v7930
      %v7936 = vlaneseq
      %v7937 = vshrl.u32 %v7936, 7
      %v7938 = vsub.s32 %v4309, %v7937
      %v7939 = vrot.slane %v7334, %v7938
      %v7940 = vsel %vm4314, %v7939, %v7935
      %v7941 = vlaneseq
      %v7942 = vshrl.u32 %v7941, 7
      %v7943 = vsub.s32 %v4316, %v7942
      %v7944 = vrot.slane %v7337, %v7943
      %v7945 = vsel %vm4321, %v7944, %v7940
      %v7946 = vlaneseq
      %v7947 = vshrl.u32 %v7946, 7
      %v7948 = vsub.s32 %v4323, %v7947
      %v7949 = vrot.slane %v7340, %v7948
      %v7950 = vsel %vm4328, %v7949, %v7945
      %v7951 = vlaneseq
      %v7952 = vshrl.u32 %v7951, 7
      %v7953 = vsub.s32 %v4330, %v7952
      %v7954 = vrot.slane %v7343, %v7953
      %v7955 = vsel %vm4335, %v7954, %v7950
      %v7956 = vlaneseq
      %v7957 = vshrl.u32 %v7956, 7
      %v7958 = vsub.s32 %v4337, %v7957
      %v7959 = vrot.slane %v7346, %v7958
      %v7960 = vsel %vm4342, %v7959, %v7955
      %v7961 = vlaneseq
      %v7962 = vshrl.u32 %v7961, 7
      %v7963 = vsub.s32 %v4344, %v7962
      %v7964 = vrot.slane %v7349, %v7963
      %v7965 = vsel %vm4349, %v7964, %v7960
      %v7966 = vlaneseq
      %v7967 = vshrl.u32 %v7966, 7
      %v7968 = vsub.s32 %v4351, %v7967
      %v7969 = vrot.slane %v7352, %v7968
      %v7970 = vsel %vm4356, %v7969, %v7965
      %v7971 = vlaneseq
      %v7972 = vshrl.u32 %v7971, 7
      %v7973 = vsub.s32 %v4358, %v7972
      %v7974 = vrot.slane %v7355, %v7973
      %v7975 = vsel %vm4363, %v7974, %v7970
      %v7976 = vlaneseq
      %v7977 = vshrl.u32 %v7976, 7
      %v7978 = vsub.s32 %v4365, %v7977
      %v7979 = vrot.slane %v7358, %v7978
      %v7980 = vsel %vm4370, %v7979, %v7975
      %v7981 = vlaneseq
      %v7982 = vshrl.u32 %v7981, 7
      %v7983 = vsub.s32 %v4372, %v7982
      %v7984 = vrot.slane %v7361, %v7983
      %v7985 = vsel %vm4377, %v7984, %v7980
      %v7986 = vlaneseq
      %v7987 = vshrl.u32 %v7986, 7
      %v7988 = vsub.s32 %v4379, %v7987
      %v7989 = vrot.slane %v7364, %v7988
      %v7990 = vsel %vm4384, %v7989, %v7985
      %v7991 = vlaneseq
      %v7992 = vshrl.u32 %v7991, 7
      %v7993 = vsub.s32 %v4386, %v7992
      %v7994 = vrot.slane %v7367, %v7993
      %v7995 = vsel %vm4391, %v7994, %v7990
      %v7996 = vlaneseq
      %v7997 = vshrl.u32 %v7996, 7
      %v7998 = vsub.s32 %v4393, %v7997
      %v7999 = vrot.slane %v7370, %v7998
      %v8000 = vsel %vm4398, %v7999, %v7995
      %v8001 = vlaneseq
      %v8002 = vshrl.u32 %v8001, 7
      %v8003 = vsub.s32 %v4400, %v8002
      %v8004 = vrot.slane %v7373, %v8003
      %v8005 = vsel %vm4405, %v8004, %v8000
      %v8006 = vsel %vm4960, %v7531, %v7452
      %v8007 = vsel %vm4962, %v7610, %v8006
      %v8008 = vsel %vm4964, %v7689, %v8007
      %v8009 = vsel %vm4966, %v7768, %v8008
      %v8010 = vsel %vm4968, %v7847, %v8009
      %v8011 = vsel %vm4970, %v7926, %v8010
      %v8012 = vsel %vm4972, %v8005, %v8011
      %s8014 = scalar_lea.vmem [#allocation18], %s1905
      %8015 = vst [vmem:[%s8014] sm:$0xff] %v8012
      %v8016 = vld [vmem:[#allocation8] sm:$0xff]
      %v8017 = vld [vmem:[#allocation8 + $0x8] sm:$0xff]
      %v8018 = vld [vmem:[#allocation8 + $0x10] sm:$0xff]
      %v8019 = vld [vmem:[#allocation8 + $0x18] sm:$0xff]
      %v8020 = vld [vmem:[#allocation8 + $0x20] sm:$0xff]
      %v8021 = vld [vmem:[#allocation8 + $0x28] sm:$0xff]
      %v8022 = vld [vmem:[#allocation8 + $0x30] sm:$0xff]
      %v8023 = vld [vmem:[#allocation8 + $0x38] sm:$0xff]
      %v8024 = vld [vmem:[#allocation8 + $0x40] sm:$0xff]
      %v8025 = vld [vmem:[#allocation8 + $0x48] sm:$0xff]
      %v8026 = vld [vmem:[#allocation8 + $0x50] sm:$0xff]
      %v8027 = vld [vmem:[#allocation8 + $0x58] sm:$0xff]
      %v8028 = vld [vmem:[#allocation8 + $0x60] sm:$0xff]
      %v8029 = vld [vmem:[#allocation8 + $0x68] sm:$0xff]
      %v8030 = vld [vmem:[#allocation8 + $0x70] sm:$0xff]
      %v8031 = vld [vmem:[#allocation8 + $0x78] sm:$0xff]
      %v8032 = vld [vmem:[#allocation8 + $0x80] sm:$0xff]
      %v8033 = vld [vmem:[#allocation8 + $0x88] sm:$0xff]
      %v8034 = vld [vmem:[#allocation8 + $0x90] sm:$0xff]
      %v8035 = vld [vmem:[#allocation8 + $0x98] sm:$0xff]
      %v8036 = vld [vmem:[#allocation8 + $0xa0] sm:$0xff]
      %v8037 = vld [vmem:[#allocation8 + $0xa8] sm:$0xff]
      %v8038 = vld [vmem:[#allocation8 + $0xb0] sm:$0xff]
      %v8039 = vld [vmem:[#allocation8 + $0xb8] sm:$0xff]
      %v8040 = vld [vmem:[#allocation8 + $0xc0] sm:$0xff]
      %v8041 = vld [vmem:[#allocation8 + $0xc8] sm:$0xff]
      %v8042 = vld [vmem:[#allocation8 + $0xd0] sm:$0xff]
      %v8043 = vld [vmem:[#allocation8 + $0xd8] sm:$0xff]
      %v8044 = vld [vmem:[#allocation8 + $0xe0] sm:$0xff]
      %v8045 = vld [vmem:[#allocation8 + $0xe8] sm:$0xff]
      %v8046 = vld [vmem:[#allocation8 + $0xf0] sm:$0xff]
      %v8047 = vld [vmem:[#allocation8 + $0xf8] sm:$0xff]
      %v8048 = vld [vmem:[#allocation8 + $0x100] sm:$0xff]
      %v8049 = vld [vmem:[#allocation8 + $0x108] sm:$0xff]
      %v8050 = vld [vmem:[#allocation8 + $0x110] sm:$0xff]
      %v8051 = vld [vmem:[#allocation8 + $0x118] sm:$0xff]
      %v8052 = vld [vmem:[#allocation8 + $0x120] sm:$0xff]
      %v8053 = vld [vmem:[#allocation8 + $0x128] sm:$0xff]
      %v8054 = vld [vmem:[#allocation8 + $0x130] sm:$0xff]
      %v8055 = vld [vmem:[#allocation8 + $0x138] sm:$0xff]
      %v8056 = vld [vmem:[#allocation8 + $0x140] sm:$0xff]
      %v8057 = vld [vmem:[#allocation8 + $0x148] sm:$0xff]
      %v8058 = vld [vmem:[#allocation8 + $0x150] sm:$0xff]
      %v8059 = vld [vmem:[#allocation8 + $0x158] sm:$0xff]
      %v8060 = vld [vmem:[#allocation8 + $0x160] sm:$0xff]
      %v8061 = vld [vmem:[#allocation8 + $0x168] sm:$0xff]
      %v8062 = vld [vmem:[#allocation8 + $0x170] sm:$0xff]
      %v8063 = vld [vmem:[#allocation8 + $0x178] sm:$0xff]
      %v8064 = vld [vmem:[#allocation8 + $0x180] sm:$0xff]
      %v8065 = vld [vmem:[#allocation8 + $0x188] sm:$0xff]
      %v8066 = vld [vmem:[#allocation8 + $0x190] sm:$0xff]
      %v8067 = vld [vmem:[#allocation8 + $0x198] sm:$0xff]
      %v8068 = vld [vmem:[#allocation8 + $0x1a0] sm:$0xff]
      %v8069 = vld [vmem:[#allocation8 + $0x1a8] sm:$0xff]
      %v8070 = vld [vmem:[#allocation8 + $0x1b0] sm:$0xff]
      %v8071 = vld [vmem:[#allocation8 + $0x1b8] sm:$0xff]
      %v8072 = vld [vmem:[#allocation8 + $0x1c0] sm:$0xff]
      %v8073 = vld [vmem:[#allocation8 + $0x1c8] sm:$0xff]
      %v8074 = vld [vmem:[#allocation8 + $0x1d0] sm:$0xff]
      %v8075 = vld [vmem:[#allocation8 + $0x1d8] sm:$0xff]
      %v8076 = vld [vmem:[#allocation8 + $0x1e0] sm:$0xff]
      %v8077 = vld [vmem:[#allocation8 + $0x1e8] sm:$0xff]
      %v8078 = vld [vmem:[#allocation8 + $0x1f0] sm:$0xff]
      %v8079 = vld [vmem:[#allocation8 + $0x1f8] sm:$0xff]
      %v8080 = vld [vmem:[#allocation8 + $0x200] sm:$0xff]
      %v8081 = vld [vmem:[#allocation8 + $0x208] sm:$0xff]
      %v8082 = vld [vmem:[#allocation8 + $0x210] sm:$0xff]
      %v8083 = vld [vmem:[#allocation8 + $0x218] sm:$0xff]
      %v8084 = vld [vmem:[#allocation8 + $0x220] sm:$0xff]
      %v8085 = vld [vmem:[#allocation8 + $0x228] sm:$0xff]
      %v8086 = vld [vmem:[#allocation8 + $0x230] sm:$0xff]
      %v8087 = vld [vmem:[#allocation8 + $0x238] sm:$0xff]
      %v8088 = vld [vmem:[#allocation8 + $0x240] sm:$0xff]
      %v8089 = vld [vmem:[#allocation8 + $0x248] sm:$0xff]
      %v8090 = vld [vmem:[#allocation8 + $0x250] sm:$0xff]
      %v8091 = vld [vmem:[#allocation8 + $0x258] sm:$0xff]
      %v8092 = vld [vmem:[#allocation8 + $0x260] sm:$0xff]
      %v8093 = vld [vmem:[#allocation8 + $0x268] sm:$0xff]
      %v8094 = vld [vmem:[#allocation8 + $0x270] sm:$0xff]
      %v8095 = vld [vmem:[#allocation8 + $0x278] sm:$0xff]
      %v8096 = vld [vmem:[#allocation8 + $0x280] sm:$0xff]
      %v8097 = vld [vmem:[#allocation8 + $0x288] sm:$0xff]
      %v8098 = vld [vmem:[#allocation8 + $0x290] sm:$0xff]
      %v8099 = vld [vmem:[#allocation8 + $0x298] sm:$0xff]
      %v8100 = vld [vmem:[#allocation8 + $0x2a0] sm:$0xff]
      %v8101 = vld [vmem:[#allocation8 + $0x2a8] sm:$0xff]
      %v8102 = vld [vmem:[#allocation8 + $0x2b0] sm:$0xff]
      %v8103 = vld [vmem:[#allocation8 + $0x2b8] sm:$0xff]
      %v8104 = vld [vmem:[#allocation8 + $0x2c0] sm:$0xff]
      %v8105 = vld [vmem:[#allocation8 + $0x2c8] sm:$0xff]
      %v8106 = vld [vmem:[#allocation8 + $0x2d0] sm:$0xff]
      %v8107 = vld [vmem:[#allocation8 + $0x2d8] sm:$0xff]
      %v8108 = vld [vmem:[#allocation8 + $0x2e0] sm:$0xff]
      %v8109 = vld [vmem:[#allocation8 + $0x2e8] sm:$0xff]
      %v8110 = vld [vmem:[#allocation8 + $0x2f0] sm:$0xff]
      %v8111 = vld [vmem:[#allocation8 + $0x2f8] sm:$0xff]
      %v8112 = vld [vmem:[#allocation8 + $0x300] sm:$0xff]
      %v8113 = vld [vmem:[#allocation8 + $0x308] sm:$0xff]
      %v8114 = vld [vmem:[#allocation8 + $0x310] sm:$0xff]
      %v8115 = vld [vmem:[#allocation8 + $0x318] sm:$0xff]
      %v8116 = vld [vmem:[#allocation8 + $0x320] sm:$0xff]
      %v8117 = vld [vmem:[#allocation8 + $0x328] sm:$0xff]
      %v8118 = vld [vmem:[#allocation8 + $0x330] sm:$0xff]
      %v8119 = vld [vmem:[#allocation8 + $0x338] sm:$0xff]
      %v8120 = vld [vmem:[#allocation8 + $0x340] sm:$0xff]
      %v8121 = vld [vmem:[#allocation8 + $0x348] sm:$0xff]
      %v8122 = vld [vmem:[#allocation8 + $0x350] sm:$0xff]
      %v8123 = vld [vmem:[#allocation8 + $0x358] sm:$0xff]
      %v8124 = vld [vmem:[#allocation8 + $0x360] sm:$0xff]
      %v8125 = vld [vmem:[#allocation8 + $0x368] sm:$0xff]
      %v8126 = vld [vmem:[#allocation8 + $0x370] sm:$0xff]
      %v8127 = vld [vmem:[#allocation8 + $0x378] sm:$0xff]
      %v8128 = vld [vmem:[#allocation8 + $0x380] sm:$0xff]
      %v8129 = vld [vmem:[#allocation8 + $0x388] sm:$0xff]
      %v8130 = vld [vmem:[#allocation8 + $0x390] sm:$0xff]
      %v8131 = vld [vmem:[#allocation8 + $0x398] sm:$0xff]
      %v8132 = vld [vmem:[#allocation8 + $0x3a0] sm:$0xff]
      %v8133 = vld [vmem:[#allocation8 + $0x3a8] sm:$0xff]
      %v8134 = vld [vmem:[#allocation8 + $0x3b0] sm:$0xff]
      %v8135 = vld [vmem:[#allocation8 + $0x3b8] sm:$0xff]
      %v8136 = vld [vmem:[#allocation8 + $0x3c0] sm:$0xff]
      %v8137 = vld [vmem:[#allocation8 + $0x3c8] sm:$0xff]
      %v8138 = vld [vmem:[#allocation8 + $0x3d0] sm:$0xff]
      %v8139 = vld [vmem:[#allocation8 + $0x3d8] sm:$0xff]
      %v8140 = vld [vmem:[#allocation8 + $0x3e0] sm:$0xff]
      %v8141 = vld [vmem:[#allocation8 + $0x3e8] sm:$0xff]
      %v8142 = vld [vmem:[#allocation8 + $0x3f0] sm:$0xff]
      %v8143 = vld [vmem:[#allocation8 + $0x3f8] sm:$0xff]
      %v8272 = vmul.f32 %v6992, %v8016
      %v8273 = vmul.f32 %v6995, %v8017
      %v8274 = vmul.f32 %v6998, %v8018
      %v8275 = vmul.f32 %v7001, %v8019
      %v8276 = vmul.f32 %v7004, %v8020
      %v8277 = vmul.f32 %v7007, %v8021
      %v8278 = vmul.f32 %v7010, %v8022
      %v8279 = vmul.f32 %v7013, %v8023
      %v8280 = vmul.f32 %v7016, %v8024
      %v8281 = vmul.f32 %v7019, %v8025
      %v8282 = vmul.f32 %v7022, %v8026
      %v8283 = vmul.f32 %v7025, %v8027
      %v8284 = vmul.f32 %v7028, %v8028
      %v8285 = vmul.f32 %v7031, %v8029
      %v8286 = vmul.f32 %v7034, %v8030
      %v8287 = vmul.f32 %v7037, %v8031
      %v8288 = vmul.f32 %v7040, %v8032
      %v8289 = vmul.f32 %v7043, %v8033
      %v8290 = vmul.f32 %v7046, %v8034
      %v8291 = vmul.f32 %v7049, %v8035
      %v8292 = vmul.f32 %v7052, %v8036
      %v8293 = vmul.f32 %v7055, %v8037
      %v8294 = vmul.f32 %v7058, %v8038
      %v8295 = vmul.f32 %v7061, %v8039
      %v8296 = vmul.f32 %v7064, %v8040
      %v8297 = vmul.f32 %v7067, %v8041
      %v8298 = vmul.f32 %v7070, %v8042
      %v8299 = vmul.f32 %v7073, %v8043
      %v8300 = vmul.f32 %v7076, %v8044
      %v8301 = vmul.f32 %v7079, %v8045
      %v8302 = vmul.f32 %v7082, %v8046
      %v8303 = vmul.f32 %v7085, %v8047
      %v8304 = vmul.f32 %v7088, %v8048
      %v8305 = vmul.f32 %v7091, %v8049
      %v8306 = vmul.f32 %v7094, %v8050
      %v8307 = vmul.f32 %v7097, %v8051
      %v8308 = vmul.f32 %v7100, %v8052
      %v8309 = vmul.f32 %v7103, %v8053
      %v8310 = vmul.f32 %v7106, %v8054
      %v8311 = vmul.f32 %v7109, %v8055
      %v8312 = vmul.f32 %v7112, %v8056
      %v8313 = vmul.f32 %v7115, %v8057
      %v8314 = vmul.f32 %v7118, %v8058
      %v8315 = vmul.f32 %v7121, %v8059
      %v8316 = vmul.f32 %v7124, %v8060
      %v8317 = vmul.f32 %v7127, %v8061
      %v8318 = vmul.f32 %v7130, %v8062
      %v8319 = vmul.f32 %v7133, %v8063
      %v8320 = vmul.f32 %v7136, %v8064
      %v8321 = vmul.f32 %v7139, %v8065
      %v8322 = vmul.f32 %v7142, %v8066
      %v8323 = vmul.f32 %v7145, %v8067
      %v8324 = vmul.f32 %v7148, %v8068
      %v8325 = vmul.f32 %v7151, %v8069
      %v8326 = vmul.f32 %v7154, %v8070
      %v8327 = vmul.f32 %v7157, %v8071
      %v8328 = vmul.f32 %v7160, %v8072
      %v8329 = vmul.f32 %v7163, %v8073
      %v8330 = vmul.f32 %v7166, %v8074
      %v8331 = vmul.f32 %v7169, %v8075
      %v8332 = vmul.f32 %v7172, %v8076
      %v8333 = vmul.f32 %v7175, %v8077
      %v8334 = vmul.f32 %v7178, %v8078
      %v8335 = vmul.f32 %v7181, %v8079
      %v8336 = vmul.f32 %v7184, %v8080
      %v8337 = vmul.f32 %v7187, %v8081
      %v8338 = vmul.f32 %v7190, %v8082
      %v8339 = vmul.f32 %v7193, %v8083
      %v8340 = vmul.f32 %v7196, %v8084
      %v8341 = vmul.f32 %v7199, %v8085
      %v8342 = vmul.f32 %v7202, %v8086
      %v8343 = vmul.f32 %v7205, %v8087
      %v8344 = vmul.f32 %v7208, %v8088
      %v8345 = vmul.f32 %v7211, %v8089
      %v8346 = vmul.f32 %v7214, %v8090
      %v8347 = vmul.f32 %v7217, %v8091
      %v8348 = vmul.f32 %v7220, %v8092
      %v8349 = vmul.f32 %v7223, %v8093
      %v8350 = vmul.f32 %v7226, %v8094
      %v8351 = vmul.f32 %v7229, %v8095
      %v8352 = vmul.f32 %v7232, %v8096
      %v8353 = vmul.f32 %v7235, %v8097
      %v8354 = vmul.f32 %v7238, %v8098
      %v8355 = vmul.f32 %v7241, %v8099
      %v8356 = vmul.f32 %v7244, %v8100
      %v8357 = vmul.f32 %v7247, %v8101
      %v8358 = vmul.f32 %v7250, %v8102
      %v8359 = vmul.f32 %v7253, %v8103
      %v8360 = vmul.f32 %v7256, %v8104
      %v8361 = vmul.f32 %v7259, %v8105
      %v8362 = vmul.f32 %v7262, %v8106
      %v8363 = vmul.f32 %v7265, %v8107
      %v8364 = vmul.f32 %v7268, %v8108
      %v8365 = vmul.f32 %v7271, %v8109
      %v8366 = vmul.f32 %v7274, %v8110
      %v8367 = vmul.f32 %v7277, %v8111
      %v8368 = vmul.f32 %v7280, %v8112
      %v8369 = vmul.f32 %v7283, %v8113
      %v8370 = vmul.f32 %v7286, %v8114
      %v8371 = vmul.f32 %v7289, %v8115
      %v8372 = vmul.f32 %v7292, %v8116
      %v8373 = vmul.f32 %v7295, %v8117
      %v8374 = vmul.f32 %v7298, %v8118
      %v8375 = vmul.f32 %v7301, %v8119
      %v8376 = vmul.f32 %v7304, %v8120
      %v8377 = vmul.f32 %v7307, %v8121
      %v8378 = vmul.f32 %v7310, %v8122
      %v8379 = vmul.f32 %v7313, %v8123
      %v8380 = vmul.f32 %v7316, %v8124
      %v8381 = vmul.f32 %v7319, %v8125
      %v8382 = vmul.f32 %v7322, %v8126
      %v8383 = vmul.f32 %v7325, %v8127
      %v8384 = vmul.f32 %v7328, %v8128
      %v8385 = vmul.f32 %v7331, %v8129
      %v8386 = vmul.f32 %v7334, %v8130
      %v8387 = vmul.f32 %v7337, %v8131
      %v8388 = vmul.f32 %v7340, %v8132
      %v8389 = vmul.f32 %v7343, %v8133
      %v8390 = vmul.f32 %v7346, %v8134
      %v8391 = vmul.f32 %v7349, %v8135
      %v8392 = vmul.f32 %v7352, %v8136
      %v8393 = vmul.f32 %v7355, %v8137
      %v8394 = vmul.f32 %v7358, %v8138
      %v8395 = vmul.f32 %v7361, %v8139
      %v8396 = vmul.f32 %v7364, %v8140
      %v8397 = vmul.f32 %v7367, %v8141
      %v8398 = vmul.f32 %v7370, %v8142
      %v8399 = vmul.f32 %v7373, %v8143
      %v8400 = vadd.f32 %v8272, %v8273
      %v8401 = vadd.f32 %v8400, %v8274
      %v8402 = vadd.f32 %v8401, %v8275
      %v8403 = vadd.f32 %v8402, %v8276
      %v8404 = vadd.f32 %v8403, %v8277
      %v8405 = vadd.f32 %v8404, %v8278
      %v8406 = vadd.f32 %v8405, %v8279
      %v8407 = vadd.f32 %v8406, %v8280
      %v8408 = vadd.f32 %v8407, %v8281
      %v8409 = vadd.f32 %v8408, %v8282
      %v8410 = vadd.f32 %v8409, %v8283
      %v8411 = vadd.f32 %v8410, %v8284
      %v8412 = vadd.f32 %v8411, %v8285
      %v8413 = vadd.f32 %v8412, %v8286
      %v8414 = vadd.f32 %v8413, %v8287
      %v8415 = vrot.slane %v8414, 4
      %v8416 = vadd.f32 %v8414, %v8415
      %v8417 = vrot.slane %v8416, 2
      %v8418 = vadd.f32 %v8416, %v8417
      %v8419 = vrot.slane %v8418, 1
      %v8420 = vadd.f32 %v8418, %v8419
      %v8421 = vadd.f32 %v8288, %v8289
      %v8422 = vadd.f32 %v8421, %v8290
      %v8423 = vadd.f32 %v8422, %v8291
      %v8424 = vadd.f32 %v8423, %v8292
      %v8425 = vadd.f32 %v8424, %v8293
      %v8426 = vadd.f32 %v8425, %v8294
      %v8427 = vadd.f32 %v8426, %v8295
      %v8428 = vadd.f32 %v8427, %v8296
      %v8429 = vadd.f32 %v8428, %v8297
      %v8430 = vadd.f32 %v8429, %v8298
      %v8431 = vadd.f32 %v8430, %v8299
      %v8432 = vadd.f32 %v8431, %v8300
      %v8433 = vadd.f32 %v8432, %v8301
      %v8434 = vadd.f32 %v8433, %v8302
      %v8435 = vadd.f32 %v8434, %v8303
      %v8436 = vrot.slane %v8435, 4
      %v8437 = vadd.f32 %v8435, %v8436
      %v8438 = vrot.slane %v8437, 2
      %v8439 = vadd.f32 %v8437, %v8438
      %v8440 = vrot.slane %v8439, 1
      %v8441 = vadd.f32 %v8439, %v8440
      %v8442 = vadd.f32 %v8304, %v8305
      %v8443 = vadd.f32 %v8442, %v8306
      %v8444 = vadd.f32 %v8443, %v8307
      %v8445 = vadd.f32 %v8444, %v8308
      %v8446 = vadd.f32 %v8445, %v8309
      %v8447 = vadd.f32 %v8446, %v8310
      %v8448 = vadd.f32 %v8447, %v8311
      %v8449 = vadd.f32 %v8448, %v8312
      %v8450 = vadd.f32 %v8449, %v8313
      %v8451 = vadd.f32 %v8450, %v8314
      %v8452 = vadd.f32 %v8451, %v8315
      %v8453 = vadd.f32 %v8452, %v8316
      %v8454 = vadd.f32 %v8453, %v8317
      %v8455 = vadd.f32 %v8454, %v8318
      %v8456 = vadd.f32 %v8455, %v8319
      %v8457 = vrot.slane %v8456, 4
      %v8458 = vadd.f32 %v8456, %v8457
      %v8459 = vrot.slane %v8458, 2
      %v8460 = vadd.f32 %v8458, %v8459
      %v8461 = vrot.slane %v8460, 1
      %v8462 = vadd.f32 %v8460, %v8461
      %v8463 = vadd.f32 %v8320, %v8321
      %v8464 = vadd.f32 %v8463, %v8322
      %v8465 = vadd.f32 %v8464, %v8323
      %v8466 = vadd.f32 %v8465, %v8324
      %v8467 = vadd.f32 %v8466, %v8325
      %v8468 = vadd.f32 %v8467, %v8326
      %v8469 = vadd.f32 %v8468, %v8327
      %v8470 = vadd.f32 %v8469, %v8328
      %v8471 = vadd.f32 %v8470, %v8329
      %v8472 = vadd.f32 %v8471, %v8330
      %v8473 = vadd.f32 %v8472, %v8331
      %v8474 = vadd.f32 %v8473, %v8332
      %v8475 = vadd.f32 %v8474, %v8333
      %v8476 = vadd.f32 %v8475, %v8334
      %v8477 = vadd.f32 %v8476, %v8335
      %v8478 = vrot.slane %v8477, 4
      %v8479 = vadd.f32 %v8477, %v8478
      %v8480 = vrot.slane %v8479, 2
      %v8481 = vadd.f32 %v8479, %v8480
      %v8482 = vrot.slane %v8481, 1
      %v8483 = vadd.f32 %v8481, %v8482
      %v8484 = vadd.f32 %v8336, %v8337
      %v8485 = vadd.f32 %v8484, %v8338
      %v8486 = vadd.f32 %v8485, %v8339
      %v8487 = vadd.f32 %v8486, %v8340
      %v8488 = vadd.f32 %v8487, %v8341
      %v8489 = vadd.f32 %v8488, %v8342
      %v8490 = vadd.f32 %v8489, %v8343
      %v8491 = vadd.f32 %v8490, %v8344
      %v8492 = vadd.f32 %v8491, %v8345
      %v8493 = vadd.f32 %v8492, %v8346
      %v8494 = vadd.f32 %v8493, %v8347
      %v8495 = vadd.f32 %v8494, %v8348
      %v8496 = vadd.f32 %v8495, %v8349
      %v8497 = vadd.f32 %v8496, %v8350
      %v8498 = vadd.f32 %v8497, %v8351
      %v8499 = vrot.slane %v8498, 4
      %v8500 = vadd.f32 %v8498, %v8499
      %v8501 = vrot.slane %v8500, 2
      %v8502 = vadd.f32 %v8500, %v8501
      %v8503 = vrot.slane %v8502, 1
      %v8504 = vadd.f32 %v8502, %v8503
      %v8505 = vadd.f32 %v8352, %v8353
      %v8506 = vadd.f32 %v8505, %v8354
      %v8507 = vadd.f32 %v8506, %v8355
      %v8508 = vadd.f32 %v8507, %v8356
      %v8509 = vadd.f32 %v8508, %v8357
      %v8510 = vadd.f32 %v8509, %v8358
      %v8511 = vadd.f32 %v8510, %v8359
      %v8512 = vadd.f32 %v8511, %v8360
      %v8513 = vadd.f32 %v8512, %v8361
      %v8514 = vadd.f32 %v8513, %v8362
      %v8515 = vadd.f32 %v8514, %v8363
      %v8516 = vadd.f32 %v8515, %v8364
      %v8517 = vadd.f32 %v8516, %v8365
      %v8518 = vadd.f32 %v8517, %v8366
      %v8519 = vadd.f32 %v8518, %v8367
      %v8520 = vrot.slane %v8519, 4
      %v8521 = vadd.f32 %v8519, %v8520
      %v8522 = vrot.slane %v8521, 2
      %v8523 = vadd.f32 %v8521, %v8522
      %v8524 = vrot.slane %v8523, 1
      %v8525 = vadd.f32 %v8523, %v8524
      %v8526 = vadd.f32 %v8368, %v8369
      %v8527 = vadd.f32 %v8526, %v8370
      %v8528 = vadd.f32 %v8527, %v8371
      %v8529 = vadd.f32 %v8528, %v8372
      %v8530 = vadd.f32 %v8529, %v8373
      %v8531 = vadd.f32 %v8530, %v8374
      %v8532 = vadd.f32 %v8531, %v8375
      %v8533 = vadd.f32 %v8532, %v8376
      %v8534 = vadd.f32 %v8533, %v8377
      %v8535 = vadd.f32 %v8534, %v8378
      %v8536 = vadd.f32 %v8535, %v8379
      %v8537 = vadd.f32 %v8536, %v8380
      %v8538 = vadd.f32 %v8537, %v8381
      %v8539 = vadd.f32 %v8538, %v8382
      %v8540 = vadd.f32 %v8539, %v8383
      %v8541 = vrot.slane %v8540, 4
      %v8542 = vadd.f32 %v8540, %v8541
      %v8543 = vrot.slane %v8542, 2
      %v8544 = vadd.f32 %v8542, %v8543
      %v8545 = vrot.slane %v8544, 1
      %v8546 = vadd.f32 %v8544, %v8545
      %v8547 = vadd.f32 %v8384, %v8385
      %v8548 = vadd.f32 %v8547, %v8386
      %v8549 = vadd.f32 %v8548, %v8387
      %v8550 = vadd.f32 %v8549, %v8388
      %v8551 = vadd.f32 %v8550, %v8389
      %v8552 = vadd.f32 %v8551, %v8390
      %v8553 = vadd.f32 %v8552, %v8391
      %v8554 = vadd.f32 %v8553, %v8392
      %v8555 = vadd.f32 %v8554, %v8393
      %v8556 = vadd.f32 %v8555, %v8394
      %v8557 = vadd.f32 %v8556, %v8395
      %v8558 = vadd.f32 %v8557, %v8396
      %v8559 = vadd.f32 %v8558, %v8397
      %v8560 = vadd.f32 %v8559, %v8398
      %v8561 = vadd.f32 %v8560, %v8399
      %v8562 = vrot.slane %v8561, 4
      %v8563 = vadd.f32 %v8561, %v8562
      %v8564 = vrot.slane %v8563, 2
      %v8565 = vadd.f32 %v8563, %v8564
      %v8566 = vrot.slane %v8565, 1
      %v8567 = vadd.f32 %v8565, %v8566
      %s8568 = scalar_lea.vmem [#allocation5], %s1905
      %v8569 = vld [vmem:[%s8568] sm:$0xff]
      %v8578 = vsel %vm4960, %v8441, %v8420
      %v8579 = vsel %vm4962, %v8462, %v8578
      %v8580 = vsel %vm4964, %v8483, %v8579
      %v8581 = vsel %vm4966, %v8504, %v8580
      %v8582 = vsel %vm4968, %v8525, %v8581
      %v8583 = vsel %vm4970, %v8546, %v8582
      %v8584 = vsel %vm4972, %v8567, %v8583
      %v8586 = vld [vmem:[#allocation14] sm:$0xff]
      %v8587 = vld [vmem:[#allocation14 + $0x8] sm:$0xff]
      %v8588 = vld [vmem:[#allocation14 + $0x10] sm:$0xff]
      %v8589 = vld [vmem:[#allocation14 + $0x18] sm:$0xff]
      %v8590 = vld [vmem:[#allocation14 + $0x20] sm:$0xff]
      %v8591 = vld [vmem:[#allocation14 + $0x28] sm:$0xff]
      %v8592 = vld [vmem:[#allocation14 + $0x30] sm:$0xff]
      %v8593 = vld [vmem:[#allocation14 + $0x38] sm:$0xff]
      %v8594 = vld [vmem:[#allocation14 + $0x40] sm:$0xff]
      %v8595 = vld [vmem:[#allocation14 + $0x48] sm:$0xff]
      %v8596 = vld [vmem:[#allocation14 + $0x50] sm:$0xff]
      %v8597 = vld [vmem:[#allocation14 + $0x58] sm:$0xff]
      %v8598 = vld [vmem:[#allocation14 + $0x60] sm:$0xff]
      %v8599 = vld [vmem:[#allocation14 + $0x68] sm:$0xff]
      %v8600 = vld [vmem:[#allocation14 + $0x70] sm:$0xff]
      %v8601 = vld [vmem:[#allocation14 + $0x78] sm:$0xff]
      %v8602 = vld [vmem:[#allocation14 + $0x80] sm:$0xff]
      %v8603 = vld [vmem:[#allocation14 + $0x88] sm:$0xff]
      %v8604 = vld [vmem:[#allocation14 + $0x90] sm:$0xff]
      %v8605 = vld [vmem:[#allocation14 + $0x98] sm:$0xff]
      %v8606 = vld [vmem:[#allocation14 + $0xa0] sm:$0xff]
      %v8607 = vld [vmem:[#allocation14 + $0xa8] sm:$0xff]
      %v8608 = vld [vmem:[#allocation14 + $0xb0] sm:$0xff]
      %v8609 = vld [vmem:[#allocation14 + $0xb8] sm:$0xff]
      %v8610 = vld [vmem:[#allocation14 + $0xc0] sm:$0xff]
      %v8611 = vld [vmem:[#allocation14 + $0xc8] sm:$0xff]
      %v8612 = vld [vmem:[#allocation14 + $0xd0] sm:$0xff]
      %v8613 = vld [vmem:[#allocation14 + $0xd8] sm:$0xff]
      %v8614 = vld [vmem:[#allocation14 + $0xe0] sm:$0xff]
      %v8615 = vld [vmem:[#allocation14 + $0xe8] sm:$0xff]
      %v8616 = vld [vmem:[#allocation14 + $0xf0] sm:$0xff]
      %v8617 = vld [vmem:[#allocation14 + $0xf8] sm:$0xff]
      %v8618 = vld [vmem:[#allocation14 + $0x100] sm:$0xff]
      %v8619 = vld [vmem:[#allocation14 + $0x108] sm:$0xff]
      %v8620 = vld [vmem:[#allocation14 + $0x110] sm:$0xff]
      %v8621 = vld [vmem:[#allocation14 + $0x118] sm:$0xff]
      %v8622 = vld [vmem:[#allocation14 + $0x120] sm:$0xff]
      %v8623 = vld [vmem:[#allocation14 + $0x128] sm:$0xff]
      %v8624 = vld [vmem:[#allocation14 + $0x130] sm:$0xff]
      %v8625 = vld [vmem:[#allocation14 + $0x138] sm:$0xff]
      %v8626 = vld [vmem:[#allocation14 + $0x140] sm:$0xff]
      %v8627 = vld [vmem:[#allocation14 + $0x148] sm:$0xff]
      %v8628 = vld [vmem:[#allocation14 + $0x150] sm:$0xff]
      %v8629 = vld [vmem:[#allocation14 + $0x158] sm:$0xff]
      %v8630 = vld [vmem:[#allocation14 + $0x160] sm:$0xff]
      %v8631 = vld [vmem:[#allocation14 + $0x168] sm:$0xff]
      %v8632 = vld [vmem:[#allocation14 + $0x170] sm:$0xff]
      %v8633 = vld [vmem:[#allocation14 + $0x178] sm:$0xff]
      %v8634 = vld [vmem:[#allocation14 + $0x180] sm:$0xff]
      %v8635 = vld [vmem:[#allocation14 + $0x188] sm:$0xff]
      %v8636 = vld [vmem:[#allocation14 + $0x190] sm:$0xff]
      %v8637 = vld [vmem:[#allocation14 + $0x198] sm:$0xff]
      %v8638 = vld [vmem:[#allocation14 + $0x1a0] sm:$0xff]
      %v8639 = vld [vmem:[#allocation14 + $0x1a8] sm:$0xff]
      %v8640 = vld [vmem:[#allocation14 + $0x1b0] sm:$0xff]
      %v8641 = vld [vmem:[#allocation14 + $0x1b8] sm:$0xff]
      %v8642 = vld [vmem:[#allocation14 + $0x1c0] sm:$0xff]
      %v8643 = vld [vmem:[#allocation14 + $0x1c8] sm:$0xff]
      %v8644 = vld [vmem:[#allocation14 + $0x1d0] sm:$0xff]
      %v8645 = vld [vmem:[#allocation14 + $0x1d8] sm:$0xff]
      %v8646 = vld [vmem:[#allocation14 + $0x1e0] sm:$0xff]
      %v8647 = vld [vmem:[#allocation14 + $0x1e8] sm:$0xff]
      %v8648 = vld [vmem:[#allocation14 + $0x1f0] sm:$0xff]
      %v8649 = vld [vmem:[#allocation14 + $0x1f8] sm:$0xff]
      %v8651 = vlaneseq
      %v8652 = vshrl.u32 %v8651, 7
      %v8653 = vsub.s32 0, %v8652
      %v8654 = vrot.slane %v1675, %v8653
      %v8655 = vlaneseq
      %v8656 = vshrl.u32 %v8655, 7
      %v8657 = vsub.s32 1, %v8656
      %v8658 = vrot.slane %v1675, %v8657
      %8661 = vmatprep.subr.mxu0 %v8587
      %8662 = vmatpush1.msra.mxu0 %v8586
      %8663 = vmatprep.subr.mxu0 %v8589
      %8664 = vmatpush1.msra.mxu0 %v8588
      %8665 = vmatprep.subr.mxu0 %v8591
      %8666 = vmatpush1.msra.mxu0 %v8590
      %8667 = vmatprep.subr.mxu0 %v8593
      %8668 = vmatpush1.msra.mxu0 %v8592
      %8669 = vmatprep.subr.mxu0 %v8595
      %8670 = vmatpush1.msra.mxu0 %v8594
      %8671 = vmatprep.subr.mxu0 %v8597
      %8672 = vmatpush1.msra.mxu0 %v8596
      %8673 = vmatprep.subr.mxu0 %v8599
      %8674 = vmatpush1.msra.mxu0 %v8598
      %8675 = vmatprep.subr.mxu0 %v8601
      %8676 = vmatpush1.msra.mxu0 %v8600
      %8677 = vmatprep.subr.mxu0 %v8603
      %8678 = vmatpush1.msra.mxu0 %v8602
      %8679 = vmatprep.subr.mxu0 %v8605
      %8680 = vmatpush1.msra.mxu0 %v8604
      %8681 = vmatprep.subr.mxu0 %v8607
      %8682 = vmatpush1.msra.mxu0 %v8606
      %8683 = vmatprep.subr.mxu0 %v8609
      %8684 = vmatpush1.msra.mxu0 %v8608
      %8685 = vmatprep.subr.mxu0 %v8611
      %8686 = vmatpush1.msra.mxu0 %v8610
      %8687 = vmatprep.subr.mxu0 %v8613
      %8688 = vmatpush1.msra.mxu0 %v8612
      %8689 = vmatprep.subr.mxu0 %v8615
      %8690 = vmatpush1.msra.mxu0 %v8614
      %8691 = vmatprep.subr.mxu0 %v8617
      %8692 = vmatpush1.msra.mxu0 %v8616
      %8693 = vmatprep.subr.mxu0 %v8619
      %8694 = vmatpush1.msra.mxu0 %v8618
      %8695 = vmatprep.subr.mxu0 %v8621
      %8696 = vmatpush1.msra.mxu0 %v8620
      %8697 = vmatprep.subr.mxu0 %v8623
      %8698 = vmatpush1.msra.mxu0 %v8622
      %8699 = vmatprep.subr.mxu0 %v8625
      %8700 = vmatpush1.msra.mxu0 %v8624
      %8701 = vmatprep.subr.mxu0 %v8627
      %8702 = vmatpush1.msra.mxu0 %v8626
      %8703 = vmatprep.subr.mxu0 %v8629
      %8704 = vmatpush1.msra.mxu0 %v8628
      %8705 = vmatprep.subr.mxu0 %v8631
      %8706 = vmatpush1.msra.mxu0 %v8630
      %8707 = vmatprep.subr.mxu0 %v8633
      %8708 = vmatpush1.msra.mxu0 %v8632
      %8709 = vmatprep.subr.mxu0 %v8635
      %8710 = vmatpush1.msra.mxu0 %v8634
      %8711 = vmatprep.subr.mxu0 %v8637
      %8712 = vmatpush1.msra.mxu0 %v8636
      %8713 = vmatprep.subr.mxu0 %v8639
      %8714 = vmatpush1.msra.mxu0 %v8638
      %8715 = vmatprep.subr.mxu0 %v8641
      %8716 = vmatpush1.msra.mxu0 %v8640
      %8717 = vmatprep.subr.mxu0 %v8643
      %8718 = vmatpush1.msra.mxu0 %v8642
      %8719 = vmatprep.subr.mxu0 %v8645
      %8720 = vmatpush1.msra.mxu0 %v8644
      %8721 = vmatprep.subr.mxu0 %v8647
      %8722 = vmatpush1.msra.mxu0 %v8646
      %8723 = vmatprep.subr.mxu0 %v8649
      %8724 = vmatpush1.msra.mxu0 %v8648
      %8725 = vmatprep.mubr.f32.mxu0 %v8584
      %8726 = vmatmul.mubr.f32.gmra.mrb[0].mxu0 %v8569
      %v8727 = vpop.f32.mrb[0].mxu0
      %v8728 = vadd.f32 %v8654, %v8727
      %v8729 = vpop.f32.mrb[0].mxu0
      %v8730 = vadd.f32 %v8658, %v8729
      %8731 = vdwg.mxu0
      %v8732 = vxor.u32 %v8728, 2147483648
      %v8733 = vxor.u32 %v8730, 2147483648
      %v8734 = vmul.f32 %v8732, 1.442695
      %v8735 = vpow.pop %v8734
      %v8736 = vmul.f32 %v8733, 1.442695
      %v8737 = vpow.pop %v8736
      %v8738 = vadd.f32 %v8735, 1.0
      %v8739 = vadd.f32 %v8737, 1.0
      %v8740 = vrcp.pop %v8738
      %v8741 = vmul.f32 1.0, %v8740
      %v8742 = vrcp.pop %v8739
      %v8743 = vmul.f32 1.0, %v8742
      %s8744 = smul.u32 %s1678, 2
      %s8745 = smul.addr %s8744, 8
      %s8746 = scalar_lea.vmem [#allocation20], %s8745
      %8747 = vst [vmem:[%s8746] sm:$0xff] %v8741
      %8748 = vst [vmem:[%s8746 + $0x8] sm:$0xff] %v8743
      %v8749 = vmul.f32 %v8741, %v8569
      %v8750 = vmul.f32 %v8743, %v8584
      %v8751 = vld [vmem:[#allocation16] sm:$0xff]
      %v8752 = vld [vmem:[#allocation16 + $0x8] sm:$0xff]
      %v8753 = vld [vmem:[#allocation16 + $0x10] sm:$0xff]
      %v8754 = vld [vmem:[#allocation16 + $0x18] sm:$0xff]
      %v8755 = vld [vmem:[#allocation16 + $0x20] sm:$0xff]
      %v8756 = vld [vmem:[#allocation16 + $0x28] sm:$0xff]
      %v8757 = vld [vmem:[#allocation16 + $0x30] sm:$0xff]
      %v8758 = vld [vmem:[#allocation16 + $0x38] sm:$0xff]
      %v8759 = vld [vmem:[#allocation16 + $0x40] sm:$0xff]
      %v8760 = vld [vmem:[#allocation16 + $0x48] sm:$0xff]
      %v8761 = vld [vmem:[#allocation16 + $0x50] sm:$0xff]
      %v8762 = vld [vmem:[#allocation16 + $0x58] sm:$0xff]
      %v8763 = vld [vmem:[#allocation16 + $0x60] sm:$0xff]
      %v8764 = vld [vmem:[#allocation16 + $0x68] sm:$0xff]
      %v8765 = vld [vmem:[#allocation16 + $0x70] sm:$0xff]
      %v8766 = vld [vmem:[#allocation16 + $0x78] sm:$0xff]
      %v8767 = vld [vmem:[#allocation16 + $0x80] sm:$0xff]
      %v8768 = vld [vmem:[#allocation16 + $0x88] sm:$0xff]
      %v8769 = vld [vmem:[#allocation16 + $0x90] sm:$0xff]
      %v8770 = vld [vmem:[#allocation16 + $0x98] sm:$0xff]
      %v8771 = vld [vmem:[#allocation16 + $0xa0] sm:$0xff]
      %v8772 = vld [vmem:[#allocation16 + $0xa8] sm:$0xff]
      %v8773 = vld [vmem:[#allocation16 + $0xb0] sm:$0xff]
      %v8774 = vld [vmem:[#allocation16 + $0xb8] sm:$0xff]
      %v8775 = vld [vmem:[#allocation16 + $0xc0] sm:$0xff]
      %v8776 = vld [vmem:[#allocation16 + $0xc8] sm:$0xff]
      %v8777 = vld [vmem:[#allocation16 + $0xd0] sm:$0xff]
      %v8778 = vld [vmem:[#allocation16 + $0xd8] sm:$0xff]
      %v8779 = vld [vmem:[#allocation16 + $0xe0] sm:$0xff]
      %v8780 = vld [vmem:[#allocation16 + $0xe8] sm:$0xff]
      %v8781 = vld [vmem:[#allocation16 + $0xf0] sm:$0xff]
      %v8782 = vld [vmem:[#allocation16 + $0xf8] sm:$0xff]
      %v8783 = vld [vmem:[#allocation16 + $0x100] sm:$0xff]
      %v8784 = vld [vmem:[#allocation16 + $0x108] sm:$0xff]
      %v8785 = vld [vmem:[#allocation16 + $0x110] sm:$0xff]
      %v8786 = vld [vmem:[#allocation16 + $0x118] sm:$0xff]
      %v8787 = vld [vmem:[#allocation16 + $0x120] sm:$0xff]
      %v8788 = vld [vmem:[#allocation16 + $0x128] sm:$0xff]
      %v8789 = vld [vmem:[#allocation16 + $0x130] sm:$0xff]
      %v8790 = vld [vmem:[#allocation16 + $0x138] sm:$0xff]
      %v8791 = vld [vmem:[#allocation16 + $0x140] sm:$0xff]
      %v8792 = vld [vmem:[#allocation16 + $0x148] sm:$0xff]
      %v8793 = vld [vmem:[#allocation16 + $0x150] sm:$0xff]
      %v8794 = vld [vmem:[#allocation16 + $0x158] sm:$0xff]
      %v8795 = vld [vmem:[#allocation16 + $0x160] sm:$0xff]
      %v8796 = vld [vmem:[#allocation16 + $0x168] sm:$0xff]
      %v8797 = vld [vmem:[#allocation16 + $0x170] sm:$0xff]
      %v8798 = vld [vmem:[#allocation16 + $0x178] sm:$0xff]
      %v8799 = vld [vmem:[#allocation16 + $0x180] sm:$0xff]
      %v8800 = vld [vmem:[#allocation16 + $0x188] sm:$0xff]
      %v8801 = vld [vmem:[#allocation16 + $0x190] sm:$0xff]
      %v8802 = vld [vmem:[#allocation16 + $0x198] sm:$0xff]
      %v8803 = vld [vmem:[#allocation16 + $0x1a0] sm:$0xff]
      %v8804 = vld [vmem:[#allocation16 + $0x1a8] sm:$0xff]
      %v8805 = vld [vmem:[#allocation16 + $0x1b0] sm:$0xff]
      %v8806 = vld [vmem:[#allocation16 + $0x1b8] sm:$0xff]
      %v8807 = vld [vmem:[#allocation16 + $0x1c0] sm:$0xff]
      %v8808 = vld [vmem:[#allocation16 + $0x1c8] sm:$0xff]
      %v8809 = vld [vmem:[#allocation16 + $0x1d0] sm:$0xff]
      %v8810 = vld [vmem:[#allocation16 + $0x1d8] sm:$0xff]
      %v8811 = vld [vmem:[#allocation16 + $0x1e0] sm:$0xff]
      %v8812 = vld [vmem:[#allocation16 + $0x1e8] sm:$0xff]
      %v8813 = vld [vmem:[#allocation16 + $0x1f0] sm:$0xff]
      %v8814 = vld [vmem:[#allocation16 + $0x1f8] sm:$0xff]
      %v8815 = vld [vmem:[#allocation16 + $0x200] sm:$0xff]
      %v8816 = vld [vmem:[#allocation16 + $0x208] sm:$0xff]
      %v8817 = vld [vmem:[#allocation16 + $0x210] sm:$0xff]
      %v8818 = vld [vmem:[#allocation16 + $0x218] sm:$0xff]
      %v8819 = vld [vmem:[#allocation16 + $0x220] sm:$0xff]
      %v8820 = vld [vmem:[#allocation16 + $0x228] sm:$0xff]
      %v8821 = vld [vmem:[#allocation16 + $0x230] sm:$0xff]
      %v8822 = vld [vmem:[#allocation16 + $0x238] sm:$0xff]
      %v8823 = vld [vmem:[#allocation16 + $0x240] sm:$0xff]
      %v8824 = vld [vmem:[#allocation16 + $0x248] sm:$0xff]
      %v8825 = vld [vmem:[#allocation16 + $0x250] sm:$0xff]
      %v8826 = vld [vmem:[#allocation16 + $0x258] sm:$0xff]
      %v8827 = vld [vmem:[#allocation16 + $0x260] sm:$0xff]
      %v8828 = vld [vmem:[#allocation16 + $0x268] sm:$0xff]
      %v8829 = vld [vmem:[#allocation16 + $0x270] sm:$0xff]
      %v8830 = vld [vmem:[#allocation16 + $0x278] sm:$0xff]
      %v8831 = vld [vmem:[#allocation16 + $0x280] sm:$0xff]
      %v8832 = vld [vmem:[#allocation16 + $0x288] sm:$0xff]
      %v8833 = vld [vmem:[#allocation16 + $0x290] sm:$0xff]
      %v8834 = vld [vmem:[#allocation16 + $0x298] sm:$0xff]
      %v8835 = vld [vmem:[#allocation16 + $0x2a0] sm:$0xff]
      %v8836 = vld [vmem:[#allocation16 + $0x2a8] sm:$0xff]
      %v8837 = vld [vmem:[#allocation16 + $0x2b0] sm:$0xff]
      %v8838 = vld [vmem:[#allocation16 + $0x2b8] sm:$0xff]
      %v8839 = vld [vmem:[#allocation16 + $0x2c0] sm:$0xff]
      %v8840 = vld [vmem:[#allocation16 + $0x2c8] sm:$0xff]
      %v8841 = vld [vmem:[#allocation16 + $0x2d0] sm:$0xff]
      %v8842 = vld [vmem:[#allocation16 + $0x2d8] sm:$0xff]
      %v8843 = vld [vmem:[#allocation16 + $0x2e0] sm:$0xff]
      %v8844 = vld [vmem:[#allocation16 + $0x2e8] sm:$0xff]
      %v8845 = vld [vmem:[#allocation16 + $0x2f0] sm:$0xff]
      %v8846 = vld [vmem:[#allocation16 + $0x2f8] sm:$0xff]
      %v8847 = vld [vmem:[#allocation16 + $0x300] sm:$0xff]
      %v8848 = vld [vmem:[#allocation16 + $0x308] sm:$0xff]
      %v8849 = vld [vmem:[#allocation16 + $0x310] sm:$0xff]
      %v8850 = vld [vmem:[#allocation16 + $0x318] sm:$0xff]
      %v8851 = vld [vmem:[#allocation16 + $0x320] sm:$0xff]
      %v8852 = vld [vmem:[#allocation16 + $0x328] sm:$0xff]
      %v8853 = vld [vmem:[#allocation16 + $0x330] sm:$0xff]
      %v8854 = vld [vmem:[#allocation16 + $0x338] sm:$0xff]
      %v8855 = vld [vmem:[#allocation16 + $0x340] sm:$0xff]
      %v8856 = vld [vmem:[#allocation16 + $0x348] sm:$0xff]
      %v8857 = vld [vmem:[#allocation16 + $0x350] sm:$0xff]
      %v8858 = vld [vmem:[#allocation16 + $0x358] sm:$0xff]
      %v8859 = vld [vmem:[#allocation16 + $0x360] sm:$0xff]
      %v8860 = vld [vmem:[#allocation16 + $0x368] sm:$0xff]
      %v8861 = vld [vmem:[#allocation16 + $0x370] sm:$0xff]
      %v8862 = vld [vmem:[#allocation16 + $0x378] sm:$0xff]
      %v8863 = vld [vmem:[#allocation16 + $0x380] sm:$0xff]
      %v8864 = vld [vmem:[#allocation16 + $0x388] sm:$0xff]
      %v8865 = vld [vmem:[#allocation16 + $0x390] sm:$0xff]
      %v8866 = vld [vmem:[#allocation16 + $0x398] sm:$0xff]
      %v8867 = vld [vmem:[#allocation16 + $0x3a0] sm:$0xff]
      %v8868 = vld [vmem:[#allocation16 + $0x3a8] sm:$0xff]
      %v8869 = vld [vmem:[#allocation16 + $0x3b0] sm:$0xff]
      %v8870 = vld [vmem:[#allocation16 + $0x3b8] sm:$0xff]
      %v8871 = vld [vmem:[#allocation16 + $0x3c0] sm:$0xff]
      %v8872 = vld [vmem:[#allocation16 + $0x3c8] sm:$0xff]
      %v8873 = vld [vmem:[#allocation16 + $0x3d0] sm:$0xff]
      %v8874 = vld [vmem:[#allocation16 + $0x3d8] sm:$0xff]
      %v8875 = vld [vmem:[#allocation16 + $0x3e0] sm:$0xff]
      %v8876 = vld [vmem:[#allocation16 + $0x3e8] sm:$0xff]
      %v8877 = vld [vmem:[#allocation16 + $0x3f0] sm:$0xff]
      %v8878 = vld [vmem:[#allocation16 + $0x3f8] sm:$0xff]
      %v8879 = vld [vmem:[#allocation16 + $0x400] sm:$0xff]
      %v8880 = vld [vmem:[#allocation16 + $0x408] sm:$0xff]
      %v8881 = vld [vmem:[#allocation16 + $0x410] sm:$0xff]
      %v8882 = vld [vmem:[#allocation16 + $0x418] sm:$0xff]
      %v8883 = vld [vmem:[#allocation16 + $0x420] sm:$0xff]
      %v8884 = vld [vmem:[#allocation16 + $0x428] sm:$0xff]
      %v8885 = vld [vmem:[#allocation16 + $0x430] sm:$0xff]
      %v8886 = vld [vmem:[#allocation16 + $0x438] sm:$0xff]
      %v8887 = vld [vmem:[#allocation16 + $0x440] sm:$0xff]
      %v8888 = vld [vmem:[#allocation16 + $0x448] sm:$0xff]
      %v8889 = vld [vmem:[#allocation16 + $0x450] sm:$0xff]
      %v8890 = vld [vmem:[#allocation16 + $0x458] sm:$0xff]
      %v8891 = vld [vmem:[#allocation16 + $0x460] sm:$0xff]
      %v8892 = vld [vmem:[#allocation16 + $0x468] sm:$0xff]
      %v8893 = vld [vmem:[#allocation16 + $0x470] sm:$0xff]
      %v8894 = vld [vmem:[#allocation16 + $0x478] sm:$0xff]
      %v8895 = vld [vmem:[#allocation16 + $0x480] sm:$0xff]
      %v8896 = vld [vmem:[#allocation16 + $0x488] sm:$0xff]
      %v8897 = vld [vmem:[#allocation16 + $0x490] sm:$0xff]
      %v8898 = vld [vmem:[#allocation16 + $0x498] sm:$0xff]
      %v8899 = vld [vmem:[#allocation16 + $0x4a0] sm:$0xff]
      %v8900 = vld [vmem:[#allocation16 + $0x4a8] sm:$0xff]
      %v8901 = vld [vmem:[#allocation16 + $0x4b0] sm:$0xff]
      %v8902 = vld [vmem:[#allocation16 + $0x4b8] sm:$0xff]
      %v8903 = vld [vmem:[#allocation16 + $0x4c0] sm:$0xff]
      %v8904 = vld [vmem:[#allocation16 + $0x4c8] sm:$0xff]
      %v8905 = vld [vmem:[#allocation16 + $0x4d0] sm:$0xff]
      %v8906 = vld [vmem:[#allocation16 + $0x4d8] sm:$0xff]
      %v8907 = vld [vmem:[#allocation16 + $0x4e0] sm:$0xff]
      %v8908 = vld [vmem:[#allocation16 + $0x4e8] sm:$0xff]
      %v8909 = vld [vmem:[#allocation16 + $0x4f0] sm:$0xff]
      %v8910 = vld [vmem:[#allocation16 + $0x4f8] sm:$0xff]
      %v8911 = vld [vmem:[#allocation16 + $0x500] sm:$0xff]
      %v8912 = vld [vmem:[#allocation16 + $0x508] sm:$0xff]
      %v8913 = vld [vmem:[#allocation16 + $0x510] sm:$0xff]
      %v8914 = vld [vmem:[#allocation16 + $0x518] sm:$0xff]
      %v8915 = vld [vmem:[#allocation16 + $0x520] sm:$0xff]
      %v8916 = vld [vmem:[#allocation16 + $0x528] sm:$0xff]
      %v8917 = vld [vmem:[#allocation16 + $0x530] sm:$0xff]
      %v8918 = vld [vmem:[#allocation16 + $0x538] sm:$0xff]
      %v8919 = vld [vmem:[#allocation16 + $0x540] sm:$0xff]
      %v8920 = vld [vmem:[#allocation16 + $0x548] sm:$0xff]
      %v8921 = vld [vmem:[#allocation16 + $0x550] sm:$0xff]
      %v8922 = vld [vmem:[#allocation16 + $0x558] sm:$0xff]
      %v8923 = vld [vmem:[#allocation16 + $0x560] sm:$0xff]
      %v8924 = vld [vmem:[#allocation16 + $0x568] sm:$0xff]
      %v8925 = vld [vmem:[#allocation16 + $0x570] sm:$0xff]
      %v8926 = vld [vmem:[#allocation16 + $0x578] sm:$0xff]
      %v8927 = vld [vmem:[#allocation16 + $0x580] sm:$0xff]
      %v8928 = vld [vmem:[#allocation16 + $0x588] sm:$0xff]
      %v8929 = vld [vmem:[#allocation16 + $0x590] sm:$0xff]
      %v8930 = vld [vmem:[#allocation16 + $0x598] sm:$0xff]
      %v8931 = vld [vmem:[#allocation16 + $0x5a0] sm:$0xff]
      %v8932 = vld [vmem:[#allocation16 + $0x5a8] sm:$0xff]
      %v8933 = vld [vmem:[#allocation16 + $0x5b0] sm:$0xff]
      %v8934 = vld [vmem:[#allocation16 + $0x5b8] sm:$0xff]
      %v8935 = vld [vmem:[#allocation16 + $0x5c0] sm:$0xff]
      %v8936 = vld [vmem:[#allocation16 + $0x5c8] sm:$0xff]
      %v8937 = vld [vmem:[#allocation16 + $0x5d0] sm:$0xff]
      %v8938 = vld [vmem:[#allocation16 + $0x5d8] sm:$0xff]
      %v8939 = vld [vmem:[#allocation16 + $0x5e0] sm:$0xff]
      %v8940 = vld [vmem:[#allocation16 + $0x5e8] sm:$0xff]
      %v8941 = vld [vmem:[#allocation16 + $0x5f0] sm:$0xff]
      %v8942 = vld [vmem:[#allocation16 + $0x5f8] sm:$0xff]
      %v8944 = vlaneseq
      %v8945 = vshrl.u32 %v8944, 7
      %v8946 = vsub.s32 0, %v8945
      %v8947 = vrot.slane %v1676, %v8946
      %v8948 = vlaneseq
      %v8949 = vshrl.u32 %v8948, 7
      %v8950 = vsub.s32 1, %v8949
      %v8951 = vrot.slane %v1676, %v8950
      %v8952 = vlaneseq
      %v8953 = vshrl.u32 %v8952, 7
      %v8954 = vsub.s32 2, %v8953
      %v8955 = vrot.slane %v1676, %v8954
      %v8956 = vlaneseq
      %v8957 = vshrl.u32 %v8956, 7
      %v8958 = vsub.s32 3, %v8957
      %v8959 = vrot.slane %v1676, %v8958
      %8964 = vmatprep.subr.mxu0 %v8752
      %8965 = vmatpush1.msra.mxu0 %v8751
      %8966 = vmatprep.subr.mxu0 %v8756
      %8967 = vmatpush1.msra.mxu0 %v8755
      %8968 = vmatprep.subr.mxu0 %v8760
      %8969 = vmatpush1.msra.mxu0 %v8759
      %8970 = vmatprep.subr.mxu0 %v8764
      %8971 = vmatpush1.msra.mxu0 %v8763
      %8972 = vmatprep.subr.mxu0 %v8768
      %8973 = vmatpush1.msra.mxu0 %v8767
      %8974 = vmatprep.subr.mxu0 %v8772
      %8975 = vmatpush1.msra.mxu0 %v8771
      %8976 = vmatprep.subr.mxu0 %v8776
      %8977 = vmatpush1.msra.mxu0 %v8775
      %8978 = vmatprep.subr.mxu0 %v8780
      %8979 = vmatpush1.msra.mxu0 %v8779
      %8980 = vmatprep.subr.mxu0 %v8784
      %8981 = vmatpush1.msra.mxu0 %v8783
      %8982 = vmatprep.subr.mxu0 %v8788
      %8983 = vmatpush1.msra.mxu0 %v8787
      %8984 = vmatprep.subr.mxu0 %v8792
      %8985 = vmatpush1.msra.mxu0 %v8791
      %8986 = vmatprep.subr.mxu0 %v8796
      %8987 = vmatpush1.msra.mxu0 %v8795
      %8988 = vmatprep.subr.mxu0 %v8800
      %8989 = vmatpush1.msra.mxu0 %v8799
      %8990 = vmatprep.subr.mxu0 %v8804
      %8991 = vmatpush1.msra.mxu0 %v8803
      %8992 = vmatprep.subr.mxu0 %v8808
      %8993 = vmatpush1.msra.mxu0 %v8807
      %8994 = vmatprep.subr.mxu0 %v8812
      %8995 = vmatpush1.msra.mxu0 %v8811
      %8996 = vmatprep.subr.mxu0 %v8816
      %8997 = vmatpush1.msra.mxu0 %v8815
      %8998 = vmatprep.subr.mxu0 %v8820
      %8999 = vmatpush1.msra.mxu0 %v8819
      %9000 = vmatprep.subr.mxu0 %v8824
      %9001 = vmatpush1.msra.mxu0 %v8823
      %9002 = vmatprep.subr.mxu0 %v8828
      %9003 = vmatpush1.msra.mxu0 %v8827
      %9004 = vmatprep.subr.mxu0 %v8832
      %9005 = vmatpush1.msra.mxu0 %v8831
      %9006 = vmatprep.subr.mxu0 %v8836
      %9007 = vmatpush1.msra.mxu0 %v8835
      %9008 = vmatprep.subr.mxu0 %v8840
      %9009 = vmatpush1.msra.mxu0 %v8839
      %9010 = vmatprep.subr.mxu0 %v8844
      %9011 = vmatpush1.msra.mxu0 %v8843
      %9012 = vmatprep.subr.mxu0 %v8848
      %9013 = vmatpush1.msra.mxu0 %v8847
      %9014 = vmatprep.subr.mxu0 %v8852
      %9015 = vmatpush1.msra.mxu0 %v8851
      %9016 = vmatprep.subr.mxu0 %v8856
      %9017 = vmatpush1.msra.mxu0 %v8855
      %9018 = vmatprep.subr.mxu0 %v8860
      %9019 = vmatpush1.msra.mxu0 %v8859
      %9020 = vmatprep.subr.mxu0 %v8864
      %9021 = vmatpush1.msra.mxu0 %v8863
      %9022 = vmatprep.subr.mxu0 %v8868
      %9023 = vmatpush1.msra.mxu0 %v8867
      %9024 = vmatprep.subr.mxu0 %v8872
      %9025 = vmatpush1.msra.mxu0 %v8871
      %9026 = vmatprep.subr.mxu0 %v8876
      %9027 = vmatpush1.msra.mxu0 %v8875
      %9028 = vmatprep.mubr.f32.mxu0 %v8750
      %9029 = vmatmul.mubr.f32.gmra.mrb[0].mxu0 %v8749
      %v9030 = vpop.f32.mrb[0].mxu0
      %v9031 = vadd.f32 %v8947, %v9030
      %v9032 = vpop.f32.mrb[0].mxu0
      %v9033 = vadd.f32 %v8951, %v9032
      %9034 = vdwg.mxu0
      %9035 = vmatprep.subr.mxu0 %v8880
      %9036 = vmatpush1.msra.mxu0 %v8879
      %9037 = vmatprep.subr.mxu0 %v8884
      %9038 = vmatpush1.msra.mxu0 %v8883
      %9039 = vmatprep.subr.mxu0 %v8888
      %9040 = vmatpush1.msra.mxu0 %v8887
      %9041 = vmatprep.subr.mxu0 %v8892
      %9042 = vmatpush1.msra.mxu0 %v8891
      %9043 = vmatprep.subr.mxu0 %v8896
      %9044 = vmatpush1.msra.mxu0 %v8895
      %9045 = vmatprep.subr.mxu0 %v8900
      %9046 = vmatpush1.msra.mxu0 %v8899
      %9047 = vmatprep.subr.mxu0 %v8904
      %9048 = vmatpush1.msra.mxu0 %v8903
      %9049 = vmatprep.subr.mxu0 %v8908
      %9050 = vmatpush1.msra.mxu0 %v8907
      %9051 = vmatprep.subr.mxu0 %v8912
      %9052 = vmatpush1.msra.mxu0 %v8911
      %9053 = vmatprep.subr.mxu0 %v8916
      %9054 = vmatpush1.msra.mxu0 %v8915
      %9055 = vmatprep.subr.mxu0 %v8920
      %9056 = vmatpush1.msra.mxu0 %v8919
      %9057 = vmatprep.subr.mxu0 %v8924
      %9058 = vmatpush1.msra.mxu0 %v8923
      %9059 = vmatprep.subr.mxu0 %v8928
      %9060 = vmatpush1.msra.mxu0 %v8927
      %9061 = vmatprep.subr.mxu0 %v8932
      %9062 = vmatpush1.msra.mxu0 %v8931
      %9063 = vmatprep.subr.mxu0 %v8936
      %9064 = vmatpush1.msra.mxu0 %v8935
      %9065 = vmatprep.subr.mxu0 %v8940
      %9066 = vmatpush1.msra.mxu0 %v8939
      %9067 = vmatprep.subr.mxu0 0.0
      %9068 = vmatpush1.msra.mxu0 0.0
      %9069 = vmatprep.subr.mxu0 0.0
      %9070 = vmatpush1.msra.mxu0 0.0
      %9071 = vmatprep.subr.mxu0 0.0
      %9072 = vmatpush1.msra.mxu0 0.0
      %9073 = vmatprep.subr.mxu0 0.0
      %9074 = vmatpush1.msra.mxu0 0.0
      %9075 = vmatprep.subr.mxu0 0.0
      %9076 = vmatpush1.msra.mxu0 0.0
      %9077 = vmatprep.subr.mxu0 0.0
      %9078 = vmatpush1.msra.mxu0 0.0
      %9079 = vmatprep.subr.mxu0 0.0
      %9080 = vmatpush1.msra.mxu0 0.0
      %9081 = vmatprep.subr.mxu0 0.0
      %9082 = vmatpush1.msra.mxu0 0.0
      %9083 = vmatprep.subr.mxu0 0.0
      %9084 = vmatpush1.msra.mxu0 0.0
      %9085 = vmatprep.subr.mxu0 0.0
      %9086 = vmatpush1.msra.mxu0 0.0
      %9087 = vmatprep.subr.mxu0 0.0
      %9088 = vmatpush1.msra.mxu0 0.0
      %9089 = vmatprep.subr.mxu0 0.0
      %9090 = vmatpush1.msra.mxu0 0.0
      %9091 = vmatprep.subr.mxu0 0.0
      %9092 = vmatpush1.msra.mxu0 0.0
      %9093 = vmatprep.subr.mxu0 0.0
      %9094 = vmatpush1.msra.mxu0 0.0
      %9095 = vmatprep.subr.mxu0 0.0
      %9096 = vmatpush1.msra.mxu0 0.0
      %9097 = vmatprep.subr.mxu0 0.0
      %9098 = vmatpush1.msra.mxu0 0.0
      %9099 = vmatprep.mubr.f32.mxu0 0.0
      %9100 = vmatmul.mubr.f32.gmra.mrb[0].mxu0 %v1683
      %v9101 = vpop.f32.mrb[0].mxu0
      %v9102 = vadd.f32 %v9031, %v9101
      %v9103 = vpop.f32.mrb[0].mxu0
      %v9104 = vadd.f32 %v9033, %v9103
      %9105 = vdwg.mxu0
      %9106 = vmatprep.subr.mxu0 %v8754
      %9107 = vmatpush1.msra.mxu0 %v8753
      %9108 = vmatprep.subr.mxu0 %v8758
      %9109 = vmatpush1.msra.mxu0 %v8757
      %9110 = vmatprep.subr.mxu0 %v8762
      %9111 = vmatpush1.msra.mxu0 %v8761
      %9112 = vmatprep.subr.mxu0 %v8766
      %9113 = vmatpush1.msra.mxu0 %v8765
      %9114 = vmatprep.subr.mxu0 %v8770
      %9115 = vmatpush1.msra.mxu0 %v8769
      %9116 = vmatprep.subr.mxu0 %v8774
      %9117 = vmatpush1.msra.mxu0 %v8773
      %9118 = vmatprep.subr.mxu0 %v8778
      %9119 = vmatpush1.msra.mxu0 %v8777
      %9120 = vmatprep.subr.mxu0 %v8782
      %9121 = vmatpush1.msra.mxu0 %v8781
      %9122 = vmatprep.subr.mxu0 %v8786
      %9123 = vmatpush1.msra.mxu0 %v8785
      %9124 = vmatprep.subr.mxu0 %v8790
      %9125 = vmatpush1.msra.mxu0 %v8789
      %9126 = vmatprep.subr.mxu0 %v8794
      %9127 = vmatpush1.msra.mxu0 %v8793
      %9128 = vmatprep.subr.mxu0 %v8798
      %9129 = vmatpush1.msra.mxu0 %v8797
      %9130 = vmatprep.subr.mxu0 %v8802
      %9131 = vmatpush1.msra.mxu0 %v8801
      %9132 = vmatprep.subr.mxu0 %v8806
      %9133 = vmatpush1.msra.mxu0 %v8805
      %9134 = vmatprep.subr.mxu0 %v8810
      %9135 = vmatpush1.msra.mxu0 %v8809
      %9136 = vmatprep.subr.mxu0 %v8814
      %9137 = vmatpush1.msra.mxu0 %v8813
      %9138 = vmatprep.subr.mxu0 %v8818
      %9139 = vmatpush1.msra.mxu0 %v8817
      %9140 = vmatprep.subr.mxu0 %v8822
      %9141 = vmatpush1.msra.mxu0 %v8821
      %9142 = vmatprep.subr.mxu0 %v8826
      %9143 = vmatpush1.msra.mxu0 %v8825
      %9144 = vmatprep.subr.mxu0 %v8830
      %9145 = vmatpush1.msra.mxu0 %v8829
      %9146 = vmatprep.subr.mxu0 %v8834
      %9147 = vmatpush1.msra.mxu0 %v8833
      %9148 = vmatprep.subr.mxu0 %v8838
      %9149 = vmatpush1.msra.mxu0 %v8837
      %9150 = vmatprep.subr.mxu0 %v8842
      %9151 = vmatpush1.msra.mxu0 %v8841
      %9152 = vmatprep.subr.mxu0 %v8846
      %9153 = vmatpush1.msra.mxu0 %v8845
      %9154 = vmatprep.subr.mxu0 %v8850
      %9155 = vmatpush1.msra.mxu0 %v8849
      %9156 = vmatprep.subr.mxu0 %v8854
      %9157 = vmatpush1.msra.mxu0 %v8853
      %9158 = vmatprep.subr.mxu0 %v8858
      %9159 = vmatpush1.msra.mxu0 %v8857
      %9160 = vmatprep.subr.mxu0 %v8862
      %9161 = vmatpush1.msra.mxu0 %v8861
      %9162 = vmatprep.subr.mxu0 %v8866
      %9163 = vmatpush1.msra.mxu0 %v8865
      %9164 = vmatprep.subr.mxu0 %v8870
      %9165 = vmatpush1.msra.mxu0 %v8869
      %9166 = vmatprep.subr.mxu0 %v8874
      %9167 = vmatpush1.msra.mxu0 %v8873
      %9168 = vmatprep.subr.mxu0 %v8878
      %9169 = vmatpush1.msra.mxu0 %v8877
      %9170 = vmatprep.mubr.f32.mxu0 %v8750
      %9171 = vmatmul.mubr.f32.gmra.mrb[0].mxu0 %v8749
      %v9172 = vpop.f32.mrb[0].mxu0
      %v9173 = vadd.f32 %v8955, %v9172
      %v9174 = vpop.f32.mrb[0].mxu0
      %v9175 = vadd.f32 %v8959, %v9174
      %9176 = vdwg.mxu0
      %9177 = vmatprep.subr.mxu0 %v8882
      %9178 = vmatpush1.msra.mxu0 %v8881
      %9179 = vmatprep.subr.mxu0 %v8886
      %9180 = vmatpush1.msra.mxu0 %v8885
      %9181 = vmatprep.subr.mxu0 %v8890
      %9182 = vmatpush1.msra.mxu0 %v8889
      %9183 = vmatprep.subr.mxu0 %v8894
      %9184 = vmatpush1.msra.mxu0 %v8893
      %9185 = vmatprep.subr.mxu0 %v8898
      %9186 = vmatpush1.msra.mxu0 %v8897
      %9187 = vmatprep.subr.mxu0 %v8902
      %9188 = vmatpush1.msra.mxu0 %v8901
      %9189 = vmatprep.subr.mxu0 %v8906
      %9190 = vmatpush1.msra.mxu0 %v8905
      %9191 = vmatprep.subr.mxu0 %v8910
      %9192 = vmatpush1.msra.mxu0 %v8909
      %9193 = vmatprep.subr.mxu0 %v8914
      %9194 = vmatpush1.msra.mxu0 %v8913
      %9195 = vmatprep.subr.mxu0 %v8918
      %9196 = vmatpush1.msra.mxu0 %v8917
      %9197 = vmatprep.subr.mxu0 %v8922
      %9198 = vmatpush1.msra.mxu0 %v8921
      %9199 = vmatprep.subr.mxu0 %v8926
      %9200 = vmatpush1.msra.mxu0 %v8925
      %9201 = vmatprep.subr.mxu0 %v8930
      %9202 = vmatpush1.msra.mxu0 %v8929
      %9203 = vmatprep.subr.mxu0 %v8934
      %9204 = vmatpush1.msra.mxu0 %v8933
      %9205 = vmatprep.subr.mxu0 %v8938
      %9206 = vmatpush1.msra.mxu0 %v8937
      %9207 = vmatprep.subr.mxu0 %v8942
      %9208 = vmatpush1.msra.mxu0 %v8941
      %9209 = vmatprep.subr.mxu0 0.0
      %9210 = vmatpush1.msra.mxu0 0.0
      %9211 = vmatprep.subr.mxu0 0.0
      %9212 = vmatpush1.msra.mxu0 0.0
      %9213 = vmatprep.subr.mxu0 0.0
      %9214 = vmatpush1.msra.mxu0 0.0
      %9215 = vmatprep.subr.mxu0 0.0
      %9216 = vmatpush1.msra.mxu0 0.0
      %9217 = vmatprep.subr.mxu0 0.0
      %9218 = vmatpush1.msra.mxu0 0.0
      %9219 = vmatprep.subr.mxu0 0.0
      %9220 = vmatpush1.msra.mxu0 0.0
      %9221 = vmatprep.subr.mxu0 0.0
      %9222 = vmatpush1.msra.mxu0 0.0
      %9223 = vmatprep.subr.mxu0 0.0
      %9224 = vmatpush1.msra.mxu0 0.0
      %9225 = vmatprep.subr.mxu0 0.0
      %9226 = vmatpush1.msra.mxu0 0.0
      %9227 = vmatprep.subr.mxu0 0.0
      %9228 = vmatpush1.msra.mxu0 0.0
      %9229 = vmatprep.subr.mxu0 0.0
      %9230 = vmatpush1.msra.mxu0 0.0
      %9231 = vmatprep.subr.mxu0 0.0
      %9232 = vmatpush1.msra.mxu0 0.0
      %9233 = vmatprep.subr.mxu0 0.0
      %9234 = vmatpush1.msra.mxu0 0.0
      %9235 = vmatprep.subr.mxu0 0.0
      %9236 = vmatpush1.msra.mxu0 0.0
      %9237 = vmatprep.subr.mxu0 0.0
      %9238 = vmatpush1.msra.mxu0 0.0
      %9239 = vmatprep.subr.mxu0 0.0
      %9240 = vmatpush1.msra.mxu0 0.0
      %9241 = vmatprep.mubr.f32.mxu0 0.0
      %9242 = vmatmul.mubr.f32.gmra.mrb[0].mxu0 %v1683
      %v9243 = vpop.f32.mrb[0].mxu0
      %v9244 = vadd.f32 %v9173, %v9243
      %v9245 = vpop.f32.mrb[0].mxu0
      %v9246 = vadd.f32 %v9175, %v9245
      %9247 = vdwg.mxu0
      %v9248 = vxor.u32 %v9102, 2147483648
      %v9249 = vmul.f32 %v9248, 1.442695
      %v9250 = vpow.pop %v9249
      %v9251 = vadd.f32 %v9250, 1.0
      %v9252 = vrcp.pop %v9251
      %v9253 = vmul.f32 1.0, %v9252
      %v9254 = vxor.u32 %v9104, 2147483648
      %v9255 = vmul.f32 %v9254, 1.442695
      %v9256 = vpow.pop %v9255
      %v9257 = vadd.f32 %v9256, 1.0
      %v9258 = vrcp.pop %v9257
      %v9259 = vmul.f32 1.0, %v9258
      %v9260 = vtanh.pop %v9244
      %v9261 = vxor.u32 %v9246, 2147483648
      %v9262 = vmul.f32 %v9261, 1.442695
      %v9263 = vpow.pop %v9262
      %v9264 = vadd.f32 %v9263, 1.0
      %v9265 = vrcp.pop %v9264
      %v9266 = vmul.f32 1.0, %v9265
      %v9267 = vmul.f32 %v9259, %v1684
      %v9268 = vmul.f32 %v9253, %v9260
      %v9269 = vadd.f32 %v9267, %v9268
      %v9270 = vtanh.pop %v9269
      %v9271 = vmul.f32 %v9266, %v9270
      %s9272 = scalar_lea.vmem [#allocation17], %s1905
      %9273 = vst [vmem:[%s9272] sm:$0xff] %v9271
    $region94: #{tpu_custom_call.1} parent=1 // loop_footer
      %s1682 = sadd.s32 1, %s1678
    $region95: #{tpu_custom_call.1} parent=1 // loop_footer_branch
      %1677 = sbr.rel target = $region91
    $region96: #{tpu_custom_call.1} parent=1 // loop_exit
      _
    // Predicated region
    $region97: #{tpu_custom_call.1} parent=1 // pred_check
      _
    $region98: #{tpu_custom_call.1} parent=1 // pred_check_branch
      %9275 = sbr.rel (0) target = $region100
    $region99: #{tpu_custom_call.1} parent=1 // pred_region
      %s9277 = ssub.s32 8192, 8192
      %9278 = vsyncadd [#allocation7], %s9277
      %s9279 = sshll.u32 [#allocation17], 4
      %s9280 = int_to_ptr.vmem [resolvable:$true] %s9279
      %9285 = dma.vmem_to_hbm [thread:$0]  %s9280, 8192, %s15, [#allocation7], 128, 128, 8
    $region100: #{tpu_custom_call.1} parent=1 // pred_fallthru
      _
    // Predicated region
    $region101: #{tpu_custom_call.1} parent=1 // pred_check
      _
    $region102: #{tpu_custom_call.1} parent=1 // pred_check_branch
      %9287 = sbr.rel (0) target = $region104
    $region103: #{tpu_custom_call.1} parent=1 // pred_region
      %s9289 = ssub.s32 8192, 8192
      %9290 = vsyncadd [#allocation19], %s9289
      %s9291 = sshll.u32 [#allocation18], 4
      %s9292 = int_to_ptr.vmem [resolvable:$true] %s9291
      %9297 = dma.vmem_to_hbm [thread:$0]  %s9292, 8192, %s16, [#allocation19], 128, 128, 8
    $region104: #{tpu_custom_call.1} parent=1 // pred_fallthru
      _
    // Predicated region
    $region105: #{tpu_custom_call.1} parent=1 // pred_check
      _
    $region106: #{tpu_custom_call.1} parent=1 // pred_check_branch
      %9299 = sbr.rel (0) target = $region108
    $region107: #{tpu_custom_call.1} parent=1 // pred_region
      %s9301 = ssub.s32 16384, 16384
      %9302 = vsyncadd [#allocation19], %s9301
      %s9303 = sshll.u32 [#allocation20], 4
      %s9304 = int_to_ptr.vmem [resolvable:$true] %s9303
      %9309 = dma.vmem_to_hbm [thread:$0]  %s9304, 16384, %s17, [#allocation19], 256, 256, 16
    $region108: #{tpu_custom_call.1} parent=1 // pred_fallthru
      _
    // Predicated region
    $region109: #{tpu_custom_call.1} parent=1 // pred_check
      _
    $region110: #{tpu_custom_call.1} parent=1 // pred_check_branch
      %9311 = sbr.rel (0) target = $region112
    $region111: #{tpu_custom_call.1} parent=1 // pred_region
      %9312 = dma.done [#allocation7], 8192
    $region112: #{tpu_custom_call.1} parent=1 // pred_fallthru
      _
    // Predicated region
    $region113: #{tpu_custom_call.1} parent=1 // pred_check
      _
    $region114: #{tpu_custom_call.1} parent=1 // pred_check_branch
      %9314 = sbr.rel (0) target = $region116
    $region115: #{tpu_custom_call.1} parent=1 // pred_region
      %9315 = dma.done [#allocation19], 8192
    $region116: #{tpu_custom_call.1} parent=1 // pred_fallthru
      _
    // Predicated region
    $region117: #{tpu_custom_call.1} parent=1 // pred_check
      _
    $region118: #{tpu_custom_call.1} parent=1 // pred_check_branch
      %9317 = sbr.rel (0) target = $region120
    $region119: #{tpu_custom_call.1} parent=1 // pred_region
      %9318 = dma.done [#allocation19], 16384
    $region120: #{tpu_custom_call.1} parent=1 // pred_fallthru
      _
    %9319 = vsyncpa [#allocation6], 1
    %9320 = vsyncpa [#allocation9], 1
    %9321 = vsyncpa [#allocation12], 1
    %9322 = vsyncpa [#allocation15], 1
    %9323 = vsyncpa [#allocation7], 1
    %9324 = vsyncpa [#allocation19], 1

</llo_original>
